<compile_context>
chip_gen: v7x
topology: tpu7x:2x2x1
jax: 0.10.0
libtpu: 0.0.40
codegen_flags: <defaults>
</compile_context>

<pallas_src>
import functools

import jax
import jax.numpy as jnp
from jax import lax
from jax.experimental import pallas as pl
from jax.experimental.pallas import tpu as pltpu

NEG_INF = 1e9  # matches `-self.hparams.inf` masked-fill semantics


def _pick_vmem_limit_bytes():
  """Per-generation scoped-VMEM budget (v7x: 64 MiB physical; v5e/v6e: 128)."""
  try:
    cap = int(getattr(pltpu.get_tpu_info(), "vmem_capacity_bytes", 0))
  except Exception:  # pragma: no cover - defensive on exotic backends
    cap = 0
  if cap >= (100 << 20):
    return 100 << 20          # v5e / v6e: exploit the 128 MiB VMEM
  return 48 << 20             # v7x (or unknown): stay well under 64 MiB


# ----------------------------------------------------------------------------
# Recurrent kernel: one grid step == TT decoder time steps (statically
# unrolled), output packed lane-dense as one [BP, TT*D] slab per grid step.
# ----------------------------------------------------------------------------
def _decoder_scan_kernel(
    # inputs
    trg_ref,        # [TT, BP, Dw]   per-grid-step block of time-major trg_emb
    x_enc_ref,      # [BP, L, 2D]
    x_enc_kb_ref,   # [BP, L, D]     (b_trg already folded in)
    x_mask_ref,     # [BP, L]        (>0  => masked)
    h0_ref,         # [BP, D]
    c0_ref,         # [BP, D]
    w_emb_ref,      # [Dw, 4D]       fused LSTM weights for y_emb
    w_feed_ref,     # [2D, 4D]       fused LSTM weights for input_feed
    w_hh_ref,       # [D, 4D]        fused LSTM weights for h
    b_gate_ref,     # [1, 4D]        b_ih + b_hh
    w_trg_ref,      # [D, D]         MlpAttn w_trg (transposed, bias folded)
    w_att_ref,      # [1, 1, D]      MlpAttn w_att weight
    w_cr_h_ref,     # [D, D]         ctx_to_readout rows for h
    w_cr_ctx_ref,   # [2D, D]        ctx_to_readout rows for ctx
    # output
    out_ref,        # [BP, TT*D]     lane-packed pre_readout slab
    # scratch (carried across grid steps)
    h_scr,          # [BP, D]
    c_scr,          # [BP, D]
    feed_scr,       # [BP, 2D]
):
  tt = trg_ref.shape[0]
  D = h_scr.shape[1]

  @pl.when(pl.program_id(0) == 0)
  def _init():
    h_scr[...] = h0_ref[...]
    c_scr[...] = c0_ref[...]
    feed_scr[...] = jnp.zeros_like(feed_scr)

  # Small loop-invariant activations hoisted; the weight matrices are read
  # straight from their refs inside the loop so only state/activations stay
  # live in vregs when D is scaled up.
  x_enc = x_enc_ref[...]
  x_enc_kb = x_enc_kb_ref[...]
  masked = x_mask_ref[...] > 0.0
  w_att = w_att_ref[...]
  b_gate = b_gate_ref[...]
  cdt = w_trg_ref.dtype   # MXU operand dtype (fp32 here; bf16 optional)

  h = h_scr[...]
  c = c_scr[...]
  feed = feed_scr[...]
  outs = []

  # Statically unrolled TT-step loop (TT small, so live ranges stay bounded).
  for s in range(tt):
    y_emb = trg_ref[s].astype(cdt)                           # [BP, Dw]

    # ----- LSTMCell: ONE fused [BP, 4D] pre-activation per operand -----
    pre = (jnp.dot(y_emb, w_emb_ref[...],
                   preferred_element_type=jnp.float32)
           + jnp.dot(feed.astype(cdt), w_feed_ref[...],
                     preferred_element_type=jnp.float32)
           + jnp.dot(h.astype(cdt), w_hh_ref[...],
                     preferred_element_type=jnp.float32)
           + b_gate)                                         # [BP, 4D]
    i_g = jax.nn.sigmoid(pre[:, 0:D])                        # static lane slices
    f_g = jax.nn.sigmoid(pre[:, D:2 * D])
    g_g = jnp.tanh(pre[:, 2 * D:3 * D])
    o_g = jax.nn.sigmoid(pre[:, 3 * D:4 * D])
    c = f_g * c + i_g * g_g
    h = o_g * jnp.tanh(c)                                    # [BP, D]

    # ----- MlpAttn(h, x_enc_k, x_enc, attn_mask=x_mask) -----
    q_proj = jnp.dot(h.astype(cdt), w_trg_ref[...],
                     preferred_element_type=jnp.float32)     # [BP, D]
    att_hid = jnp.tanh(x_enc_kb + q_proj[:, None, :])        # [BP, L, D]
    # b_att is a scalar added uniformly before softmax -> softmax-invariant,
    # so it is dropped from the kernel (exactly equivalent).
    scores = jnp.sum(att_hid * w_att, axis=-1)               # [BP, L]
    scores = jnp.where(masked, -NEG_INF, scores)
    scores = scores - jnp.max(scores, axis=-1, keepdims=True)
    p = jnp.exp(scores)
    p = p * pl.reciprocal(jnp.sum(p, axis=-1, keepdims=True), approx=True)
    # NOTE: padded batch rows run un-masked attention over zero-padded x_enc;
    # they are cropped in the wrapper (do NOT pad the mask with 1s, or the
    # softmax denominator would be 0).
    ctx = jnp.sum(p[:, :, None] * x_enc, axis=1)             # [BP, 2D]
    feed = ctx

    # ----- pre_readout only; big V-wide readout matmul is hoisted -----
    pre_readout = jnp.tanh(
        jnp.dot(h.astype(cdt), w_cr_h_ref[...],
                preferred_element_type=jnp.float32)
        + jnp.dot(ctx.astype(cdt), w_cr_ctx_ref[...],
                  preferred_element_type=jnp.float32))       # [BP, D]
    outs.append(pre_readout)

  # ONE lane-dense store per grid step ([BP, TT*D] slab).
  out_ref[...] = jnp.concatenate(outs, axis=-1).astype(out_ref.dtype)
  h_scr[...] = h
  c_scr[...] = c
  feed_scr[...] = feed


# ----------------------------------------------------------------------------
# Hoisted readout: (B*T, D) x (D, V) matmul tiled over rows AND vocab.
# ----------------------------------------------------------------------------
def _readout_matmul_kernel(x_ref, w_ref, o_ref):
  o_ref[...] = jnp.dot(x_ref[...], w_ref[...],
                       preferred_element_type=jnp.float32).astype(o_ref.dtype)


def _readout_matmul(x, w, vmem_limit):
  """x: [M, D], w: [D, V] -> [M, V] float32 (tiled over M and V)."""
  M, Dk = x.shape
  V = w.shape[1]

  tm = min(512, -(-M // 8) * 8)            # row tile, multiple of 8 sublanes
  Mp = -(-M // tm) * tm
  if Mp != M:
    x = jnp.pad(x, ((0, Mp - M), (0, 0)))

  if V <= 256:
    tn, Vp = V, V                          # single full-width N tile
  else:
    tn = 256                               # 256-wide MXU / lane-dense stores
    Vp = -(-V // tn) * tn
    if Vp != V:
      w = jnp.pad(w, ((0, 0), (0, Vp - V)))

  out = pl.pallas_call(
      _readout_matmul_kernel,
      out_shape=jax.ShapeDtypeStruct((Mp, Vp), jnp.float32),
      grid_spec=pltpu.PrefetchScalarGridSpec(
          num_scalar_prefetch=0,
          grid=(Mp // tm, Vp // tn),
          in_specs=[pl.BlockSpec((tm, Dk), lambda i, j: (i, 0)),
                    pl.BlockSpec((Dk, tn), lambda i, j: (0, j))],
          out_specs=pl.BlockSpec((tm, tn), lambda i, j: (i, j))),
      compiler_params=pltpu.CompilerParams(
          dimension_semantics=("parallel", "parallel"),
          vmem_limit_bytes=vmem_limit),
  )(x, w)
  return out[:M, :V]


# ----------------------------------------------------------------------------
# Wrapper
# ----------------------------------------------------------------------------
@functools.partial(jax.jit, static_argnames=("matmul_dtype",))
def decoder_forward(trg_emb, x_enc, x_enc_k, x_mask, h0, c0, params,
                    matmul_dtype=jnp.float32):
  """trg_emb: [B, T, Dw]; returns logits [B, T, V] (PyTorch convention)."""
  B, T, Dw = trg_emb.shape
  D = h0.shape[1]
  V = params["w_ro_T"].shape[1]
  vmem_limit = _pick_vmem_limit_bytes()

  # ---- sublane-pad batch to a multiple of 8 (cropped after) ----
  BP = -(-B // 8) * 8
  pad_b = BP - B
  if pad_b:
    pad0 = lambda a: jnp.pad(a, ((0, pad_b),) + ((0, 0),) * (a.ndim - 1))
    trg_emb = pad0(trg_emb)
    x_enc = pad0(x_enc)
    x_enc_k = pad0(x_enc_k)
    x_mask = pad0(x_mask)   # padded rows stay UN-masked (see kernel note)
    h0 = pad0(h0)
    c0 = pad0(c0)

  # fold b_trg into the attention keys (removes a per-step broadcast add)
  x_enc_kb = x_enc_k + params["b_trg"]                        # [BP, L, D]

  # ---- fused (un-split) gate weights: [in, 4D] stacks ----
  w_emb = params["w_ih_T"][:Dw].astype(matmul_dtype)          # [Dw, 4D]
  w_feed = params["w_ih_T"][Dw:].astype(matmul_dtype)         # [2D, 4D]
  w_hh = params["w_hh_T"].astype(matmul_dtype)                # [D, 4D]
  b_gate = (params["b_ih"] + params["b_hh"]).reshape(1, 4 * D)  # folded biases
  w_trg = params["w_trg_T"].astype(matmul_dtype)              # [D, D]
  w_att3 = params["w_att"].reshape(1, 1, D)                   # [1, 1, D]
  w_cr_h = params["w_cr_T"][:D].astype(matmul_dtype)          # [D, D]
  w_cr_ctx = params["w_cr_T"][D:].astype(matmul_dtype)        # [2D, D]

  # ---- time steps per grid iteration (unrolled inside the kernel) ----
  TT = min(T, 8)
  if (TT * D) % 128 != 0 and TT < T:
    # keep the packed output store lane-dense (multiple of 128) when grid > 1
    TT = T
  Tp = -(-T // TT) * TT

  trg_emb_t = jnp.transpose(trg_emb, (1, 0, 2))               # [T, BP, Dw]
  if Tp != T:
    trg_emb_t = jnp.pad(trg_emb_t, ((0, Tp - T), (0, 0), (0, 0)))

  def full(arr):
    n = arr.ndim
    return pl.BlockSpec(arr.shape, lambda g, _n=n: (0,) * _n)

  in_specs = [
      pl.BlockSpec((TT, BP, Dw), lambda g: (g, 0, 0)),        # streamed trg
      full(x_enc), full(x_enc_kb), full(x_mask), full(h0), full(c0),
      full(w_emb), full(w_feed), full(w_hh), full(b_gate),
      full(w_trg), full(w_att3), full(w_cr_h), full(w_cr_ctx),
  ]
  # lane-packed output: one [BP, TT*D] slab per grid step
  out_spec = pl.BlockSpec((BP, TT * D), lambda g: (0, g))

  pre_lane = pl.pallas_call(
      _decoder_scan_kernel,
      out_shape=jax.ShapeDtypeStruct((BP, Tp * D), jnp.float32),
      grid_spec=pltpu.PrefetchScalarGridSpec(
          num_scalar_prefetch=0,
          grid=(Tp // TT,),
          in_specs=in_specs,
          out_specs=out_spec,
          scratch_shapes=[
              pltpu.VMEM((BP, D), jnp.float32),               # h
              pltpu.VMEM((BP, D), jnp.float32),               # c
              pltpu.VMEM((BP, 2 * D), jnp.float32),           # input_feed
          ]),
      compiler_params=pltpu.CompilerParams(
          dimension_semantics=("arbitrary",),                 # true recurrence
          vmem_limit_bytes=vmem_limit),
  )(trg_emb_t, x_enc, x_enc_kb, x_mask, h0, c0,
    w_emb, w_feed, w_hh, b_gate, w_trg, w_att3, w_cr_h, w_cr_ctx)

  # ---- unpack lanes (batch-major already, no transpose needed) ----
  pre_btd = pre_lane.reshape(BP, Tp, D)[:B, :T]               # [B, T, D]
  logits = _readout_matmul(
      pre_btd.reshape(B * T, D).astype(matmul_dtype),
      params["w_ro_T"].astype(matmul_dtype), vmem_limit)      # [B*T, V]
  return logits.reshape(B, T, V)


# ----------------------------------------------------------------------------
# Pure-JAX reference (mirrors the PyTorch forward exactly)
# ----------------------------------------------------------------------------
def decoder_ref(trg_emb, x_enc, x_enc_k, x_mask, h0, c0, p):
  B, T, _ = trg_emb.shape
  D = h0.shape[1]
  h, c = h0, c0
  feed = jnp.zeros((B, 2 * D), jnp.float32)
  outs = []
  for t in range(T):
    y = jnp.concatenate([trg_emb[:, t, :], feed], axis=1)
    gates = y @ p["w_ih_T"] + p["b_ih"] + h @ p["w_hh_T"] + p["b_hh"]
    i_g = jax.nn.sigmoid(gates[:, :D])
    f_g = jax.nn.sigmoid(gates[:, D:2 * D])
    g_g = jnp.tanh(gates[:, 2 * D:3 * D])
    o_g = jax.nn.sigmoid(gates[:, 3 * D:])
    c = f_g * c + i_g * g_g
    h = o_g * jnp.tanh(c)
    qp = h @ p["w_trg_T"] + p["b_trg"]
    ah = jnp.tanh(x_enc_k + qp[:, None, :])
    sc = jnp.sum(ah * p["w_att"][None, :, :], axis=-1) + p["b_att"]
    sc = jnp.where(x_mask > 0.0, -NEG_INF, sc)
    w = jax.nn.softmax(sc, axis=-1)
    ctx = jnp.sum(w[:, :, None] * x_enc, axis=1)
    pr = jnp.tanh(jnp.concatenate([h, ctx], axis=1) @ p["w_cr_T"])
    outs.append(pr @ p["w_ro_T"])
    feed = ctx
  return jnp.stack(outs, axis=1)  # [B, T, V]


# ----------------------------------------------------------------------------
# Main
# ----------------------------------------------------------------------------
if __name__ == "__main__":
  B, T, L = 2, 8, 8          # batch, target len, source len
  D = 32                     # d_model
  Dw = 32                    # d_word_vec
  V = 64                     # trg_vocab_size
  PAD_ID = 0

  key = jax.random.PRNGKey(0)
  ks = jax.random.split(key, 16)
  s = 0.1

  # ---- deterministic parameters (shapes from the module's __init__) ----
  emb_table = s * jax.random.normal(ks[0], (V, Dw), jnp.float32)
  emb_table = emb_table.at[PAD_ID].set(0.0)          # padding_idx

  params = {
      # nn.LSTMCell(Dw + 2D, D): weight_ih [4D, Dw+2D], weight_hh [4D, D]
      "w_ih_T": s * jax.random.normal(ks[1], (Dw + 2 * D, 4 * D), jnp.float32),
      "b_ih":   s * jax.random.normal(ks[2], (1, 4 * D), jnp.float32),
      "w_hh_T": s * jax.random.normal(ks[3], (D, 4 * D), jnp.float32),
      "b_hh":   s * jax.random.normal(ks[4], (1, 4 * D), jnp.float32),
      # MlpAttn: w_trg Linear(D, D), w_att Linear(D, 1)
      "w_trg_T": s * jax.random.normal(ks[5], (D, D), jnp.float32),
      "b_trg":   s * jax.random.normal(ks[6], (1, D), jnp.float32),
      "w_att":   s * jax.random.normal(ks[7], (1, D), jnp.float32),
      "b_att":   s * jax.random.normal(ks[8], (1, 1), jnp.float32),
      # ctx_to_readout Linear(3D, D, bias=False), readout Linear(D, V, bias=False)
      "w_cr_T": s * jax.random.normal(ks[9], (3 * D, D), jnp.float32),
      "w_ro_T": s * jax.random.normal(ks[10], (D, V), jnp.float32),
  }

  # ---- deterministic inputs ----
  x_enc = jax.random.normal(ks[11], (B, L, 2 * D), jnp.float32)
  x_enc_k = jax.random.normal(ks[12], (B, L, D), jnp.float32)
  y_train = jax.random.randint(ks[13], (B, T), 0, V)
  h0 = jax.random.normal(ks[14], (B, D), jnp.float32)
  c0 = jax.random.normal(ks[15], (B, D), jnp.float32)
  # source mask: last two positions of batch 1 are padding
  x_mask = jnp.zeros((B, L), jnp.float32).at[1, L - 2:].set(1.0)

  # embedding lookup (glue, outside kernel)
  trg_emb = jnp.take(emb_table, y_train, axis=0)      # [B, T, Dw]

  logits = decoder_forward(trg_emb, x_enc, x_enc_k, x_mask, h0, c0, params)
  logits = jax.block_until_ready(logits)

  ref = decoder_ref(trg_emb, x_enc, x_enc_k, x_mask, h0, c0, params)
  assert logits.shape == (B, T, V)
  assert jnp.max(jnp.abs(logits - ref)) < 1e-2

  print("KERNEL_OK")
</pallas_src>

<mosaic_0001>
module attributes {stable_mosaic.version = 11 : i64} {
  func.func @_readout_matmul_kernel(%arg0: i32, %arg1: i32, %arg2: memref<16x32xf32, #tpu.memory_space<vmem>>, %arg3: memref<32x64xf32, #tpu.memory_space<vmem>>, %arg4: memref<16x64xf32, #tpu.memory_space<vmem>>) attributes {dimension_semantics = [#tpu.dimension_semantics<parallel>, #tpu.dimension_semantics<parallel>], iteration_bounds = array<i64: 1, 1>, scalar_prefetch = 0 : i64, scratch_operands = 0 : i64, tpu.core_type = #tpu.core_type<tc>, window_params = [{transform_indices = @transform_0, window_bounds = array<i64: 16, 32>}, {transform_indices = @transform_1, window_bounds = array<i64: 32, 64>}, {transform_indices = @transform_2, window_bounds = array<i64: 16, 64>}]} {
    %c0 = arith.constant 0 : index
    %c0_0 = arith.constant 0 : index
    %0 = vector.load %arg2[%c0, %c0_0] : memref<16x32xf32, #tpu.memory_space<vmem>>, vector<16x32xf32>
    %c0_1 = arith.constant 0 : index
    %c0_2 = arith.constant 0 : index
    %1 = vector.load %arg3[%c0_1, %c0_2] : memref<32x64xf32, #tpu.memory_space<vmem>>, vector<32x64xf32>
    %cst = arith.constant dense<0.000000e+00> : vector<16x64xf32>
    %2 = tpu.matmul %0, %1, %cst {dimension_numbers = #tpu.dot_dimension_numbers<[1], [0], [0], [1], [0, 0, 1, 1], [], []>} : vector<16x32xf32>, vector<32x64xf32>, vector<16x64xf32> -> vector<16x64xf32>
    %c0_3 = arith.constant 0 : index
    %c0_4 = arith.constant 0 : index
    %3 = vector.load %arg4[%c0_3, %c0_4] : memref<16x64xf32, #tpu.memory_space<vmem>>, vector<16x64xf32>
    tpu.vector_store %arg4[%c0_3, %c0_4], %2 {strides = array<i32>} : memref<16x64xf32, #tpu.memory_space<vmem>>, vector<16x64xf32>,
    return
  }
  func.func @transform_0(%arg0: i32, %arg1: i32) -> (i32, i32) {
    %c0_i32 = arith.constant 0 : i32
    %c0_i32_0 = arith.constant 0 : i32
    return %arg0, %c0_i32 : i32, i32
  }
  func.func @transform_1(%arg0: i32, %arg1: i32) -> (i32, i32) {
    %c0_i32 = arith.constant 0 : i32
    %c0_i32_0 = arith.constant 0 : i32
    return %c0_i32, %arg1 : i32, i32
  }
  func.func @transform_2(%arg0: i32, %arg1: i32) -> (i32, i32) {
    %c0_i32 = arith.constant 0 : i32
    return %arg0, %arg1 : i32, i32
  }
}

module attributes {stable_mosaic.version = 11 : i64} {
  func.func @_decoder_scan_kernel(%arg0: i32, %arg1: memref<8x8x32xf32, #tpu.memory_space<vmem>>, %arg2: memref<8x8x64xf32, #tpu.memory_space<vmem>>, %arg3: memref<8x8x32xf32, #tpu.memory_space<vmem>>, %arg4: memref<8x8xf32, #tpu.memory_space<vmem>>, %arg5: memref<8x32xf32, #tpu.memory_space<vmem>>, %arg6: memref<8x32xf32, #tpu.memory_space<vmem>>, %arg7: memref<32x128xf32, #tpu.memory_space<vmem>>, %arg8: memref<64x128xf32, #tpu.memory_space<vmem>>, %arg9: memref<32x128xf32, #tpu.memory_space<vmem>>, %arg10: memref<1x128xf32, #tpu.memory_space<vmem>>, %arg11: memref<32x32xf32, #tpu.memory_space<vmem>>, %arg12: memref<1x1x32xf32, #tpu.memory_space<vmem>>, %arg13: memref<32x32xf32, #tpu.memory_space<vmem>>, %arg14: memref<64x32xf32, #tpu.memory_space<vmem>>, %arg15: memref<8x256xf32, #tpu.memory_space<vmem>>, %arg16: memref<8x32xf32, #tpu.memory_space<vmem>>, %arg17: memref<8x32xf32, #tpu.memory_space<vmem>>, %arg18: memref<8x64xf32, #tpu.memory_space<vmem>>) attributes {dimension_semantics = [#tpu.dimension_semantics<arbitrary>], iteration_bounds = array<i64: 1>, scalar_prefetch = 0 : i64, scratch_operands = 3 : i64, tpu.core_type = #tpu.core_type<tc>, window_params = [{transform_indices = @transform_0, window_bounds = array<i64: 8, 8, 32>}, {pipeline_mode = #tpu.pipeline_mode<synchronous>, transform_indices = @transform_1, window_bounds = array<i64: 8, 8, 64>}, {pipeline_mode = #tpu.pipeline_mode<synchronous>, transform_indices = @transform_2, window_bounds = array<i64: 8, 8, 32>}, {pipeline_mode = #tpu.pipeline_mode<synchronous>, transform_indices = @transform_3, window_bounds = array<i64: 8, 8>}, {pipeline_mode = #tpu.pipeline_mode<synchronous>, transform_indices = @transform_4, window_bounds = array<i64: 8, 32>}, {pipeline_mode = #tpu.pipeline_mode<synchronous>, transform_indices = @transform_5, window_bounds = array<i64: 8, 32>}, {pipeline_mode = #tpu.pipeline_mode<synchronous>, transform_indices = @transform_6, window_bounds = array<i64: 32, 128>}, {pipeline_mode = #tpu.pipeline_mode<synchronous>, transform_indices = @transform_7, window_bounds = array<i64: 64, 128>}, {pipeline_mode = #tpu.pipeline_mode<synchronous>, transform_indices = @transform_8, window_bounds = array<i64: 32, 128>}, {pipeline_mode = #tpu.pipeline_mode<synchronous>, transform_indices = @transform_9, window_bounds = array<i64: 1, 128>}, {pipeline_mode = #tpu.pipeline_mode<synchronous>, transform_indices = @transform_10, window_bounds = array<i64: 32, 32>}, {pipeline_mode = #tpu.pipeline_mode<synchronous>, transform_indices = @transform_11, window_bounds = array<i64: 1, 1, 32>}, {pipeline_mode = #tpu.pipeline_mode<synchronous>, transform_indices = @transform_12, window_bounds = array<i64: 32, 32>}, {pipeline_mode = #tpu.pipeline_mode<synchronous>, transform_indices = @transform_13, window_bounds = array<i64: 64, 32>}, {transform_indices = @transform_14, window_bounds = array<i64: 8, 256>}]} {
    %c0_i32 = arith.constant 0 : i32
    %0 = arith.cmpi eq, %arg0, %c0_i32 : i32
    %1 = arith.extui %0 : i1 to i32
    %c0_i32_0 = arith.constant 0 : i32
    %2 = arith.cmpi ne, %1, %c0_i32_0 : i32
    scf.if %2 {
      %c0_252 = arith.constant 0 : index
      %c0_253 = arith.constant 0 : index
      %562 = vector.load %arg5[%c0_252, %c0_253] : memref<8x32xf32, #tpu.memory_space<vmem>>, vector<8x32xf32>
      %c0_254 = arith.constant 0 : index
      %c0_255 = arith.constant 0 : index
      %563 = vector.load %arg16[%c0_254, %c0_255] : memref<8x32xf32, #tpu.memory_space<vmem>>, vector<8x32xf32>
      tpu.vector_store %arg16[%c0_254, %c0_255], %562 {strides = array<i32>} : memref<8x32xf32, #tpu.memory_space<vmem>>, vector<8x32xf32>,
      %c0_256 = arith.constant 0 : index
      %c0_257 = arith.constant 0 : index
      %564 = vector.load %arg6[%c0_256, %c0_257] : memref<8x32xf32, #tpu.memory_space<vmem>>, vector<8x32xf32>
      %c0_258 = arith.constant 0 : index
      %c0_259 = arith.constant 0 : index
      %565 = vector.load %arg17[%c0_258, %c0_259] : memref<8x32xf32, #tpu.memory_space<vmem>>, vector<8x32xf32>
      tpu.vector_store %arg17[%c0_258, %c0_259], %564 {strides = array<i32>} : memref<8x32xf32, #tpu.memory_space<vmem>>, vector<8x32xf32>,
      %cst_260 = arith.constant 0.000000e+00 : f32
      %566 = vector.broadcast %cst_260 : f32 to vector<8x64xf32>
      %c0_261 = arith.constant 0 : index
      %c0_262 = arith.constant 0 : index
      %567 = vector.load %arg18[%c0_261, %c0_262] : memref<8x64xf32, #tpu.memory_space<vmem>>, vector<8x64xf32>
      tpu.vector_store %arg18[%c0_261, %c0_262], %566 {strides = array<i32>} : memref<8x64xf32, #tpu.memory_space<vmem>>, vector<8x64xf32>,
    } else {
    }
    %c0 = arith.constant 0 : index
    %c0_1 = arith.constant 0 : index
    %c0_2 = arith.constant 0 : index
    %3 = vector.load %arg2[%c0, %c0_1, %c0_2] : memref<8x8x64xf32, #tpu.memory_space<vmem>>, vector<8x8x64xf32>
    %c0_3 = arith.constant 0 : index
    %c0_4 = arith.constant 0 : index
    %c0_5 = arith.constant 0 : index
    %4 = vector.load %arg3[%c0_3, %c0_4, %c0_5] : memref<8x8x32xf32, #tpu.memory_space<vmem>>, vector<8x8x32xf32>
    %c0_6 = arith.constant 0 : index
    %c0_7 = arith.constant 0 : index
    %5 = vector.load %arg4[%c0_6, %c0_7] : memref<8x8xf32, #tpu.memory_space<vmem>>, vector<8x8xf32>
    %cst = arith.constant 0.000000e+00 : f32
    %6 = vector.broadcast %cst : f32 to vector<8x8xf32>
    %7 = arith.cmpf ogt, %5, %6 : vector<8x8xf32>
    %c0_8 = arith.constant 0 : index
    %c0_9 = arith.constant 0 : index
    %c0_10 = arith.constant 0 : index
    %8 = vector.load %arg12[%c0_8, %c0_9, %c0_10] : memref<1x1x32xf32, #tpu.memory_space<vmem>>, vector<1x1x32xf32>
    %c0_11 = arith.constant 0 : index
    %c0_12 = arith.constant 0 : index
    %9 = vector.load %arg10[%c0_11, %c0_12] : memref<1x128xf32, #tpu.memory_space<vmem>>, vector<1x128xf32>
    %c0_13 = arith.constant 0 : index
    %c0_14 = arith.constant 0 : index
    %10 = vector.load %arg16[%c0_13, %c0_14] : memref<8x32xf32, #tpu.memory_space<vmem>>, vector<8x32xf32>
    %c0_15 = arith.constant 0 : index
    %c0_16 = arith.constant 0 : index
    %11 = vector.load %arg17[%c0_15, %c0_16] : memref<8x32xf32, #tpu.memory_space<vmem>>, vector<8x32xf32>
    %c0_17 = arith.constant 0 : index
    %c0_18 = arith.constant 0 : index
    %12 = vector.load %arg18[%c0_17, %c0_18] : memref<8x64xf32, #tpu.memory_space<vmem>>, vector<8x64xf32>
    %c0_19 = arith.constant 0 : index
    %c0_20 = arith.constant 0 : index
    %c0_21 = arith.constant 0 : index
    %13 = vector.load %arg1[%c0_19, %c0_20, %c0_21] : memref<8x8x32xf32, #tpu.memory_space<vmem>>, vector<1x8x32xf32>
    %14 = vector.shape_cast %13 : vector<1x8x32xf32> to vector<8x32xf32>
    %c0_22 = arith.constant 0 : index
    %c0_23 = arith.constant 0 : index
    %15 = vector.load %arg7[%c0_22, %c0_23] : memref<32x128xf32, #tpu.memory_space<vmem>>, vector<32x128xf32>
    %cst_24 = arith.constant dense<0.000000e+00> : vector<8x128xf32>
    %16 = tpu.matmul %14, %15, %cst_24 {dimension_numbers = #tpu.dot_dimension_numbers<[1], [0], [0], [1], [0, 0, 1, 1], [], []>} : vector<8x32xf32>, vector<32x128xf32>, vector<8x128xf32> -> vector<8x128xf32>
    %c0_25 = arith.constant 0 : index
    %c0_26 = arith.constant 0 : index
    %17 = vector.load %arg8[%c0_25, %c0_26] : memref<64x128xf32, #tpu.memory_space<vmem>>, vector<64x128xf32>
    %cst_27 = arith.constant dense<0.000000e+00> : vector<8x128xf32>
    %18 = tpu.matmul %12, %17, %cst_27 {dimension_numbers = #tpu.dot_dimension_numbers<[1], [0], [0], [1], [0, 0, 1, 1], [], []>} : vector<8x64xf32>, vector<64x128xf32>, vector<8x128xf32> -> vector<8x128xf32>
    %19 = arith.addf %16, %18 : vector<8x128xf32>
    %c0_28 = arith.constant 0 : index
    %c0_29 = arith.constant 0 : index
    %20 = vector.load %arg9[%c0_28, %c0_29] : memref<32x128xf32, #tpu.memory_space<vmem>>, vector<32x128xf32>
    %cst_30 = arith.constant dense<0.000000e+00> : vector<8x128xf32>
    %21 = tpu.matmul %10, %20, %cst_30 {dimension_numbers = #tpu.dot_dimension_numbers<[1], [0], [0], [1], [0, 0, 1, 1], [], []>} : vector<8x32xf32>, vector<32x128xf32>, vector<8x128xf32> -> vector<8x128xf32>
    %22 = arith.addf %19, %21 : vector<8x128xf32>
    %23 = vector.broadcast %9 : vector<1x128xf32> to vector<8x128xf32>
    %24 = arith.addf %22, %23 : vector<8x128xf32>
    %25 = vector.extract_strided_slice %24 {offsets = [0, 0], sizes = [8, 32], strides = [1, 1]} : vector<8x128xf32> to vector<8x32xf32>
    %26 = arith.negf %25 : vector<8x32xf32>
    %27 = math.exp %26 : vector<8x32xf32>
    %cst_31 = arith.constant 1.000000e+00 : f32
    %28 = vector.broadcast %cst_31 : f32 to vector<8x32xf32>
    %29 = arith.addf %28, %27 : vector<8x32xf32>
    %30 = arith.divf %28, %29 : vector<8x32xf32>
    %31 = vector.extract_strided_slice %24 {offsets = [0, 32], sizes = [8, 32], strides = [1, 1]} : vector<8x128xf32> to vector<8x32xf32>
    %32 = arith.negf %31 : vector<8x32xf32>
    %33 = math.exp %32 : vector<8x32xf32>
    %cst_32 = arith.constant 1.000000e+00 : f32
    %34 = vector.broadcast %cst_32 : f32 to vector<8x32xf32>
    %35 = arith.addf %34, %33 : vector<8x32xf32>
    %36 = arith.divf %34, %35 : vector<8x32xf32>
    %37 = vector.extract_strided_slice %24 {offsets = [0, 64], sizes = [8, 32], strides = [1, 1]} : vector<8x128xf32> to vector<8x32xf32>
    %38 = math.tanh %37 : vector<8x32xf32>
    %39 = vector.extract_strided_slice %24 {offsets = [0, 96], sizes = [8, 32], strides = [1, 1]} : vector<8x128xf32> to vector<8x32xf32>
    %40 = arith.negf %39 : vector<8x32xf32>
    %41 = math.exp %40 : vector<8x32xf32>
    %cst_33 = arith.constant 1.000000e+00 : f32
    %42 = vector.broadcast %cst_33 : f32 to vector<8x32xf32>
    %43 = arith.addf %42, %41 : vector<8x32xf32>
    %44 = arith.divf %42, %43 : vector<8x32xf32>
    %45 = arith.mulf %36, %11 : vector<8x32xf32>
    %46 = arith.mulf %30, %38 : vector<8x32xf32>
    %47 = arith.addf %45, %46 : vector<8x32xf32>
    %48 = math.tanh %47 : vector<8x32xf32>
    %49 = arith.mulf %44, %48 : vector<8x32xf32>
    %c0_34 = arith.constant 0 : index
    %c0_35 = arith.constant 0 : index
    %50 = vector.load %arg11[%c0_34, %c0_35] : memref<32x32xf32, #tpu.memory_space<vmem>>, vector<32x32xf32>
    %cst_36 = arith.constant dense<0.000000e+00> : vector<8x32xf32>
    %51 = tpu.matmul %49, %50, %cst_36 {dimension_numbers = #tpu.dot_dimension_numbers<[1], [0], [0], [1], [0, 0, 1, 1], [], []>} : vector<8x32xf32>, vector<32x32xf32>, vector<8x32xf32> -> vector<8x32xf32>
    %52 = vector.shape_cast %51 : vector<8x32xf32> to vector<8x1x32xf32>
    %53 = vector.broadcast %52 : vector<8x1x32xf32> to vector<8x8x32xf32>
    %54 = arith.addf %4, %53 : vector<8x8x32xf32>
    %55 = math.tanh %54 : vector<8x8x32xf32>
    %56 = vector.broadcast %8 : vector<1x1x32xf32> to vector<8x8x32xf32>
    %57 = arith.mulf %55, %56 : vector<8x8x32xf32>
    %cst_37 = arith.constant dense<0.000000e+00> : vector<8x8xf32>
    %58 = vector.multi_reduction <add>, %57, %cst_37 [2] : vector<8x8x32xf32> to vector<8x8xf32>
    %cst_38 = arith.constant -1.000000e+09 : f32
    %59 = vector.broadcast %cst_38 : f32 to vector<8x8xf32>
    %60 = arith.select %7, %59, %58 : vector<8x8xi1>, vector<8x8xf32>
    %cst_39 = arith.constant dense<0xFF800000> : vector<8xf32>
    %61 = vector.multi_reduction <maximumf>, %60, %cst_39 [1] : vector<8x8xf32> to vector<8xf32>
    %62 = vector.shape_cast %61 : vector<8xf32> to vector<8x1xf32>
    %63 = vector.broadcast %62 : vector<8x1xf32> to vector<8x8xf32>
    %64 = arith.subf %60, %63 : vector<8x8xf32>
    %65 = math.exp %64 : vector<8x8xf32>
    %cst_40 = arith.constant dense<0.000000e+00> : vector<8xf32>
    %66 = vector.multi_reduction <add>, %65, %cst_40 [1] : vector<8x8xf32> to vector<8xf32>
    %67 = vector.shape_cast %66 : vector<8xf32> to vector<8x1xf32>
    %68 = tpu.reciprocal %67 {approx = true} : vector<8x1xf32> -> vector<8x1xf32>
    %69 = vector.broadcast %68 : vector<8x1xf32> to vector<8x8xf32>
    %70 = arith.mulf %65, %69 : vector<8x8xf32>
    %71 = vector.shape_cast %70 : vector<8x8xf32> to vector<8x8x1xf32>
    %72 = vector.broadcast %71 : vector<8x8x1xf32> to vector<8x8x64xf32>
    %73 = arith.mulf %72, %3 : vector<8x8x64xf32>
    %cst_41 = arith.constant dense<0.000000e+00> : vector<8x64xf32>
    %74 = vector.multi_reduction <add>, %73, %cst_41 [1] : vector<8x8x64xf32> to vector<8x64xf32>
    %c0_42 = arith.constant 0 : index
    %c0_43 = arith.constant 0 : index
    %75 = vector.load %arg13[%c0_42, %c0_43] : memref<32x32xf32, #tpu.memory_space<vmem>>, vector<32x32xf32>
    %cst_44 = arith.constant dense<0.000000e+00> : vector<8x32xf32>
    %76 = tpu.matmul %49, %75, %cst_44 {dimension_numbers = #tpu.dot_dimension_numbers<[1], [0], [0], [1], [0, 0, 1, 1], [], []>} : vector<8x32xf32>, vector<32x32xf32>, vector<8x32xf32> -> vector<8x32xf32>
    %c0_45 = arith.constant 0 : index
    %c0_46 = arith.constant 0 : index
    %77 = vector.load %arg14[%c0_45, %c0_46] : memref<64x32xf32, #tpu.memory_space<vmem>>, vector<64x32xf32>
    %cst_47 = arith.constant dense<0.000000e+00> : vector<8x32xf32>
    %78 = tpu.matmul %74, %77, %cst_47 {dimension_numbers = #tpu.dot_dimension_numbers<[1], [0], [0], [1], [0, 0, 1, 1], [], []>} : vector<8x64xf32>, vector<64x32xf32>, vector<8x32xf32> -> vector<8x32xf32>
    %79 = arith.addf %76, %78 : vector<8x32xf32>
    %80 = math.tanh %79 : vector<8x32xf32>
    %c1 = arith.constant 1 : index
    %c0_48 = arith.constant 0 : index
    %c0_49 = arith.constant 0 : index
    %81 = vector.load %arg1[%c1, %c0_48, %c0_49] : memref<8x8x32xf32, #tpu.memory_space<vmem>>, vector<1x8x32xf32>
    %82 = vector.shape_cast %81 : vector<1x8x32xf32> to vector<8x32xf32>
    %c0_50 = arith.constant 0 : index
    %c0_51 = arith.constant 0 : index
    %83 = vector.load %arg7[%c0_50, %c0_51] : memref<32x128xf32, #tpu.memory_space<vmem>>, vector<32x128xf32>
    %cst_52 = arith.constant dense<0.000000e+00> : vector<8x128xf32>
    %84 = tpu.matmul %82, %83, %cst_52 {dimension_numbers = #tpu.dot_dimension_numbers<[1], [0], [0], [1], [0, 0, 1, 1], [], []>} : vector<8x32xf32>, vector<32x128xf32>, vector<8x128xf32> -> vector<8x128xf32>
    %c0_53 = arith.constant 0 : index
    %c0_54 = arith.constant 0 : index
    %85 = vector.load %arg8[%c0_53, %c0_54] : memref<64x128xf32, #tpu.memory_space<vmem>>, vector<64x128xf32>
    %cst_55 = arith.constant dense<0.000000e+00> : vector<8x128xf32>
    %86 = tpu.matmul %74, %85, %cst_55 {dimension_numbers = #tpu.dot_dimension_numbers<[1], [0], [0], [1], [0, 0, 1, 1], [], []>} : vector<8x64xf32>, vector<64x128xf32>, vector<8x128xf32> -> vector<8x128xf32>
    %87 = arith.addf %84, %86 : vector<8x128xf32>
    %c0_56 = arith.constant 0 : index
    %c0_57 = arith.constant 0 : index
    %88 = vector.load %arg9[%c0_56, %c0_57] : memref<32x128xf32, #tpu.memory_space<vmem>>, vector<32x128xf32>
    %cst_58 = arith.constant dense<0.000000e+00> : vector<8x128xf32>
    %89 = tpu.matmul %49, %88, %cst_58 {dimension_numbers = #tpu.dot_dimension_numbers<[1], [0], [0], [1], [0, 0, 1, 1], [], []>} : vector<8x32xf32>, vector<32x128xf32>, vector<8x128xf32> -> vector<8x128xf32>
    %90 = arith.addf %87, %89 : vector<8x128xf32>
    %91 = vector.broadcast %9 : vector<1x128xf32> to vector<8x128xf32>
    %92 = arith.addf %90, %91 : vector<8x128xf32>
    %93 = vector.extract_strided_slice %92 {offsets = [0, 0], sizes = [8, 32], strides = [1, 1]} : vector<8x128xf32> to vector<8x32xf32>
    %94 = arith.negf %93 : vector<8x32xf32>
    %95 = math.exp %94 : vector<8x32xf32>
    %cst_59 = arith.constant 1.000000e+00 : f32
    %96 = vector.broadcast %cst_59 : f32 to vector<8x32xf32>
    %97 = arith.addf %96, %95 : vector<8x32xf32>
    %98 = arith.divf %96, %97 : vector<8x32xf32>
    %99 = vector.extract_strided_slice %92 {offsets = [0, 32], sizes = [8, 32], strides = [1, 1]} : vector<8x128xf32> to vector<8x32xf32>
    %100 = arith.negf %99 : vector<8x32xf32>
    %101 = math.exp %100 : vector<8x32xf32>
    %cst_60 = arith.constant 1.000000e+00 : f32
    %102 = vector.broadcast %cst_60 : f32 to vector<8x32xf32>
    %103 = arith.addf %102, %101 : vector<8x32xf32>
    %104 = arith.divf %102, %103 : vector<8x32xf32>
    %105 = vector.extract_strided_slice %92 {offsets = [0, 64], sizes = [8, 32], strides = [1, 1]} : vector<8x128xf32> to vector<8x32xf32>
    %106 = math.tanh %105 : vector<8x32xf32>
    %107 = vector.extract_strided_slice %92 {offsets = [0, 96], sizes = [8, 32], strides = [1, 1]} : vector<8x128xf32> to vector<8x32xf32>
    %108 = arith.negf %107 : vector<8x32xf32>
    %109 = math.exp %108 : vector<8x32xf32>
    %cst_61 = arith.constant 1.000000e+00 : f32
    %110 = vector.broadcast %cst_61 : f32 to vector<8x32xf32>
    %111 = arith.addf %110, %109 : vector<8x32xf32>
    %112 = arith.divf %110, %111 : vector<8x32xf32>
    %113 = arith.mulf %104, %47 : vector<8x32xf32>
    %114 = arith.mulf %98, %106 : vector<8x32xf32>
    %115 = arith.addf %113, %114 : vector<8x32xf32>
    %116 = math.tanh %115 : vector<8x32xf32>
    %117 = arith.mulf %112, %116 : vector<8x32xf32>
    %c0_62 = arith.constant 0 : index
    %c0_63 = arith.constant 0 : index
    %118 = vector.load %arg11[%c0_62, %c0_63] : memref<32x32xf32, #tpu.memory_space<vmem>>, vector<32x32xf32>
    %cst_64 = arith.constant dense<0.000000e+00> : vector<8x32xf32>
    %119 = tpu.matmul %117, %118, %cst_64 {dimension_numbers = #tpu.dot_dimension_numbers<[1], [0], [0], [1], [0, 0, 1, 1], [], []>} : vector<8x32xf32>, vector<32x32xf32>, vector<8x32xf32> -> vector<8x32xf32>
    %120 = vector.shape_cast %119 : vector<8x32xf32> to vector<8x1x32xf32>
    %121 = vector.broadcast %120 : vector<8x1x32xf32> to vector<8x8x32xf32>
    %122 = arith.addf %4, %121 : vector<8x8x32xf32>
    %123 = math.tanh %122 : vector<8x8x32xf32>
    %124 = vector.broadcast %8 : vector<1x1x32xf32> to vector<8x8x32xf32>
    %125 = arith.mulf %123, %124 : vector<8x8x32xf32>
    %cst_65 = arith.constant dense<0.000000e+00> : vector<8x8xf32>
    %126 = vector.multi_reduction <add>, %125, %cst_65 [2] : vector<8x8x32xf32> to vector<8x8xf32>
    %cst_66 = arith.constant -1.000000e+09 : f32
    %127 = vector.broadcast %cst_66 : f32 to vector<8x8xf32>
    %128 = arith.select %7, %127, %126 : vector<8x8xi1>, vector<8x8xf32>
    %cst_67 = arith.constant dense<0xFF800000> : vector<8xf32>
    %129 = vector.multi_reduction <maximumf>, %128, %cst_67 [1] : vector<8x8xf32> to vector<8xf32>
    %130 = vector.shape_cast %129 : vector<8xf32> to vector<8x1xf32>
    %131 = vector.broadcast %130 : vector<8x1xf32> to vector<8x8xf32>
    %132 = arith.subf %128, %131 : vector<8x8xf32>
    %133 = math.exp %132 : vector<8x8xf32>
    %cst_68 = arith.constant dense<0.000000e+00> : vector<8xf32>
    %134 = vector.multi_reduction <add>, %133, %cst_68 [1] : vector<8x8xf32> to vector<8xf32>
    %135 = vector.shape_cast %134 : vector<8xf32> to vector<8x1xf32>
    %136 = tpu.reciprocal %135 {approx = true} : vector<8x1xf32> -> vector<8x1xf32>
    %137 = vector.broadcast %136 : vector<8x1xf32> to vector<8x8xf32>
    %138 = arith.mulf %133, %137 : vector<8x8xf32>
    %139 = vector.shape_cast %138 : vector<8x8xf32> to vector<8x8x1xf32>
    %140 = vector.broadcast %139 : vector<8x8x1xf32> to vector<8x8x64xf32>
    %141 = arith.mulf %140, %3 : vector<8x8x64xf32>
    %cst_69 = arith.constant dense<0.000000e+00> : vector<8x64xf32>
    %142 = vector.multi_reduction <add>, %141, %cst_69 [1] : vector<8x8x64xf32> to vector<8x64xf32>
    %c0_70 = arith.constant 0 : index
    %c0_71 = arith.constant 0 : index
    %143 = vector.load %arg13[%c0_70, %c0_71] : memref<32x32xf32, #tpu.memory_space<vmem>>, vector<32x32xf32>
    %cst_72 = arith.constant dense<0.000000e+00> : vector<8x32xf32>
    %144 = tpu.matmul %117, %143, %cst_72 {dimension_numbers = #tpu.dot_dimension_numbers<[1], [0], [0], [1], [0, 0, 1, 1], [], []>} : vector<8x32xf32>, vector<32x32xf32>, vector<8x32xf32> -> vector<8x32xf32>
    %c0_73 = arith.constant 0 : index
    %c0_74 = arith.constant 0 : index
    %145 = vector.load %arg14[%c0_73, %c0_74] : memref<64x32xf32, #tpu.memory_space<vmem>>, vector<64x32xf32>
    %cst_75 = arith.constant dense<0.000000e+00> : vector<8x32xf32>
    %146 = tpu.matmul %142, %145, %cst_75 {dimension_numbers = #tpu.dot_dimension_numbers<[1], [0], [0], [1], [0, 0, 1, 1], [], []>} : vector<8x64xf32>, vector<64x32xf32>, vector<8x32xf32> -> vector<8x32xf32>
    %147 = arith.addf %144, %146 : vector<8x32xf32>
    %148 = math.tanh %147 : vector<8x32xf32>
    %c2 = arith.constant 2 : index
    %c0_76 = arith.constant 0 : index
    %c0_77 = arith.constant 0 : index
    %149 = vector.load %arg1[%c2, %c0_76, %c0_77] : memref<8x8x32xf32, #tpu.memory_space<vmem>>, vector<1x8x32xf32>
    %150 = vector.shape_cast %149 : vector<1x8x32xf32> to vector<8x32xf32>
    %c0_78 = arith.constant 0 : index
    %c0_79 = arith.constant 0 : index
    %151 = vector.load %arg7[%c0_78, %c0_79] : memref<32x128xf32, #tpu.memory_space<vmem>>, vector<32x128xf32>
    %cst_80 = arith.constant dense<0.000000e+00> : vector<8x128xf32>
    %152 = tpu.matmul %150, %151, %cst_80 {dimension_numbers = #tpu.dot_dimension_numbers<[1], [0], [0], [1], [0, 0, 1, 1], [], []>} : vector<8x32xf32>, vector<32x128xf32>, vector<8x128xf32> -> vector<8x128xf32>
    %c0_81 = arith.constant 0 : index
    %c0_82 = arith.constant 0 : index
    %153 = vector.load %arg8[%c0_81, %c0_82] : memref<64x128xf32, #tpu.memory_space<vmem>>, vector<64x128xf32>
    %cst_83 = arith.constant dense<0.000000e+00> : vector<8x128xf32>
    %154 = tpu.matmul %142, %153, %cst_83 {dimension_numbers = #tpu.dot_dimension_numbers<[1], [0], [0], [1], [0, 0, 1, 1], [], []>} : vector<8x64xf32>, vector<64x128xf32>, vector<8x128xf32> -> vector<8x128xf32>
    %155 = arith.addf %152, %154 : vector<8x128xf32>
    %c0_84 = arith.constant 0 : index
    %c0_85 = arith.constant 0 : index
    %156 = vector.load %arg9[%c0_84, %c0_85] : memref<32x128xf32, #tpu.memory_space<vmem>>, vector<32x128xf32>
    %cst_86 = arith.constant dense<0.000000e+00> : vector<8x128xf32>
    %157 = tpu.matmul %117, %156, %cst_86 {dimension_numbers = #tpu.dot_dimension_numbers<[1], [0], [0], [1], [0, 0, 1, 1], [], []>} : vector<8x32xf32>, vector<32x128xf32>, vector<8x128xf32> -> vector<8x128xf32>
    %158 = arith.addf %155, %157 : vector<8x128xf32>
    %159 = vector.broadcast %9 : vector<1x128xf32> to vector<8x128xf32>
    %160 = arith.addf %158, %159 : vector<8x128xf32>
    %161 = vector.extract_strided_slice %160 {offsets = [0, 0], sizes = [8, 32], strides = [1, 1]} : vector<8x128xf32> to vector<8x32xf32>
    %162 = arith.negf %161 : vector<8x32xf32>
    %163 = math.exp %162 : vector<8x32xf32>
    %cst_87 = arith.constant 1.000000e+00 : f32
    %164 = vector.broadcast %cst_87 : f32 to vector<8x32xf32>
    %165 = arith.addf %164, %163 : vector<8x32xf32>
    %166 = arith.divf %164, %165 : vector<8x32xf32>
    %167 = vector.extract_strided_slice %160 {offsets = [0, 32], sizes = [8, 32], strides = [1, 1]} : vector<8x128xf32> to vector<8x32xf32>
    %168 = arith.negf %167 : vector<8x32xf32>
    %169 = math.exp %168 : vector<8x32xf32>
    %cst_88 = arith.constant 1.000000e+00 : f32
    %170 = vector.broadcast %cst_88 : f32 to vector<8x32xf32>
    %171 = arith.addf %170, %169 : vector<8x32xf32>
    %172 = arith.divf %170, %171 : vector<8x32xf32>
    %173 = vector.extract_strided_slice %160 {offsets = [0, 64], sizes = [8, 32], strides = [1, 1]} : vector<8x128xf32> to vector<8x32xf32>
    %174 = math.tanh %173 : vector<8x32xf32>
    %175 = vector.extract_strided_slice %160 {offsets = [0, 96], sizes = [8, 32], strides = [1, 1]} : vector<8x128xf32> to vector<8x32xf32>
    %176 = arith.negf %175 : vector<8x32xf32>
    %177 = math.exp %176 : vector<8x32xf32>
    %cst_89 = arith.constant 1.000000e+00 : f32
    %178 = vector.broadcast %cst_89 : f32 to vector<8x32xf32>
    %179 = arith.addf %178, %177 : vector<8x32xf32>
    %180 = arith.divf %178, %179 : vector<8x32xf32>
    %181 = arith.mulf %172, %115 : vector<8x32xf32>
    %182 = arith.mulf %166, %174 : vector<8x32xf32>
    %183 = arith.addf %181, %182 : vector<8x32xf32>
    %184 = math.tanh %183 : vector<8x32xf32>
    %185 = arith.mulf %180, %184 : vector<8x32xf32>
    %c0_90 = arith.constant 0 : index
    %c0_91 = arith.constant 0 : index
    %186 = vector.load %arg11[%c0_90, %c0_91] : memref<32x32xf32, #tpu.memory_space<vmem>>, vector<32x32xf32>
    %cst_92 = arith.constant dense<0.000000e+00> : vector<8x32xf32>
    %187 = tpu.matmul %185, %186, %cst_92 {dimension_numbers = #tpu.dot_dimension_numbers<[1], [0], [0], [1], [0, 0, 1, 1], [], []>} : vector<8x32xf32>, vector<32x32xf32>, vector<8x32xf32> -> vector<8x32xf32>
    %188 = vector.shape_cast %187 : vector<8x32xf32> to vector<8x1x32xf32>
    %189 = vector.broadcast %188 : vector<8x1x32xf32> to vector<8x8x32xf32>
    %190 = arith.addf %4, %189 : vector<8x8x32xf32>
    %191 = math.tanh %190 : vector<8x8x32xf32>
    %192 = vector.broadcast %8 : vector<1x1x32xf32> to vector<8x8x32xf32>
    %193 = arith.mulf %191, %192 : vector<8x8x32xf32>
    %cst_93 = arith.constant dense<0.000000e+00> : vector<8x8xf32>
    %194 = vector.multi_reduction <add>, %193, %cst_93 [2] : vector<8x8x32xf32> to vector<8x8xf32>
    %cst_94 = arith.constant -1.000000e+09 : f32
    %195 = vector.broadcast %cst_94 : f32 to vector<8x8xf32>
    %196 = arith.select %7, %195, %194 : vector<8x8xi1>, vector<8x8xf32>
    %cst_95 = arith.constant dense<0xFF800000> : vector<8xf32>
    %197 = vector.multi_reduction <maximumf>, %196, %cst_95 [1] : vector<8x8xf32> to vector<8xf32>
    %198 = vector.shape_cast %197 : vector<8xf32> to vector<8x1xf32>
    %199 = vector.broadcast %198 : vector<8x1xf32> to vector<8x8xf32>
    %200 = arith.subf %196, %199 : vector<8x8xf32>
    %201 = math.exp %200 : vector<8x8xf32>
    %cst_96 = arith.constant dense<0.000000e+00> : vector<8xf32>
    %202 = vector.multi_reduction <add>, %201, %cst_96 [1] : vector<8x8xf32> to vector<8xf32>
    %203 = vector.shape_cast %202 : vector<8xf32> to vector<8x1xf32>
    %204 = tpu.reciprocal %203 {approx = true} : vector<8x1xf32> -> vector<8x1xf32>
    %205 = vector.broadcast %204 : vector<8x1xf32> to vector<8x8xf32>
    %206 = arith.mulf %201, %205 : vector<8x8xf32>
    %207 = vector.shape_cast %206 : vector<8x8xf32> to vector<8x8x1xf32>
    %208 = vector.broadcast %207 : vector<8x8x1xf32> to vector<8x8x64xf32>
    %209 = arith.mulf %208, %3 : vector<8x8x64xf32>
    %cst_97 = arith.constant dense<0.000000e+00> : vector<8x64xf32>
    %210 = vector.multi_reduction <add>, %209, %cst_97 [1] : vector<8x8x64xf32> to vector<8x64xf32>
    %c0_98 = arith.constant 0 : index
    %c0_99 = arith.constant 0 : index
    %211 = vector.load %arg13[%c0_98, %c0_99] : memref<32x32xf32, #tpu.memory_space<vmem>>, vector<32x32xf32>
    %cst_100 = arith.constant dense<0.000000e+00> : vector<8x32xf32>
    %212 = tpu.matmul %185, %211, %cst_100 {dimension_numbers = #tpu.dot_dimension_numbers<[1], [0], [0], [1], [0, 0, 1, 1], [], []>} : vector<8x32xf32>, vector<32x32xf32>, vector<8x32xf32> -> vector<8x32xf32>
    %c0_101 = arith.constant 0 : index
    %c0_102 = arith.constant 0 : index
    %213 = vector.load %arg14[%c0_101, %c0_102] : memref<64x32xf32, #tpu.memory_space<vmem>>, vector<64x32xf32>
    %cst_103 = arith.constant dense<0.000000e+00> : vector<8x32xf32>
    %214 = tpu.matmul %210, %213, %cst_103 {dimension_numbers = #tpu.dot_dimension_numbers<[1], [0], [0], [1], [0, 0, 1, 1], [], []>} : vector<8x64xf32>, vector<64x32xf32>, vector<8x32xf32> -> vector<8x32xf32>
    %215 = arith.addf %212, %214 : vector<8x32xf32>
    %216 = math.tanh %215 : vector<8x32xf32>
    %c3 = arith.constant 3 : index
    %c0_104 = arith.constant 0 : index
    %c0_105 = arith.constant 0 : index
    %217 = vector.load %arg1[%c3, %c0_104, %c0_105] : memref<8x8x32xf32, #tpu.memory_space<vmem>>, vector<1x8x32xf32>
    %218 = vector.shape_cast %217 : vector<1x8x32xf32> to vector<8x32xf32>
    %c0_106 = arith.constant 0 : index
    %c0_107 = arith.constant 0 : index
    %219 = vector.load %arg7[%c0_106, %c0_107] : memref<32x128xf32, #tpu.memory_space<vmem>>, vector<32x128xf32>
    %cst_108 = arith.constant dense<0.000000e+00> : vector<8x128xf32>
    %220 = tpu.matmul %218, %219, %cst_108 {dimension_numbers = #tpu.dot_dimension_numbers<[1], [0], [0], [1], [0, 0, 1, 1], [], []>} : vector<8x32xf32>, vector<32x128xf32>, vector<8x128xf32> -> vector<8x128xf32>
    %c0_109 = arith.constant 0 : index
    %c0_110 = arith.constant 0 : index
    %221 = vector.load %arg8[%c0_109, %c0_110] : memref<64x128xf32, #tpu.memory_space<vmem>>, vector<64x128xf32>
    %cst_111 = arith.constant dense<0.000000e+00> : vector<8x128xf32>
    %222 = tpu.matmul %210, %221, %cst_111 {dimension_numbers = #tpu.dot_dimension_numbers<[1], [0], [0], [1], [0, 0, 1, 1], [], []>} : vector<8x64xf32>, vector<64x128xf32>, vector<8x128xf32> -> vector<8x128xf32>
    %223 = arith.addf %220, %222 : vector<8x128xf32>
    %c0_112 = arith.constant 0 : index
    %c0_113 = arith.constant 0 : index
    %224 = vector.load %arg9[%c0_112, %c0_113] : memref<32x128xf32, #tpu.memory_space<vmem>>, vector<32x128xf32>
    %cst_114 = arith.constant dense<0.000000e+00> : vector<8x128xf32>
    %225 = tpu.matmul %185, %224, %cst_114 {dimension_numbers = #tpu.dot_dimension_numbers<[1], [0], [0], [1], [0, 0, 1, 1], [], []>} : vector<8x32xf32>, vector<32x128xf32>, vector<8x128xf32> -> vector<8x128xf32>
    %226 = arith.addf %223, %225 : vector<8x128xf32>
    %227 = vector.broadcast %9 : vector<1x128xf32> to vector<8x128xf32>
    %228 = arith.addf %226, %227 : vector<8x128xf32>
    %229 = vector.extract_strided_slice %228 {offsets = [0, 0], sizes = [8, 32], strides = [1, 1]} : vector<8x128xf32> to vector<8x32xf32>
    %230 = arith.negf %229 : vector<8x32xf32>
    %231 = math.exp %230 : vector<8x32xf32>
    %cst_115 = arith.constant 1.000000e+00 : f32
    %232 = vector.broadcast %cst_115 : f32 to vector<8x32xf32>
    %233 = arith.addf %232, %231 : vector<8x32xf32>
    %234 = arith.divf %232, %233 : vector<8x32xf32>
    %235 = vector.extract_strided_slice %228 {offsets = [0, 32], sizes = [8, 32], strides = [1, 1]} : vector<8x128xf32> to vector<8x32xf32>
    %236 = arith.negf %235 : vector<8x32xf32>
    %237 = math.exp %236 : vector<8x32xf32>
    %cst_116 = arith.constant 1.000000e+00 : f32
    %238 = vector.broadcast %cst_116 : f32 to vector<8x32xf32>
    %239 = arith.addf %238, %237 : vector<8x32xf32>
    %240 = arith.divf %238, %239 : vector<8x32xf32>
    %241 = vector.extract_strided_slice %228 {offsets = [0, 64], sizes = [8, 32], strides = [1, 1]} : vector<8x128xf32> to vector<8x32xf32>
    %242 = math.tanh %241 : vector<8x32xf32>
    %243 = vector.extract_strided_slice %228 {offsets = [0, 96], sizes = [8, 32], strides = [1, 1]} : vector<8x128xf32> to vector<8x32xf32>
    %244 = arith.negf %243 : vector<8x32xf32>
    %245 = math.exp %244 : vector<8x32xf32>
    %cst_117 = arith.constant 1.000000e+00 : f32
    %246 = vector.broadcast %cst_117 : f32 to vector<8x32xf32>
    %247 = arith.addf %246, %245 : vector<8x32xf32>
    %248 = arith.divf %246, %247 : vector<8x32xf32>
    %249 = arith.mulf %240, %183 : vector<8x32xf32>
    %250 = arith.mulf %234, %242 : vector<8x32xf32>
    %251 = arith.addf %249, %250 : vector<8x32xf32>
    %252 = math.tanh %251 : vector<8x32xf32>
    %253 = arith.mulf %248, %252 : vector<8x32xf32>
    %c0_118 = arith.constant 0 : index
    %c0_119 = arith.constant 0 : index
    %254 = vector.load %arg11[%c0_118, %c0_119] : memref<32x32xf32, #tpu.memory_space<vmem>>, vector<32x32xf32>
    %cst_120 = arith.constant dense<0.000000e+00> : vector<8x32xf32>
    %255 = tpu.matmul %253, %254, %cst_120 {dimension_numbers = #tpu.dot_dimension_numbers<[1], [0], [0], [1], [0, 0, 1, 1], [], []>} : vector<8x32xf32>, vector<32x32xf32>, vector<8x32xf32> -> vector<8x32xf32>
    %256 = vector.shape_cast %255 : vector<8x32xf32> to vector<8x1x32xf32>
    %257 = vector.broadcast %256 : vector<8x1x32xf32> to vector<8x8x32xf32>
    %258 = arith.addf %4, %257 : vector<8x8x32xf32>
    %259 = math.tanh %258 : vector<8x8x32xf32>
    %260 = vector.broadcast %8 : vector<1x1x32xf32> to vector<8x8x32xf32>
    %261 = arith.mulf %259, %260 : vector<8x8x32xf32>
    %cst_121 = arith.constant dense<0.000000e+00> : vector<8x8xf32>
    %262 = vector.multi_reduction <add>, %261, %cst_121 [2] : vector<8x8x32xf32> to vector<8x8xf32>
    %cst_122 = arith.constant -1.000000e+09 : f32
    %263 = vector.broadcast %cst_122 : f32 to vector<8x8xf32>
    %264 = arith.select %7, %263, %262 : vector<8x8xi1>, vector<8x8xf32>
    %cst_123 = arith.constant dense<0xFF800000> : vector<8xf32>
    %265 = vector.multi_reduction <maximumf>, %264, %cst_123 [1] : vector<8x8xf32> to vector<8xf32>
    %266 = vector.shape_cast %265 : vector<8xf32> to vector<8x1xf32>
    %267 = vector.broadcast %266 : vector<8x1xf32> to vector<8x8xf32>
    %268 = arith.subf %264, %267 : vector<8x8xf32>
    %269 = math.exp %268 : vector<8x8xf32>
    %cst_124 = arith.constant dense<0.000000e+00> : vector<8xf32>
    %270 = vector.multi_reduction <add>, %269, %cst_124 [1] : vector<8x8xf32> to vector<8xf32>
    %271 = vector.shape_cast %270 : vector<8xf32> to vector<8x1xf32>
    %272 = tpu.reciprocal %271 {approx = true} : vector<8x1xf32> -> vector<8x1xf32>
    %273 = vector.broadcast %272 : vector<8x1xf32> to vector<8x8xf32>
    %274 = arith.mulf %269, %273 : vector<8x8xf32>
    %275 = vector.shape_cast %274 : vector<8x8xf32> to vector<8x8x1xf32>
    %276 = vector.broadcast %275 : vector<8x8x1xf32> to vector<8x8x64xf32>
    %277 = arith.mulf %276, %3 : vector<8x8x64xf32>
    %cst_125 = arith.constant dense<0.000000e+00> : vector<8x64xf32>
    %278 = vector.multi_reduction <add>, %277, %cst_125 [1] : vector<8x8x64xf32> to vector<8x64xf32>
    %c0_126 = arith.constant 0 : index
    %c0_127 = arith.constant 0 : index
    %279 = vector.load %arg13[%c0_126, %c0_127] : memref<32x32xf32, #tpu.memory_space<vmem>>, vector<32x32xf32>
    %cst_128 = arith.constant dense<0.000000e+00> : vector<8x32xf32>
    %280 = tpu.matmul %253, %279, %cst_128 {dimension_numbers = #tpu.dot_dimension_numbers<[1], [0], [0], [1], [0, 0, 1, 1], [], []>} : vector<8x32xf32>, vector<32x32xf32>, vector<8x32xf32> -> vector<8x32xf32>
    %c0_129 = arith.constant 0 : index
    %c0_130 = arith.constant 0 : index
    %281 = vector.load %arg14[%c0_129, %c0_130] : memref<64x32xf32, #tpu.memory_space<vmem>>, vector<64x32xf32>
    %cst_131 = arith.constant dense<0.000000e+00> : vector<8x32xf32>
    %282 = tpu.matmul %278, %281, %cst_131 {dimension_numbers = #tpu.dot_dimension_numbers<[1], [0], [0], [1], [0, 0, 1, 1], [], []>} : vector<8x64xf32>, vector<64x32xf32>, vector<8x32xf32> -> vector<8x32xf32>
    %283 = arith.addf %280, %282 : vector<8x32xf32>
    %284 = math.tanh %283 : vector<8x32xf32>
    %c4 = arith.constant 4 : index
    %c0_132 = arith.constant 0 : index
    %c0_133 = arith.constant 0 : index
    %285 = vector.load %arg1[%c4, %c0_132, %c0_133] : memref<8x8x32xf32, #tpu.memory_space<vmem>>, vector<1x8x32xf32>
    %286 = vector.shape_cast %285 : vector<1x8x32xf32> to vector<8x32xf32>
    %c0_134 = arith.constant 0 : index
    %c0_135 = arith.constant 0 : index
    %287 = vector.load %arg7[%c0_134, %c0_135] : memref<32x128xf32, #tpu.memory_space<vmem>>, vector<32x128xf32>
    %cst_136 = arith.constant dense<0.000000e+00> : vector<8x128xf32>
    %288 = tpu.matmul %286, %287, %cst_136 {dimension_numbers = #tpu.dot_dimension_numbers<[1], [0], [0], [1], [0, 0, 1, 1], [], []>} : vector<8x32xf32>, vector<32x128xf32>, vector<8x128xf32> -> vector<8x128xf32>
    %c0_137 = arith.constant 0 : index
    %c0_138 = arith.constant 0 : index
    %289 = vector.load %arg8[%c0_137, %c0_138] : memref<64x128xf32, #tpu.memory_space<vmem>>, vector<64x128xf32>
    %cst_139 = arith.constant dense<0.000000e+00> : vector<8x128xf32>
    %290 = tpu.matmul %278, %289, %cst_139 {dimension_numbers = #tpu.dot_dimension_numbers<[1], [0], [0], [1], [0, 0, 1, 1], [], []>} : vector<8x64xf32>, vector<64x128xf32>, vector<8x128xf32> -> vector<8x128xf32>
    %291 = arith.addf %288, %290 : vector<8x128xf32>
    %c0_140 = arith.constant 0 : index
    %c0_141 = arith.constant 0 : index
    %292 = vector.load %arg9[%c0_140, %c0_141] : memref<32x128xf32, #tpu.memory_space<vmem>>, vector<32x128xf32>
    %cst_142 = arith.constant dense<0.000000e+00> : vector<8x128xf32>
    %293 = tpu.matmul %253, %292, %cst_142 {dimension_numbers = #tpu.dot_dimension_numbers<[1], [0], [0], [1], [0, 0, 1, 1], [], []>} : vector<8x32xf32>, vector<32x128xf32>, vector<8x128xf32> -> vector<8x128xf32>
    %294 = arith.addf %291, %293 : vector<8x128xf32>
    %295 = vector.broadcast %9 : vector<1x128xf32> to vector<8x128xf32>
    %296 = arith.addf %294, %295 : vector<8x128xf32>
    %297 = vector.extract_strided_slice %296 {offsets = [0, 0], sizes = [8, 32], strides = [1, 1]} : vector<8x128xf32> to vector<8x32xf32>
    %298 = arith.negf %297 : vector<8x32xf32>
    %299 = math.exp %298 : vector<8x32xf32>
    %cst_143 = arith.constant 1.000000e+00 : f32
    %300 = vector.broadcast %cst_143 : f32 to vector<8x32xf32>
    %301 = arith.addf %300, %299 : vector<8x32xf32>
    %302 = arith.divf %300, %301 : vector<8x32xf32>
    %303 = vector.extract_strided_slice %296 {offsets = [0, 32], sizes = [8, 32], strides = [1, 1]} : vector<8x128xf32> to vector<8x32xf32>
    %304 = arith.negf %303 : vector<8x32xf32>
    %305 = math.exp %304 : vector<8x32xf32>
    %cst_144 = arith.constant 1.000000e+00 : f32
    %306 = vector.broadcast %cst_144 : f32 to vector<8x32xf32>
    %307 = arith.addf %306, %305 : vector<8x32xf32>
    %308 = arith.divf %306, %307 : vector<8x32xf32>
    %309 = vector.extract_strided_slice %296 {offsets = [0, 64], sizes = [8, 32], strides = [1, 1]} : vector<8x128xf32> to vector<8x32xf32>
    %310 = math.tanh %309 : vector<8x32xf32>
    %311 = vector.extract_strided_slice %296 {offsets = [0, 96], sizes = [8, 32], strides = [1, 1]} : vector<8x128xf32> to vector<8x32xf32>
    %312 = arith.negf %311 : vector<8x32xf32>
    %313 = math.exp %312 : vector<8x32xf32>
    %cst_145 = arith.constant 1.000000e+00 : f32
    %314 = vector.broadcast %cst_145 : f32 to vector<8x32xf32>
    %315 = arith.addf %314, %313 : vector<8x32xf32>
    %316 = arith.divf %314, %315 : vector<8x32xf32>
    %317 = arith.mulf %308, %251 : vector<8x32xf32>
    %318 = arith.mulf %302, %310 : vector<8x32xf32>
    %319 = arith.addf %317, %318 : vector<8x32xf32>
    %320 = math.tanh %319 : vector<8x32xf32>
    %321 = arith.mulf %316, %320 : vector<8x32xf32>
    %c0_146 = arith.constant 0 : index
    %c0_147 = arith.constant 0 : index
    %322 = vector.load %arg11[%c0_146, %c0_147] : memref<32x32xf32, #tpu.memory_space<vmem>>, vector<32x32xf32>
    %cst_148 = arith.constant dense<0.000000e+00> : vector<8x32xf32>
    %323 = tpu.matmul %321, %322, %cst_148 {dimension_numbers = #tpu.dot_dimension_numbers<[1], [0], [0], [1], [0, 0, 1, 1], [], []>} : vector<8x32xf32>, vector<32x32xf32>, vector<8x32xf32> -> vector<8x32xf32>
    %324 = vector.shape_cast %323 : vector<8x32xf32> to vector<8x1x32xf32>
    %325 = vector.broadcast %324 : vector<8x1x32xf32> to vector<8x8x32xf32>
    %326 = arith.addf %4, %325 : vector<8x8x32xf32>
    %327 = math.tanh %326 : vector<8x8x32xf32>
    %328 = vector.broadcast %8 : vector<1x1x32xf32> to vector<8x8x32xf32>
    %329 = arith.mulf %327, %328 : vector<8x8x32xf32>
    %cst_149 = arith.constant dense<0.000000e+00> : vector<8x8xf32>
    %330 = vector.multi_reduction <add>, %329, %cst_149 [2] : vector<8x8x32xf32> to vector<8x8xf32>
    %cst_150 = arith.constant -1.000000e+09 : f32
    %331 = vector.broadcast %cst_150 : f32 to vector<8x8xf32>
    %332 = arith.select %7, %331, %330 : vector<8x8xi1>, vector<8x8xf32>
    %cst_151 = arith.constant dense<0xFF800000> : vector<8xf32>
    %333 = vector.multi_reduction <maximumf>, %332, %cst_151 [1] : vector<8x8xf32> to vector<8xf32>
    %334 = vector.shape_cast %333 : vector<8xf32> to vector<8x1xf32>
    %335 = vector.broadcast %334 : vector<8x1xf32> to vector<8x8xf32>
    %336 = arith.subf %332, %335 : vector<8x8xf32>
    %337 = math.exp %336 : vector<8x8xf32>
    %cst_152 = arith.constant dense<0.000000e+00> : vector<8xf32>
    %338 = vector.multi_reduction <add>, %337, %cst_152 [1] : vector<8x8xf32> to vector<8xf32>
    %339 = vector.shape_cast %338 : vector<8xf32> to vector<8x1xf32>
    %340 = tpu.reciprocal %339 {approx = true} : vector<8x1xf32> -> vector<8x1xf32>
    %341 = vector.broadcast %340 : vector<8x1xf32> to vector<8x8xf32>
    %342 = arith.mulf %337, %341 : vector<8x8xf32>
    %343 = vector.shape_cast %342 : vector<8x8xf32> to vector<8x8x1xf32>
    %344 = vector.broadcast %343 : vector<8x8x1xf32> to vector<8x8x64xf32>
    %345 = arith.mulf %344, %3 : vector<8x8x64xf32>
    %cst_153 = arith.constant dense<0.000000e+00> : vector<8x64xf32>
    %346 = vector.multi_reduction <add>, %345, %cst_153 [1] : vector<8x8x64xf32> to vector<8x64xf32>
    %c0_154 = arith.constant 0 : index
    %c0_155 = arith.constant 0 : index
    %347 = vector.load %arg13[%c0_154, %c0_155] : memref<32x32xf32, #tpu.memory_space<vmem>>, vector<32x32xf32>
    %cst_156 = arith.constant dense<0.000000e+00> : vector<8x32xf32>
    %348 = tpu.matmul %321, %347, %cst_156 {dimension_numbers = #tpu.dot_dimension_numbers<[1], [0], [0], [1], [0, 0, 1, 1], [], []>} : vector<8x32xf32>, vector<32x32xf32>, vector<8x32xf32> -> vector<8x32xf32>
    %c0_157 = arith.constant 0 : index
    %c0_158 = arith.constant 0 : index
    %349 = vector.load %arg14[%c0_157, %c0_158] : memref<64x32xf32, #tpu.memory_space<vmem>>, vector<64x32xf32>
    %cst_159 = arith.constant dense<0.000000e+00> : vector<8x32xf32>
    %350 = tpu.matmul %346, %349, %cst_159 {dimension_numbers = #tpu.dot_dimension_numbers<[1], [0], [0], [1], [0, 0, 1, 1], [], []>} : vector<8x64xf32>, vector<64x32xf32>, vector<8x32xf32> -> vector<8x32xf32>
    %351 = arith.addf %348, %350 : vector<8x32xf32>
    %352 = math.tanh %351 : vector<8x32xf32>
    %c5 = arith.constant 5 : index
    %c0_160 = arith.constant 0 : index
    %c0_161 = arith.constant 0 : index
    %353 = vector.load %arg1[%c5, %c0_160, %c0_161] : memref<8x8x32xf32, #tpu.memory_space<vmem>>, vector<1x8x32xf32>
    %354 = vector.shape_cast %353 : vector<1x8x32xf32> to vector<8x32xf32>
    %c0_162 = arith.constant 0 : index
    %c0_163 = arith.constant 0 : index
    %355 = vector.load %arg7[%c0_162, %c0_163] : memref<32x128xf32, #tpu.memory_space<vmem>>, vector<32x128xf32>
    %cst_164 = arith.constant dense<0.000000e+00> : vector<8x128xf32>
    %356 = tpu.matmul %354, %355, %cst_164 {dimension_numbers = #tpu.dot_dimension_numbers<[1], [0], [0], [1], [0, 0, 1, 1], [], []>} : vector<8x32xf32>, vector<32x128xf32>, vector<8x128xf32> -> vector<8x128xf32>
    %c0_165 = arith.constant 0 : index
    %c0_166 = arith.constant 0 : index
    %357 = vector.load %arg8[%c0_165, %c0_166] : memref<64x128xf32, #tpu.memory_space<vmem>>, vector<64x128xf32>
    %cst_167 = arith.constant dense<0.000000e+00> : vector<8x128xf32>
    %358 = tpu.matmul %346, %357, %cst_167 {dimension_numbers = #tpu.dot_dimension_numbers<[1], [0], [0], [1], [0, 0, 1, 1], [], []>} : vector<8x64xf32>, vector<64x128xf32>, vector<8x128xf32> -> vector<8x128xf32>
    %359 = arith.addf %356, %358 : vector<8x128xf32>
    %c0_168 = arith.constant 0 : index
    %c0_169 = arith.constant 0 : index
    %360 = vector.load %arg9[%c0_168, %c0_169] : memref<32x128xf32, #tpu.memory_space<vmem>>, vector<32x128xf32>
    %cst_170 = arith.constant dense<0.000000e+00> : vector<8x128xf32>
    %361 = tpu.matmul %321, %360, %cst_170 {dimension_numbers = #tpu.dot_dimension_numbers<[1], [0], [0], [1], [0, 0, 1, 1], [], []>} : vector<8x32xf32>, vector<32x128xf32>, vector<8x128xf32> -> vector<8x128xf32>
    %362 = arith.addf %359, %361 : vector<8x128xf32>
    %363 = vector.broadcast %9 : vector<1x128xf32> to vector<8x128xf32>
    %364 = arith.addf %362, %363 : vector<8x128xf32>
    %365 = vector.extract_strided_slice %364 {offsets = [0, 0], sizes = [8, 32], strides = [1, 1]} : vector<8x128xf32> to vector<8x32xf32>
    %366 = arith.negf %365 : vector<8x32xf32>
    %367 = math.exp %366 : vector<8x32xf32>
    %cst_171 = arith.constant 1.000000e+00 : f32
    %368 = vector.broadcast %cst_171 : f32 to vector<8x32xf32>
    %369 = arith.addf %368, %367 : vector<8x32xf32>
    %370 = arith.divf %368, %369 : vector<8x32xf32>
    %371 = vector.extract_strided_slice %364 {offsets = [0, 32], sizes = [8, 32], strides = [1, 1]} : vector<8x128xf32> to vector<8x32xf32>
    %372 = arith.negf %371 : vector<8x32xf32>
    %373 = math.exp %372 : vector<8x32xf32>
    %cst_172 = arith.constant 1.000000e+00 : f32
    %374 = vector.broadcast %cst_172 : f32 to vector<8x32xf32>
    %375 = arith.addf %374, %373 : vector<8x32xf32>
    %376 = arith.divf %374, %375 : vector<8x32xf32>
    %377 = vector.extract_strided_slice %364 {offsets = [0, 64], sizes = [8, 32], strides = [1, 1]} : vector<8x128xf32> to vector<8x32xf32>
    %378 = math.tanh %377 : vector<8x32xf32>
    %379 = vector.extract_strided_slice %364 {offsets = [0, 96], sizes = [8, 32], strides = [1, 1]} : vector<8x128xf32> to vector<8x32xf32>
    %380 = arith.negf %379 : vector<8x32xf32>
    %381 = math.exp %380 : vector<8x32xf32>
    %cst_173 = arith.constant 1.000000e+00 : f32
    %382 = vector.broadcast %cst_173 : f32 to vector<8x32xf32>
    %383 = arith.addf %382, %381 : vector<8x32xf32>
    %384 = arith.divf %382, %383 : vector<8x32xf32>
    %385 = arith.mulf %376, %319 : vector<8x32xf32>
    %386 = arith.mulf %370, %378 : vector<8x32xf32>
    %387 = arith.addf %385, %386 : vector<8x32xf32>
    %388 = math.tanh %387 : vector<8x32xf32>
    %389 = arith.mulf %384, %388 : vector<8x32xf32>
    %c0_174 = arith.constant 0 : index
    %c0_175 = arith.constant 0 : index
    %390 = vector.load %arg11[%c0_174, %c0_175] : memref<32x32xf32, #tpu.memory_space<vmem>>, vector<32x32xf32>
    %cst_176 = arith.constant dense<0.000000e+00> : vector<8x32xf32>
    %391 = tpu.matmul %389, %390, %cst_176 {dimension_numbers = #tpu.dot_dimension_numbers<[1], [0], [0], [1], [0, 0, 1, 1], [], []>} : vector<8x32xf32>, vector<32x32xf32>, vector<8x32xf32> -> vector<8x32xf32>
    %392 = vector.shape_cast %391 : vector<8x32xf32> to vector<8x1x32xf32>
    %393 = vector.broadcast %392 : vector<8x1x32xf32> to vector<8x8x32xf32>
    %394 = arith.addf %4, %393 : vector<8x8x32xf32>
    %395 = math.tanh %394 : vector<8x8x32xf32>
    %396 = vector.broadcast %8 : vector<1x1x32xf32> to vector<8x8x32xf32>
    %397 = arith.mulf %395, %396 : vector<8x8x32xf32>
    %cst_177 = arith.constant dense<0.000000e+00> : vector<8x8xf32>
    %398 = vector.multi_reduction <add>, %397, %cst_177 [2] : vector<8x8x32xf32> to vector<8x8xf32>
    %cst_178 = arith.constant -1.000000e+09 : f32
    %399 = vector.broadcast %cst_178 : f32 to vector<8x8xf32>
    %400 = arith.select %7, %399, %398 : vector<8x8xi1>, vector<8x8xf32>
    %cst_179 = arith.constant dense<0xFF800000> : vector<8xf32>
    %401 = vector.multi_reduction <maximumf>, %400, %cst_179 [1] : vector<8x8xf32> to vector<8xf32>
    %402 = vector.shape_cast %401 : vector<8xf32> to vector<8x1xf32>
    %403 = vector.broadcast %402 : vector<8x1xf32> to vector<8x8xf32>
    %404 = arith.subf %400, %403 : vector<8x8xf32>
    %405 = math.exp %404 : vector<8x8xf32>
    %cst_180 = arith.constant dense<0.000000e+00> : vector<8xf32>
    %406 = vector.multi_reduction <add>, %405, %cst_180 [1] : vector<8x8xf32> to vector<8xf32>
    %407 = vector.shape_cast %406 : vector<8xf32> to vector<8x1xf32>
    %408 = tpu.reciprocal %407 {approx = true} : vector<8x1xf32> -> vector<8x1xf32>
    %409 = vector.broadcast %408 : vector<8x1xf32> to vector<8x8xf32>
    %410 = arith.mulf %405, %409 : vector<8x8xf32>
    %411 = vector.shape_cast %410 : vector<8x8xf32> to vector<8x8x1xf32>
    %412 = vector.broadcast %411 : vector<8x8x1xf32> to vector<8x8x64xf32>
    %413 = arith.mulf %412, %3 : vector<8x8x64xf32>
    %cst_181 = arith.constant dense<0.000000e+00> : vector<8x64xf32>
    %414 = vector.multi_reduction <add>, %413, %cst_181 [1] : vector<8x8x64xf32> to vector<8x64xf32>
    %c0_182 = arith.constant 0 : index
    %c0_183 = arith.constant 0 : index
    %415 = vector.load %arg13[%c0_182, %c0_183] : memref<32x32xf32, #tpu.memory_space<vmem>>, vector<32x32xf32>
    %cst_184 = arith.constant dense<0.000000e+00> : vector<8x32xf32>
    %416 = tpu.matmul %389, %415, %cst_184 {dimension_numbers = #tpu.dot_dimension_numbers<[1], [0], [0], [1], [0, 0, 1, 1], [], []>} : vector<8x32xf32>, vector<32x32xf32>, vector<8x32xf32> -> vector<8x32xf32>
    %c0_185 = arith.constant 0 : index
    %c0_186 = arith.constant 0 : index
    %417 = vector.load %arg14[%c0_185, %c0_186] : memref<64x32xf32, #tpu.memory_space<vmem>>, vector<64x32xf32>
    %cst_187 = arith.constant dense<0.000000e+00> : vector<8x32xf32>
    %418 = tpu.matmul %414, %417, %cst_187 {dimension_numbers = #tpu.dot_dimension_numbers<[1], [0], [0], [1], [0, 0, 1, 1], [], []>} : vector<8x64xf32>, vector<64x32xf32>, vector<8x32xf32> -> vector<8x32xf32>
    %419 = arith.addf %416, %418 : vector<8x32xf32>
    %420 = math.tanh %419 : vector<8x32xf32>
    %c6 = arith.constant 6 : index
    %c0_188 = arith.constant 0 : index
    %c0_189 = arith.constant 0 : index
    %421 = vector.load %arg1[%c6, %c0_188, %c0_189] : memref<8x8x32xf32, #tpu.memory_space<vmem>>, vector<1x8x32xf32>
    %422 = vector.shape_cast %421 : vector<1x8x32xf32> to vector<8x32xf32>
    %c0_190 = arith.constant 0 : index
    %c0_191 = arith.constant 0 : index
    %423 = vector.load %arg7[%c0_190, %c0_191] : memref<32x128xf32, #tpu.memory_space<vmem>>, vector<32x128xf32>
    %cst_192 = arith.constant dense<0.000000e+00> : vector<8x128xf32>
    %424 = tpu.matmul %422, %423, %cst_192 {dimension_numbers = #tpu.dot_dimension_numbers<[1], [0], [0], [1], [0, 0, 1, 1], [], []>} : vector<8x32xf32>, vector<32x128xf32>, vector<8x128xf32> -> vector<8x128xf32>
    %c0_193 = arith.constant 0 : index
    %c0_194 = arith.constant 0 : index
    %425 = vector.load %arg8[%c0_193, %c0_194] : memref<64x128xf32, #tpu.memory_space<vmem>>, vector<64x128xf32>
    %cst_195 = arith.constant dense<0.000000e+00> : vector<8x128xf32>
    %426 = tpu.matmul %414, %425, %cst_195 {dimension_numbers = #tpu.dot_dimension_numbers<[1], [0], [0], [1], [0, 0, 1, 1], [], []>} : vector<8x64xf32>, vector<64x128xf32>, vector<8x128xf32> -> vector<8x128xf32>
    %427 = arith.addf %424, %426 : vector<8x128xf32>
    %c0_196 = arith.constant 0 : index
    %c0_197 = arith.constant 0 : index
    %428 = vector.load %arg9[%c0_196, %c0_197] : memref<32x128xf32, #tpu.memory_space<vmem>>, vector<32x128xf32>
    %cst_198 = arith.constant dense<0.000000e+00> : vector<8x128xf32>
    %429 = tpu.matmul %389, %428, %cst_198 {dimension_numbers = #tpu.dot_dimension_numbers<[1], [0], [0], [1], [0, 0, 1, 1], [], []>} : vector<8x32xf32>, vector<32x128xf32>, vector<8x128xf32> -> vector<8x128xf32>
    %430 = arith.addf %427, %429 : vector<8x128xf32>
    %431 = vector.broadcast %9 : vector<1x128xf32> to vector<8x128xf32>
    %432 = arith.addf %430, %431 : vector<8x128xf32>
    %433 = vector.extract_strided_slice %432 {offsets = [0, 0], sizes = [8, 32], strides = [1, 1]} : vector<8x128xf32> to vector<8x32xf32>
    %434 = arith.negf %433 : vector<8x32xf32>
    %435 = math.exp %434 : vector<8x32xf32>
    %cst_199 = arith.constant 1.000000e+00 : f32
    %436 = vector.broadcast %cst_199 : f32 to vector<8x32xf32>
    %437 = arith.addf %436, %435 : vector<8x32xf32>
    %438 = arith.divf %436, %437 : vector<8x32xf32>
    %439 = vector.extract_strided_slice %432 {offsets = [0, 32], sizes = [8, 32], strides = [1, 1]} : vector<8x128xf32> to vector<8x32xf32>
    %440 = arith.negf %439 : vector<8x32xf32>
    %441 = math.exp %440 : vector<8x32xf32>
    %cst_200 = arith.constant 1.000000e+00 : f32
    %442 = vector.broadcast %cst_200 : f32 to vector<8x32xf32>
    %443 = arith.addf %442, %441 : vector<8x32xf32>
    %444 = arith.divf %442, %443 : vector<8x32xf32>
    %445 = vector.extract_strided_slice %432 {offsets = [0, 64], sizes = [8, 32], strides = [1, 1]} : vector<8x128xf32> to vector<8x32xf32>
    %446 = math.tanh %445 : vector<8x32xf32>
    %447 = vector.extract_strided_slice %432 {offsets = [0, 96], sizes = [8, 32], strides = [1, 1]} : vector<8x128xf32> to vector<8x32xf32>
    %448 = arith.negf %447 : vector<8x32xf32>
    %449 = math.exp %448 : vector<8x32xf32>
    %cst_201 = arith.constant 1.000000e+00 : f32
    %450 = vector.broadcast %cst_201 : f32 to vector<8x32xf32>
    %451 = arith.addf %450, %449 : vector<8x32xf32>
    %452 = arith.divf %450, %451 : vector<8x32xf32>
    %453 = arith.mulf %444, %387 : vector<8x32xf32>
    %454 = arith.mulf %438, %446 : vector<8x32xf32>
    %455 = arith.addf %453, %454 : vector<8x32xf32>
    %456 = math.tanh %455 : vector<8x32xf32>
    %457 = arith.mulf %452, %456 : vector<8x32xf32>
    %c0_202 = arith.constant 0 : index
    %c0_203 = arith.constant 0 : index
    %458 = vector.load %arg11[%c0_202, %c0_203] : memref<32x32xf32, #tpu.memory_space<vmem>>, vector<32x32xf32>
    %cst_204 = arith.constant dense<0.000000e+00> : vector<8x32xf32>
    %459 = tpu.matmul %457, %458, %cst_204 {dimension_numbers = #tpu.dot_dimension_numbers<[1], [0], [0], [1], [0, 0, 1, 1], [], []>} : vector<8x32xf32>, vector<32x32xf32>, vector<8x32xf32> -> vector<8x32xf32>
    %460 = vector.shape_cast %459 : vector<8x32xf32> to vector<8x1x32xf32>
    %461 = vector.broadcast %460 : vector<8x1x32xf32> to vector<8x8x32xf32>
    %462 = arith.addf %4, %461 : vector<8x8x32xf32>
    %463 = math.tanh %462 : vector<8x8x32xf32>
    %464 = vector.broadcast %8 : vector<1x1x32xf32> to vector<8x8x32xf32>
    %465 = arith.mulf %463, %464 : vector<8x8x32xf32>
    %cst_205 = arith.constant dense<0.000000e+00> : vector<8x8xf32>
    %466 = vector.multi_reduction <add>, %465, %cst_205 [2] : vector<8x8x32xf32> to vector<8x8xf32>
    %cst_206 = arith.constant -1.000000e+09 : f32
    %467 = vector.broadcast %cst_206 : f32 to vector<8x8xf32>
    %468 = arith.select %7, %467, %466 : vector<8x8xi1>, vector<8x8xf32>
    %cst_207 = arith.constant dense<0xFF800000> : vector<8xf32>
    %469 = vector.multi_reduction <maximumf>, %468, %cst_207 [1] : vector<8x8xf32> to vector<8xf32>
    %470 = vector.shape_cast %469 : vector<8xf32> to vector<8x1xf32>
    %471 = vector.broadcast %470 : vector<8x1xf32> to vector<8x8xf32>
    %472 = arith.subf %468, %471 : vector<8x8xf32>
    %473 = math.exp %472 : vector<8x8xf32>
    %cst_208 = arith.constant dense<0.000000e+00> : vector<8xf32>
    %474 = vector.multi_reduction <add>, %473, %cst_208 [1] : vector<8x8xf32> to vector<8xf32>
    %475 = vector.shape_cast %474 : vector<8xf32> to vector<8x1xf32>
    %476 = tpu.reciprocal %475 {approx = true} : vector<8x1xf32> -> vector<8x1xf32>
    %477 = vector.broadcast %476 : vector<8x1xf32> to vector<8x8xf32>
    %478 = arith.mulf %473, %477 : vector<8x8xf32>
    %479 = vector.shape_cast %478 : vector<8x8xf32> to vector<8x8x1xf32>
    %480 = vector.broadcast %479 : vector<8x8x1xf32> to vector<8x8x64xf32>
    %481 = arith.mulf %480, %3 : vector<8x8x64xf32>
    %cst_209 = arith.constant dense<0.000000e+00> : vector<8x64xf32>
    %482 = vector.multi_reduction <add>, %481, %cst_209 [1] : vector<8x8x64xf32> to vector<8x64xf32>
    %c0_210 = arith.constant 0 : index
    %c0_211 = arith.constant 0 : index
    %483 = vector.load %arg13[%c0_210, %c0_211] : memref<32x32xf32, #tpu.memory_space<vmem>>, vector<32x32xf32>
    %cst_212 = arith.constant dense<0.000000e+00> : vector<8x32xf32>
    %484 = tpu.matmul %457, %483, %cst_212 {dimension_numbers = #tpu.dot_dimension_numbers<[1], [0], [0], [1], [0, 0, 1, 1], [], []>} : vector<8x32xf32>, vector<32x32xf32>, vector<8x32xf32> -> vector<8x32xf32>
    %c0_213 = arith.constant 0 : index
    %c0_214 = arith.constant 0 : index
    %485 = vector.load %arg14[%c0_213, %c0_214] : memref<64x32xf32, #tpu.memory_space<vmem>>, vector<64x32xf32>
    %cst_215 = arith.constant dense<0.000000e+00> : vector<8x32xf32>
    %486 = tpu.matmul %482, %485, %cst_215 {dimension_numbers = #tpu.dot_dimension_numbers<[1], [0], [0], [1], [0, 0, 1, 1], [], []>} : vector<8x64xf32>, vector<64x32xf32>, vector<8x32xf32> -> vector<8x32xf32>
    %487 = arith.addf %484, %486 : vector<8x32xf32>
    %488 = math.tanh %487 : vector<8x32xf32>
    %c7 = arith.constant 7 : index
    %c0_216 = arith.constant 0 : index
    %c0_217 = arith.constant 0 : index
    %489 = vector.load %arg1[%c7, %c0_216, %c0_217] : memref<8x8x32xf32, #tpu.memory_space<vmem>>, vector<1x8x32xf32>
    %490 = vector.shape_cast %489 : vector<1x8x32xf32> to vector<8x32xf32>
    %c0_218 = arith.constant 0 : index
    %c0_219 = arith.constant 0 : index
    %491 = vector.load %arg7[%c0_218, %c0_219] : memref<32x128xf32, #tpu.memory_space<vmem>>, vector<32x128xf32>
    %cst_220 = arith.constant dense<0.000000e+00> : vector<8x128xf32>
    %492 = tpu.matmul %490, %491, %cst_220 {dimension_numbers = #tpu.dot_dimension_numbers<[1], [0], [0], [1], [0, 0, 1, 1], [], []>} : vector<8x32xf32>, vector<32x128xf32>, vector<8x128xf32> -> vector<8x128xf32>
    %c0_221 = arith.constant 0 : index
    %c0_222 = arith.constant 0 : index
    %493 = vector.load %arg8[%c0_221, %c0_222] : memref<64x128xf32, #tpu.memory_space<vmem>>, vector<64x128xf32>
    %cst_223 = arith.constant dense<0.000000e+00> : vector<8x128xf32>
    %494 = tpu.matmul %482, %493, %cst_223 {dimension_numbers = #tpu.dot_dimension_numbers<[1], [0], [0], [1], [0, 0, 1, 1], [], []>} : vector<8x64xf32>, vector<64x128xf32>, vector<8x128xf32> -> vector<8x128xf32>
    %495 = arith.addf %492, %494 : vector<8x128xf32>
    %c0_224 = arith.constant 0 : index
    %c0_225 = arith.constant 0 : index
    %496 = vector.load %arg9[%c0_224, %c0_225] : memref<32x128xf32, #tpu.memory_space<vmem>>, vector<32x128xf32>
    %cst_226 = arith.constant dense<0.000000e+00> : vector<8x128xf32>
    %497 = tpu.matmul %457, %496, %cst_226 {dimension_numbers = #tpu.dot_dimension_numbers<[1], [0], [0], [1], [0, 0, 1, 1], [], []>} : vector<8x32xf32>, vector<32x128xf32>, vector<8x128xf32> -> vector<8x128xf32>
    %498 = arith.addf %495, %497 : vector<8x128xf32>
    %499 = vector.broadcast %9 : vector<1x128xf32> to vector<8x128xf32>
    %500 = arith.addf %498, %499 : vector<8x128xf32>
    %501 = vector.extract_strided_slice %500 {offsets = [0, 0], sizes = [8, 32], strides = [1, 1]} : vector<8x128xf32> to vector<8x32xf32>
    %502 = arith.negf %501 : vector<8x32xf32>
    %503 = math.exp %502 : vector<8x32xf32>
    %cst_227 = arith.constant 1.000000e+00 : f32
    %504 = vector.broadcast %cst_227 : f32 to vector<8x32xf32>
    %505 = arith.addf %504, %503 : vector<8x32xf32>
    %506 = arith.divf %504, %505 : vector<8x32xf32>
    %507 = vector.extract_strided_slice %500 {offsets = [0, 32], sizes = [8, 32], strides = [1, 1]} : vector<8x128xf32> to vector<8x32xf32>
    %508 = arith.negf %507 : vector<8x32xf32>
    %509 = math.exp %508 : vector<8x32xf32>
    %cst_228 = arith.constant 1.000000e+00 : f32
    %510 = vector.broadcast %cst_228 : f32 to vector<8x32xf32>
    %511 = arith.addf %510, %509 : vector<8x32xf32>
    %512 = arith.divf %510, %511 : vector<8x32xf32>
    %513 = vector.extract_strided_slice %500 {offsets = [0, 64], sizes = [8, 32], strides = [1, 1]} : vector<8x128xf32> to vector<8x32xf32>
    %514 = math.tanh %513 : vector<8x32xf32>
    %515 = vector.extract_strided_slice %500 {offsets = [0, 96], sizes = [8, 32], strides = [1, 1]} : vector<8x128xf32> to vector<8x32xf32>
    %516 = arith.negf %515 : vector<8x32xf32>
    %517 = math.exp %516 : vector<8x32xf32>
    %cst_229 = arith.constant 1.000000e+00 : f32
    %518 = vector.broadcast %cst_229 : f32 to vector<8x32xf32>
    %519 = arith.addf %518, %517 : vector<8x32xf32>
    %520 = arith.divf %518, %519 : vector<8x32xf32>
    %521 = arith.mulf %512, %455 : vector<8x32xf32>
    %522 = arith.mulf %506, %514 : vector<8x32xf32>
    %523 = arith.addf %521, %522 : vector<8x32xf32>
    %524 = math.tanh %523 : vector<8x32xf32>
    %525 = arith.mulf %520, %524 : vector<8x32xf32>
    %c0_230 = arith.constant 0 : index
    %c0_231 = arith.constant 0 : index
    %526 = vector.load %arg11[%c0_230, %c0_231] : memref<32x32xf32, #tpu.memory_space<vmem>>, vector<32x32xf32>
    %cst_232 = arith.constant dense<0.000000e+00> : vector<8x32xf32>
    %527 = tpu.matmul %525, %526, %cst_232 {dimension_numbers = #tpu.dot_dimension_numbers<[1], [0], [0], [1], [0, 0, 1, 1], [], []>} : vector<8x32xf32>, vector<32x32xf32>, vector<8x32xf32> -> vector<8x32xf32>
    %528 = vector.shape_cast %527 : vector<8x32xf32> to vector<8x1x32xf32>
    %529 = vector.broadcast %528 : vector<8x1x32xf32> to vector<8x8x32xf32>
    %530 = arith.addf %4, %529 : vector<8x8x32xf32>
    %531 = math.tanh %530 : vector<8x8x32xf32>
    %532 = vector.broadcast %8 : vector<1x1x32xf32> to vector<8x8x32xf32>
    %533 = arith.mulf %531, %532 : vector<8x8x32xf32>
    %cst_233 = arith.constant dense<0.000000e+00> : vector<8x8xf32>
    %534 = vector.multi_reduction <add>, %533, %cst_233 [2] : vector<8x8x32xf32> to vector<8x8xf32>
    %cst_234 = arith.constant -1.000000e+09 : f32
    %535 = vector.broadcast %cst_234 : f32 to vector<8x8xf32>
    %536 = arith.select %7, %535, %534 : vector<8x8xi1>, vector<8x8xf32>
    %cst_235 = arith.constant dense<0xFF800000> : vector<8xf32>
    %537 = vector.multi_reduction <maximumf>, %536, %cst_235 [1] : vector<8x8xf32> to vector<8xf32>
    %538 = vector.shape_cast %537 : vector<8xf32> to vector<8x1xf32>
    %539 = vector.broadcast %538 : vector<8x1xf32> to vector<8x8xf32>
    %540 = arith.subf %536, %539 : vector<8x8xf32>
    %541 = math.exp %540 : vector<8x8xf32>
    %cst_236 = arith.constant dense<0.000000e+00> : vector<8xf32>
    %542 = vector.multi_reduction <add>, %541, %cst_236 [1] : vector<8x8xf32> to vector<8xf32>
    %543 = vector.shape_cast %542 : vector<8xf32> to vector<8x1xf32>
    %544 = tpu.reciprocal %543 {approx = true} : vector<8x1xf32> -> vector<8x1xf32>
    %545 = vector.broadcast %544 : vector<8x1xf32> to vector<8x8xf32>
    %546 = arith.mulf %541, %545 : vector<8x8xf32>
    %547 = vector.shape_cast %546 : vector<8x8xf32> to vector<8x8x1xf32>
    %548 = vector.broadcast %547 : vector<8x8x1xf32> to vector<8x8x64xf32>
    %549 = arith.mulf %548, %3 : vector<8x8x64xf32>
    %cst_237 = arith.constant dense<0.000000e+00> : vector<8x64xf32>
    %550 = vector.multi_reduction <add>, %549, %cst_237 [1] : vector<8x8x64xf32> to vector<8x64xf32>
    %c0_238 = arith.constant 0 : index
    %c0_239 = arith.constant 0 : index
    %551 = vector.load %arg13[%c0_238, %c0_239] : memref<32x32xf32, #tpu.memory_space<vmem>>, vector<32x32xf32>
    %cst_240 = arith.constant dense<0.000000e+00> : vector<8x32xf32>
    %552 = tpu.matmul %525, %551, %cst_240 {dimension_numbers = #tpu.dot_dimension_numbers<[1], [0], [0], [1], [0, 0, 1, 1], [], []>} : vector<8x32xf32>, vector<32x32xf32>, vector<8x32xf32> -> vector<8x32xf32>
    %c0_241 = arith.constant 0 : index
    %c0_242 = arith.constant 0 : index
    %553 = vector.load %arg14[%c0_241, %c0_242] : memref<64x32xf32, #tpu.memory_space<vmem>>, vector<64x32xf32>
    %cst_243 = arith.constant dense<0.000000e+00> : vector<8x32xf32>
    %554 = tpu.matmul %550, %553, %cst_243 {dimension_numbers = #tpu.dot_dimension_numbers<[1], [0], [0], [1], [0, 0, 1, 1], [], []>} : vector<8x64xf32>, vector<64x32xf32>, vector<8x32xf32> -> vector<8x32xf32>
    %555 = arith.addf %552, %554 : vector<8x32xf32>
    %556 = math.tanh %555 : vector<8x32xf32>
    %557 = tpu.concatenate %80, %148, %216, %284, %352, %420, %488, %556 in 1 : vector<8x32xf32>, vector<8x32xf32>, vector<8x32xf32>, vector<8x32xf32>, vector<8x32xf32>, vector<8x32xf32>, vector<8x32xf32>, vector<8x32xf32> -> vector<8x256xf32>
    %c0_244 = arith.constant 0 : index
    %c0_245 = arith.constant 0 : index
    %558 = vector.load %arg15[%c0_244, %c0_245] : memref<8x256xf32, #tpu.memory_space<vmem>>, vector<8x256xf32>
    tpu.vector_store %arg15[%c0_244, %c0_245], %557 {strides = array<i32>} : memref<8x256xf32, #tpu.memory_space<vmem>>, vector<8x256xf32>,
    %c0_246 = arith.constant 0 : index
    %c0_247 = arith.constant 0 : index
    %559 = vector.load %arg16[%c0_246, %c0_247] : memref<8x32xf32, #tpu.memory_space<vmem>>, vector<8x32xf32>
    tpu.vector_store %arg16[%c0_246, %c0_247], %525 {strides = array<i32>} : memref<8x32xf32, #tpu.memory_space<vmem>>, vector<8x32xf32>,
    %c0_248 = arith.constant 0 : index
    %c0_249 = arith.constant 0 : index
    %560 = vector.load %arg17[%c0_248, %c0_249] : memref<8x32xf32, #tpu.memory_space<vmem>>, vector<8x32xf32>
    tpu.vector_store %arg17[%c0_248, %c0_249], %523 {strides = array<i32>} : memref<8x32xf32, #tpu.memory_space<vmem>>, vector<8x32xf32>,
    %c0_250 = arith.constant 0 : index
    %c0_251 = arith.constant 0 : index
    %561 = vector.load %arg18[%c0_250, %c0_251] : memref<8x64xf32, #tpu.memory_space<vmem>>, vector<8x64xf32>
    tpu.vector_store %arg18[%c0_250, %c0_251], %550 {strides = array<i32>} : memref<8x64xf32, #tpu.memory_space<vmem>>, vector<8x64xf32>,
    return
  }
  func.func @transform_0(%arg0: i32) -> (i32, i32, i32) {
    %c0_i32 = arith.constant 0 : i32
    %c0_i32_0 = arith.constant 0 : i32
    %c0_i32_1 = arith.constant 0 : i32
    return %arg0, %c0_i32, %c0_i32_0 : i32, i32, i32
  }
  func.func @transform_1(%arg0: i32) -> (i32, i32, i32) {
    %c0_i32 = arith.constant 0 : i32
    %c0_i32_0 = arith.constant 0 : i32
    %c0_i32_1 = arith.constant 0 : i32
    %c0_i32_2 = arith.constant 0 : i32
    return %c0_i32, %c0_i32_0, %c0_i32_1 : i32, i32, i32
  }
  func.func @transform_2(%arg0: i32) -> (i32, i32, i32) {
    %c0_i32 = arith.constant 0 : i32
    %c0_i32_0 = arith.constant 0 : i32
    %c0_i32_1 = arith.constant 0 : i32
    %c0_i32_2 = arith.constant 0 : i32
    return %c0_i32, %c0_i32_0, %c0_i32_1 : i32, i32, i32
  }
  func.func @transform_3(%arg0: i32) -> (i32, i32) {
    %c0_i32 = arith.constant 0 : i32
    %c0_i32_0 = arith.constant 0 : i32
    %c0_i32_1 = arith.constant 0 : i32
    return %c0_i32, %c0_i32_0 : i32, i32
  }
  func.func @transform_4(%arg0: i32) -> (i32, i32) {
    %c0_i32 = arith.constant 0 : i32
    %c0_i32_0 = arith.constant 0 : i32
    %c0_i32_1 = arith.constant 0 : i32
    return %c0_i32, %c0_i32_0 : i32, i32
  }
  func.func @transform_5(%arg0: i32) -> (i32, i32) {
    %c0_i32 = arith.constant 0 : i32
    %c0_i32_0 = arith.constant 0 : i32
    %c0_i32_1 = arith.constant 0 : i32
    return %c0_i32, %c0_i32_0 : i32, i32
  }
  func.func @transform_6(%arg0: i32) -> (i32, i32) {
    %c0_i32 = arith.constant 0 : i32
    %c0_i32_0 = arith.constant 0 : i32
    %c0_i32_1 = arith.constant 0 : i32
    return %c0_i32, %c0_i32_0 : i32, i32
  }
  func.func @transform_7(%arg0: i32) -> (i32, i32) {
    %c0_i32 = arith.constant 0 : i32
    %c0_i32_0 = arith.constant 0 : i32
    %c0_i32_1 = arith.constant 0 : i32
    return %c0_i32, %c0_i32_0 : i32, i32
  }
  func.func @transform_8(%arg0: i32) -> (i32, i32) {
    %c0_i32 = arith.constant 0 : i32
    %c0_i32_0 = arith.constant 0 : i32
    %c0_i32_1 = arith.constant 0 : i32
    return %c0_i32, %c0_i32_0 : i32, i32
  }
  func.func @transform_9(%arg0: i32) -> (i32, i32) {
    %c0_i32 = arith.constant 0 : i32
    %c0_i32_0 = arith.constant 0 : i32
    %c0_i32_1 = arith.constant 0 : i32
    return %c0_i32, %c0_i32_0 : i32, i32
  }
  func.func @transform_10(%arg0: i32) -> (i32, i32) {
    %c0_i32 = arith.constant 0 : i32
    %c0_i32_0 = arith.constant 0 : i32
    %c0_i32_1 = arith.constant 0 : i32
    return %c0_i32, %c0_i32_0 : i32, i32
  }
  func.func @transform_11(%arg0: i32) -> (i32, i32, i32) {
    %c0_i32 = arith.constant 0 : i32
    %c0_i32_0 = arith.constant 0 : i32
    %c0_i32_1 = arith.constant 0 : i32
    %c0_i32_2 = arith.constant 0 : i32
    return %c0_i32, %c0_i32_0, %c0_i32_1 : i32, i32, i32
  }
  func.func @transform_12(%arg0: i32) -> (i32, i32) {
    %c0_i32 = arith.constant 0 : i32
    %c0_i32_0 = arith.constant 0 : i32
    %c0_i32_1 = arith.constant 0 : i32
    return %c0_i32, %c0_i32_0 : i32, i32
  }
  func.func @transform_13(%arg0: i32) -> (i32, i32) {
    %c0_i32 = arith.constant 0 : i32
    %c0_i32_0 = arith.constant 0 : i32
    %c0_i32_1 = arith.constant 0 : i32
    return %c0_i32, %c0_i32_0 : i32, i32
  }
  func.func @transform_14(%arg0: i32) -> (i32, i32) {
    %c0_i32 = arith.constant 0 : i32
    %c0_i32_0 = arith.constant 0 : i32
    return %c0_i32, %arg0 : i32, i32
  }
}

</mosaic_0001>

<llo_original>
// kernel: decoder_forward.3
$region0: #{decoder_forward.3}
  #allocation0 [shape = 'u32[]', space=smem, size = 0x4, offset = 0x4, fixed_abs, tag = 'smem constant byte address 0x4 - core index']
  #allocation1 [shape = 'u32[144,128]{1,0:T(1,128)}', space=vmem, size = 0x12000, scoped, tag = 'internal scratch']
  %s0 = inlined_call_operand.vmem [shape: f32[16,32], index: 0, kind: input, shape index: {}]
  %s1 = inlined_call_operand.vmem [shape: f32[32,64], index: 1, kind: input, shape index: {}]
  %s2 = inlined_call_operand.hbm [shape: f32[16,64], index: 2, kind: output, shape index: {}]
  %s3 = sld [smem:[#allocation0]]
  $region18: #{decoder_forward.3} parent=0
    _
  %s5 = ssub.s32 1, %s3
  %s6 = scalar_select 0, %s5, %s3
  $region1: #{decoder_forward.3} parent=0
    #allocation2 [shape = 'u8[8192]{0}', space=vmem, size = 0x2000, scoped, tag = 'output window, operand 0, single buffered']
    #allocation3 [shape = 's32[1]{0}', space=sflag, size = 0x4, scoped, tag = 'scoped memory for decoder_forward.3']
    %7 = vsyncpa [#allocation3], 0
    // Predicated region
    $region2: #{decoder_forward.3} parent=1 // pred_check
      _
    $region3: #{decoder_forward.3} parent=1 // pred_check_branch
      %9 = sbr.rel (0) target = $region5
    $region4: #{decoder_forward.3} parent=1 // pred_region
      _
    $region5: #{decoder_forward.3} parent=1 // pred_fallthru
      _
    // Predicated region
    $region6: #{decoder_forward.3} parent=1 // pred_check
      _
    $region7: #{decoder_forward.3} parent=1 // pred_check_branch
      %11 = sbr.rel (0) target = $region9
    $region8: #{decoder_forward.3} parent=1 // pred_region
      _
    $region9: #{decoder_forward.3} parent=1 // pred_fallthru
      _
    %v12 = vld [vmem:[%s0] sm:$0xff]
    %v13 = vld [vmem:[%s0 + $0x8] sm:$0xff]
    %v14 = vld [vmem:[%s1] sm:$0xff]
    %v15 = vld [vmem:[%s1 + $0x8] sm:$0xff]
    %v16 = vld [vmem:[%s1 + $0x10] sm:$0xff]
    %v17 = vld [vmem:[%s1 + $0x18] sm:$0xff]
    %vm18 = vcmask 261120
    %v20 = vsel %vm18, %v12, 0
    %v23 = vsel %vm18, %v13, 0
    %25 = vmatprep.subr.mxu0 0.0
    %26 = vmatpush1.msra.mxu0 %v14
    %27 = vmatprep.subr.mxu0 0.0
    %28 = vmatpush1.msra.mxu0 %v15
    %29 = vmatprep.subr.mxu0 0.0
    %30 = vmatpush1.msra.mxu0 %v16
    %31 = vmatprep.subr.mxu0 0.0
    %32 = vmatpush1.msra.mxu0 %v17
    %33 = vmatprep.subr.mxu0 0.0
    %34 = vmatpush1.msra.mxu0 0.0
    %35 = vmatprep.subr.mxu0 0.0
    %36 = vmatpush1.msra.mxu0 0.0
    %37 = vmatprep.subr.mxu0 0.0
    %38 = vmatpush1.msra.mxu0 0.0
    %39 = vmatprep.subr.mxu0 0.0
    %40 = vmatpush1.msra.mxu0 0.0
    %41 = vmatprep.subr.mxu0 0.0
    %42 = vmatpush1.msra.mxu0 0.0
    %43 = vmatprep.subr.mxu0 0.0
    %44 = vmatpush1.msra.mxu0 0.0
    %45 = vmatprep.subr.mxu0 0.0
    %46 = vmatpush1.msra.mxu0 0.0
    %47 = vmatprep.subr.mxu0 0.0
    %48 = vmatpush1.msra.mxu0 0.0
    %49 = vmatprep.subr.mxu0 0.0
    %50 = vmatpush1.msra.mxu0 0.0
    %51 = vmatprep.subr.mxu0 0.0
    %52 = vmatpush1.msra.mxu0 0.0
    %53 = vmatprep.subr.mxu0 0.0
    %54 = vmatpush1.msra.mxu0 0.0
    %55 = vmatprep.subr.mxu0 0.0
    %56 = vmatpush1.msra.mxu0 0.0
    %57 = vmatprep.subr.mxu0 0.0
    %58 = vmatpush1.msra.mxu0 0.0
    %59 = vmatprep.subr.mxu0 0.0
    %60 = vmatpush1.msra.mxu0 0.0
    %61 = vmatprep.subr.mxu0 0.0
    %62 = vmatpush1.msra.mxu0 0.0
    %63 = vmatprep.subr.mxu0 0.0
    %64 = vmatpush1.msra.mxu0 0.0
    %65 = vmatprep.subr.mxu0 0.0
    %66 = vmatpush1.msra.mxu0 0.0
    %67 = vmatprep.subr.mxu0 0.0
    %68 = vmatpush1.msra.mxu0 0.0
    %69 = vmatprep.subr.mxu0 0.0
    %70 = vmatpush1.msra.mxu0 0.0
    %71 = vmatprep.subr.mxu0 0.0
    %72 = vmatpush1.msra.mxu0 0.0
    %73 = vmatprep.subr.mxu0 0.0
    %74 = vmatpush1.msra.mxu0 0.0
    %75 = vmatprep.subr.mxu0 0.0
    %76 = vmatpush1.msra.mxu0 0.0
    %77 = vmatprep.subr.mxu0 0.0
    %78 = vmatpush1.msra.mxu0 0.0
    %79 = vmatprep.subr.mxu0 0.0
    %80 = vmatpush1.msra.mxu0 0.0
    %81 = vmatprep.subr.mxu0 0.0
    %82 = vmatpush1.msra.mxu0 0.0
    %83 = vmatprep.subr.mxu0 0.0
    %84 = vmatpush1.msra.mxu0 0.0
    %85 = vmatprep.subr.mxu0 0.0
    %86 = vmatpush1.msra.mxu0 0.0
    %87 = vmatprep.subr.mxu0 0.0
    %88 = vmatpush1.msra.mxu0 0.0
    %89 = vmatprep.mubr.f32.mxu0 0.0
    %90 = vmatmul.mubr.f32.gmra.mrb[0].mxu0 %v20
    %v91 = vpop.f32.mrb[0].mxu0
    %v92 = vadd.f32 0.0, %v91
    %v93 = vpop.f32.mrb[0].mxu0
    %94 = vmatprep.mubr.f32.mxu0 0.0
    %95 = vmatmul.mubr.f32.gmra.mrb[0].mxu0 %v23
    %v96 = vpop.f32.mrb[0].mxu0
    %v97 = vadd.f32 0.0, %v96
    %v98 = vpop.f32.mrb[0].mxu0
    %99 = vdwg.mxu0
    %vm100 = vcmask 523264
    %101 = vst.msk [vmem:[#allocation2] sm:$0xff] %vm100, %v92
    %102 = vst.msk [vmem:[#allocation2 + $0x8] sm:$0xff] %vm100, %v97
    // Predicated region
    $region10: #{decoder_forward.3} parent=1 // pred_check
      _
    $region11: #{decoder_forward.3} parent=1 // pred_check_branch
      %104 = sbr.rel (0) target = $region13
    $region12: #{decoder_forward.3} parent=1 // pred_region
      %s106 = ssub.s32 256, 256
      %107 = vsyncadd [#allocation3], %s106
      %s108 = sshll.u32 [#allocation2], 4
      %s109 = int_to_ptr.vmem [resolvable:$true] %s108
      %114 = dma.vmem_to_hbm [thread:$0]  %s109, 256, %s2, [#allocation3], 128, 128, 8
    $region13: #{decoder_forward.3} parent=1 // pred_fallthru
      _
    // Predicated region
    $region14: #{decoder_forward.3} parent=1 // pred_check
      _
    $region15: #{decoder_forward.3} parent=1 // pred_check_branch
      %116 = sbr.rel (0) target = $region17
    $region16: #{decoder_forward.3} parent=1 // pred_region
      %117 = dma.done [#allocation3], 256
    $region17: #{decoder_forward.3} parent=1 // pred_fallthru
      _
    %118 = vsyncpa [#allocation3], 1

// kernel: decoder_forward.2
$region0: #{decoder_forward.2}
  #allocation0 [shape = 'u32[]', space=smem, size = 0x4, offset = 0x4, fixed_abs, tag = 'smem constant byte address 0x4 - core index']
  #allocation1 [shape = 'u32[144,128]{1,0:T(1,128)}', space=vmem, size = 0x12000, scoped, tag = 'internal scratch']
  #allocation2 [shape = 'f32[8,32]{1,0:T(8,128)}', space=vmem, size = 0x1000, scoped, tag = 'scratch operand']
  #allocation3 [shape = 'f32[8,32]{1,0:T(8,128)}', space=vmem, size = 0x1000, scoped, tag = 'scratch operand']
  #allocation4 [shape = 'f32[8,64]{1,0:T(8,128)}', space=vmem, size = 0x1000, scoped, tag = 'scratch operand']
  %s0 = inlined_call_operand.vmem [shape: f32[8,8,32], index: 0, kind: input, shape index: {}]
  %s1 = inlined_call_operand.vmem [shape: f32[8,8,64], index: 1, kind: input, shape index: {}]
  %s2 = inlined_call_operand.vmem [shape: f32[8,8,32], index: 2, kind: input, shape index: {}]
  %s3 = inlined_call_operand.vmem [shape: f32[8,8], index: 3, kind: input, shape index: {}]
  %s4 = inlined_call_operand.vmem [shape: f32[8,32], index: 4, kind: input, shape index: {}]
  %s5 = inlined_call_operand.vmem [shape: f32[8,32], index: 5, kind: input, shape index: {}]
  %s6 = inlined_call_operand.vmem [shape: f32[32,128], index: 6, kind: input, shape index: {}]
  %s7 = inlined_call_operand.vmem [shape: f32[64,128], index: 7, kind: input, shape index: {}]
  %s8 = inlined_call_operand.vmem [shape: f32[32,128], index: 8, kind: input, shape index: {}]
  %s9 = inlined_call_operand.vmem [shape: f32[1,128], index: 9, kind: input, shape index: {}]
  %s10 = inlined_call_operand.vmem [shape: f32[32,32], index: 10, kind: input, shape index: {}]
  %s11 = inlined_call_operand.vmem [shape: f32[1,1,32], index: 11, kind: input, shape index: {}]
  %s12 = inlined_call_operand.vmem [shape: f32[32,32], index: 12, kind: input, shape index: {}]
  %s13 = inlined_call_operand.vmem [shape: f32[64,32], index: 13, kind: input, shape index: {}]
  %s14 = inlined_call_operand.vmem [shape: f32[8,256], index: 14, kind: output, shape index: {}]
  %s15 = sld [smem:[#allocation0]]
  $region70: #{decoder_forward.2} parent=0
    _
  %s17 = ssub.s32 1, %s15
  %s18 = scalar_select 0, %s17, %s15
  // Predicated region
  $region2: #{decoder_forward.2} parent=0 // pred_check
    _
  $region3: #{decoder_forward.2} parent=0 // pred_check_branch
    %20 = sbr.rel (0) target = $region5
  $region4: #{decoder_forward.2} parent=0 // pred_region
    _
  $region5: #{decoder_forward.2} parent=0 // pred_fallthru
    _
  // Predicated region
  $region6: #{decoder_forward.2} parent=0 // pred_check
    _
  $region7: #{decoder_forward.2} parent=0 // pred_check_branch
    %22 = sbr.rel (0) target = $region9
  $region8: #{decoder_forward.2} parent=0 // pred_region
    _
  $region9: #{decoder_forward.2} parent=0 // pred_fallthru
    _
  // Predicated region
  $region10: #{decoder_forward.2} parent=0 // pred_check
    _
  $region11: #{decoder_forward.2} parent=0 // pred_check_branch
    %24 = sbr.rel (0) target = $region13
  $region12: #{decoder_forward.2} parent=0 // pred_region
    _
  $region13: #{decoder_forward.2} parent=0 // pred_fallthru
    _
  // Predicated region
  $region14: #{decoder_forward.2} parent=0 // pred_check
    _
  $region15: #{decoder_forward.2} parent=0 // pred_check_branch
    %26 = sbr.rel (0) target = $region17
  $region16: #{decoder_forward.2} parent=0 // pred_region
    _
  $region17: #{decoder_forward.2} parent=0 // pred_fallthru
    _
  // Predicated region
  $region18: #{decoder_forward.2} parent=0 // pred_check
    _
  $region19: #{decoder_forward.2} parent=0 // pred_check_branch
    %28 = sbr.rel (0) target = $region21
  $region20: #{decoder_forward.2} parent=0 // pred_region
    _
  $region21: #{decoder_forward.2} parent=0 // pred_fallthru
    _
  // Predicated region
  $region22: #{decoder_forward.2} parent=0 // pred_check
    _
  $region23: #{decoder_forward.2} parent=0 // pred_check_branch
    %30 = sbr.rel (0) target = $region25
  $region24: #{decoder_forward.2} parent=0 // pred_region
    _
  $region25: #{decoder_forward.2} parent=0 // pred_fallthru
    _
  // Predicated region
  $region26: #{decoder_forward.2} parent=0 // pred_check
    _
  $region27: #{decoder_forward.2} parent=0 // pred_check_branch
    %32 = sbr.rel (0) target = $region29
  $region28: #{decoder_forward.2} parent=0 // pred_region
    _
  $region29: #{decoder_forward.2} parent=0 // pred_fallthru
    _
  // Predicated region
  $region30: #{decoder_forward.2} parent=0 // pred_check
    _
  $region31: #{decoder_forward.2} parent=0 // pred_check_branch
    %34 = sbr.rel (0) target = $region33
  $region32: #{decoder_forward.2} parent=0 // pred_region
    _
  $region33: #{decoder_forward.2} parent=0 // pred_fallthru
    _
  // Predicated region
  $region34: #{decoder_forward.2} parent=0 // pred_check
    _
  $region35: #{decoder_forward.2} parent=0 // pred_check_branch
    %36 = sbr.rel (0) target = $region37
  $region36: #{decoder_forward.2} parent=0 // pred_region
    _
  $region37: #{decoder_forward.2} parent=0 // pred_fallthru
    _
  // Predicated region
  $region38: #{decoder_forward.2} parent=0 // pred_check
    _
  $region39: #{decoder_forward.2} parent=0 // pred_check_branch
    %38 = sbr.rel (0) target = $region41
  $region40: #{decoder_forward.2} parent=0 // pred_region
    _
  $region41: #{decoder_forward.2} parent=0 // pred_fallthru
    _
  // Predicated region
  $region42: #{decoder_forward.2} parent=0 // pred_check
    _
  $region43: #{decoder_forward.2} parent=0 // pred_check_branch
    %40 = sbr.rel (0) target = $region45
  $region44: #{decoder_forward.2} parent=0 // pred_region
    _
  $region45: #{decoder_forward.2} parent=0 // pred_fallthru
    _
  // Predicated region
  $region46: #{decoder_forward.2} parent=0 // pred_check
    _
  $region47: #{decoder_forward.2} parent=0 // pred_check_branch
    %42 = sbr.rel (0) target = $region49
  $region48: #{decoder_forward.2} parent=0 // pred_region
    _
  $region49: #{decoder_forward.2} parent=0 // pred_fallthru
    _
  // Predicated region
  $region50: #{decoder_forward.2} parent=0 // pred_check
    _
  $region51: #{decoder_forward.2} parent=0 // pred_check_branch
    %44 = sbr.rel (0) target = $region53
  $region52: #{decoder_forward.2} parent=0 // pred_region
    _
  $region53: #{decoder_forward.2} parent=0 // pred_fallthru
    _
  // Predicated region
  $region54: #{decoder_forward.2} parent=0 // pred_check
    _
  $region55: #{decoder_forward.2} parent=0 // pred_check_branch
    %46 = sbr.rel (0) target = $region57
  $region56: #{decoder_forward.2} parent=0 // pred_region
    _
  $region57: #{decoder_forward.2} parent=0 // pred_fallthru
    _
  %p47 = scmp.eq.s32.totalorder 0, 0
  // Predicated region
  $region58: #{decoder_forward.2} parent=0 // pred_check
    %p48 = pneg %p47
  $region59: #{decoder_forward.2} parent=0 // pred_check_branch
    %50 = sbr.rel (%p48) target = $region61
  $region60: #{decoder_forward.2} parent=0 // pred_region
    %v51 = vld [vmem:[%s4] sm:$0xff]
    %vm52 = vcmask 261120
    %53 = vst.msk [vmem:[#allocation2] sm:$0xff] %vm52, %v51
    %v54 = vld [vmem:[%s5] sm:$0xff]
    %55 = vst.msk [vmem:[#allocation3] sm:$0xff] %vm52, %v54
    %vm56 = vcmask 523264
    %57 = vst.msk [vmem:[#allocation4] sm:$0xff] %vm56, 0.0
  $region61: #{decoder_forward.2} parent=0 // pred_fallthru
    _
  %v58 = vld [vmem:[%s1] sm:$0xff]
  %v59 = vld [vmem:[%s1 + $0x8] sm:$0xff]
  %v60 = vld [vmem:[%s1 + $0x10] sm:$0xff]
  %v61 = vld [vmem:[%s1 + $0x18] sm:$0xff]
  %v62 = vld [vmem:[%s1 + $0x20] sm:$0xff]
  %v63 = vld [vmem:[%s1 + $0x28] sm:$0xff]
  %v64 = vld [vmem:[%s1 + $0x30] sm:$0xff]
  %v65 = vld [vmem:[%s1 + $0x38] sm:$0xff]
  %v66 = vld [vmem:[%s2] sm:$0xff]
  %v67 = vld [vmem:[%s2 + $0x8] sm:$0xff]
  %v68 = vld [vmem:[%s2 + $0x10] sm:$0xff]
  %v69 = vld [vmem:[%s2 + $0x18] sm:$0xff]
  %v70 = vld [vmem:[%s2 + $0x20] sm:$0xff]
  %v71 = vld [vmem:[%s2 + $0x28] sm:$0xff]
  %v72 = vld [vmem:[%s2 + $0x30] sm:$0xff]
  %v73 = vld [vmem:[%s2 + $0x38] sm:$0xff]
  %v74 = vld [vmem:[%s3] sm:$0xff]
  %vm75 = vcmp.gt.f32.partialorder %v74, 0.0
  %v76 = vld [vmem:[%s11] sm:$0x1]
  %v77 = vld [vmem:[%s9] sm:$0x1]
  %v78 = vld [vmem:[#allocation2] sm:$0xff]
  %v79 = vld [vmem:[#allocation3] sm:$0xff]
  %v80 = vld [vmem:[#allocation4] sm:$0xff]
  %v81 = vld [vmem:[%s0] sm:$0xff]
  %v82 = vld [vmem:[%s6] sm:$0xff]
  %v83 = vld [vmem:[%s6 + $0x8] sm:$0xff]
  %v84 = vld [vmem:[%s6 + $0x10] sm:$0xff]
  %v85 = vld [vmem:[%s6 + $0x18] sm:$0xff]
  %v86 = vld [vmem:[%s7] sm:$0xff]
  %v87 = vld [vmem:[%s7 + $0x8] sm:$0xff]
  %v88 = vld [vmem:[%s7 + $0x10] sm:$0xff]
  %v89 = vld [vmem:[%s7 + $0x18] sm:$0xff]
  %v90 = vld [vmem:[%s7 + $0x20] sm:$0xff]
  %v91 = vld [vmem:[%s7 + $0x28] sm:$0xff]
  %v92 = vld [vmem:[%s7 + $0x30] sm:$0xff]
  %v93 = vld [vmem:[%s7 + $0x38] sm:$0xff]
  %vm94 = vcmask 523264
  %v96 = vsel %vm94, %v80, 0
  %98 = vmatprep.subr.mxu0 0.0
  %99 = vmatpush1.msra.mxu0 %v86
  %100 = vmatprep.subr.mxu0 0.0
  %101 = vmatpush1.msra.mxu0 %v87
  %102 = vmatprep.subr.mxu0 0.0
  %103 = vmatpush1.msra.mxu0 %v88
  %104 = vmatprep.subr.mxu0 0.0
  %105 = vmatpush1.msra.mxu0 %v89
  %106 = vmatprep.subr.mxu0 0.0
  %107 = vmatpush1.msra.mxu0 %v90
  %108 = vmatprep.subr.mxu0 0.0
  %109 = vmatpush1.msra.mxu0 %v91
  %110 = vmatprep.subr.mxu0 0.0
  %111 = vmatpush1.msra.mxu0 %v92
  %112 = vmatprep.subr.mxu0 0.0
  %113 = vmatpush1.msra.mxu0 %v93
  %114 = vmatprep.subr.mxu0 0.0
  %115 = vmatpush1.msra.mxu0 0.0
  %116 = vmatprep.subr.mxu0 0.0
  %117 = vmatpush1.msra.mxu0 0.0
  %118 = vmatprep.subr.mxu0 0.0
  %119 = vmatpush1.msra.mxu0 0.0
  %120 = vmatprep.subr.mxu0 0.0
  %121 = vmatpush1.msra.mxu0 0.0
  %122 = vmatprep.subr.mxu0 0.0
  %123 = vmatpush1.msra.mxu0 0.0
  %124 = vmatprep.subr.mxu0 0.0
  %125 = vmatpush1.msra.mxu0 0.0
  %126 = vmatprep.subr.mxu0 0.0
  %127 = vmatpush1.msra.mxu0 0.0
  %128 = vmatprep.subr.mxu0 0.0
  %129 = vmatpush1.msra.mxu0 0.0
  %130 = vmatprep.subr.mxu0 0.0
  %131 = vmatpush1.msra.mxu0 0.0
  %132 = vmatprep.subr.mxu0 0.0
  %133 = vmatpush1.msra.mxu0 0.0
  %134 = vmatprep.subr.mxu0 0.0
  %135 = vmatpush1.msra.mxu0 0.0
  %136 = vmatprep.subr.mxu0 0.0
  %137 = vmatpush1.msra.mxu0 0.0
  %138 = vmatprep.subr.mxu0 0.0
  %139 = vmatpush1.msra.mxu0 0.0
  %140 = vmatprep.subr.mxu0 0.0
  %141 = vmatpush1.msra.mxu0 0.0
  %142 = vmatprep.subr.mxu0 0.0
  %143 = vmatpush1.msra.mxu0 0.0
  %144 = vmatprep.subr.mxu0 0.0
  %145 = vmatpush1.msra.mxu0 0.0
  %146 = vmatprep.subr.mxu0 0.0
  %147 = vmatpush1.msra.mxu0 0.0
  %148 = vmatprep.subr.mxu0 0.0
  %149 = vmatpush1.msra.mxu0 0.0
  %150 = vmatprep.subr.mxu0 0.0
  %151 = vmatpush1.msra.mxu0 0.0
  %152 = vmatprep.subr.mxu0 0.0
  %153 = vmatpush1.msra.mxu0 0.0
  %154 = vmatprep.subr.mxu0 0.0
  %155 = vmatpush1.msra.mxu0 0.0
  %156 = vmatprep.subr.mxu0 0.0
  %157 = vmatpush1.msra.mxu0 0.0
  %158 = vmatprep.subr.mxu0 0.0
  %159 = vmatpush1.msra.mxu0 0.0
  %160 = vmatprep.subr.mxu0 0.0
  %161 = vmatpush1.msra.mxu0 0.0
  %162 = vmatprep.mubr.f32.mxu0 0.0
  %163 = vmatmul.mubr.f32.gmra.mrb[0].mxu0 %v96
  %v164 = vpop.f32.mrb[0].mxu0
  %v165 = vadd.f32 0.0, %v164
  %v166 = vpop.f32.mrb[0].mxu0
  %167 = vdwg.mxu0
  %vm168 = vcmask 261120
  %v170 = vsel %vm168, %v81, 0
  %172 = vmatprep.subr.mxu0 0.0
  %173 = vmatpush1.msra.mxu0 %v82
  %174 = vmatprep.subr.mxu0 0.0
  %175 = vmatpush1.msra.mxu0 %v83
  %176 = vmatprep.subr.mxu0 0.0
  %177 = vmatpush1.msra.mxu0 %v84
  %178 = vmatprep.subr.mxu0 0.0
  %179 = vmatpush1.msra.mxu0 %v85
  %180 = vmatprep.subr.mxu0 0.0
  %181 = vmatpush1.msra.mxu0 0.0
  %182 = vmatprep.subr.mxu0 0.0
  %183 = vmatpush1.msra.mxu0 0.0
  %184 = vmatprep.subr.mxu0 0.0
  %185 = vmatpush1.msra.mxu0 0.0
  %186 = vmatprep.subr.mxu0 0.0
  %187 = vmatpush1.msra.mxu0 0.0
  %188 = vmatprep.subr.mxu0 0.0
  %189 = vmatpush1.msra.mxu0 0.0
  %190 = vmatprep.subr.mxu0 0.0
  %191 = vmatpush1.msra.mxu0 0.0
  %192 = vmatprep.subr.mxu0 0.0
  %193 = vmatpush1.msra.mxu0 0.0
  %194 = vmatprep.subr.mxu0 0.0
  %195 = vmatpush1.msra.mxu0 0.0
  %196 = vmatprep.subr.mxu0 0.0
  %197 = vmatpush1.msra.mxu0 0.0
  %198 = vmatprep.subr.mxu0 0.0
  %199 = vmatpush1.msra.mxu0 0.0
  %200 = vmatprep.subr.mxu0 0.0
  %201 = vmatpush1.msra.mxu0 0.0
  %202 = vmatprep.subr.mxu0 0.0
  %203 = vmatpush1.msra.mxu0 0.0
  %204 = vmatprep.subr.mxu0 0.0
  %205 = vmatpush1.msra.mxu0 0.0
  %206 = vmatprep.subr.mxu0 0.0
  %207 = vmatpush1.msra.mxu0 0.0
  %208 = vmatprep.subr.mxu0 0.0
  %209 = vmatpush1.msra.mxu0 0.0
  %210 = vmatprep.subr.mxu0 0.0
  %211 = vmatpush1.msra.mxu0 0.0
  %212 = vmatprep.subr.mxu0 0.0
  %213 = vmatpush1.msra.mxu0 0.0
  %214 = vmatprep.subr.mxu0 0.0
  %215 = vmatpush1.msra.mxu0 0.0
  %216 = vmatprep.subr.mxu0 0.0
  %217 = vmatpush1.msra.mxu0 0.0
  %218 = vmatprep.subr.mxu0 0.0
  %219 = vmatpush1.msra.mxu0 0.0
  %220 = vmatprep.subr.mxu0 0.0
  %221 = vmatpush1.msra.mxu0 0.0
  %222 = vmatprep.subr.mxu0 0.0
  %223 = vmatpush1.msra.mxu0 0.0
  %224 = vmatprep.subr.mxu0 0.0
  %225 = vmatpush1.msra.mxu0 0.0
  %226 = vmatprep.subr.mxu0 0.0
  %227 = vmatpush1.msra.mxu0 0.0
  %228 = vmatprep.subr.mxu0 0.0
  %229 = vmatpush1.msra.mxu0 0.0
  %230 = vmatprep.subr.mxu0 0.0
  %231 = vmatpush1.msra.mxu0 0.0
  %232 = vmatprep.subr.mxu0 0.0
  %233 = vmatpush1.msra.mxu0 0.0
  %234 = vmatprep.subr.mxu0 0.0
  %235 = vmatpush1.msra.mxu0 0.0
  %236 = vmatprep.mubr.f32.mxu0 0.0
  %237 = vmatmul.mubr.f32.gmra.mrb[0].mxu0 %v170
  %v238 = vpop.f32.mrb[0].mxu0
  %v239 = vadd.f32 %v165, %v238
  %v240 = vpop.f32.mrb[0].mxu0
  %241 = vdwg.mxu0
  %v242 = vld [vmem:[%s8] sm:$0xff]
  %v243 = vld [vmem:[%s8 + $0x8] sm:$0xff]
  %v244 = vld [vmem:[%s8 + $0x10] sm:$0xff]
  %v245 = vld [vmem:[%s8 + $0x18] sm:$0xff]
  %v247 = vsel %vm168, %v78, 0
  %249 = vmatprep.subr.mxu0 0.0
  %250 = vmatpush1.msra.mxu0 %v242
  %251 = vmatprep.subr.mxu0 0.0
  %252 = vmatpush1.msra.mxu0 %v243
  %253 = vmatprep.subr.mxu0 0.0
  %254 = vmatpush1.msra.mxu0 %v244
  %255 = vmatprep.subr.mxu0 0.0
  %256 = vmatpush1.msra.mxu0 %v245
  %257 = vmatprep.subr.mxu0 0.0
  %258 = vmatpush1.msra.mxu0 0.0
  %259 = vmatprep.subr.mxu0 0.0
  %260 = vmatpush1.msra.mxu0 0.0
  %261 = vmatprep.subr.mxu0 0.0
  %262 = vmatpush1.msra.mxu0 0.0
  %263 = vmatprep.subr.mxu0 0.0
  %264 = vmatpush1.msra.mxu0 0.0
  %265 = vmatprep.subr.mxu0 0.0
  %266 = vmatpush1.msra.mxu0 0.0
  %267 = vmatprep.subr.mxu0 0.0
  %268 = vmatpush1.msra.mxu0 0.0
  %269 = vmatprep.subr.mxu0 0.0
  %270 = vmatpush1.msra.mxu0 0.0
  %271 = vmatprep.subr.mxu0 0.0
  %272 = vmatpush1.msra.mxu0 0.0
  %273 = vmatprep.subr.mxu0 0.0
  %274 = vmatpush1.msra.mxu0 0.0
  %275 = vmatprep.subr.mxu0 0.0
  %276 = vmatpush1.msra.mxu0 0.0
  %277 = vmatprep.subr.mxu0 0.0
  %278 = vmatpush1.msra.mxu0 0.0
  %279 = vmatprep.subr.mxu0 0.0
  %280 = vmatpush1.msra.mxu0 0.0
  %281 = vmatprep.subr.mxu0 0.0
  %282 = vmatpush1.msra.mxu0 0.0
  %283 = vmatprep.subr.mxu0 0.0
  %284 = vmatpush1.msra.mxu0 0.0
  %285 = vmatprep.subr.mxu0 0.0
  %286 = vmatpush1.msra.mxu0 0.0
  %287 = vmatprep.subr.mxu0 0.0
  %288 = vmatpush1.msra.mxu0 0.0
  %289 = vmatprep.subr.mxu0 0.0
  %290 = vmatpush1.msra.mxu0 0.0
  %291 = vmatprep.subr.mxu0 0.0
  %292 = vmatpush1.msra.mxu0 0.0
  %293 = vmatprep.subr.mxu0 0.0
  %294 = vmatpush1.msra.mxu0 0.0
  %295 = vmatprep.subr.mxu0 0.0
  %296 = vmatpush1.msra.mxu0 0.0
  %297 = vmatprep.subr.mxu0 0.0
  %298 = vmatpush1.msra.mxu0 0.0
  %299 = vmatprep.subr.mxu0 0.0
  %300 = vmatpush1.msra.mxu0 0.0
  %301 = vmatprep.subr.mxu0 0.0
  %302 = vmatpush1.msra.mxu0 0.0
  %303 = vmatprep.subr.mxu0 0.0
  %304 = vmatpush1.msra.mxu0 0.0
  %305 = vmatprep.subr.mxu0 0.0
  %306 = vmatpush1.msra.mxu0 0.0
  %307 = vmatprep.subr.mxu0 0.0
  %308 = vmatpush1.msra.mxu0 0.0
  %309 = vmatprep.subr.mxu0 0.0
  %310 = vmatpush1.msra.mxu0 0.0
  %311 = vmatprep.subr.mxu0 0.0
  %312 = vmatpush1.msra.mxu0 0.0
  %313 = vmatprep.mubr.f32.mxu0 0.0
  %314 = vmatmul.mubr.f32.gmra.mrb[0].mxu0 %v247
  %v315 = vpop.f32.mrb[0].mxu0
  %v316 = vadd.f32 0.0, %v315
  %v317 = vpop.f32.mrb[0].mxu0
  %318 = vdwg.mxu0
  %v319 = vadd.f32 %v239, %v316
  %v321 = vlaneseq
  %v322 = vshrl.u32 %v321, 7
  %v323 = vsub.s32 0, %v322
  %v324 = vrot.slane %v77, %v323
  %v326 = vadd.f32 %v319, %v324
  %v327 = vxor.u32 %v326, 2147483648
  %v328 = vmul.f32 %v327, 1.442695
  %v329 = vpow.pop %v328
  %v330 = vadd.f32 %v329, 1.0
  %v331 = vrcp.pop %v330
  %v332 = vmul.f32 1.0, %v331
  %v333 = vtanh.pop %v326
  %335 = vrot.lane.b32.xlu0 %v79, 32
  %v336 = vpop.permute.xlu0 %335
  %v338 = vmul.f32 %v332, %v336
  %340 = vrot.lane.b32.xlu0 %v333, 64
  %v341 = vpop.permute.xlu0 %340
  %v343 = vmul.f32 %v332, %v341
  %345 = vrot.lane.b32.xlu0 %v343, 32
  %v346 = vpop.permute.xlu0 %345
  %v348 = vadd.f32 %v338, %v346
  %v349 = vtanh.pop %v348
  %351 = vrot.lane.b32.xlu0 %v349, 64
  %v352 = vpop.permute.xlu0 %351
  %v354 = vmul.f32 %v332, %v352
  %v355 = vld [vmem:[%s10] sm:$0xff]
  %v356 = vld [vmem:[%s10 + $0x8] sm:$0xff]
  %v357 = vld [vmem:[%s10 + $0x10] sm:$0xff]
  %v358 = vld [vmem:[%s10 + $0x18] sm:$0xff]
  %360 = vrot.lane.b32.xlu0 %v354, 32
  %v361 = vpop.permute.xlu0 %360
  %v362 = vsel %vm168, %v361, 0
  %364 = vmatprep.subr.mxu0 0.0
  %365 = vmatpush1.msra.mxu0 %v355
  %366 = vmatprep.subr.mxu0 0.0
  %367 = vmatpush1.msra.mxu0 %v356
  %368 = vmatprep.subr.mxu0 0.0
  %369 = vmatpush1.msra.mxu0 %v357
  %370 = vmatprep.subr.mxu0 0.0
  %371 = vmatpush1.msra.mxu0 %v358
  %372 = vmatprep.subr.mxu0 0.0
  %373 = vmatpush1.msra.mxu0 0.0
  %374 = vmatprep.subr.mxu0 0.0
  %375 = vmatpush1.msra.mxu0 0.0
  %376 = vmatprep.subr.mxu0 0.0
  %377 = vmatpush1.msra.mxu0 0.0
  %378 = vmatprep.subr.mxu0 0.0
  %379 = vmatpush1.msra.mxu0 0.0
  %380 = vmatprep.subr.mxu0 0.0
  %381 = vmatpush1.msra.mxu0 0.0
  %382 = vmatprep.subr.mxu0 0.0
  %383 = vmatpush1.msra.mxu0 0.0
  %384 = vmatprep.subr.mxu0 0.0
  %385 = vmatpush1.msra.mxu0 0.0
  %386 = vmatprep.subr.mxu0 0.0
  %387 = vmatpush1.msra.mxu0 0.0
  %388 = vmatprep.subr.mxu0 0.0
  %389 = vmatpush1.msra.mxu0 0.0
  %390 = vmatprep.subr.mxu0 0.0
  %391 = vmatpush1.msra.mxu0 0.0
  %392 = vmatprep.subr.mxu0 0.0
  %393 = vmatpush1.msra.mxu0 0.0
  %394 = vmatprep.subr.mxu0 0.0
  %395 = vmatpush1.msra.mxu0 0.0
  %396 = vmatprep.subr.mxu0 0.0
  %397 = vmatpush1.msra.mxu0 0.0
  %398 = vmatprep.subr.mxu0 0.0
  %399 = vmatpush1.msra.mxu0 0.0
  %400 = vmatprep.subr.mxu0 0.0
  %401 = vmatpush1.msra.mxu0 0.0
  %402 = vmatprep.subr.mxu0 0.0
  %403 = vmatpush1.msra.mxu0 0.0
  %404 = vmatprep.subr.mxu0 0.0
  %405 = vmatpush1.msra.mxu0 0.0
  %406 = vmatprep.subr.mxu0 0.0
  %407 = vmatpush1.msra.mxu0 0.0
  %408 = vmatprep.subr.mxu0 0.0
  %409 = vmatpush1.msra.mxu0 0.0
  %410 = vmatprep.subr.mxu0 0.0
  %411 = vmatpush1.msra.mxu0 0.0
  %412 = vmatprep.subr.mxu0 0.0
  %413 = vmatpush1.msra.mxu0 0.0
  %414 = vmatprep.subr.mxu0 0.0
  %415 = vmatpush1.msra.mxu0 0.0
  %416 = vmatprep.subr.mxu0 0.0
  %417 = vmatpush1.msra.mxu0 0.0
  %418 = vmatprep.subr.mxu0 0.0
  %419 = vmatpush1.msra.mxu0 0.0
  %420 = vmatprep.subr.mxu0 0.0
  %421 = vmatpush1.msra.mxu0 0.0
  %422 = vmatprep.subr.mxu0 0.0
  %423 = vmatpush1.msra.mxu0 0.0
  %424 = vmatprep.subr.mxu0 0.0
  %425 = vmatpush1.msra.mxu0 0.0
  %426 = vmatprep.subr.mxu0 0.0
  %427 = vmatpush1.msra.mxu0 0.0
  %428 = vmatprep.mubr.f32.mxu0 0.0
  %429 = vmatmul.mubr.f32.gmra.mrb[0].mxu0 %v362
  %v430 = vpop.f32.mrb[0].mxu0
  %v431 = vadd.f32 0.0, %v430
  %v432 = vpop.f32.mrb[0].mxu0
  %433 = vdwg.mxu0
  %v435 = vcombine.high %v431, %v431
  %v437 = vunpack.c.l.s4 1966171168
  %v438 = vunpack.c.0.s8 %v437
  %v439 = vlaneseq
  %v440 = vshrl.u32 %v439, 7
  %v441 = vsub.s32 %v438, %v440
  %v442 = vrot.slane %v431, %v441
  %v444 = vunpack.c.l.s4 1966171168
  %v445 = vunpack.c.0.s8 %v444
  %v446 = vlaneseq
  %v447 = vshrl.u32 %v446, 7
  %v448 = vsub.s32 %v445, %v447
  %v449 = vrot.slane %v435, %v448
  %v450 = vcombine.high %v442, %v442
  %v451 = vcombine.high %v449, %v449
  %v453 = vunpack.c.l.s4 1966171168
  %v454 = vunpack.c.0.s8 %v453
  %v455 = vlaneseq
  %v456 = vshrl.u32 %v455, 7
  %v457 = vsub.s32 %v454, %v456
  %v458 = vrot.slane %v442, %v457
  %v460 = vunpack.c.l.s4 1966171168
  %v461 = vunpack.c.0.s8 %v460
  %v462 = vlaneseq
  %v463 = vshrl.u32 %v462, 7
  %v464 = vsub.s32 %v461, %v463
  %v465 = vrot.slane %v449, %v464
  %v467 = vunpack.c.l.s4 1966171168
  %v468 = vunpack.c.0.s8 %v467
  %v469 = vlaneseq
  %v470 = vshrl.u32 %v469, 7
  %v471 = vsub.s32 %v468, %v470
  %v472 = vrot.slane %v450, %v471
  %v474 = vunpack.c.l.s4 1966171168
  %v475 = vunpack.c.0.s8 %v474
  %v476 = vlaneseq
  %v477 = vshrl.u32 %v476, 7
  %v478 = vsub.s32 %v475, %v477
  %v479 = vrot.slane %v451, %v478
  %v480 = vcombine.high %v458, %v458
  %v481 = vcombine.high %v465, %v465
  %v482 = vcombine.high %v472, %v472
  %v483 = vcombine.high %v479, %v479
  %v484 = vlaneseq
  %v485 = vshrl.u32 %v484, 7
  %v486 = vsub.s32 0, %v485
  %v487 = vrot.slane %v458, %v486
  %v488 = vlaneseq
  %v489 = vshrl.u32 %v488, 7
  %v490 = vsub.s32 0, %v489
  %v491 = vrot.slane %v472, %v490
  %v492 = vlaneseq
  %v493 = vshrl.u32 %v492, 7
  %v494 = vsub.s32 0, %v493
  %v495 = vrot.slane %v480, %v494
  %v496 = vlaneseq
  %v497 = vshrl.u32 %v496, 7
  %v498 = vsub.s32 0, %v497
  %v499 = vrot.slane %v482, %v498
  %v500 = vlaneseq
  %v501 = vshrl.u32 %v500, 7
  %v502 = vsub.s32 0, %v501
  %v503 = vrot.slane %v465, %v502
  %v504 = vlaneseq
  %v505 = vshrl.u32 %v504, 7
  %v506 = vsub.s32 0, %v505
  %v507 = vrot.slane %v479, %v506
  %v508 = vlaneseq
  %v509 = vshrl.u32 %v508, 7
  %v510 = vsub.s32 0, %v509
  %v511 = vrot.slane %v481, %v510
  %v512 = vlaneseq
  %v513 = vshrl.u32 %v512, 7
  %v514 = vsub.s32 0, %v513
  %v515 = vrot.slane %v483, %v514
  %v524 = vadd.f32 %v66, %v487
  %v525 = vadd.f32 %v67, %v491
  %v526 = vadd.f32 %v68, %v495
  %v527 = vadd.f32 %v69, %v499
  %v528 = vadd.f32 %v70, %v503
  %v529 = vadd.f32 %v71, %v507
  %v530 = vadd.f32 %v72, %v511
  %v531 = vadd.f32 %v73, %v515
  %v532 = vtanh.pop %v524
  %v533 = vtanh.pop %v525
  %v534 = vtanh.pop %v526
  %v535 = vtanh.pop %v527
  %v536 = vtanh.pop %v528
  %v537 = vtanh.pop %v529
  %v538 = vtanh.pop %v530
  %v539 = vtanh.pop %v531
  %v541 = vlaneseq
  %v542 = vshrl.u32 %v541, 7
  %v543 = vsub.s32 0, %v542
  %v544 = vrot.slane %v76, %v543
  %v546 = vmul.f32 %v532, %v544
  %v547 = vmul.f32 %v533, %v544
  %v548 = vmul.f32 %v534, %v544
  %v549 = vmul.f32 %v535, %v544
  %v550 = vmul.f32 %v536, %v544
  %v551 = vmul.f32 %v537, %v544
  %v552 = vmul.f32 %v538, %v544
  %v553 = vmul.f32 %v539, %v544
  %v554 = vsel %vm168, %v546, 0.0
  %555 = vadd.xlane.f32.xlu0 %v554
  %v556 = vpop.xlane.xlu0 %555
  %v557 = vsel %vm168, %v547, 0.0
  %558 = vadd.xlane.f32.xlu0 %v557
  %v559 = vpop.xlane.xlu0 %558
  %v560 = vsel %vm168, %v548, 0.0
  %561 = vadd.xlane.f32.xlu0 %v560
  %v562 = vpop.xlane.xlu0 %561
  %v563 = vsel %vm168, %v549, 0.0
  %564 = vadd.xlane.f32.xlu0 %v563
  %v565 = vpop.xlane.xlu0 %564
  %v566 = vsel %vm168, %v550, 0.0
  %567 = vadd.xlane.f32.xlu0 %v566
  %v568 = vpop.xlane.xlu0 %567
  %v569 = vsel %vm168, %v551, 0.0
  %570 = vadd.xlane.f32.xlu0 %v569
  %v571 = vpop.xlane.xlu0 %570
  %v572 = vsel %vm168, %v552, 0.0
  %573 = vadd.xlane.f32.xlu0 %v572
  %v574 = vpop.xlane.xlu0 %573
  %v575 = vsel %vm168, %v553, 0.0
  %576 = vadd.xlane.f32.xlu0 %v575
  %v577 = vpop.xlane.xlu0 %576
  %v586 = vlaneseq
  %v587 = vand.u32 %v586, 127
  %v588 = vlaneseq
  %v589 = vshrl.u32 %v588, 7
  %v590 = vsub.s32 %v587, %v589
  %v591 = vrot.slane %v556, %v590
  %v592 = vlaneseq
  %v593 = vshrl.u32 %v592, 7
  %v594 = vsub.s32 %v587, %v593
  %v595 = vrot.slane %v559, %v594
  %v596 = vlaneseq
  %v597 = vshrl.u32 %v596, 7
  %v598 = vsub.s32 %v587, %v597
  %v599 = vrot.slane %v562, %v598
  %v600 = vlaneseq
  %v601 = vshrl.u32 %v600, 7
  %v602 = vsub.s32 %v587, %v601
  %v603 = vrot.slane %v565, %v602
  %v604 = vlaneseq
  %v605 = vshrl.u32 %v604, 7
  %v606 = vsub.s32 %v587, %v605
  %v607 = vrot.slane %v568, %v606
  %v608 = vlaneseq
  %v609 = vshrl.u32 %v608, 7
  %v610 = vsub.s32 %v587, %v609
  %v611 = vrot.slane %v571, %v610
  %v612 = vlaneseq
  %v613 = vshrl.u32 %v612, 7
  %v614 = vsub.s32 %v587, %v613
  %v615 = vrot.slane %v574, %v614
  %v616 = vlaneseq
  %v617 = vshrl.u32 %v616, 7
  %v618 = vsub.s32 %v587, %v617
  %v619 = vrot.slane %v577, %v618
  %vm620 = vcmask 1041409
  %v621 = vsel %vm620, %v595, %v591
  %vm622 = vcmask 1042434
  %v623 = vsel %vm622, %v599, %v621
  %vm624 = vcmask 1043459
  %v625 = vsel %vm624, %v603, %v623
  %vm626 = vcmask 1044484
  %v627 = vsel %vm626, %v607, %v625
  %vm628 = vcmask 1045509
  %v629 = vsel %vm628, %v611, %v627
  %vm630 = vcmask 1046534
  %v631 = vsel %vm630, %v615, %v629
  %vm632 = vcmask 1047559
  %v633 = vsel %vm632, %v619, %v631
  %v635 = vsel %vm75, -1e+09, %v633
  %vm636 = vcmask 64512
  %v637 = vsel %vm636, %v635, -inf
  %638 = vmax.xlane.f32.xlu0 %v637
  %v639 = vpop.xlane.xlu0 %638
  %v640 = vsub.f32 %v635, %v639
  %v641 = vmul.f32 %v640, 1.442695
  %v642 = vpow.pop %v641
  %v643 = vsel %vm636, %v642, 0.0
  %644 = vadd.xlane.f32.xlu0 %v643
  %v645 = vpop.xlane.xlu0 %644
  %v646 = vrcp.pop %v645
  %v647 = vmul.f32 %v642, %v646
  %v648 = vlaneseq
  %v649 = vshrl.u32 %v648, 7
  %v650 = vsub.s32 0, %v649
  %v651 = vrot.slane %v647, %v650
  %653 = vbcast.lane.b32.xlu0 %v651, 256
  %v654 = vpop.permute.xlu0 %653
  %v655 = vlaneseq
  %v656 = vshrl.u32 %v655, 7
  %v657 = vsub.s32 1, %v656
  %v658 = vrot.slane %v647, %v657
  %660 = vbcast.lane.b32.xlu0 %v658, 256
  %v661 = vpop.permute.xlu0 %660
  %v662 = vlaneseq
  %v663 = vshrl.u32 %v662, 7
  %v664 = vsub.s32 2, %v663
  %v665 = vrot.slane %v647, %v664
  %667 = vbcast.lane.b32.xlu0 %v665, 256
  %v668 = vpop.permute.xlu0 %667
  %v669 = vlaneseq
  %v670 = vshrl.u32 %v669, 7
  %v671 = vsub.s32 3, %v670
  %v672 = vrot.slane %v647, %v671
  %674 = vbcast.lane.b32.xlu0 %v672, 256
  %v675 = vpop.permute.xlu0 %674
  %v676 = vlaneseq
  %v677 = vshrl.u32 %v676, 7
  %v678 = vsub.s32 4, %v677
  %v679 = vrot.slane %v647, %v678
  %681 = vbcast.lane.b32.xlu0 %v679, 256
  %v682 = vpop.permute.xlu0 %681
  %v683 = vlaneseq
  %v684 = vshrl.u32 %v683, 7
  %v685 = vsub.s32 5, %v684
  %v686 = vrot.slane %v647, %v685
  %688 = vbcast.lane.b32.xlu0 %v686, 256
  %v689 = vpop.permute.xlu0 %688
  %v690 = vlaneseq
  %v691 = vshrl.u32 %v690, 7
  %v692 = vsub.s32 6, %v691
  %v693 = vrot.slane %v647, %v692
  %695 = vbcast.lane.b32.xlu0 %v693, 256
  %v696 = vpop.permute.xlu0 %695
  %v697 = vlaneseq
  %v698 = vshrl.u32 %v697, 7
  %v699 = vsub.s32 7, %v698
  %v700 = vrot.slane %v647, %v699
  %702 = vbcast.lane.b32.xlu0 %v700, 256
  %v703 = vpop.permute.xlu0 %702
  %v704 = vmul.f32 %v654, %v58
  %v705 = vmul.f32 %v661, %v59
  %v706 = vmul.f32 %v668, %v60
  %v707 = vmul.f32 %v675, %v61
  %v708 = vmul.f32 %v682, %v62
  %v709 = vmul.f32 %v689, %v63
  %v710 = vmul.f32 %v696, %v64
  %v711 = vmul.f32 %v703, %v65
  %v712 = vsel %vm94, %v704, 0.0
  %v713 = vrot.slane %v712, 4
  %v714 = vadd.f32 %v712, %v713
  %v715 = vrot.slane %v714, 2
  %v716 = vadd.f32 %v714, %v715
  %v717 = vrot.slane %v716, 1
  %v718 = vadd.f32 %v716, %v717
  %v719 = vsel %vm94, %v705, 0.0
  %v720 = vrot.slane %v719, 4
  %v721 = vadd.f32 %v719, %v720
  %v722 = vrot.slane %v721, 2
  %v723 = vadd.f32 %v721, %v722
  %v724 = vrot.slane %v723, 1
  %v725 = vadd.f32 %v723, %v724
  %v726 = vsel %vm94, %v706, 0.0
  %v727 = vrot.slane %v726, 4
  %v728 = vadd.f32 %v726, %v727
  %v729 = vrot.slane %v728, 2
  %v730 = vadd.f32 %v728, %v729
  %v731 = vrot.slane %v730, 1
  %v732 = vadd.f32 %v730, %v731
  %v733 = vsel %vm94, %v707, 0.0
  %v734 = vrot.slane %v733, 4
  %v735 = vadd.f32 %v733, %v734
  %v736 = vrot.slane %v735, 2
  %v737 = vadd.f32 %v735, %v736
  %v738 = vrot.slane %v737, 1
  %v739 = vadd.f32 %v737, %v738
  %v740 = vsel %vm94, %v708, 0.0
  %v741 = vrot.slane %v740, 4
  %v742 = vadd.f32 %v740, %v741
  %v743 = vrot.slane %v742, 2
  %v744 = vadd.f32 %v742, %v743
  %v745 = vrot.slane %v744, 1
  %v746 = vadd.f32 %v744, %v745
  %v747 = vsel %vm94, %v709, 0.0
  %v748 = vrot.slane %v747, 4
  %v749 = vadd.f32 %v747, %v748
  %v750 = vrot.slane %v749, 2
  %v751 = vadd.f32 %v749, %v750
  %v752 = vrot.slane %v751, 1
  %v753 = vadd.f32 %v751, %v752
  %v754 = vsel %vm94, %v710, 0.0
  %v755 = vrot.slane %v754, 4
  %v756 = vadd.f32 %v754, %v755
  %v757 = vrot.slane %v756, 2
  %v758 = vadd.f32 %v756, %v757
  %v759 = vrot.slane %v758, 1
  %v760 = vadd.f32 %v758, %v759
  %v761 = vsel %vm94, %v711, 0.0
  %v762 = vrot.slane %v761, 4
  %v763 = vadd.f32 %v761, %v762
  %v764 = vrot.slane %v763, 2
  %v765 = vadd.f32 %v763, %v764
  %v766 = vrot.slane %v765, 1
  %v767 = vadd.f32 %v765, %v766
  %v768 = vld [vmem:[%s12] sm:$0xff]
  %v769 = vld [vmem:[%s12 + $0x8] sm:$0xff]
  %v770 = vld [vmem:[%s12 + $0x10] sm:$0xff]
  %v771 = vld [vmem:[%s12 + $0x18] sm:$0xff]
  %v772 = vld [vmem:[%s13] sm:$0xff]
  %v773 = vld [vmem:[%s13 + $0x8] sm:$0xff]
  %v774 = vld [vmem:[%s13 + $0x10] sm:$0xff]
  %v775 = vld [vmem:[%s13 + $0x18] sm:$0xff]
  %v776 = vld [vmem:[%s13 + $0x20] sm:$0xff]
  %v777 = vld [vmem:[%s13 + $0x28] sm:$0xff]
  %v778 = vld [vmem:[%s13 + $0x30] sm:$0xff]
  %v779 = vld [vmem:[%s13 + $0x38] sm:$0xff]
  %v788 = vsel %vm620, %v725, %v718
  %v789 = vsel %vm622, %v732, %v788
  %v790 = vsel %vm624, %v739, %v789
  %v791 = vsel %vm626, %v746, %v790
  %v792 = vsel %vm628, %v753, %v791
  %v793 = vsel %vm630, %v760, %v792
  %v794 = vsel %vm632, %v767, %v793
  %v795 = vsel %vm94, %v794, 0
  %797 = vmatprep.subr.mxu0 0.0
  %798 = vmatpush1.msra.mxu0 %v772
  %799 = vmatprep.subr.mxu0 0.0
  %800 = vmatpush1.msra.mxu0 %v773
  %801 = vmatprep.subr.mxu0 0.0
  %802 = vmatpush1.msra.mxu0 %v774
  %803 = vmatprep.subr.mxu0 0.0
  %804 = vmatpush1.msra.mxu0 %v775
  %805 = vmatprep.subr.mxu0 0.0
  %806 = vmatpush1.msra.mxu0 %v776
  %807 = vmatprep.subr.mxu0 0.0
  %808 = vmatpush1.msra.mxu0 %v777
  %809 = vmatprep.subr.mxu0 0.0
  %810 = vmatpush1.msra.mxu0 %v778
  %811 = vmatprep.subr.mxu0 0.0
  %812 = vmatpush1.msra.mxu0 %v779
  %813 = vmatprep.subr.mxu0 0.0
  %814 = vmatpush1.msra.mxu0 0.0
  %815 = vmatprep.subr.mxu0 0.0
  %816 = vmatpush1.msra.mxu0 0.0
  %817 = vmatprep.subr.mxu0 0.0
  %818 = vmatpush1.msra.mxu0 0.0
  %819 = vmatprep.subr.mxu0 0.0
  %820 = vmatpush1.msra.mxu0 0.0
  %821 = vmatprep.subr.mxu0 0.0
  %822 = vmatpush1.msra.mxu0 0.0
  %823 = vmatprep.subr.mxu0 0.0
  %824 = vmatpush1.msra.mxu0 0.0
  %825 = vmatprep.subr.mxu0 0.0
  %826 = vmatpush1.msra.mxu0 0.0
  %827 = vmatprep.subr.mxu0 0.0
  %828 = vmatpush1.msra.mxu0 0.0
  %829 = vmatprep.subr.mxu0 0.0
  %830 = vmatpush1.msra.mxu0 0.0
  %831 = vmatprep.subr.mxu0 0.0
  %832 = vmatpush1.msra.mxu0 0.0
  %833 = vmatprep.subr.mxu0 0.0
  %834 = vmatpush1.msra.mxu0 0.0
  %835 = vmatprep.subr.mxu0 0.0
  %836 = vmatpush1.msra.mxu0 0.0
  %837 = vmatprep.subr.mxu0 0.0
  %838 = vmatpush1.msra.mxu0 0.0
  %839 = vmatprep.subr.mxu0 0.0
  %840 = vmatpush1.msra.mxu0 0.0
  %841 = vmatprep.subr.mxu0 0.0
  %842 = vmatpush1.msra.mxu0 0.0
  %843 = vmatprep.subr.mxu0 0.0
  %844 = vmatpush1.msra.mxu0 0.0
  %845 = vmatprep.subr.mxu0 0.0
  %846 = vmatpush1.msra.mxu0 0.0
  %847 = vmatprep.subr.mxu0 0.0
  %848 = vmatpush1.msra.mxu0 0.0
  %849 = vmatprep.subr.mxu0 0.0
  %850 = vmatpush1.msra.mxu0 0.0
  %851 = vmatprep.subr.mxu0 0.0
  %852 = vmatpush1.msra.mxu0 0.0
  %853 = vmatprep.subr.mxu0 0.0
  %854 = vmatpush1.msra.mxu0 0.0
  %855 = vmatprep.subr.mxu0 0.0
  %856 = vmatpush1.msra.mxu0 0.0
  %857 = vmatprep.subr.mxu0 0.0
  %858 = vmatpush1.msra.mxu0 0.0
  %859 = vmatprep.subr.mxu0 0.0
  %860 = vmatpush1.msra.mxu0 0.0
  %861 = vmatprep.mubr.f32.mxu0 0.0
  %862 = vmatmul.mubr.f32.gmra.mrb[0].mxu0 %v795
  %v863 = vpop.f32.mrb[0].mxu0
  %v864 = vadd.f32 0.0, %v863
  %v865 = vpop.f32.mrb[0].mxu0
  %866 = vdwg.mxu0
  %867 = vmatprep.subr.mxu0 0.0
  %868 = vmatpush1.msra.mxu0 %v768
  %869 = vmatprep.subr.mxu0 0.0
  %870 = vmatpush1.msra.mxu0 %v769
  %871 = vmatprep.subr.mxu0 0.0
  %872 = vmatpush1.msra.mxu0 %v770
  %873 = vmatprep.subr.mxu0 0.0
  %874 = vmatpush1.msra.mxu0 %v771
  %875 = vmatprep.subr.mxu0 0.0
  %876 = vmatpush1.msra.mxu0 0.0
  %877 = vmatprep.subr.mxu0 0.0
  %878 = vmatpush1.msra.mxu0 0.0
  %879 = vmatprep.subr.mxu0 0.0
  %880 = vmatpush1.msra.mxu0 0.0
  %881 = vmatprep.subr.mxu0 0.0
  %882 = vmatpush1.msra.mxu0 0.0
  %883 = vmatprep.subr.mxu0 0.0
  %884 = vmatpush1.msra.mxu0 0.0
  %885 = vmatprep.subr.mxu0 0.0
  %886 = vmatpush1.msra.mxu0 0.0
  %887 = vmatprep.subr.mxu0 0.0
  %888 = vmatpush1.msra.mxu0 0.0
  %889 = vmatprep.subr.mxu0 0.0
  %890 = vmatpush1.msra.mxu0 0.0
  %891 = vmatprep.subr.mxu0 0.0
  %892 = vmatpush1.msra.mxu0 0.0
  %893 = vmatprep.subr.mxu0 0.0
  %894 = vmatpush1.msra.mxu0 0.0
  %895 = vmatprep.subr.mxu0 0.0
  %896 = vmatpush1.msra.mxu0 0.0
  %897 = vmatprep.subr.mxu0 0.0
  %898 = vmatpush1.msra.mxu0 0.0
  %899 = vmatprep.subr.mxu0 0.0
  %900 = vmatpush1.msra.mxu0 0.0
  %901 = vmatprep.subr.mxu0 0.0
  %902 = vmatpush1.msra.mxu0 0.0
  %903 = vmatprep.subr.mxu0 0.0
  %904 = vmatpush1.msra.mxu0 0.0
  %905 = vmatprep.subr.mxu0 0.0
  %906 = vmatpush1.msra.mxu0 0.0
  %907 = vmatprep.subr.mxu0 0.0
  %908 = vmatpush1.msra.mxu0 0.0
  %909 = vmatprep.subr.mxu0 0.0
  %910 = vmatpush1.msra.mxu0 0.0
  %911 = vmatprep.subr.mxu0 0.0
  %912 = vmatpush1.msra.mxu0 0.0
  %913 = vmatprep.subr.mxu0 0.0
  %914 = vmatpush1.msra.mxu0 0.0
  %915 = vmatprep.subr.mxu0 0.0
  %916 = vmatpush1.msra.mxu0 0.0
  %917 = vmatprep.subr.mxu0 0.0
  %918 = vmatpush1.msra.mxu0 0.0
  %919 = vmatprep.subr.mxu0 0.0
  %920 = vmatpush1.msra.mxu0 0.0
  %921 = vmatprep.subr.mxu0 0.0
  %922 = vmatpush1.msra.mxu0 0.0
  %923 = vmatprep.subr.mxu0 0.0
  %924 = vmatpush1.msra.mxu0 0.0
  %925 = vmatprep.subr.mxu0 0.0
  %926 = vmatpush1.msra.mxu0 0.0
  %927 = vmatprep.subr.mxu0 0.0
  %928 = vmatpush1.msra.mxu0 0.0
  %929 = vmatprep.subr.mxu0 0.0
  %930 = vmatpush1.msra.mxu0 0.0
  %931 = vmatprep.mubr.f32.mxu0 0.0
  %932 = vmatmul.mubr.f32.gmra.mrb[0].mxu0 %v362
  %v933 = vpop.f32.mrb[0].mxu0
  %v934 = vadd.f32 %v864, %v933
  %v935 = vpop.f32.mrb[0].mxu0
  %936 = vdwg.mxu0
  %v937 = vtanh.pop %v934
  %s938 = scalar_lea.vmem %s0, 8
  %v939 = vld [vmem:[%s938] sm:$0xff]
  %940 = vmatprep.subr.mxu0 0.0
  %941 = vmatpush1.msra.mxu0 %v86
  %942 = vmatprep.subr.mxu0 0.0
  %943 = vmatpush1.msra.mxu0 %v87
  %944 = vmatprep.subr.mxu0 0.0
  %945 = vmatpush1.msra.mxu0 %v88
  %946 = vmatprep.subr.mxu0 0.0
  %947 = vmatpush1.msra.mxu0 %v89
  %948 = vmatprep.subr.mxu0 0.0
  %949 = vmatpush1.msra.mxu0 %v90
  %950 = vmatprep.subr.mxu0 0.0
  %951 = vmatpush1.msra.mxu0 %v91
  %952 = vmatprep.subr.mxu0 0.0
  %953 = vmatpush1.msra.mxu0 %v92
  %954 = vmatprep.subr.mxu0 0.0
  %955 = vmatpush1.msra.mxu0 %v93
  %956 = vmatprep.subr.mxu0 0.0
  %957 = vmatpush1.msra.mxu0 0.0
  %958 = vmatprep.subr.mxu0 0.0
  %959 = vmatpush1.msra.mxu0 0.0
  %960 = vmatprep.subr.mxu0 0.0
  %961 = vmatpush1.msra.mxu0 0.0
  %962 = vmatprep.subr.mxu0 0.0
  %963 = vmatpush1.msra.mxu0 0.0
  %964 = vmatprep.subr.mxu0 0.0
  %965 = vmatpush1.msra.mxu0 0.0
  %966 = vmatprep.subr.mxu0 0.0
  %967 = vmatpush1.msra.mxu0 0.0
  %968 = vmatprep.subr.mxu0 0.0
  %969 = vmatpush1.msra.mxu0 0.0
  %970 = vmatprep.subr.mxu0 0.0
  %971 = vmatpush1.msra.mxu0 0.0
  %972 = vmatprep.subr.mxu0 0.0
  %973 = vmatpush1.msra.mxu0 0.0
  %974 = vmatprep.subr.mxu0 0.0
  %975 = vmatpush1.msra.mxu0 0.0
  %976 = vmatprep.subr.mxu0 0.0
  %977 = vmatpush1.msra.mxu0 0.0
  %978 = vmatprep.subr.mxu0 0.0
  %979 = vmatpush1.msra.mxu0 0.0
  %980 = vmatprep.subr.mxu0 0.0
  %981 = vmatpush1.msra.mxu0 0.0
  %982 = vmatprep.subr.mxu0 0.0
  %983 = vmatpush1.msra.mxu0 0.0
  %984 = vmatprep.subr.mxu0 0.0
  %985 = vmatpush1.msra.mxu0 0.0
  %986 = vmatprep.subr.mxu0 0.0
  %987 = vmatpush1.msra.mxu0 0.0
  %988 = vmatprep.subr.mxu0 0.0
  %989 = vmatpush1.msra.mxu0 0.0
  %990 = vmatprep.subr.mxu0 0.0
  %991 = vmatpush1.msra.mxu0 0.0
  %992 = vmatprep.subr.mxu0 0.0
  %993 = vmatpush1.msra.mxu0 0.0
  %994 = vmatprep.subr.mxu0 0.0
  %995 = vmatpush1.msra.mxu0 0.0
  %996 = vmatprep.subr.mxu0 0.0
  %997 = vmatpush1.msra.mxu0 0.0
  %998 = vmatprep.subr.mxu0 0.0
  %999 = vmatpush1.msra.mxu0 0.0
  %1000 = vmatprep.subr.mxu0 0.0
  %1001 = vmatpush1.msra.mxu0 0.0
  %1002 = vmatprep.subr.mxu0 0.0
  %1003 = vmatpush1.msra.mxu0 0.0
  %1004 = vmatprep.mubr.f32.mxu0 0.0
  %1005 = vmatmul.mubr.f32.gmra.mrb[0].mxu0 %v795
  %v1006 = vpop.f32.mrb[0].mxu0
  %v1007 = vadd.f32 0.0, %v1006
  %v1008 = vpop.f32.mrb[0].mxu0
  %1009 = vdwg.mxu0
  %v1011 = vsel %vm168, %v939, 0
  %1013 = vmatprep.subr.mxu0 0.0
  %1014 = vmatpush1.msra.mxu0 %v82
  %1015 = vmatprep.subr.mxu0 0.0
  %1016 = vmatpush1.msra.mxu0 %v83
  %1017 = vmatprep.subr.mxu0 0.0
  %1018 = vmatpush1.msra.mxu0 %v84
  %1019 = vmatprep.subr.mxu0 0.0
  %1020 = vmatpush1.msra.mxu0 %v85
  %1021 = vmatprep.subr.mxu0 0.0
  %1022 = vmatpush1.msra.mxu0 0.0
  %1023 = vmatprep.subr.mxu0 0.0
  %1024 = vmatpush1.msra.mxu0 0.0
  %1025 = vmatprep.subr.mxu0 0.0
  %1026 = vmatpush1.msra.mxu0 0.0
  %1027 = vmatprep.subr.mxu0 0.0
  %1028 = vmatpush1.msra.mxu0 0.0
  %1029 = vmatprep.subr.mxu0 0.0
  %1030 = vmatpush1.msra.mxu0 0.0
  %1031 = vmatprep.subr.mxu0 0.0
  %1032 = vmatpush1.msra.mxu0 0.0
  %1033 = vmatprep.subr.mxu0 0.0
  %1034 = vmatpush1.msra.mxu0 0.0
  %1035 = vmatprep.subr.mxu0 0.0
  %1036 = vmatpush1.msra.mxu0 0.0
  %1037 = vmatprep.subr.mxu0 0.0
  %1038 = vmatpush1.msra.mxu0 0.0
  %1039 = vmatprep.subr.mxu0 0.0
  %1040 = vmatpush1.msra.mxu0 0.0
  %1041 = vmatprep.subr.mxu0 0.0
  %1042 = vmatpush1.msra.mxu0 0.0
  %1043 = vmatprep.subr.mxu0 0.0
  %1044 = vmatpush1.msra.mxu0 0.0
  %1045 = vmatprep.subr.mxu0 0.0
  %1046 = vmatpush1.msra.mxu0 0.0
  %1047 = vmatprep.subr.mxu0 0.0
  %1048 = vmatpush1.msra.mxu0 0.0
  %1049 = vmatprep.subr.mxu0 0.0
  %1050 = vmatpush1.msra.mxu0 0.0
  %1051 = vmatprep.subr.mxu0 0.0
  %1052 = vmatpush1.msra.mxu0 0.0
  %1053 = vmatprep.subr.mxu0 0.0
  %1054 = vmatpush1.msra.mxu0 0.0
  %1055 = vmatprep.subr.mxu0 0.0
  %1056 = vmatpush1.msra.mxu0 0.0
  %1057 = vmatprep.subr.mxu0 0.0
  %1058 = vmatpush1.msra.mxu0 0.0
  %1059 = vmatprep.subr.mxu0 0.0
  %1060 = vmatpush1.msra.mxu0 0.0
  %1061 = vmatprep.subr.mxu0 0.0
  %1062 = vmatpush1.msra.mxu0 0.0
  %1063 = vmatprep.subr.mxu0 0.0
  %1064 = vmatpush1.msra.mxu0 0.0
  %1065 = vmatprep.subr.mxu0 0.0
  %1066 = vmatpush1.msra.mxu0 0.0
  %1067 = vmatprep.subr.mxu0 0.0
  %1068 = vmatpush1.msra.mxu0 0.0
  %1069 = vmatprep.subr.mxu0 0.0
  %1070 = vmatpush1.msra.mxu0 0.0
  %1071 = vmatprep.subr.mxu0 0.0
  %1072 = vmatpush1.msra.mxu0 0.0
  %1073 = vmatprep.subr.mxu0 0.0
  %1074 = vmatpush1.msra.mxu0 0.0
  %1075 = vmatprep.subr.mxu0 0.0
  %1076 = vmatpush1.msra.mxu0 0.0
  %1077 = vmatprep.mubr.f32.mxu0 0.0
  %1078 = vmatmul.mubr.f32.gmra.mrb[0].mxu0 %v1011
  %v1079 = vpop.f32.mrb[0].mxu0
  %v1080 = vadd.f32 %v1007, %v1079
  %v1081 = vpop.f32.mrb[0].mxu0
  %1082 = vdwg.mxu0
  %1083 = vmatprep.subr.mxu0 0.0
  %1084 = vmatpush1.msra.mxu0 %v242
  %1085 = vmatprep.subr.mxu0 0.0
  %1086 = vmatpush1.msra.mxu0 %v243
  %1087 = vmatprep.subr.mxu0 0.0
  %1088 = vmatpush1.msra.mxu0 %v244
  %1089 = vmatprep.subr.mxu0 0.0
  %1090 = vmatpush1.msra.mxu0 %v245
  %1091 = vmatprep.subr.mxu0 0.0
  %1092 = vmatpush1.msra.mxu0 0.0
  %1093 = vmatprep.subr.mxu0 0.0
  %1094 = vmatpush1.msra.mxu0 0.0
  %1095 = vmatprep.subr.mxu0 0.0
  %1096 = vmatpush1.msra.mxu0 0.0
  %1097 = vmatprep.subr.mxu0 0.0
  %1098 = vmatpush1.msra.mxu0 0.0
  %1099 = vmatprep.subr.mxu0 0.0
  %1100 = vmatpush1.msra.mxu0 0.0
  %1101 = vmatprep.subr.mxu0 0.0
  %1102 = vmatpush1.msra.mxu0 0.0
  %1103 = vmatprep.subr.mxu0 0.0
  %1104 = vmatpush1.msra.mxu0 0.0
  %1105 = vmatprep.subr.mxu0 0.0
  %1106 = vmatpush1.msra.mxu0 0.0
  %1107 = vmatprep.subr.mxu0 0.0
  %1108 = vmatpush1.msra.mxu0 0.0
  %1109 = vmatprep.subr.mxu0 0.0
  %1110 = vmatpush1.msra.mxu0 0.0
  %1111 = vmatprep.subr.mxu0 0.0
  %1112 = vmatpush1.msra.mxu0 0.0
  %1113 = vmatprep.subr.mxu0 0.0
  %1114 = vmatpush1.msra.mxu0 0.0
  %1115 = vmatprep.subr.mxu0 0.0
  %1116 = vmatpush1.msra.mxu0 0.0
  %1117 = vmatprep.subr.mxu0 0.0
  %1118 = vmatpush1.msra.mxu0 0.0
  %1119 = vmatprep.subr.mxu0 0.0
  %1120 = vmatpush1.msra.mxu0 0.0
  %1121 = vmatprep.subr.mxu0 0.0
  %1122 = vmatpush1.msra.mxu0 0.0
  %1123 = vmatprep.subr.mxu0 0.0
  %1124 = vmatpush1.msra.mxu0 0.0
  %1125 = vmatprep.subr.mxu0 0.0
  %1126 = vmatpush1.msra.mxu0 0.0
  %1127 = vmatprep.subr.mxu0 0.0
  %1128 = vmatpush1.msra.mxu0 0.0
  %1129 = vmatprep.subr.mxu0 0.0
  %1130 = vmatpush1.msra.mxu0 0.0
  %1131 = vmatprep.subr.mxu0 0.0
  %1132 = vmatpush1.msra.mxu0 0.0
  %1133 = vmatprep.subr.mxu0 0.0
  %1134 = vmatpush1.msra.mxu0 0.0
  %1135 = vmatprep.subr.mxu0 0.0
  %1136 = vmatpush1.msra.mxu0 0.0
  %1137 = vmatprep.subr.mxu0 0.0
  %1138 = vmatpush1.msra.mxu0 0.0
  %1139 = vmatprep.subr.mxu0 0.0
  %1140 = vmatpush1.msra.mxu0 0.0
  %1141 = vmatprep.subr.mxu0 0.0
  %1142 = vmatpush1.msra.mxu0 0.0
  %1143 = vmatprep.subr.mxu0 0.0
  %1144 = vmatpush1.msra.mxu0 0.0
  %1145 = vmatprep.subr.mxu0 0.0
  %1146 = vmatpush1.msra.mxu0 0.0
  %1147 = vmatprep.mubr.f32.mxu0 0.0
  %1148 = vmatmul.mubr.f32.gmra.mrb[0].mxu0 %v362
  %v1149 = vpop.f32.mrb[0].mxu0
  %v1150 = vadd.f32 0.0, %v1149
  %v1151 = vpop.f32.mrb[0].mxu0
  %1152 = vdwg.mxu0
  %v1153 = vadd.f32 %v1080, %v1150
  %v1154 = vadd.f32 %v1153, %v324
  %v1155 = vxor.u32 %v1154, 2147483648
  %v1156 = vmul.f32 %v1155, 1.442695
  %v1157 = vpow.pop %v1156
  %v1158 = vadd.f32 %v1157, 1.0
  %v1159 = vrcp.pop %v1158
  %v1160 = vmul.f32 1.0, %v1159
  %v1161 = vtanh.pop %v1154
  %v1162 = vmul.f32 %v1160, %v348
  %1164 = vrot.lane.b32.xlu0 %v1161, 64
  %v1165 = vpop.permute.xlu0 %1164
  %v1167 = vmul.f32 %v1160, %v1165
  %1169 = vrot.lane.b32.xlu0 %v1167, 32
  %v1170 = vpop.permute.xlu0 %1169
  %v1172 = vadd.f32 %v1162, %v1170
  %v1173 = vtanh.pop %v1172
  %1175 = vrot.lane.b32.xlu0 %v1173, 64
  %v1176 = vpop.permute.xlu0 %1175
  %v1178 = vmul.f32 %v1160, %v1176
  %1180 = vrot.lane.b32.xlu0 %v1178, 32
  %v1181 = vpop.permute.xlu0 %1180
  %v1182 = vsel %vm168, %v1181, 0
  %1184 = vmatprep.subr.mxu0 0.0
  %1185 = vmatpush1.msra.mxu0 %v355
  %1186 = vmatprep.subr.mxu0 0.0
  %1187 = vmatpush1.msra.mxu0 %v356
  %1188 = vmatprep.subr.mxu0 0.0
  %1189 = vmatpush1.msra.mxu0 %v357
  %1190 = vmatprep.subr.mxu0 0.0
  %1191 = vmatpush1.msra.mxu0 %v358
  %1192 = vmatprep.subr.mxu0 0.0
  %1193 = vmatpush1.msra.mxu0 0.0
  %1194 = vmatprep.subr.mxu0 0.0
  %1195 = vmatpush1.msra.mxu0 0.0
  %1196 = vmatprep.subr.mxu0 0.0
  %1197 = vmatpush1.msra.mxu0 0.0
  %1198 = vmatprep.subr.mxu0 0.0
  %1199 = vmatpush1.msra.mxu0 0.0
  %1200 = vmatprep.subr.mxu0 0.0
  %1201 = vmatpush1.msra.mxu0 0.0
  %1202 = vmatprep.subr.mxu0 0.0
  %1203 = vmatpush1.msra.mxu0 0.0
  %1204 = vmatprep.subr.mxu0 0.0
  %1205 = vmatpush1.msra.mxu0 0.0
  %1206 = vmatprep.subr.mxu0 0.0
  %1207 = vmatpush1.msra.mxu0 0.0
  %1208 = vmatprep.subr.mxu0 0.0
  %1209 = vmatpush1.msra.mxu0 0.0
  %1210 = vmatprep.subr.mxu0 0.0
  %1211 = vmatpush1.msra.mxu0 0.0
  %1212 = vmatprep.subr.mxu0 0.0
  %1213 = vmatpush1.msra.mxu0 0.0
  %1214 = vmatprep.subr.mxu0 0.0
  %1215 = vmatpush1.msra.mxu0 0.0
  %1216 = vmatprep.subr.mxu0 0.0
  %1217 = vmatpush1.msra.mxu0 0.0
  %1218 = vmatprep.subr.mxu0 0.0
  %1219 = vmatpush1.msra.mxu0 0.0
  %1220 = vmatprep.subr.mxu0 0.0
  %1221 = vmatpush1.msra.mxu0 0.0
  %1222 = vmatprep.subr.mxu0 0.0
  %1223 = vmatpush1.msra.mxu0 0.0
  %1224 = vmatprep.subr.mxu0 0.0
  %1225 = vmatpush1.msra.mxu0 0.0
  %1226 = vmatprep.subr.mxu0 0.0
  %1227 = vmatpush1.msra.mxu0 0.0
  %1228 = vmatprep.subr.mxu0 0.0
  %1229 = vmatpush1.msra.mxu0 0.0
  %1230 = vmatprep.subr.mxu0 0.0
  %1231 = vmatpush1.msra.mxu0 0.0
  %1232 = vmatprep.subr.mxu0 0.0
  %1233 = vmatpush1.msra.mxu0 0.0
  %1234 = vmatprep.subr.mxu0 0.0
  %1235 = vmatpush1.msra.mxu0 0.0
  %1236 = vmatprep.subr.mxu0 0.0
  %1237 = vmatpush1.msra.mxu0 0.0
  %1238 = vmatprep.subr.mxu0 0.0
  %1239 = vmatpush1.msra.mxu0 0.0
  %1240 = vmatprep.subr.mxu0 0.0
  %1241 = vmatpush1.msra.mxu0 0.0
  %1242 = vmatprep.subr.mxu0 0.0
  %1243 = vmatpush1.msra.mxu0 0.0
  %1244 = vmatprep.subr.mxu0 0.0
  %1245 = vmatpush1.msra.mxu0 0.0
  %1246 = vmatprep.subr.mxu0 0.0
  %1247 = vmatpush1.msra.mxu0 0.0
  %1248 = vmatprep.mubr.f32.mxu0 0.0
  %1249 = vmatmul.mubr.f32.gmra.mrb[0].mxu0 %v1182
  %v1250 = vpop.f32.mrb[0].mxu0
  %v1251 = vadd.f32 0.0, %v1250
  %v1252 = vpop.f32.mrb[0].mxu0
  %1253 = vdwg.mxu0
  %v1255 = vcombine.high %v1251, %v1251
  %v1257 = vunpack.c.l.s4 1966171168
  %v1258 = vunpack.c.0.s8 %v1257
  %v1259 = vlaneseq
  %v1260 = vshrl.u32 %v1259, 7
  %v1261 = vsub.s32 %v1258, %v1260
  %v1262 = vrot.slane %v1251, %v1261
  %v1264 = vunpack.c.l.s4 1966171168
  %v1265 = vunpack.c.0.s8 %v1264
  %v1266 = vlaneseq
  %v1267 = vshrl.u32 %v1266, 7
  %v1268 = vsub.s32 %v1265, %v1267
  %v1269 = vrot.slane %v1255, %v1268
  %v1270 = vcombine.high %v1262, %v1262
  %v1271 = vcombine.high %v1269, %v1269
  %v1273 = vunpack.c.l.s4 1966171168
  %v1274 = vunpack.c.0.s8 %v1273
  %v1275 = vlaneseq
  %v1276 = vshrl.u32 %v1275, 7
  %v1277 = vsub.s32 %v1274, %v1276
  %v1278 = vrot.slane %v1262, %v1277
  %v1280 = vunpack.c.l.s4 1966171168
  %v1281 = vunpack.c.0.s8 %v1280
  %v1282 = vlaneseq
  %v1283 = vshrl.u32 %v1282, 7
  %v1284 = vsub.s32 %v1281, %v1283
  %v1285 = vrot.slane %v1269, %v1284
  %v1287 = vunpack.c.l.s4 1966171168
  %v1288 = vunpack.c.0.s8 %v1287
  %v1289 = vlaneseq
  %v1290 = vshrl.u32 %v1289, 7
  %v1291 = vsub.s32 %v1288, %v1290
  %v1292 = vrot.slane %v1270, %v1291
  %v1294 = vunpack.c.l.s4 1966171168
  %v1295 = vunpack.c.0.s8 %v1294
  %v1296 = vlaneseq
  %v1297 = vshrl.u32 %v1296, 7
  %v1298 = vsub.s32 %v1295, %v1297
  %v1299 = vrot.slane %v1271, %v1298
  %v1300 = vcombine.high %v1278, %v1278
  %v1301 = vcombine.high %v1285, %v1285
  %v1302 = vcombine.high %v1292, %v1292
  %v1303 = vcombine.high %v1299, %v1299
  %v1304 = vlaneseq
  %v1305 = vshrl.u32 %v1304, 7
  %v1306 = vsub.s32 0, %v1305
  %v1307 = vrot.slane %v1278, %v1306
  %v1308 = vlaneseq
  %v1309 = vshrl.u32 %v1308, 7
  %v1310 = vsub.s32 0, %v1309
  %v1311 = vrot.slane %v1292, %v1310
  %v1312 = vlaneseq
  %v1313 = vshrl.u32 %v1312, 7
  %v1314 = vsub.s32 0, %v1313
  %v1315 = vrot.slane %v1300, %v1314
  %v1316 = vlaneseq
  %v1317 = vshrl.u32 %v1316, 7
  %v1318 = vsub.s32 0, %v1317
  %v1319 = vrot.slane %v1302, %v1318
  %v1320 = vlaneseq
  %v1321 = vshrl.u32 %v1320, 7
  %v1322 = vsub.s32 0, %v1321
  %v1323 = vrot.slane %v1285, %v1322
  %v1324 = vlaneseq
  %v1325 = vshrl.u32 %v1324, 7
  %v1326 = vsub.s32 0, %v1325
  %v1327 = vrot.slane %v1299, %v1326
  %v1328 = vlaneseq
  %v1329 = vshrl.u32 %v1328, 7
  %v1330 = vsub.s32 0, %v1329
  %v1331 = vrot.slane %v1301, %v1330
  %v1332 = vlaneseq
  %v1333 = vshrl.u32 %v1332, 7
  %v1334 = vsub.s32 0, %v1333
  %v1335 = vrot.slane %v1303, %v1334
  %v1344 = vadd.f32 %v66, %v1307
  %v1345 = vadd.f32 %v67, %v1311
  %v1346 = vadd.f32 %v68, %v1315
  %v1347 = vadd.f32 %v69, %v1319
  %v1348 = vadd.f32 %v70, %v1323
  %v1349 = vadd.f32 %v71, %v1327
  %v1350 = vadd.f32 %v72, %v1331
  %v1351 = vadd.f32 %v73, %v1335
  %v1352 = vtanh.pop %v1344
  %v1353 = vtanh.pop %v1345
  %v1354 = vtanh.pop %v1346
  %v1355 = vtanh.pop %v1347
  %v1356 = vtanh.pop %v1348
  %v1357 = vtanh.pop %v1349
  %v1358 = vtanh.pop %v1350
  %v1359 = vtanh.pop %v1351
  %v1360 = vmul.f32 %v1352, %v544
  %v1361 = vmul.f32 %v1353, %v544
  %v1362 = vmul.f32 %v1354, %v544
  %v1363 = vmul.f32 %v1355, %v544
  %v1364 = vmul.f32 %v1356, %v544
  %v1365 = vmul.f32 %v1357, %v544
  %v1366 = vmul.f32 %v1358, %v544
  %v1367 = vmul.f32 %v1359, %v544
  %v1368 = vsel %vm168, %v1360, 0.0
  %1369 = vadd.xlane.f32.xlu0 %v1368
  %v1370 = vpop.xlane.xlu0 %1369
  %v1371 = vsel %vm168, %v1361, 0.0
  %1372 = vadd.xlane.f32.xlu0 %v1371
  %v1373 = vpop.xlane.xlu0 %1372
  %v1374 = vsel %vm168, %v1362, 0.0
  %1375 = vadd.xlane.f32.xlu0 %v1374
  %v1376 = vpop.xlane.xlu0 %1375
  %v1377 = vsel %vm168, %v1363, 0.0
  %1378 = vadd.xlane.f32.xlu0 %v1377
  %v1379 = vpop.xlane.xlu0 %1378
  %v1380 = vsel %vm168, %v1364, 0.0
  %1381 = vadd.xlane.f32.xlu0 %v1380
  %v1382 = vpop.xlane.xlu0 %1381
  %v1383 = vsel %vm168, %v1365, 0.0
  %1384 = vadd.xlane.f32.xlu0 %v1383
  %v1385 = vpop.xlane.xlu0 %1384
  %v1386 = vsel %vm168, %v1366, 0.0
  %1387 = vadd.xlane.f32.xlu0 %v1386
  %v1388 = vpop.xlane.xlu0 %1387
  %v1389 = vsel %vm168, %v1367, 0.0
  %1390 = vadd.xlane.f32.xlu0 %v1389
  %v1391 = vpop.xlane.xlu0 %1390
  %v1400 = vlaneseq
  %v1401 = vshrl.u32 %v1400, 7
  %v1402 = vsub.s32 %v587, %v1401
  %v1403 = vrot.slane %v1370, %v1402
  %v1404 = vlaneseq
  %v1405 = vshrl.u32 %v1404, 7
  %v1406 = vsub.s32 %v587, %v1405
  %v1407 = vrot.slane %v1373, %v1406
  %v1408 = vlaneseq
  %v1409 = vshrl.u32 %v1408, 7
  %v1410 = vsub.s32 %v587, %v1409
  %v1411 = vrot.slane %v1376, %v1410
  %v1412 = vlaneseq
  %v1413 = vshrl.u32 %v1412, 7
  %v1414 = vsub.s32 %v587, %v1413
  %v1415 = vrot.slane %v1379, %v1414
  %v1416 = vlaneseq
  %v1417 = vshrl.u32 %v1416, 7
  %v1418 = vsub.s32 %v587, %v1417
  %v1419 = vrot.slane %v1382, %v1418
  %v1420 = vlaneseq
  %v1421 = vshrl.u32 %v1420, 7
  %v1422 = vsub.s32 %v587, %v1421
  %v1423 = vrot.slane %v1385, %v1422
  %v1424 = vlaneseq
  %v1425 = vshrl.u32 %v1424, 7
  %v1426 = vsub.s32 %v587, %v1425
  %v1427 = vrot.slane %v1388, %v1426
  %v1428 = vlaneseq
  %v1429 = vshrl.u32 %v1428, 7
  %v1430 = vsub.s32 %v587, %v1429
  %v1431 = vrot.slane %v1391, %v1430
  %v1432 = vsel %vm620, %v1407, %v1403
  %v1433 = vsel %vm622, %v1411, %v1432
  %v1434 = vsel %vm624, %v1415, %v1433
  %v1435 = vsel %vm626, %v1419, %v1434
  %v1436 = vsel %vm628, %v1423, %v1435
  %v1437 = vsel %vm630, %v1427, %v1436
  %v1438 = vsel %vm632, %v1431, %v1437
  %v1440 = vsel %vm75, -1e+09, %v1438
  %v1441 = vsel %vm636, %v1440, -inf
  %1442 = vmax.xlane.f32.xlu0 %v1441
  %v1443 = vpop.xlane.xlu0 %1442
  %v1444 = vsub.f32 %v1440, %v1443
  %v1445 = vmul.f32 %v1444, 1.442695
  %v1446 = vpow.pop %v1445
  %v1447 = vsel %vm636, %v1446, 0.0
  %1448 = vadd.xlane.f32.xlu0 %v1447
  %v1449 = vpop.xlane.xlu0 %1448
  %v1450 = vrcp.pop %v1449
  %v1451 = vmul.f32 %v1446, %v1450
  %v1452 = vlaneseq
  %v1453 = vshrl.u32 %v1452, 7
  %v1454 = vsub.s32 0, %v1453
  %v1455 = vrot.slane %v1451, %v1454
  %1457 = vbcast.lane.b32.xlu0 %v1455, 256
  %v1458 = vpop.permute.xlu0 %1457
  %v1459 = vlaneseq
  %v1460 = vshrl.u32 %v1459, 7
  %v1461 = vsub.s32 1, %v1460
  %v1462 = vrot.slane %v1451, %v1461
  %1464 = vbcast.lane.b32.xlu0 %v1462, 256
  %v1465 = vpop.permute.xlu0 %1464
  %v1466 = vlaneseq
  %v1467 = vshrl.u32 %v1466, 7
  %v1468 = vsub.s32 2, %v1467
  %v1469 = vrot.slane %v1451, %v1468
  %1471 = vbcast.lane.b32.xlu0 %v1469, 256
  %v1472 = vpop.permute.xlu0 %1471
  %v1473 = vlaneseq
  %v1474 = vshrl.u32 %v1473, 7
  %v1475 = vsub.s32 3, %v1474
  %v1476 = vrot.slane %v1451, %v1475
  %1478 = vbcast.lane.b32.xlu0 %v1476, 256
  %v1479 = vpop.permute.xlu0 %1478
  %v1480 = vlaneseq
  %v1481 = vshrl.u32 %v1480, 7
  %v1482 = vsub.s32 4, %v1481
  %v1483 = vrot.slane %v1451, %v1482
  %1485 = vbcast.lane.b32.xlu0 %v1483, 256
  %v1486 = vpop.permute.xlu0 %1485
  %v1487 = vlaneseq
  %v1488 = vshrl.u32 %v1487, 7
  %v1489 = vsub.s32 5, %v1488
  %v1490 = vrot.slane %v1451, %v1489
  %1492 = vbcast.lane.b32.xlu0 %v1490, 256
  %v1493 = vpop.permute.xlu0 %1492
  %v1494 = vlaneseq
  %v1495 = vshrl.u32 %v1494, 7
  %v1496 = vsub.s32 6, %v1495
  %v1497 = vrot.slane %v1451, %v1496
  %1499 = vbcast.lane.b32.xlu0 %v1497, 256
  %v1500 = vpop.permute.xlu0 %1499
  %v1501 = vlaneseq
  %v1502 = vshrl.u32 %v1501, 7
  %v1503 = vsub.s32 7, %v1502
  %v1504 = vrot.slane %v1451, %v1503
  %1506 = vbcast.lane.b32.xlu0 %v1504, 256
  %v1507 = vpop.permute.xlu0 %1506
  %v1508 = vmul.f32 %v1458, %v58
  %v1509 = vmul.f32 %v1465, %v59
  %v1510 = vmul.f32 %v1472, %v60
  %v1511 = vmul.f32 %v1479, %v61
  %v1512 = vmul.f32 %v1486, %v62
  %v1513 = vmul.f32 %v1493, %v63
  %v1514 = vmul.f32 %v1500, %v64
  %v1515 = vmul.f32 %v1507, %v65
  %v1516 = vsel %vm94, %v1508, 0.0
  %v1517 = vrot.slane %v1516, 4
  %v1518 = vadd.f32 %v1516, %v1517
  %v1519 = vrot.slane %v1518, 2
  %v1520 = vadd.f32 %v1518, %v1519
  %v1521 = vrot.slane %v1520, 1
  %v1522 = vadd.f32 %v1520, %v1521
  %v1523 = vsel %vm94, %v1509, 0.0
  %v1524 = vrot.slane %v1523, 4
  %v1525 = vadd.f32 %v1523, %v1524
  %v1526 = vrot.slane %v1525, 2
  %v1527 = vadd.f32 %v1525, %v1526
  %v1528 = vrot.slane %v1527, 1
  %v1529 = vadd.f32 %v1527, %v1528
  %v1530 = vsel %vm94, %v1510, 0.0
  %v1531 = vrot.slane %v1530, 4
  %v1532 = vadd.f32 %v1530, %v1531
  %v1533 = vrot.slane %v1532, 2
  %v1534 = vadd.f32 %v1532, %v1533
  %v1535 = vrot.slane %v1534, 1
  %v1536 = vadd.f32 %v1534, %v1535
  %v1537 = vsel %vm94, %v1511, 0.0
  %v1538 = vrot.slane %v1537, 4
  %v1539 = vadd.f32 %v1537, %v1538
  %v1540 = vrot.slane %v1539, 2
  %v1541 = vadd.f32 %v1539, %v1540
  %v1542 = vrot.slane %v1541, 1
  %v1543 = vadd.f32 %v1541, %v1542
  %v1544 = vsel %vm94, %v1512, 0.0
  %v1545 = vrot.slane %v1544, 4
  %v1546 = vadd.f32 %v1544, %v1545
  %v1547 = vrot.slane %v1546, 2
  %v1548 = vadd.f32 %v1546, %v1547
  %v1549 = vrot.slane %v1548, 1
  %v1550 = vadd.f32 %v1548, %v1549
  %v1551 = vsel %vm94, %v1513, 0.0
  %v1552 = vrot.slane %v1551, 4
  %v1553 = vadd.f32 %v1551, %v1552
  %v1554 = vrot.slane %v1553, 2
  %v1555 = vadd.f32 %v1553, %v1554
  %v1556 = vrot.slane %v1555, 1
  %v1557 = vadd.f32 %v1555, %v1556
  %v1558 = vsel %vm94, %v1514, 0.0
  %v1559 = vrot.slane %v1558, 4
  %v1560 = vadd.f32 %v1558, %v1559
  %v1561 = vrot.slane %v1560, 2
  %v1562 = vadd.f32 %v1560, %v1561
  %v1563 = vrot.slane %v1562, 1
  %v1564 = vadd.f32 %v1562, %v1563
  %v1565 = vsel %vm94, %v1515, 0.0
  %v1566 = vrot.slane %v1565, 4
  %v1567 = vadd.f32 %v1565, %v1566
  %v1568 = vrot.slane %v1567, 2
  %v1569 = vadd.f32 %v1567, %v1568
  %v1570 = vrot.slane %v1569, 1
  %v1571 = vadd.f32 %v1569, %v1570
  %v1580 = vsel %vm620, %v1529, %v1522
  %v1581 = vsel %vm622, %v1536, %v1580
  %v1582 = vsel %vm624, %v1543, %v1581
  %v1583 = vsel %vm626, %v1550, %v1582
  %v1584 = vsel %vm628, %v1557, %v1583
  %v1585 = vsel %vm630, %v1564, %v1584
  %v1586 = vsel %vm632, %v1571, %v1585
  %v1587 = vsel %vm94, %v1586, 0
  %1589 = vmatprep.subr.mxu0 0.0
  %1590 = vmatpush1.msra.mxu0 %v772
  %1591 = vmatprep.subr.mxu0 0.0
  %1592 = vmatpush1.msra.mxu0 %v773
  %1593 = vmatprep.subr.mxu0 0.0
  %1594 = vmatpush1.msra.mxu0 %v774
  %1595 = vmatprep.subr.mxu0 0.0
  %1596 = vmatpush1.msra.mxu0 %v775
  %1597 = vmatprep.subr.mxu0 0.0
  %1598 = vmatpush1.msra.mxu0 %v776
  %1599 = vmatprep.subr.mxu0 0.0
  %1600 = vmatpush1.msra.mxu0 %v777
  %1601 = vmatprep.subr.mxu0 0.0
  %1602 = vmatpush1.msra.mxu0 %v778
  %1603 = vmatprep.subr.mxu0 0.0
  %1604 = vmatpush1.msra.mxu0 %v779
  %1605 = vmatprep.subr.mxu0 0.0
  %1606 = vmatpush1.msra.mxu0 0.0
  %1607 = vmatprep.subr.mxu0 0.0
  %1608 = vmatpush1.msra.mxu0 0.0
  %1609 = vmatprep.subr.mxu0 0.0
  %1610 = vmatpush1.msra.mxu0 0.0
  %1611 = vmatprep.subr.mxu0 0.0
  %1612 = vmatpush1.msra.mxu0 0.0
  %1613 = vmatprep.subr.mxu0 0.0
  %1614 = vmatpush1.msra.mxu0 0.0
  %1615 = vmatprep.subr.mxu0 0.0
  %1616 = vmatpush1.msra.mxu0 0.0
  %1617 = vmatprep.subr.mxu0 0.0
  %1618 = vmatpush1.msra.mxu0 0.0
  %1619 = vmatprep.subr.mxu0 0.0
  %1620 = vmatpush1.msra.mxu0 0.0
  %1621 = vmatprep.subr.mxu0 0.0
  %1622 = vmatpush1.msra.mxu0 0.0
  %1623 = vmatprep.subr.mxu0 0.0
  %1624 = vmatpush1.msra.mxu0 0.0
  %1625 = vmatprep.subr.mxu0 0.0
  %1626 = vmatpush1.msra.mxu0 0.0
  %1627 = vmatprep.subr.mxu0 0.0
  %1628 = vmatpush1.msra.mxu0 0.0
  %1629 = vmatprep.subr.mxu0 0.0
  %1630 = vmatpush1.msra.mxu0 0.0
  %1631 = vmatprep.subr.mxu0 0.0
  %1632 = vmatpush1.msra.mxu0 0.0
  %1633 = vmatprep.subr.mxu0 0.0
  %1634 = vmatpush1.msra.mxu0 0.0
  %1635 = vmatprep.subr.mxu0 0.0
  %1636 = vmatpush1.msra.mxu0 0.0
  %1637 = vmatprep.subr.mxu0 0.0
  %1638 = vmatpush1.msra.mxu0 0.0
  %1639 = vmatprep.subr.mxu0 0.0
  %1640 = vmatpush1.msra.mxu0 0.0
  %1641 = vmatprep.subr.mxu0 0.0
  %1642 = vmatpush1.msra.mxu0 0.0
  %1643 = vmatprep.subr.mxu0 0.0
  %1644 = vmatpush1.msra.mxu0 0.0
  %1645 = vmatprep.subr.mxu0 0.0
  %1646 = vmatpush1.msra.mxu0 0.0
  %1647 = vmatprep.subr.mxu0 0.0
  %1648 = vmatpush1.msra.mxu0 0.0
  %1649 = vmatprep.subr.mxu0 0.0
  %1650 = vmatpush1.msra.mxu0 0.0
  %1651 = vmatprep.subr.mxu0 0.0
  %1652 = vmatpush1.msra.mxu0 0.0
  %1653 = vmatprep.mubr.f32.mxu0 0.0
  %1654 = vmatmul.mubr.f32.gmra.mrb[0].mxu0 %v1587
  %v1655 = vpop.f32.mrb[0].mxu0
  %v1656 = vadd.f32 0.0, %v1655
  %v1657 = vpop.f32.mrb[0].mxu0
  %1658 = vdwg.mxu0
  %1659 = vmatprep.subr.mxu0 0.0
  %1660 = vmatpush1.msra.mxu0 %v768
  %1661 = vmatprep.subr.mxu0 0.0
  %1662 = vmatpush1.msra.mxu0 %v769
  %1663 = vmatprep.subr.mxu0 0.0
  %1664 = vmatpush1.msra.mxu0 %v770
  %1665 = vmatprep.subr.mxu0 0.0
  %1666 = vmatpush1.msra.mxu0 %v771
  %1667 = vmatprep.subr.mxu0 0.0
  %1668 = vmatpush1.msra.mxu0 0.0
  %1669 = vmatprep.subr.mxu0 0.0
  %1670 = vmatpush1.msra.mxu0 0.0
  %1671 = vmatprep.subr.mxu0 0.0
  %1672 = vmatpush1.msra.mxu0 0.0
  %1673 = vmatprep.subr.mxu0 0.0
  %1674 = vmatpush1.msra.mxu0 0.0
  %1675 = vmatprep.subr.mxu0 0.0
  %1676 = vmatpush1.msra.mxu0 0.0
  %1677 = vmatprep.subr.mxu0 0.0
  %1678 = vmatpush1.msra.mxu0 0.0
  %1679 = vmatprep.subr.mxu0 0.0
  %1680 = vmatpush1.msra.mxu0 0.0
  %1681 = vmatprep.subr.mxu0 0.0
  %1682 = vmatpush1.msra.mxu0 0.0
  %1683 = vmatprep.subr.mxu0 0.0
  %1684 = vmatpush1.msra.mxu0 0.0
  %1685 = vmatprep.subr.mxu0 0.0
  %1686 = vmatpush1.msra.mxu0 0.0
  %1687 = vmatprep.subr.mxu0 0.0
  %1688 = vmatpush1.msra.mxu0 0.0
  %1689 = vmatprep.subr.mxu0 0.0
  %1690 = vmatpush1.msra.mxu0 0.0
  %1691 = vmatprep.subr.mxu0 0.0
  %1692 = vmatpush1.msra.mxu0 0.0
  %1693 = vmatprep.subr.mxu0 0.0
  %1694 = vmatpush1.msra.mxu0 0.0
  %1695 = vmatprep.subr.mxu0 0.0
  %1696 = vmatpush1.msra.mxu0 0.0
  %1697 = vmatprep.subr.mxu0 0.0
  %1698 = vmatpush1.msra.mxu0 0.0
  %1699 = vmatprep.subr.mxu0 0.0
  %1700 = vmatpush1.msra.mxu0 0.0
  %1701 = vmatprep.subr.mxu0 0.0
  %1702 = vmatpush1.msra.mxu0 0.0
  %1703 = vmatprep.subr.mxu0 0.0
  %1704 = vmatpush1.msra.mxu0 0.0
  %1705 = vmatprep.subr.mxu0 0.0
  %1706 = vmatpush1.msra.mxu0 0.0
  %1707 = vmatprep.subr.mxu0 0.0
  %1708 = vmatpush1.msra.mxu0 0.0
  %1709 = vmatprep.subr.mxu0 0.0
  %1710 = vmatpush1.msra.mxu0 0.0
  %1711 = vmatprep.subr.mxu0 0.0
  %1712 = vmatpush1.msra.mxu0 0.0
  %1713 = vmatprep.subr.mxu0 0.0
  %1714 = vmatpush1.msra.mxu0 0.0
  %1715 = vmatprep.subr.mxu0 0.0
  %1716 = vmatpush1.msra.mxu0 0.0
  %1717 = vmatprep.subr.mxu0 0.0
  %1718 = vmatpush1.msra.mxu0 0.0
  %1719 = vmatprep.subr.mxu0 0.0
  %1720 = vmatpush1.msra.mxu0 0.0
  %1721 = vmatprep.subr.mxu0 0.0
  %1722 = vmatpush1.msra.mxu0 0.0
  %1723 = vmatprep.mubr.f32.mxu0 0.0
  %1724 = vmatmul.mubr.f32.gmra.mrb[0].mxu0 %v1182
  %v1725 = vpop.f32.mrb[0].mxu0
  %v1726 = vadd.f32 %v1656, %v1725
  %v1727 = vpop.f32.mrb[0].mxu0
  %1728 = vdwg.mxu0
  %v1729 = vtanh.pop %v1726
  %s1730 = scalar_lea.vmem %s0, 16
  %v1731 = vld [vmem:[%s1730] sm:$0xff]
  %1732 = vmatprep.subr.mxu0 0.0
  %1733 = vmatpush1.msra.mxu0 %v86
  %1734 = vmatprep.subr.mxu0 0.0
  %1735 = vmatpush1.msra.mxu0 %v87
  %1736 = vmatprep.subr.mxu0 0.0
  %1737 = vmatpush1.msra.mxu0 %v88
  %1738 = vmatprep.subr.mxu0 0.0
  %1739 = vmatpush1.msra.mxu0 %v89
  %1740 = vmatprep.subr.mxu0 0.0
  %1741 = vmatpush1.msra.mxu0 %v90
  %1742 = vmatprep.subr.mxu0 0.0
  %1743 = vmatpush1.msra.mxu0 %v91
  %1744 = vmatprep.subr.mxu0 0.0
  %1745 = vmatpush1.msra.mxu0 %v92
  %1746 = vmatprep.subr.mxu0 0.0
  %1747 = vmatpush1.msra.mxu0 %v93
  %1748 = vmatprep.subr.mxu0 0.0
  %1749 = vmatpush1.msra.mxu0 0.0
  %1750 = vmatprep.subr.mxu0 0.0
  %1751 = vmatpush1.msra.mxu0 0.0
  %1752 = vmatprep.subr.mxu0 0.0
  %1753 = vmatpush1.msra.mxu0 0.0
  %1754 = vmatprep.subr.mxu0 0.0
  %1755 = vmatpush1.msra.mxu0 0.0
  %1756 = vmatprep.subr.mxu0 0.0
  %1757 = vmatpush1.msra.mxu0 0.0
  %1758 = vmatprep.subr.mxu0 0.0
  %1759 = vmatpush1.msra.mxu0 0.0
  %1760 = vmatprep.subr.mxu0 0.0
  %1761 = vmatpush1.msra.mxu0 0.0
  %1762 = vmatprep.subr.mxu0 0.0
  %1763 = vmatpush1.msra.mxu0 0.0
  %1764 = vmatprep.subr.mxu0 0.0
  %1765 = vmatpush1.msra.mxu0 0.0
  %1766 = vmatprep.subr.mxu0 0.0
  %1767 = vmatpush1.msra.mxu0 0.0
  %1768 = vmatprep.subr.mxu0 0.0
  %1769 = vmatpush1.msra.mxu0 0.0
  %1770 = vmatprep.subr.mxu0 0.0
  %1771 = vmatpush1.msra.mxu0 0.0
  %1772 = vmatprep.subr.mxu0 0.0
  %1773 = vmatpush1.msra.mxu0 0.0
  %1774 = vmatprep.subr.mxu0 0.0
  %1775 = vmatpush1.msra.mxu0 0.0
  %1776 = vmatprep.subr.mxu0 0.0
  %1777 = vmatpush1.msra.mxu0 0.0
  %1778 = vmatprep.subr.mxu0 0.0
  %1779 = vmatpush1.msra.mxu0 0.0
  %1780 = vmatprep.subr.mxu0 0.0
  %1781 = vmatpush1.msra.mxu0 0.0
  %1782 = vmatprep.subr.mxu0 0.0
  %1783 = vmatpush1.msra.mxu0 0.0
  %1784 = vmatprep.subr.mxu0 0.0
  %1785 = vmatpush1.msra.mxu0 0.0
  %1786 = vmatprep.subr.mxu0 0.0
  %1787 = vmatpush1.msra.mxu0 0.0
  %1788 = vmatprep.subr.mxu0 0.0
  %1789 = vmatpush1.msra.mxu0 0.0
  %1790 = vmatprep.subr.mxu0 0.0
  %1791 = vmatpush1.msra.mxu0 0.0
  %1792 = vmatprep.subr.mxu0 0.0
  %1793 = vmatpush1.msra.mxu0 0.0
  %1794 = vmatprep.subr.mxu0 0.0
  %1795 = vmatpush1.msra.mxu0 0.0
  %1796 = vmatprep.mubr.f32.mxu0 0.0
  %1797 = vmatmul.mubr.f32.gmra.mrb[0].mxu0 %v1587
  %v1798 = vpop.f32.mrb[0].mxu0
  %v1799 = vadd.f32 0.0, %v1798
  %v1800 = vpop.f32.mrb[0].mxu0
  %1801 = vdwg.mxu0
  %v1803 = vsel %vm168, %v1731, 0
  %1805 = vmatprep.subr.mxu0 0.0
  %1806 = vmatpush1.msra.mxu0 %v82
  %1807 = vmatprep.subr.mxu0 0.0
  %1808 = vmatpush1.msra.mxu0 %v83
  %1809 = vmatprep.subr.mxu0 0.0
  %1810 = vmatpush1.msra.mxu0 %v84
  %1811 = vmatprep.subr.mxu0 0.0
  %1812 = vmatpush1.msra.mxu0 %v85
  %1813 = vmatprep.subr.mxu0 0.0
  %1814 = vmatpush1.msra.mxu0 0.0
  %1815 = vmatprep.subr.mxu0 0.0
  %1816 = vmatpush1.msra.mxu0 0.0
  %1817 = vmatprep.subr.mxu0 0.0
  %1818 = vmatpush1.msra.mxu0 0.0
  %1819 = vmatprep.subr.mxu0 0.0
  %1820 = vmatpush1.msra.mxu0 0.0
  %1821 = vmatprep.subr.mxu0 0.0
  %1822 = vmatpush1.msra.mxu0 0.0
  %1823 = vmatprep.subr.mxu0 0.0
  %1824 = vmatpush1.msra.mxu0 0.0
  %1825 = vmatprep.subr.mxu0 0.0
  %1826 = vmatpush1.msra.mxu0 0.0
  %1827 = vmatprep.subr.mxu0 0.0
  %1828 = vmatpush1.msra.mxu0 0.0
  %1829 = vmatprep.subr.mxu0 0.0
  %1830 = vmatpush1.msra.mxu0 0.0
  %1831 = vmatprep.subr.mxu0 0.0
  %1832 = vmatpush1.msra.mxu0 0.0
  %1833 = vmatprep.subr.mxu0 0.0
  %1834 = vmatpush1.msra.mxu0 0.0
  %1835 = vmatprep.subr.mxu0 0.0
  %1836 = vmatpush1.msra.mxu0 0.0
  %1837 = vmatprep.subr.mxu0 0.0
  %1838 = vmatpush1.msra.mxu0 0.0
  %1839 = vmatprep.subr.mxu0 0.0
  %1840 = vmatpush1.msra.mxu0 0.0
  %1841 = vmatprep.subr.mxu0 0.0
  %1842 = vmatpush1.msra.mxu0 0.0
  %1843 = vmatprep.subr.mxu0 0.0
  %1844 = vmatpush1.msra.mxu0 0.0
  %1845 = vmatprep.subr.mxu0 0.0
  %1846 = vmatpush1.msra.mxu0 0.0
  %1847 = vmatprep.subr.mxu0 0.0
  %1848 = vmatpush1.msra.mxu0 0.0
  %1849 = vmatprep.subr.mxu0 0.0
  %1850 = vmatpush1.msra.mxu0 0.0
  %1851 = vmatprep.subr.mxu0 0.0
  %1852 = vmatpush1.msra.mxu0 0.0
  %1853 = vmatprep.subr.mxu0 0.0
  %1854 = vmatpush1.msra.mxu0 0.0
  %1855 = vmatprep.subr.mxu0 0.0
  %1856 = vmatpush1.msra.mxu0 0.0
  %1857 = vmatprep.subr.mxu0 0.0
  %1858 = vmatpush1.msra.mxu0 0.0
  %1859 = vmatprep.subr.mxu0 0.0
  %1860 = vmatpush1.msra.mxu0 0.0
  %1861 = vmatprep.subr.mxu0 0.0
  %1862 = vmatpush1.msra.mxu0 0.0
  %1863 = vmatprep.subr.mxu0 0.0
  %1864 = vmatpush1.msra.mxu0 0.0
  %1865 = vmatprep.subr.mxu0 0.0
  %1866 = vmatpush1.msra.mxu0 0.0
  %1867 = vmatprep.subr.mxu0 0.0
  %1868 = vmatpush1.msra.mxu0 0.0
  %1869 = vmatprep.mubr.f32.mxu0 0.0
  %1870 = vmatmul.mubr.f32.gmra.mrb[0].mxu0 %v1803
  %v1871 = vpop.f32.mrb[0].mxu0
  %v1872 = vadd.f32 %v1799, %v1871
  %v1873 = vpop.f32.mrb[0].mxu0
  %1874 = vdwg.mxu0
  %1875 = vmatprep.subr.mxu0 0.0
  %1876 = vmatpush1.msra.mxu0 %v242
  %1877 = vmatprep.subr.mxu0 0.0
  %1878 = vmatpush1.msra.mxu0 %v243
  %1879 = vmatprep.subr.mxu0 0.0
  %1880 = vmatpush1.msra.mxu0 %v244
  %1881 = vmatprep.subr.mxu0 0.0
  %1882 = vmatpush1.msra.mxu0 %v245
  %1883 = vmatprep.subr.mxu0 0.0
  %1884 = vmatpush1.msra.mxu0 0.0
  %1885 = vmatprep.subr.mxu0 0.0
  %1886 = vmatpush1.msra.mxu0 0.0
  %1887 = vmatprep.subr.mxu0 0.0
  %1888 = vmatpush1.msra.mxu0 0.0
  %1889 = vmatprep.subr.mxu0 0.0
  %1890 = vmatpush1.msra.mxu0 0.0
  %1891 = vmatprep.subr.mxu0 0.0
  %1892 = vmatpush1.msra.mxu0 0.0
  %1893 = vmatprep.subr.mxu0 0.0
  %1894 = vmatpush1.msra.mxu0 0.0
  %1895 = vmatprep.subr.mxu0 0.0
  %1896 = vmatpush1.msra.mxu0 0.0
  %1897 = vmatprep.subr.mxu0 0.0
  %1898 = vmatpush1.msra.mxu0 0.0
  %1899 = vmatprep.subr.mxu0 0.0
  %1900 = vmatpush1.msra.mxu0 0.0
  %1901 = vmatprep.subr.mxu0 0.0
  %1902 = vmatpush1.msra.mxu0 0.0
  %1903 = vmatprep.subr.mxu0 0.0
  %1904 = vmatpush1.msra.mxu0 0.0
  %1905 = vmatprep.subr.mxu0 0.0
  %1906 = vmatpush1.msra.mxu0 0.0
  %1907 = vmatprep.subr.mxu0 0.0
  %1908 = vmatpush1.msra.mxu0 0.0
  %1909 = vmatprep.subr.mxu0 0.0
  %1910 = vmatpush1.msra.mxu0 0.0
  %1911 = vmatprep.subr.mxu0 0.0
  %1912 = vmatpush1.msra.mxu0 0.0
  %1913 = vmatprep.subr.mxu0 0.0
  %1914 = vmatpush1.msra.mxu0 0.0
  %1915 = vmatprep.subr.mxu0 0.0
  %1916 = vmatpush1.msra.mxu0 0.0
  %1917 = vmatprep.subr.mxu0 0.0
  %1918 = vmatpush1.msra.mxu0 0.0
  %1919 = vmatprep.subr.mxu0 0.0
  %1920 = vmatpush1.msra.mxu0 0.0
  %1921 = vmatprep.subr.mxu0 0.0
  %1922 = vmatpush1.msra.mxu0 0.0
  %1923 = vmatprep.subr.mxu0 0.0
  %1924 = vmatpush1.msra.mxu0 0.0
  %1925 = vmatprep.subr.mxu0 0.0
  %1926 = vmatpush1.msra.mxu0 0.0
  %1927 = vmatprep.subr.mxu0 0.0
  %1928 = vmatpush1.msra.mxu0 0.0
  %1929 = vmatprep.subr.mxu0 0.0
  %1930 = vmatpush1.msra.mxu0 0.0
  %1931 = vmatprep.subr.mxu0 0.0
  %1932 = vmatpush1.msra.mxu0 0.0
  %1933 = vmatprep.subr.mxu0 0.0
  %1934 = vmatpush1.msra.mxu0 0.0
  %1935 = vmatprep.subr.mxu0 0.0
  %1936 = vmatpush1.msra.mxu0 0.0
  %1937 = vmatprep.subr.mxu0 0.0
  %1938 = vmatpush1.msra.mxu0 0.0
  %1939 = vmatprep.mubr.f32.mxu0 0.0
  %1940 = vmatmul.mubr.f32.gmra.mrb[0].mxu0 %v1182
  %v1941 = vpop.f32.mrb[0].mxu0
  %v1942 = vadd.f32 0.0, %v1941
  %v1943 = vpop.f32.mrb[0].mxu0
  %1944 = vdwg.mxu0
  %v1945 = vadd.f32 %v1872, %v1942
  %v1946 = vadd.f32 %v1945, %v324
  %v1947 = vxor.u32 %v1946, 2147483648
  %v1948 = vmul.f32 %v1947, 1.442695
  %v1949 = vpow.pop %v1948
  %v1950 = vadd.f32 %v1949, 1.0
  %v1951 = vrcp.pop %v1950
  %v1952 = vmul.f32 1.0, %v1951
  %v1953 = vtanh.pop %v1946
  %v1954 = vmul.f32 %v1952, %v1172
  %1956 = vrot.lane.b32.xlu0 %v1953, 64
  %v1957 = vpop.permute.xlu0 %1956
  %v1959 = vmul.f32 %v1952, %v1957
  %1961 = vrot.lane.b32.xlu0 %v1959, 32
  %v1962 = vpop.permute.xlu0 %1961
  %v1964 = vadd.f32 %v1954, %v1962
  %v1965 = vtanh.pop %v1964
  %1967 = vrot.lane.b32.xlu0 %v1965, 64
  %v1968 = vpop.permute.xlu0 %1967
  %v1970 = vmul.f32 %v1952, %v1968
  %1972 = vrot.lane.b32.xlu0 %v1970, 32
  %v1973 = vpop.permute.xlu0 %1972
  %v1974 = vsel %vm168, %v1973, 0
  %1976 = vmatprep.subr.mxu0 0.0
  %1977 = vmatpush1.msra.mxu0 %v355
  %1978 = vmatprep.subr.mxu0 0.0
  %1979 = vmatpush1.msra.mxu0 %v356
  %1980 = vmatprep.subr.mxu0 0.0
  %1981 = vmatpush1.msra.mxu0 %v357
  %1982 = vmatprep.subr.mxu0 0.0
  %1983 = vmatpush1.msra.mxu0 %v358
  %1984 = vmatprep.subr.mxu0 0.0
  %1985 = vmatpush1.msra.mxu0 0.0
  %1986 = vmatprep.subr.mxu0 0.0
  %1987 = vmatpush1.msra.mxu0 0.0
  %1988 = vmatprep.subr.mxu0 0.0
  %1989 = vmatpush1.msra.mxu0 0.0
  %1990 = vmatprep.subr.mxu0 0.0
  %1991 = vmatpush1.msra.mxu0 0.0
  %1992 = vmatprep.subr.mxu0 0.0
  %1993 = vmatpush1.msra.mxu0 0.0
  %1994 = vmatprep.subr.mxu0 0.0
  %1995 = vmatpush1.msra.mxu0 0.0
  %1996 = vmatprep.subr.mxu0 0.0
  %1997 = vmatpush1.msra.mxu0 0.0
  %1998 = vmatprep.subr.mxu0 0.0
  %1999 = vmatpush1.msra.mxu0 0.0
  %2000 = vmatprep.subr.mxu0 0.0
  %2001 = vmatpush1.msra.mxu0 0.0
  %2002 = vmatprep.subr.mxu0 0.0
  %2003 = vmatpush1.msra.mxu0 0.0
  %2004 = vmatprep.subr.mxu0 0.0
  %2005 = vmatpush1.msra.mxu0 0.0
  %2006 = vmatprep.subr.mxu0 0.0
  %2007 = vmatpush1.msra.mxu0 0.0
  %2008 = vmatprep.subr.mxu0 0.0
  %2009 = vmatpush1.msra.mxu0 0.0
  %2010 = vmatprep.subr.mxu0 0.0
  %2011 = vmatpush1.msra.mxu0 0.0
  %2012 = vmatprep.subr.mxu0 0.0
  %2013 = vmatpush1.msra.mxu0 0.0
  %2014 = vmatprep.subr.mxu0 0.0
  %2015 = vmatpush1.msra.mxu0 0.0
  %2016 = vmatprep.subr.mxu0 0.0
  %2017 = vmatpush1.msra.mxu0 0.0
  %2018 = vmatprep.subr.mxu0 0.0
  %2019 = vmatpush1.msra.mxu0 0.0
  %2020 = vmatprep.subr.mxu0 0.0
  %2021 = vmatpush1.msra.mxu0 0.0
  %2022 = vmatprep.subr.mxu0 0.0
  %2023 = vmatpush1.msra.mxu0 0.0
  %2024 = vmatprep.subr.mxu0 0.0
  %2025 = vmatpush1.msra.mxu0 0.0
  %2026 = vmatprep.subr.mxu0 0.0
  %2027 = vmatpush1.msra.mxu0 0.0
  %2028 = vmatprep.subr.mxu0 0.0
  %2029 = vmatpush1.msra.mxu0 0.0
  %2030 = vmatprep.subr.mxu0 0.0
  %2031 = vmatpush1.msra.mxu0 0.0
  %2032 = vmatprep.subr.mxu0 0.0
  %2033 = vmatpush1.msra.mxu0 0.0
  %2034 = vmatprep.subr.mxu0 0.0
  %2035 = vmatpush1.msra.mxu0 0.0
  %2036 = vmatprep.subr.mxu0 0.0
  %2037 = vmatpush1.msra.mxu0 0.0
  %2038 = vmatprep.subr.mxu0 0.0
  %2039 = vmatpush1.msra.mxu0 0.0
  %2040 = vmatprep.mubr.f32.mxu0 0.0
  %2041 = vmatmul.mubr.f32.gmra.mrb[0].mxu0 %v1974
  %v2042 = vpop.f32.mrb[0].mxu0
  %v2043 = vadd.f32 0.0, %v2042
  %v2044 = vpop.f32.mrb[0].mxu0
  %2045 = vdwg.mxu0
  %v2047 = vcombine.high %v2043, %v2043
  %v2049 = vunpack.c.l.s4 1966171168
  %v2050 = vunpack.c.0.s8 %v2049
  %v2051 = vlaneseq
  %v2052 = vshrl.u32 %v2051, 7
  %v2053 = vsub.s32 %v2050, %v2052
  %v2054 = vrot.slane %v2043, %v2053
  %v2056 = vunpack.c.l.s4 1966171168
  %v2057 = vunpack.c.0.s8 %v2056
  %v2058 = vlaneseq
  %v2059 = vshrl.u32 %v2058, 7
  %v2060 = vsub.s32 %v2057, %v2059
  %v2061 = vrot.slane %v2047, %v2060
  %v2062 = vcombine.high %v2054, %v2054
  %v2063 = vcombine.high %v2061, %v2061
  %v2065 = vunpack.c.l.s4 1966171168
  %v2066 = vunpack.c.0.s8 %v2065
  %v2067 = vlaneseq
  %v2068 = vshrl.u32 %v2067, 7
  %v2069 = vsub.s32 %v2066, %v2068
  %v2070 = vrot.slane %v2054, %v2069
  %v2072 = vunpack.c.l.s4 1966171168
  %v2073 = vunpack.c.0.s8 %v2072
  %v2074 = vlaneseq
  %v2075 = vshrl.u32 %v2074, 7
  %v2076 = vsub.s32 %v2073, %v2075
  %v2077 = vrot.slane %v2061, %v2076
  %v2079 = vunpack.c.l.s4 1966171168
  %v2080 = vunpack.c.0.s8 %v2079
  %v2081 = vlaneseq
  %v2082 = vshrl.u32 %v2081, 7
  %v2083 = vsub.s32 %v2080, %v2082
  %v2084 = vrot.slane %v2062, %v2083
  %v2086 = vunpack.c.l.s4 1966171168
  %v2087 = vunpack.c.0.s8 %v2086
  %v2088 = vlaneseq
  %v2089 = vshrl.u32 %v2088, 7
  %v2090 = vsub.s32 %v2087, %v2089
  %v2091 = vrot.slane %v2063, %v2090
  %v2092 = vcombine.high %v2070, %v2070
  %v2093 = vcombine.high %v2077, %v2077
  %v2094 = vcombine.high %v2084, %v2084
  %v2095 = vcombine.high %v2091, %v2091
  %v2096 = vlaneseq
  %v2097 = vshrl.u32 %v2096, 7
  %v2098 = vsub.s32 0, %v2097
  %v2099 = vrot.slane %v2070, %v2098
  %v2100 = vlaneseq
  %v2101 = vshrl.u32 %v2100, 7
  %v2102 = vsub.s32 0, %v2101
  %v2103 = vrot.slane %v2084, %v2102
  %v2104 = vlaneseq
  %v2105 = vshrl.u32 %v2104, 7
  %v2106 = vsub.s32 0, %v2105
  %v2107 = vrot.slane %v2092, %v2106
  %v2108 = vlaneseq
  %v2109 = vshrl.u32 %v2108, 7
  %v2110 = vsub.s32 0, %v2109
  %v2111 = vrot.slane %v2094, %v2110
  %v2112 = vlaneseq
  %v2113 = vshrl.u32 %v2112, 7
  %v2114 = vsub.s32 0, %v2113
  %v2115 = vrot.slane %v2077, %v2114
  %v2116 = vlaneseq
  %v2117 = vshrl.u32 %v2116, 7
  %v2118 = vsub.s32 0, %v2117
  %v2119 = vrot.slane %v2091, %v2118
  %v2120 = vlaneseq
  %v2121 = vshrl.u32 %v2120, 7
  %v2122 = vsub.s32 0, %v2121
  %v2123 = vrot.slane %v2093, %v2122
  %v2124 = vlaneseq
  %v2125 = vshrl.u32 %v2124, 7
  %v2126 = vsub.s32 0, %v2125
  %v2127 = vrot.slane %v2095, %v2126
  %v2136 = vadd.f32 %v66, %v2099
  %v2137 = vadd.f32 %v67, %v2103
  %v2138 = vadd.f32 %v68, %v2107
  %v2139 = vadd.f32 %v69, %v2111
  %v2140 = vadd.f32 %v70, %v2115
  %v2141 = vadd.f32 %v71, %v2119
  %v2142 = vadd.f32 %v72, %v2123
  %v2143 = vadd.f32 %v73, %v2127
  %v2144 = vtanh.pop %v2136
  %v2145 = vtanh.pop %v2137
  %v2146 = vtanh.pop %v2138
  %v2147 = vtanh.pop %v2139
  %v2148 = vtanh.pop %v2140
  %v2149 = vtanh.pop %v2141
  %v2150 = vtanh.pop %v2142
  %v2151 = vtanh.pop %v2143
  %v2152 = vmul.f32 %v2144, %v544
  %v2153 = vmul.f32 %v2145, %v544
  %v2154 = vmul.f32 %v2146, %v544
  %v2155 = vmul.f32 %v2147, %v544
  %v2156 = vmul.f32 %v2148, %v544
  %v2157 = vmul.f32 %v2149, %v544
  %v2158 = vmul.f32 %v2150, %v544
  %v2159 = vmul.f32 %v2151, %v544
  %v2160 = vsel %vm168, %v2152, 0.0
  %2161 = vadd.xlane.f32.xlu0 %v2160
  %v2162 = vpop.xlane.xlu0 %2161
  %v2163 = vsel %vm168, %v2153, 0.0
  %2164 = vadd.xlane.f32.xlu0 %v2163
  %v2165 = vpop.xlane.xlu0 %2164
  %v2166 = vsel %vm168, %v2154, 0.0
  %2167 = vadd.xlane.f32.xlu0 %v2166
  %v2168 = vpop.xlane.xlu0 %2167
  %v2169 = vsel %vm168, %v2155, 0.0
  %2170 = vadd.xlane.f32.xlu0 %v2169
  %v2171 = vpop.xlane.xlu0 %2170
  %v2172 = vsel %vm168, %v2156, 0.0
  %2173 = vadd.xlane.f32.xlu0 %v2172
  %v2174 = vpop.xlane.xlu0 %2173
  %v2175 = vsel %vm168, %v2157, 0.0
  %2176 = vadd.xlane.f32.xlu0 %v2175
  %v2177 = vpop.xlane.xlu0 %2176
  %v2178 = vsel %vm168, %v2158, 0.0
  %2179 = vadd.xlane.f32.xlu0 %v2178
  %v2180 = vpop.xlane.xlu0 %2179
  %v2181 = vsel %vm168, %v2159, 0.0
  %2182 = vadd.xlane.f32.xlu0 %v2181
  %v2183 = vpop.xlane.xlu0 %2182
  %v2192 = vlaneseq
  %v2193 = vshrl.u32 %v2192, 7
  %v2194 = vsub.s32 %v587, %v2193
  %v2195 = vrot.slane %v2162, %v2194
  %v2196 = vlaneseq
  %v2197 = vshrl.u32 %v2196, 7
  %v2198 = vsub.s32 %v587, %v2197
  %v2199 = vrot.slane %v2165, %v2198
  %v2200 = vlaneseq
  %v2201 = vshrl.u32 %v2200, 7
  %v2202 = vsub.s32 %v587, %v2201
  %v2203 = vrot.slane %v2168, %v2202
  %v2204 = vlaneseq
  %v2205 = vshrl.u32 %v2204, 7
  %v2206 = vsub.s32 %v587, %v2205
  %v2207 = vrot.slane %v2171, %v2206
  %v2208 = vlaneseq
  %v2209 = vshrl.u32 %v2208, 7
  %v2210 = vsub.s32 %v587, %v2209
  %v2211 = vrot.slane %v2174, %v2210
  %v2212 = vlaneseq
  %v2213 = vshrl.u32 %v2212, 7
  %v2214 = vsub.s32 %v587, %v2213
  %v2215 = vrot.slane %v2177, %v2214
  %v2216 = vlaneseq
  %v2217 = vshrl.u32 %v2216, 7
  %v2218 = vsub.s32 %v587, %v2217
  %v2219 = vrot.slane %v2180, %v2218
  %v2220 = vlaneseq
  %v2221 = vshrl.u32 %v2220, 7
  %v2222 = vsub.s32 %v587, %v2221
  %v2223 = vrot.slane %v2183, %v2222
  %v2224 = vsel %vm620, %v2199, %v2195
  %v2225 = vsel %vm622, %v2203, %v2224
  %v2226 = vsel %vm624, %v2207, %v2225
  %v2227 = vsel %vm626, %v2211, %v2226
  %v2228 = vsel %vm628, %v2215, %v2227
  %v2229 = vsel %vm630, %v2219, %v2228
  %v2230 = vsel %vm632, %v2223, %v2229
  %v2232 = vsel %vm75, -1e+09, %v2230
  %v2233 = vsel %vm636, %v2232, -inf
  %2234 = vmax.xlane.f32.xlu0 %v2233
  %v2235 = vpop.xlane.xlu0 %2234
  %v2236 = vsub.f32 %v2232, %v2235
  %v2237 = vmul.f32 %v2236, 1.442695
  %v2238 = vpow.pop %v2237
  %v2239 = vsel %vm636, %v2238, 0.0
  %2240 = vadd.xlane.f32.xlu0 %v2239
  %v2241 = vpop.xlane.xlu0 %2240
  %v2242 = vrcp.pop %v2241
  %v2243 = vmul.f32 %v2238, %v2242
  %v2244 = vlaneseq
  %v2245 = vshrl.u32 %v2244, 7
  %v2246 = vsub.s32 0, %v2245
  %v2247 = vrot.slane %v2243, %v2246
  %2249 = vbcast.lane.b32.xlu0 %v2247, 256
  %v2250 = vpop.permute.xlu0 %2249
  %v2251 = vlaneseq
  %v2252 = vshrl.u32 %v2251, 7
  %v2253 = vsub.s32 1, %v2252
  %v2254 = vrot.slane %v2243, %v2253
  %2256 = vbcast.lane.b32.xlu0 %v2254, 256
  %v2257 = vpop.permute.xlu0 %2256
  %v2258 = vlaneseq
  %v2259 = vshrl.u32 %v2258, 7
  %v2260 = vsub.s32 2, %v2259
  %v2261 = vrot.slane %v2243, %v2260
  %2263 = vbcast.lane.b32.xlu0 %v2261, 256
  %v2264 = vpop.permute.xlu0 %2263
  %v2265 = vlaneseq
  %v2266 = vshrl.u32 %v2265, 7
  %v2267 = vsub.s32 3, %v2266
  %v2268 = vrot.slane %v2243, %v2267
  %2270 = vbcast.lane.b32.xlu0 %v2268, 256
  %v2271 = vpop.permute.xlu0 %2270
  %v2272 = vlaneseq
  %v2273 = vshrl.u32 %v2272, 7
  %v2274 = vsub.s32 4, %v2273
  %v2275 = vrot.slane %v2243, %v2274
  %2277 = vbcast.lane.b32.xlu0 %v2275, 256
  %v2278 = vpop.permute.xlu0 %2277
  %v2279 = vlaneseq
  %v2280 = vshrl.u32 %v2279, 7
  %v2281 = vsub.s32 5, %v2280
  %v2282 = vrot.slane %v2243, %v2281
  %2284 = vbcast.lane.b32.xlu0 %v2282, 256
  %v2285 = vpop.permute.xlu0 %2284
  %v2286 = vlaneseq
  %v2287 = vshrl.u32 %v2286, 7
  %v2288 = vsub.s32 6, %v2287
  %v2289 = vrot.slane %v2243, %v2288
  %2291 = vbcast.lane.b32.xlu0 %v2289, 256
  %v2292 = vpop.permute.xlu0 %2291
  %v2293 = vlaneseq
  %v2294 = vshrl.u32 %v2293, 7
  %v2295 = vsub.s32 7, %v2294
  %v2296 = vrot.slane %v2243, %v2295
  %2298 = vbcast.lane.b32.xlu0 %v2296, 256
  %v2299 = vpop.permute.xlu0 %2298
  %v2300 = vmul.f32 %v2250, %v58
  %v2301 = vmul.f32 %v2257, %v59
  %v2302 = vmul.f32 %v2264, %v60
  %v2303 = vmul.f32 %v2271, %v61
  %v2304 = vmul.f32 %v2278, %v62
  %v2305 = vmul.f32 %v2285, %v63
  %v2306 = vmul.f32 %v2292, %v64
  %v2307 = vmul.f32 %v2299, %v65
  %v2308 = vsel %vm94, %v2300, 0.0
  %v2309 = vrot.slane %v2308, 4
  %v2310 = vadd.f32 %v2308, %v2309
  %v2311 = vrot.slane %v2310, 2
  %v2312 = vadd.f32 %v2310, %v2311
  %v2313 = vrot.slane %v2312, 1
  %v2314 = vadd.f32 %v2312, %v2313
  %v2315 = vsel %vm94, %v2301, 0.0
  %v2316 = vrot.slane %v2315, 4
  %v2317 = vadd.f32 %v2315, %v2316
  %v2318 = vrot.slane %v2317, 2
  %v2319 = vadd.f32 %v2317, %v2318
  %v2320 = vrot.slane %v2319, 1
  %v2321 = vadd.f32 %v2319, %v2320
  %v2322 = vsel %vm94, %v2302, 0.0
  %v2323 = vrot.slane %v2322, 4
  %v2324 = vadd.f32 %v2322, %v2323
  %v2325 = vrot.slane %v2324, 2
  %v2326 = vadd.f32 %v2324, %v2325
  %v2327 = vrot.slane %v2326, 1
  %v2328 = vadd.f32 %v2326, %v2327
  %v2329 = vsel %vm94, %v2303, 0.0
  %v2330 = vrot.slane %v2329, 4
  %v2331 = vadd.f32 %v2329, %v2330
  %v2332 = vrot.slane %v2331, 2
  %v2333 = vadd.f32 %v2331, %v2332
  %v2334 = vrot.slane %v2333, 1
  %v2335 = vadd.f32 %v2333, %v2334
  %v2336 = vsel %vm94, %v2304, 0.0
  %v2337 = vrot.slane %v2336, 4
  %v2338 = vadd.f32 %v2336, %v2337
  %v2339 = vrot.slane %v2338, 2
  %v2340 = vadd.f32 %v2338, %v2339
  %v2341 = vrot.slane %v2340, 1
  %v2342 = vadd.f32 %v2340, %v2341
  %v2343 = vsel %vm94, %v2305, 0.0
  %v2344 = vrot.slane %v2343, 4
  %v2345 = vadd.f32 %v2343, %v2344
  %v2346 = vrot.slane %v2345, 2
  %v2347 = vadd.f32 %v2345, %v2346
  %v2348 = vrot.slane %v2347, 1
  %v2349 = vadd.f32 %v2347, %v2348
  %v2350 = vsel %vm94, %v2306, 0.0
  %v2351 = vrot.slane %v2350, 4
  %v2352 = vadd.f32 %v2350, %v2351
  %v2353 = vrot.slane %v2352, 2
  %v2354 = vadd.f32 %v2352, %v2353
  %v2355 = vrot.slane %v2354, 1
  %v2356 = vadd.f32 %v2354, %v2355
  %v2357 = vsel %vm94, %v2307, 0.0
  %v2358 = vrot.slane %v2357, 4
  %v2359 = vadd.f32 %v2357, %v2358
  %v2360 = vrot.slane %v2359, 2
  %v2361 = vadd.f32 %v2359, %v2360
  %v2362 = vrot.slane %v2361, 1
  %v2363 = vadd.f32 %v2361, %v2362
  %v2372 = vsel %vm620, %v2321, %v2314
  %v2373 = vsel %vm622, %v2328, %v2372
  %v2374 = vsel %vm624, %v2335, %v2373
  %v2375 = vsel %vm626, %v2342, %v2374
  %v2376 = vsel %vm628, %v2349, %v2375
  %v2377 = vsel %vm630, %v2356, %v2376
  %v2378 = vsel %vm632, %v2363, %v2377
  %v2379 = vsel %vm94, %v2378, 0
  %2381 = vmatprep.subr.mxu0 0.0
  %2382 = vmatpush1.msra.mxu0 %v772
  %2383 = vmatprep.subr.mxu0 0.0
  %2384 = vmatpush1.msra.mxu0 %v773
  %2385 = vmatprep.subr.mxu0 0.0
  %2386 = vmatpush1.msra.mxu0 %v774
  %2387 = vmatprep.subr.mxu0 0.0
  %2388 = vmatpush1.msra.mxu0 %v775
  %2389 = vmatprep.subr.mxu0 0.0
  %2390 = vmatpush1.msra.mxu0 %v776
  %2391 = vmatprep.subr.mxu0 0.0
  %2392 = vmatpush1.msra.mxu0 %v777
  %2393 = vmatprep.subr.mxu0 0.0
  %2394 = vmatpush1.msra.mxu0 %v778
  %2395 = vmatprep.subr.mxu0 0.0
  %2396 = vmatpush1.msra.mxu0 %v779
  %2397 = vmatprep.subr.mxu0 0.0
  %2398 = vmatpush1.msra.mxu0 0.0
  %2399 = vmatprep.subr.mxu0 0.0
  %2400 = vmatpush1.msra.mxu0 0.0
  %2401 = vmatprep.subr.mxu0 0.0
  %2402 = vmatpush1.msra.mxu0 0.0
  %2403 = vmatprep.subr.mxu0 0.0
  %2404 = vmatpush1.msra.mxu0 0.0
  %2405 = vmatprep.subr.mxu0 0.0
  %2406 = vmatpush1.msra.mxu0 0.0
  %2407 = vmatprep.subr.mxu0 0.0
  %2408 = vmatpush1.msra.mxu0 0.0
  %2409 = vmatprep.subr.mxu0 0.0
  %2410 = vmatpush1.msra.mxu0 0.0
  %2411 = vmatprep.subr.mxu0 0.0
  %2412 = vmatpush1.msra.mxu0 0.0
  %2413 = vmatprep.subr.mxu0 0.0
  %2414 = vmatpush1.msra.mxu0 0.0
  %2415 = vmatprep.subr.mxu0 0.0
  %2416 = vmatpush1.msra.mxu0 0.0
  %2417 = vmatprep.subr.mxu0 0.0
  %2418 = vmatpush1.msra.mxu0 0.0
  %2419 = vmatprep.subr.mxu0 0.0
  %2420 = vmatpush1.msra.mxu0 0.0
  %2421 = vmatprep.subr.mxu0 0.0
  %2422 = vmatpush1.msra.mxu0 0.0
  %2423 = vmatprep.subr.mxu0 0.0
  %2424 = vmatpush1.msra.mxu0 0.0
  %2425 = vmatprep.subr.mxu0 0.0
  %2426 = vmatpush1.msra.mxu0 0.0
  %2427 = vmatprep.subr.mxu0 0.0
  %2428 = vmatpush1.msra.mxu0 0.0
  %2429 = vmatprep.subr.mxu0 0.0
  %2430 = vmatpush1.msra.mxu0 0.0
  %2431 = vmatprep.subr.mxu0 0.0
  %2432 = vmatpush1.msra.mxu0 0.0
  %2433 = vmatprep.subr.mxu0 0.0
  %2434 = vmatpush1.msra.mxu0 0.0
  %2435 = vmatprep.subr.mxu0 0.0
  %2436 = vmatpush1.msra.mxu0 0.0
  %2437 = vmatprep.subr.mxu0 0.0
  %2438 = vmatpush1.msra.mxu0 0.0
  %2439 = vmatprep.subr.mxu0 0.0
  %2440 = vmatpush1.msra.mxu0 0.0
  %2441 = vmatprep.subr.mxu0 0.0
  %2442 = vmatpush1.msra.mxu0 0.0
  %2443 = vmatprep.subr.mxu0 0.0
  %2444 = vmatpush1.msra.mxu0 0.0
  %2445 = vmatprep.mubr.f32.mxu0 0.0
  %2446 = vmatmul.mubr.f32.gmra.mrb[0].mxu0 %v2379
  %v2447 = vpop.f32.mrb[0].mxu0
  %v2448 = vadd.f32 0.0, %v2447
  %v2449 = vpop.f32.mrb[0].mxu0
  %2450 = vdwg.mxu0
  %2451 = vmatprep.subr.mxu0 0.0
  %2452 = vmatpush1.msra.mxu0 %v768
  %2453 = vmatprep.subr.mxu0 0.0
  %2454 = vmatpush1.msra.mxu0 %v769
  %2455 = vmatprep.subr.mxu0 0.0
  %2456 = vmatpush1.msra.mxu0 %v770
  %2457 = vmatprep.subr.mxu0 0.0
  %2458 = vmatpush1.msra.mxu0 %v771
  %2459 = vmatprep.subr.mxu0 0.0
  %2460 = vmatpush1.msra.mxu0 0.0
  %2461 = vmatprep.subr.mxu0 0.0
  %2462 = vmatpush1.msra.mxu0 0.0
  %2463 = vmatprep.subr.mxu0 0.0
  %2464 = vmatpush1.msra.mxu0 0.0
  %2465 = vmatprep.subr.mxu0 0.0
  %2466 = vmatpush1.msra.mxu0 0.0
  %2467 = vmatprep.subr.mxu0 0.0
  %2468 = vmatpush1.msra.mxu0 0.0
  %2469 = vmatprep.subr.mxu0 0.0
  %2470 = vmatpush1.msra.mxu0 0.0
  %2471 = vmatprep.subr.mxu0 0.0
  %2472 = vmatpush1.msra.mxu0 0.0
  %2473 = vmatprep.subr.mxu0 0.0
  %2474 = vmatpush1.msra.mxu0 0.0
  %2475 = vmatprep.subr.mxu0 0.0
  %2476 = vmatpush1.msra.mxu0 0.0
  %2477 = vmatprep.subr.mxu0 0.0
  %2478 = vmatpush1.msra.mxu0 0.0
  %2479 = vmatprep.subr.mxu0 0.0
  %2480 = vmatpush1.msra.mxu0 0.0
  %2481 = vmatprep.subr.mxu0 0.0
  %2482 = vmatpush1.msra.mxu0 0.0
  %2483 = vmatprep.subr.mxu0 0.0
  %2484 = vmatpush1.msra.mxu0 0.0
  %2485 = vmatprep.subr.mxu0 0.0
  %2486 = vmatpush1.msra.mxu0 0.0
  %2487 = vmatprep.subr.mxu0 0.0
  %2488 = vmatpush1.msra.mxu0 0.0
  %2489 = vmatprep.subr.mxu0 0.0
  %2490 = vmatpush1.msra.mxu0 0.0
  %2491 = vmatprep.subr.mxu0 0.0
  %2492 = vmatpush1.msra.mxu0 0.0
  %2493 = vmatprep.subr.mxu0 0.0
  %2494 = vmatpush1.msra.mxu0 0.0
  %2495 = vmatprep.subr.mxu0 0.0
  %2496 = vmatpush1.msra.mxu0 0.0
  %2497 = vmatprep.subr.mxu0 0.0
  %2498 = vmatpush1.msra.mxu0 0.0
  %2499 = vmatprep.subr.mxu0 0.0
  %2500 = vmatpush1.msra.mxu0 0.0
  %2501 = vmatprep.subr.mxu0 0.0
  %2502 = vmatpush1.msra.mxu0 0.0
  %2503 = vmatprep.subr.mxu0 0.0
  %2504 = vmatpush1.msra.mxu0 0.0
  %2505 = vmatprep.subr.mxu0 0.0
  %2506 = vmatpush1.msra.mxu0 0.0
  %2507 = vmatprep.subr.mxu0 0.0
  %2508 = vmatpush1.msra.mxu0 0.0
  %2509 = vmatprep.subr.mxu0 0.0
  %2510 = vmatpush1.msra.mxu0 0.0
  %2511 = vmatprep.subr.mxu0 0.0
  %2512 = vmatpush1.msra.mxu0 0.0
  %2513 = vmatprep.subr.mxu0 0.0
  %2514 = vmatpush1.msra.mxu0 0.0
  %2515 = vmatprep.mubr.f32.mxu0 0.0
  %2516 = vmatmul.mubr.f32.gmra.mrb[0].mxu0 %v1974
  %v2517 = vpop.f32.mrb[0].mxu0
  %v2518 = vadd.f32 %v2448, %v2517
  %v2519 = vpop.f32.mrb[0].mxu0
  %2520 = vdwg.mxu0
  %v2521 = vtanh.pop %v2518
  %s2522 = scalar_lea.vmem %s0, 24
  %v2523 = vld [vmem:[%s2522] sm:$0xff]
  %2524 = vmatprep.subr.mxu0 0.0
  %2525 = vmatpush1.msra.mxu0 %v86
  %2526 = vmatprep.subr.mxu0 0.0
  %2527 = vmatpush1.msra.mxu0 %v87
  %2528 = vmatprep.subr.mxu0 0.0
  %2529 = vmatpush1.msra.mxu0 %v88
  %2530 = vmatprep.subr.mxu0 0.0
  %2531 = vmatpush1.msra.mxu0 %v89
  %2532 = vmatprep.subr.mxu0 0.0
  %2533 = vmatpush1.msra.mxu0 %v90
  %2534 = vmatprep.subr.mxu0 0.0
  %2535 = vmatpush1.msra.mxu0 %v91
  %2536 = vmatprep.subr.mxu0 0.0
  %2537 = vmatpush1.msra.mxu0 %v92
  %2538 = vmatprep.subr.mxu0 0.0
  %2539 = vmatpush1.msra.mxu0 %v93
  %2540 = vmatprep.subr.mxu0 0.0
  %2541 = vmatpush1.msra.mxu0 0.0
  %2542 = vmatprep.subr.mxu0 0.0
  %2543 = vmatpush1.msra.mxu0 0.0
  %2544 = vmatprep.subr.mxu0 0.0
  %2545 = vmatpush1.msra.mxu0 0.0
  %2546 = vmatprep.subr.mxu0 0.0
  %2547 = vmatpush1.msra.mxu0 0.0
  %2548 = vmatprep.subr.mxu0 0.0
  %2549 = vmatpush1.msra.mxu0 0.0
  %2550 = vmatprep.subr.mxu0 0.0
  %2551 = vmatpush1.msra.mxu0 0.0
  %2552 = vmatprep.subr.mxu0 0.0
  %2553 = vmatpush1.msra.mxu0 0.0
  %2554 = vmatprep.subr.mxu0 0.0
  %2555 = vmatpush1.msra.mxu0 0.0
  %2556 = vmatprep.subr.mxu0 0.0
  %2557 = vmatpush1.msra.mxu0 0.0
  %2558 = vmatprep.subr.mxu0 0.0
  %2559 = vmatpush1.msra.mxu0 0.0
  %2560 = vmatprep.subr.mxu0 0.0
  %2561 = vmatpush1.msra.mxu0 0.0
  %2562 = vmatprep.subr.mxu0 0.0
  %2563 = vmatpush1.msra.mxu0 0.0
  %2564 = vmatprep.subr.mxu0 0.0
  %2565 = vmatpush1.msra.mxu0 0.0
  %2566 = vmatprep.subr.mxu0 0.0
  %2567 = vmatpush1.msra.mxu0 0.0
  %2568 = vmatprep.subr.mxu0 0.0
  %2569 = vmatpush1.msra.mxu0 0.0
  %2570 = vmatprep.subr.mxu0 0.0
  %2571 = vmatpush1.msra.mxu0 0.0
  %2572 = vmatprep.subr.mxu0 0.0
  %2573 = vmatpush1.msra.mxu0 0.0
  %2574 = vmatprep.subr.mxu0 0.0
  %2575 = vmatpush1.msra.mxu0 0.0
  %2576 = vmatprep.subr.mxu0 0.0
  %2577 = vmatpush1.msra.mxu0 0.0
  %2578 = vmatprep.subr.mxu0 0.0
  %2579 = vmatpush1.msra.mxu0 0.0
  %2580 = vmatprep.subr.mxu0 0.0
  %2581 = vmatpush1.msra.mxu0 0.0
  %2582 = vmatprep.subr.mxu0 0.0
  %2583 = vmatpush1.msra.mxu0 0.0
  %2584 = vmatprep.subr.mxu0 0.0
  %2585 = vmatpush1.msra.mxu0 0.0
  %2586 = vmatprep.subr.mxu0 0.0
  %2587 = vmatpush1.msra.mxu0 0.0
  %2588 = vmatprep.mubr.f32.mxu0 0.0
  %2589 = vmatmul.mubr.f32.gmra.mrb[0].mxu0 %v2379
  %v2590 = vpop.f32.mrb[0].mxu0
  %v2591 = vadd.f32 0.0, %v2590
  %v2592 = vpop.f32.mrb[0].mxu0
  %2593 = vdwg.mxu0
  %v2595 = vsel %vm168, %v2523, 0
  %2597 = vmatprep.subr.mxu0 0.0
  %2598 = vmatpush1.msra.mxu0 %v82
  %2599 = vmatprep.subr.mxu0 0.0
  %2600 = vmatpush1.msra.mxu0 %v83
  %2601 = vmatprep.subr.mxu0 0.0
  %2602 = vmatpush1.msra.mxu0 %v84
  %2603 = vmatprep.subr.mxu0 0.0
  %2604 = vmatpush1.msra.mxu0 %v85
  %2605 = vmatprep.subr.mxu0 0.0
  %2606 = vmatpush1.msra.mxu0 0.0
  %2607 = vmatprep.subr.mxu0 0.0
  %2608 = vmatpush1.msra.mxu0 0.0
  %2609 = vmatprep.subr.mxu0 0.0
  %2610 = vmatpush1.msra.mxu0 0.0
  %2611 = vmatprep.subr.mxu0 0.0
  %2612 = vmatpush1.msra.mxu0 0.0
  %2613 = vmatprep.subr.mxu0 0.0
  %2614 = vmatpush1.msra.mxu0 0.0
  %2615 = vmatprep.subr.mxu0 0.0
  %2616 = vmatpush1.msra.mxu0 0.0
  %2617 = vmatprep.subr.mxu0 0.0
  %2618 = vmatpush1.msra.mxu0 0.0
  %2619 = vmatprep.subr.mxu0 0.0
  %2620 = vmatpush1.msra.mxu0 0.0
  %2621 = vmatprep.subr.mxu0 0.0
  %2622 = vmatpush1.msra.mxu0 0.0
  %2623 = vmatprep.subr.mxu0 0.0
  %2624 = vmatpush1.msra.mxu0 0.0
  %2625 = vmatprep.subr.mxu0 0.0
  %2626 = vmatpush1.msra.mxu0 0.0
  %2627 = vmatprep.subr.mxu0 0.0
  %2628 = vmatpush1.msra.mxu0 0.0
  %2629 = vmatprep.subr.mxu0 0.0
  %2630 = vmatpush1.msra.mxu0 0.0
  %2631 = vmatprep.subr.mxu0 0.0
  %2632 = vmatpush1.msra.mxu0 0.0
  %2633 = vmatprep.subr.mxu0 0.0
  %2634 = vmatpush1.msra.mxu0 0.0
  %2635 = vmatprep.subr.mxu0 0.0
  %2636 = vmatpush1.msra.mxu0 0.0
  %2637 = vmatprep.subr.mxu0 0.0
  %2638 = vmatpush1.msra.mxu0 0.0
  %2639 = vmatprep.subr.mxu0 0.0
  %2640 = vmatpush1.msra.mxu0 0.0
  %2641 = vmatprep.subr.mxu0 0.0
  %2642 = vmatpush1.msra.mxu0 0.0
  %2643 = vmatprep.subr.mxu0 0.0
  %2644 = vmatpush1.msra.mxu0 0.0
  %2645 = vmatprep.subr.mxu0 0.0
  %2646 = vmatpush1.msra.mxu0 0.0
  %2647 = vmatprep.subr.mxu0 0.0
  %2648 = vmatpush1.msra.mxu0 0.0
  %2649 = vmatprep.subr.mxu0 0.0
  %2650 = vmatpush1.msra.mxu0 0.0
  %2651 = vmatprep.subr.mxu0 0.0
  %2652 = vmatpush1.msra.mxu0 0.0
  %2653 = vmatprep.subr.mxu0 0.0
  %2654 = vmatpush1.msra.mxu0 0.0
  %2655 = vmatprep.subr.mxu0 0.0
  %2656 = vmatpush1.msra.mxu0 0.0
  %2657 = vmatprep.subr.mxu0 0.0
  %2658 = vmatpush1.msra.mxu0 0.0
  %2659 = vmatprep.subr.mxu0 0.0
  %2660 = vmatpush1.msra.mxu0 0.0
  %2661 = vmatprep.mubr.f32.mxu0 0.0
  %2662 = vmatmul.mubr.f32.gmra.mrb[0].mxu0 %v2595
  %v2663 = vpop.f32.mrb[0].mxu0
  %v2664 = vadd.f32 %v2591, %v2663
  %v2665 = vpop.f32.mrb[0].mxu0
  %2666 = vdwg.mxu0
  %2667 = vmatprep.subr.mxu0 0.0
  %2668 = vmatpush1.msra.mxu0 %v242
  %2669 = vmatprep.subr.mxu0 0.0
  %2670 = vmatpush1.msra.mxu0 %v243
  %2671 = vmatprep.subr.mxu0 0.0
  %2672 = vmatpush1.msra.mxu0 %v244
  %2673 = vmatprep.subr.mxu0 0.0
  %2674 = vmatpush1.msra.mxu0 %v245
  %2675 = vmatprep.subr.mxu0 0.0
  %2676 = vmatpush1.msra.mxu0 0.0
  %2677 = vmatprep.subr.mxu0 0.0
  %2678 = vmatpush1.msra.mxu0 0.0
  %2679 = vmatprep.subr.mxu0 0.0
  %2680 = vmatpush1.msra.mxu0 0.0
  %2681 = vmatprep.subr.mxu0 0.0
  %2682 = vmatpush1.msra.mxu0 0.0
  %2683 = vmatprep.subr.mxu0 0.0
  %2684 = vmatpush1.msra.mxu0 0.0
  %2685 = vmatprep.subr.mxu0 0.0
  %2686 = vmatpush1.msra.mxu0 0.0
  %2687 = vmatprep.subr.mxu0 0.0
  %2688 = vmatpush1.msra.mxu0 0.0
  %2689 = vmatprep.subr.mxu0 0.0
  %2690 = vmatpush1.msra.mxu0 0.0
  %2691 = vmatprep.subr.mxu0 0.0
  %2692 = vmatpush1.msra.mxu0 0.0
  %2693 = vmatprep.subr.mxu0 0.0
  %2694 = vmatpush1.msra.mxu0 0.0
  %2695 = vmatprep.subr.mxu0 0.0
  %2696 = vmatpush1.msra.mxu0 0.0
  %2697 = vmatprep.subr.mxu0 0.0
  %2698 = vmatpush1.msra.mxu0 0.0
  %2699 = vmatprep.subr.mxu0 0.0
  %2700 = vmatpush1.msra.mxu0 0.0
  %2701 = vmatprep.subr.mxu0 0.0
  %2702 = vmatpush1.msra.mxu0 0.0
  %2703 = vmatprep.subr.mxu0 0.0
  %2704 = vmatpush1.msra.mxu0 0.0
  %2705 = vmatprep.subr.mxu0 0.0
  %2706 = vmatpush1.msra.mxu0 0.0
  %2707 = vmatprep.subr.mxu0 0.0
  %2708 = vmatpush1.msra.mxu0 0.0
  %2709 = vmatprep.subr.mxu0 0.0
  %2710 = vmatpush1.msra.mxu0 0.0
  %2711 = vmatprep.subr.mxu0 0.0
  %2712 = vmatpush1.msra.mxu0 0.0
  %2713 = vmatprep.subr.mxu0 0.0
  %2714 = vmatpush1.msra.mxu0 0.0
  %2715 = vmatprep.subr.mxu0 0.0
  %2716 = vmatpush1.msra.mxu0 0.0
  %2717 = vmatprep.subr.mxu0 0.0
  %2718 = vmatpush1.msra.mxu0 0.0
  %2719 = vmatprep.subr.mxu0 0.0
  %2720 = vmatpush1.msra.mxu0 0.0
  %2721 = vmatprep.subr.mxu0 0.0
  %2722 = vmatpush1.msra.mxu0 0.0
  %2723 = vmatprep.subr.mxu0 0.0
  %2724 = vmatpush1.msra.mxu0 0.0
  %2725 = vmatprep.subr.mxu0 0.0
  %2726 = vmatpush1.msra.mxu0 0.0
  %2727 = vmatprep.subr.mxu0 0.0
  %2728 = vmatpush1.msra.mxu0 0.0
  %2729 = vmatprep.subr.mxu0 0.0
  %2730 = vmatpush1.msra.mxu0 0.0
  %2731 = vmatprep.mubr.f32.mxu0 0.0
  %2732 = vmatmul.mubr.f32.gmra.mrb[0].mxu0 %v1974
  %v2733 = vpop.f32.mrb[0].mxu0
  %v2734 = vadd.f32 0.0, %v2733
  %v2735 = vpop.f32.mrb[0].mxu0
  %2736 = vdwg.mxu0
  %v2737 = vadd.f32 %v2664, %v2734
  %v2738 = vadd.f32 %v2737, %v324
  %v2739 = vxor.u32 %v2738, 2147483648
  %v2740 = vmul.f32 %v2739, 1.442695
  %v2741 = vpow.pop %v2740
  %v2742 = vadd.f32 %v2741, 1.0
  %v2743 = vrcp.pop %v2742
  %v2744 = vmul.f32 1.0, %v2743
  %v2745 = vtanh.pop %v2738
  %v2746 = vmul.f32 %v2744, %v1964
  %2748 = vrot.lane.b32.xlu0 %v2745, 64
  %v2749 = vpop.permute.xlu0 %2748
  %v2751 = vmul.f32 %v2744, %v2749
  %2753 = vrot.lane.b32.xlu0 %v2751, 32
  %v2754 = vpop.permute.xlu0 %2753
  %v2756 = vadd.f32 %v2746, %v2754
  %v2757 = vtanh.pop %v2756
  %2759 = vrot.lane.b32.xlu0 %v2757, 64
  %v2760 = vpop.permute.xlu0 %2759
  %v2762 = vmul.f32 %v2744, %v2760
  %2764 = vrot.lane.b32.xlu0 %v2762, 32
  %v2765 = vpop.permute.xlu0 %2764
  %v2766 = vsel %vm168, %v2765, 0
  %2768 = vmatprep.subr.mxu0 0.0
  %2769 = vmatpush1.msra.mxu0 %v355
  %2770 = vmatprep.subr.mxu0 0.0
  %2771 = vmatpush1.msra.mxu0 %v356
  %2772 = vmatprep.subr.mxu0 0.0
  %2773 = vmatpush1.msra.mxu0 %v357
  %2774 = vmatprep.subr.mxu0 0.0
  %2775 = vmatpush1.msra.mxu0 %v358
  %2776 = vmatprep.subr.mxu0 0.0
  %2777 = vmatpush1.msra.mxu0 0.0
  %2778 = vmatprep.subr.mxu0 0.0
  %2779 = vmatpush1.msra.mxu0 0.0
  %2780 = vmatprep.subr.mxu0 0.0
  %2781 = vmatpush1.msra.mxu0 0.0
  %2782 = vmatprep.subr.mxu0 0.0
  %2783 = vmatpush1.msra.mxu0 0.0
  %2784 = vmatprep.subr.mxu0 0.0
  %2785 = vmatpush1.msra.mxu0 0.0
  %2786 = vmatprep.subr.mxu0 0.0
  %2787 = vmatpush1.msra.mxu0 0.0
  %2788 = vmatprep.subr.mxu0 0.0
  %2789 = vmatpush1.msra.mxu0 0.0
  %2790 = vmatprep.subr.mxu0 0.0
  %2791 = vmatpush1.msra.mxu0 0.0
  %2792 = vmatprep.subr.mxu0 0.0
  %2793 = vmatpush1.msra.mxu0 0.0
  %2794 = vmatprep.subr.mxu0 0.0
  %2795 = vmatpush1.msra.mxu0 0.0
  %2796 = vmatprep.subr.mxu0 0.0
  %2797 = vmatpush1.msra.mxu0 0.0
  %2798 = vmatprep.subr.mxu0 0.0
  %2799 = vmatpush1.msra.mxu0 0.0
  %2800 = vmatprep.subr.mxu0 0.0
  %2801 = vmatpush1.msra.mxu0 0.0
  %2802 = vmatprep.subr.mxu0 0.0
  %2803 = vmatpush1.msra.mxu0 0.0
  %2804 = vmatprep.subr.mxu0 0.0
  %2805 = vmatpush1.msra.mxu0 0.0
  %2806 = vmatprep.subr.mxu0 0.0
  %2807 = vmatpush1.msra.mxu0 0.0
  %2808 = vmatprep.subr.mxu0 0.0
  %2809 = vmatpush1.msra.mxu0 0.0
  %2810 = vmatprep.subr.mxu0 0.0
  %2811 = vmatpush1.msra.mxu0 0.0
  %2812 = vmatprep.subr.mxu0 0.0
  %2813 = vmatpush1.msra.mxu0 0.0
  %2814 = vmatprep.subr.mxu0 0.0
  %2815 = vmatpush1.msra.mxu0 0.0
  %2816 = vmatprep.subr.mxu0 0.0
  %2817 = vmatpush1.msra.mxu0 0.0
  %2818 = vmatprep.subr.mxu0 0.0
  %2819 = vmatpush1.msra.mxu0 0.0
  %2820 = vmatprep.subr.mxu0 0.0
  %2821 = vmatpush1.msra.mxu0 0.0
  %2822 = vmatprep.subr.mxu0 0.0
  %2823 = vmatpush1.msra.mxu0 0.0
  %2824 = vmatprep.subr.mxu0 0.0
  %2825 = vmatpush1.msra.mxu0 0.0
  %2826 = vmatprep.subr.mxu0 0.0
  %2827 = vmatpush1.msra.mxu0 0.0
  %2828 = vmatprep.subr.mxu0 0.0
  %2829 = vmatpush1.msra.mxu0 0.0
  %2830 = vmatprep.subr.mxu0 0.0
  %2831 = vmatpush1.msra.mxu0 0.0
  %2832 = vmatprep.mubr.f32.mxu0 0.0
  %2833 = vmatmul.mubr.f32.gmra.mrb[0].mxu0 %v2766
  %v2834 = vpop.f32.mrb[0].mxu0
  %v2835 = vadd.f32 0.0, %v2834
  %v2836 = vpop.f32.mrb[0].mxu0
  %2837 = vdwg.mxu0
  %v2839 = vcombine.high %v2835, %v2835
  %v2841 = vunpack.c.l.s4 1966171168
  %v2842 = vunpack.c.0.s8 %v2841
  %v2843 = vlaneseq
  %v2844 = vshrl.u32 %v2843, 7
  %v2845 = vsub.s32 %v2842, %v2844
  %v2846 = vrot.slane %v2835, %v2845
  %v2848 = vunpack.c.l.s4 1966171168
  %v2849 = vunpack.c.0.s8 %v2848
  %v2850 = vlaneseq
  %v2851 = vshrl.u32 %v2850, 7
  %v2852 = vsub.s32 %v2849, %v2851
  %v2853 = vrot.slane %v2839, %v2852
  %v2854 = vcombine.high %v2846, %v2846
  %v2855 = vcombine.high %v2853, %v2853
  %v2857 = vunpack.c.l.s4 1966171168
  %v2858 = vunpack.c.0.s8 %v2857
  %v2859 = vlaneseq
  %v2860 = vshrl.u32 %v2859, 7
  %v2861 = vsub.s32 %v2858, %v2860
  %v2862 = vrot.slane %v2846, %v2861
  %v2864 = vunpack.c.l.s4 1966171168
  %v2865 = vunpack.c.0.s8 %v2864
  %v2866 = vlaneseq
  %v2867 = vshrl.u32 %v2866, 7
  %v2868 = vsub.s32 %v2865, %v2867
  %v2869 = vrot.slane %v2853, %v2868
  %v2871 = vunpack.c.l.s4 1966171168
  %v2872 = vunpack.c.0.s8 %v2871
  %v2873 = vlaneseq
  %v2874 = vshrl.u32 %v2873, 7
  %v2875 = vsub.s32 %v2872, %v2874
  %v2876 = vrot.slane %v2854, %v2875
  %v2878 = vunpack.c.l.s4 1966171168
  %v2879 = vunpack.c.0.s8 %v2878
  %v2880 = vlaneseq
  %v2881 = vshrl.u32 %v2880, 7
  %v2882 = vsub.s32 %v2879, %v2881
  %v2883 = vrot.slane %v2855, %v2882
  %v2884 = vcombine.high %v2862, %v2862
  %v2885 = vcombine.high %v2869, %v2869
  %v2886 = vcombine.high %v2876, %v2876
  %v2887 = vcombine.high %v2883, %v2883
  %v2888 = vlaneseq
  %v2889 = vshrl.u32 %v2888, 7
  %v2890 = vsub.s32 0, %v2889
  %v2891 = vrot.slane %v2862, %v2890
  %v2892 = vlaneseq
  %v2893 = vshrl.u32 %v2892, 7
  %v2894 = vsub.s32 0, %v2893
  %v2895 = vrot.slane %v2876, %v2894
  %v2896 = vlaneseq
  %v2897 = vshrl.u32 %v2896, 7
  %v2898 = vsub.s32 0, %v2897
  %v2899 = vrot.slane %v2884, %v2898
  %v2900 = vlaneseq
  %v2901 = vshrl.u32 %v2900, 7
  %v2902 = vsub.s32 0, %v2901
  %v2903 = vrot.slane %v2886, %v2902
  %v2904 = vlaneseq
  %v2905 = vshrl.u32 %v2904, 7
  %v2906 = vsub.s32 0, %v2905
  %v2907 = vrot.slane %v2869, %v2906
  %v2908 = vlaneseq
  %v2909 = vshrl.u32 %v2908, 7
  %v2910 = vsub.s32 0, %v2909
  %v2911 = vrot.slane %v2883, %v2910
  %v2912 = vlaneseq
  %v2913 = vshrl.u32 %v2912, 7
  %v2914 = vsub.s32 0, %v2913
  %v2915 = vrot.slane %v2885, %v2914
  %v2916 = vlaneseq
  %v2917 = vshrl.u32 %v2916, 7
  %v2918 = vsub.s32 0, %v2917
  %v2919 = vrot.slane %v2887, %v2918
  %v2928 = vadd.f32 %v66, %v2891
  %v2929 = vadd.f32 %v67, %v2895
  %v2930 = vadd.f32 %v68, %v2899
  %v2931 = vadd.f32 %v69, %v2903
  %v2932 = vadd.f32 %v70, %v2907
  %v2933 = vadd.f32 %v71, %v2911
  %v2934 = vadd.f32 %v72, %v2915
  %v2935 = vadd.f32 %v73, %v2919
  %v2936 = vtanh.pop %v2928
  %v2937 = vtanh.pop %v2929
  %v2938 = vtanh.pop %v2930
  %v2939 = vtanh.pop %v2931
  %v2940 = vtanh.pop %v2932
  %v2941 = vtanh.pop %v2933
  %v2942 = vtanh.pop %v2934
  %v2943 = vtanh.pop %v2935
  %v2944 = vmul.f32 %v2936, %v544
  %v2945 = vmul.f32 %v2937, %v544
  %v2946 = vmul.f32 %v2938, %v544
  %v2947 = vmul.f32 %v2939, %v544
  %v2948 = vmul.f32 %v2940, %v544
  %v2949 = vmul.f32 %v2941, %v544
  %v2950 = vmul.f32 %v2942, %v544
  %v2951 = vmul.f32 %v2943, %v544
  %v2952 = vsel %vm168, %v2944, 0.0
  %2953 = vadd.xlane.f32.xlu0 %v2952
  %v2954 = vpop.xlane.xlu0 %2953
  %v2955 = vsel %vm168, %v2945, 0.0
  %2956 = vadd.xlane.f32.xlu0 %v2955
  %v2957 = vpop.xlane.xlu0 %2956
  %v2958 = vsel %vm168, %v2946, 0.0
  %2959 = vadd.xlane.f32.xlu0 %v2958
  %v2960 = vpop.xlane.xlu0 %2959
  %v2961 = vsel %vm168, %v2947, 0.0
  %2962 = vadd.xlane.f32.xlu0 %v2961
  %v2963 = vpop.xlane.xlu0 %2962
  %v2964 = vsel %vm168, %v2948, 0.0
  %2965 = vadd.xlane.f32.xlu0 %v2964
  %v2966 = vpop.xlane.xlu0 %2965
  %v2967 = vsel %vm168, %v2949, 0.0
  %2968 = vadd.xlane.f32.xlu0 %v2967
  %v2969 = vpop.xlane.xlu0 %2968
  %v2970 = vsel %vm168, %v2950, 0.0
  %2971 = vadd.xlane.f32.xlu0 %v2970
  %v2972 = vpop.xlane.xlu0 %2971
  %v2973 = vsel %vm168, %v2951, 0.0
  %2974 = vadd.xlane.f32.xlu0 %v2973
  %v2975 = vpop.xlane.xlu0 %2974
  %v2984 = vlaneseq
  %v2985 = vshrl.u32 %v2984, 7
  %v2986 = vsub.s32 %v587, %v2985
  %v2987 = vrot.slane %v2954, %v2986
  %v2988 = vlaneseq
  %v2989 = vshrl.u32 %v2988, 7
  %v2990 = vsub.s32 %v587, %v2989
  %v2991 = vrot.slane %v2957, %v2990
  %v2992 = vlaneseq
  %v2993 = vshrl.u32 %v2992, 7
  %v2994 = vsub.s32 %v587, %v2993
  %v2995 = vrot.slane %v2960, %v2994
  %v2996 = vlaneseq
  %v2997 = vshrl.u32 %v2996, 7
  %v2998 = vsub.s32 %v587, %v2997
  %v2999 = vrot.slane %v2963, %v2998
  %v3000 = vlaneseq
  %v3001 = vshrl.u32 %v3000, 7
  %v3002 = vsub.s32 %v587, %v3001
  %v3003 = vrot.slane %v2966, %v3002
  %v3004 = vlaneseq
  %v3005 = vshrl.u32 %v3004, 7
  %v3006 = vsub.s32 %v587, %v3005
  %v3007 = vrot.slane %v2969, %v3006
  %v3008 = vlaneseq
  %v3009 = vshrl.u32 %v3008, 7
  %v3010 = vsub.s32 %v587, %v3009
  %v3011 = vrot.slane %v2972, %v3010
  %v3012 = vlaneseq
  %v3013 = vshrl.u32 %v3012, 7
  %v3014 = vsub.s32 %v587, %v3013
  %v3015 = vrot.slane %v2975, %v3014
  %v3016 = vsel %vm620, %v2991, %v2987
  %v3017 = vsel %vm622, %v2995, %v3016
  %v3018 = vsel %vm624, %v2999, %v3017
  %v3019 = vsel %vm626, %v3003, %v3018
  %v3020 = vsel %vm628, %v3007, %v3019
  %v3021 = vsel %vm630, %v3011, %v3020
  %v3022 = vsel %vm632, %v3015, %v3021
  %v3024 = vsel %vm75, -1e+09, %v3022
  %v3025 = vsel %vm636, %v3024, -inf
  %3026 = vmax.xlane.f32.xlu0 %v3025
  %v3027 = vpop.xlane.xlu0 %3026
  %v3028 = vsub.f32 %v3024, %v3027
  %v3029 = vmul.f32 %v3028, 1.442695
  %v3030 = vpow.pop %v3029
  %v3031 = vsel %vm636, %v3030, 0.0
  %3032 = vadd.xlane.f32.xlu0 %v3031
  %v3033 = vpop.xlane.xlu0 %3032
  %v3034 = vrcp.pop %v3033
  %v3035 = vmul.f32 %v3030, %v3034
  %v3036 = vlaneseq
  %v3037 = vshrl.u32 %v3036, 7
  %v3038 = vsub.s32 0, %v3037
  %v3039 = vrot.slane %v3035, %v3038
  %3041 = vbcast.lane.b32.xlu0 %v3039, 256
  %v3042 = vpop.permute.xlu0 %3041
  %v3043 = vlaneseq
  %v3044 = vshrl.u32 %v3043, 7
  %v3045 = vsub.s32 1, %v3044
  %v3046 = vrot.slane %v3035, %v3045
  %3048 = vbcast.lane.b32.xlu0 %v3046, 256
  %v3049 = vpop.permute.xlu0 %3048
  %v3050 = vlaneseq
  %v3051 = vshrl.u32 %v3050, 7
  %v3052 = vsub.s32 2, %v3051
  %v3053 = vrot.slane %v3035, %v3052
  %3055 = vbcast.lane.b32.xlu0 %v3053, 256
  %v3056 = vpop.permute.xlu0 %3055
  %v3057 = vlaneseq
  %v3058 = vshrl.u32 %v3057, 7
  %v3059 = vsub.s32 3, %v3058
  %v3060 = vrot.slane %v3035, %v3059
  %3062 = vbcast.lane.b32.xlu0 %v3060, 256
  %v3063 = vpop.permute.xlu0 %3062
  %v3064 = vlaneseq
  %v3065 = vshrl.u32 %v3064, 7
  %v3066 = vsub.s32 4, %v3065
  %v3067 = vrot.slane %v3035, %v3066
  %3069 = vbcast.lane.b32.xlu0 %v3067, 256
  %v3070 = vpop.permute.xlu0 %3069
  %v3071 = vlaneseq
  %v3072 = vshrl.u32 %v3071, 7
  %v3073 = vsub.s32 5, %v3072
  %v3074 = vrot.slane %v3035, %v3073
  %3076 = vbcast.lane.b32.xlu0 %v3074, 256
  %v3077 = vpop.permute.xlu0 %3076
  %v3078 = vlaneseq
  %v3079 = vshrl.u32 %v3078, 7
  %v3080 = vsub.s32 6, %v3079
  %v3081 = vrot.slane %v3035, %v3080
  %3083 = vbcast.lane.b32.xlu0 %v3081, 256
  %v3084 = vpop.permute.xlu0 %3083
  %v3085 = vlaneseq
  %v3086 = vshrl.u32 %v3085, 7
  %v3087 = vsub.s32 7, %v3086
  %v3088 = vrot.slane %v3035, %v3087
  %3090 = vbcast.lane.b32.xlu0 %v3088, 256
  %v3091 = vpop.permute.xlu0 %3090
  %v3092 = vmul.f32 %v3042, %v58
  %v3093 = vmul.f32 %v3049, %v59
  %v3094 = vmul.f32 %v3056, %v60
  %v3095 = vmul.f32 %v3063, %v61
  %v3096 = vmul.f32 %v3070, %v62
  %v3097 = vmul.f32 %v3077, %v63
  %v3098 = vmul.f32 %v3084, %v64
  %v3099 = vmul.f32 %v3091, %v65
  %v3100 = vsel %vm94, %v3092, 0.0
  %v3101 = vrot.slane %v3100, 4
  %v3102 = vadd.f32 %v3100, %v3101
  %v3103 = vrot.slane %v3102, 2
  %v3104 = vadd.f32 %v3102, %v3103
  %v3105 = vrot.slane %v3104, 1
  %v3106 = vadd.f32 %v3104, %v3105
  %v3107 = vsel %vm94, %v3093, 0.0
  %v3108 = vrot.slane %v3107, 4
  %v3109 = vadd.f32 %v3107, %v3108
  %v3110 = vrot.slane %v3109, 2
  %v3111 = vadd.f32 %v3109, %v3110
  %v3112 = vrot.slane %v3111, 1
  %v3113 = vadd.f32 %v3111, %v3112
  %v3114 = vsel %vm94, %v3094, 0.0
  %v3115 = vrot.slane %v3114, 4
  %v3116 = vadd.f32 %v3114, %v3115
  %v3117 = vrot.slane %v3116, 2
  %v3118 = vadd.f32 %v3116, %v3117
  %v3119 = vrot.slane %v3118, 1
  %v3120 = vadd.f32 %v3118, %v3119
  %v3121 = vsel %vm94, %v3095, 0.0
  %v3122 = vrot.slane %v3121, 4
  %v3123 = vadd.f32 %v3121, %v3122
  %v3124 = vrot.slane %v3123, 2
  %v3125 = vadd.f32 %v3123, %v3124
  %v3126 = vrot.slane %v3125, 1
  %v3127 = vadd.f32 %v3125, %v3126
  %v3128 = vsel %vm94, %v3096, 0.0
  %v3129 = vrot.slane %v3128, 4
  %v3130 = vadd.f32 %v3128, %v3129
  %v3131 = vrot.slane %v3130, 2
  %v3132 = vadd.f32 %v3130, %v3131
  %v3133 = vrot.slane %v3132, 1
  %v3134 = vadd.f32 %v3132, %v3133
  %v3135 = vsel %vm94, %v3097, 0.0
  %v3136 = vrot.slane %v3135, 4
  %v3137 = vadd.f32 %v3135, %v3136
  %v3138 = vrot.slane %v3137, 2
  %v3139 = vadd.f32 %v3137, %v3138
  %v3140 = vrot.slane %v3139, 1
  %v3141 = vadd.f32 %v3139, %v3140
  %v3142 = vsel %vm94, %v3098, 0.0
  %v3143 = vrot.slane %v3142, 4
  %v3144 = vadd.f32 %v3142, %v3143
  %v3145 = vrot.slane %v3144, 2
  %v3146 = vadd.f32 %v3144, %v3145
  %v3147 = vrot.slane %v3146, 1
  %v3148 = vadd.f32 %v3146, %v3147
  %v3149 = vsel %vm94, %v3099, 0.0
  %v3150 = vrot.slane %v3149, 4
  %v3151 = vadd.f32 %v3149, %v3150
  %v3152 = vrot.slane %v3151, 2
  %v3153 = vadd.f32 %v3151, %v3152
  %v3154 = vrot.slane %v3153, 1
  %v3155 = vadd.f32 %v3153, %v3154
  %v3164 = vsel %vm620, %v3113, %v3106
  %v3165 = vsel %vm622, %v3120, %v3164
  %v3166 = vsel %vm624, %v3127, %v3165
  %v3167 = vsel %vm626, %v3134, %v3166
  %v3168 = vsel %vm628, %v3141, %v3167
  %v3169 = vsel %vm630, %v3148, %v3168
  %v3170 = vsel %vm632, %v3155, %v3169
  %v3171 = vsel %vm94, %v3170, 0
  %3173 = vmatprep.subr.mxu0 0.0
  %3174 = vmatpush1.msra.mxu0 %v772
  %3175 = vmatprep.subr.mxu0 0.0
  %3176 = vmatpush1.msra.mxu0 %v773
  %3177 = vmatprep.subr.mxu0 0.0
  %3178 = vmatpush1.msra.mxu0 %v774
  %3179 = vmatprep.subr.mxu0 0.0
  %3180 = vmatpush1.msra.mxu0 %v775
  %3181 = vmatprep.subr.mxu0 0.0
  %3182 = vmatpush1.msra.mxu0 %v776
  %3183 = vmatprep.subr.mxu0 0.0
  %3184 = vmatpush1.msra.mxu0 %v777
  %3185 = vmatprep.subr.mxu0 0.0
  %3186 = vmatpush1.msra.mxu0 %v778
  %3187 = vmatprep.subr.mxu0 0.0
  %3188 = vmatpush1.msra.mxu0 %v779
  %3189 = vmatprep.subr.mxu0 0.0
  %3190 = vmatpush1.msra.mxu0 0.0
  %3191 = vmatprep.subr.mxu0 0.0
  %3192 = vmatpush1.msra.mxu0 0.0
  %3193 = vmatprep.subr.mxu0 0.0
  %3194 = vmatpush1.msra.mxu0 0.0
  %3195 = vmatprep.subr.mxu0 0.0
  %3196 = vmatpush1.msra.mxu0 0.0
  %3197 = vmatprep.subr.mxu0 0.0
  %3198 = vmatpush1.msra.mxu0 0.0
  %3199 = vmatprep.subr.mxu0 0.0
  %3200 = vmatpush1.msra.mxu0 0.0
  %3201 = vmatprep.subr.mxu0 0.0
  %3202 = vmatpush1.msra.mxu0 0.0
  %3203 = vmatprep.subr.mxu0 0.0
  %3204 = vmatpush1.msra.mxu0 0.0
  %3205 = vmatprep.subr.mxu0 0.0
  %3206 = vmatpush1.msra.mxu0 0.0
  %3207 = vmatprep.subr.mxu0 0.0
  %3208 = vmatpush1.msra.mxu0 0.0
  %3209 = vmatprep.subr.mxu0 0.0
  %3210 = vmatpush1.msra.mxu0 0.0
  %3211 = vmatprep.subr.mxu0 0.0
  %3212 = vmatpush1.msra.mxu0 0.0
  %3213 = vmatprep.subr.mxu0 0.0
  %3214 = vmatpush1.msra.mxu0 0.0
  %3215 = vmatprep.subr.mxu0 0.0
  %3216 = vmatpush1.msra.mxu0 0.0
  %3217 = vmatprep.subr.mxu0 0.0
  %3218 = vmatpush1.msra.mxu0 0.0
  %3219 = vmatprep.subr.mxu0 0.0
  %3220 = vmatpush1.msra.mxu0 0.0
  %3221 = vmatprep.subr.mxu0 0.0
  %3222 = vmatpush1.msra.mxu0 0.0
  %3223 = vmatprep.subr.mxu0 0.0
  %3224 = vmatpush1.msra.mxu0 0.0
  %3225 = vmatprep.subr.mxu0 0.0
  %3226 = vmatpush1.msra.mxu0 0.0
  %3227 = vmatprep.subr.mxu0 0.0
  %3228 = vmatpush1.msra.mxu0 0.0
  %3229 = vmatprep.subr.mxu0 0.0
  %3230 = vmatpush1.msra.mxu0 0.0
  %3231 = vmatprep.subr.mxu0 0.0
  %3232 = vmatpush1.msra.mxu0 0.0
  %3233 = vmatprep.subr.mxu0 0.0
  %3234 = vmatpush1.msra.mxu0 0.0
  %3235 = vmatprep.subr.mxu0 0.0
  %3236 = vmatpush1.msra.mxu0 0.0
  %3237 = vmatprep.mubr.f32.mxu0 0.0
  %3238 = vmatmul.mubr.f32.gmra.mrb[0].mxu0 %v3171
  %v3239 = vpop.f32.mrb[0].mxu0
  %v3240 = vadd.f32 0.0, %v3239
  %v3241 = vpop.f32.mrb[0].mxu0
  %3242 = vdwg.mxu0
  %3243 = vmatprep.subr.mxu0 0.0
  %3244 = vmatpush1.msra.mxu0 %v768
  %3245 = vmatprep.subr.mxu0 0.0
  %3246 = vmatpush1.msra.mxu0 %v769
  %3247 = vmatprep.subr.mxu0 0.0
  %3248 = vmatpush1.msra.mxu0 %v770
  %3249 = vmatprep.subr.mxu0 0.0
  %3250 = vmatpush1.msra.mxu0 %v771
  %3251 = vmatprep.subr.mxu0 0.0
  %3252 = vmatpush1.msra.mxu0 0.0
  %3253 = vmatprep.subr.mxu0 0.0
  %3254 = vmatpush1.msra.mxu0 0.0
  %3255 = vmatprep.subr.mxu0 0.0
  %3256 = vmatpush1.msra.mxu0 0.0
  %3257 = vmatprep.subr.mxu0 0.0
  %3258 = vmatpush1.msra.mxu0 0.0
  %3259 = vmatprep.subr.mxu0 0.0
  %3260 = vmatpush1.msra.mxu0 0.0
  %3261 = vmatprep.subr.mxu0 0.0
  %3262 = vmatpush1.msra.mxu0 0.0
  %3263 = vmatprep.subr.mxu0 0.0
  %3264 = vmatpush1.msra.mxu0 0.0
  %3265 = vmatprep.subr.mxu0 0.0
  %3266 = vmatpush1.msra.mxu0 0.0
  %3267 = vmatprep.subr.mxu0 0.0
  %3268 = vmatpush1.msra.mxu0 0.0
  %3269 = vmatprep.subr.mxu0 0.0
  %3270 = vmatpush1.msra.mxu0 0.0
  %3271 = vmatprep.subr.mxu0 0.0
  %3272 = vmatpush1.msra.mxu0 0.0
  %3273 = vmatprep.subr.mxu0 0.0
  %3274 = vmatpush1.msra.mxu0 0.0
  %3275 = vmatprep.subr.mxu0 0.0
  %3276 = vmatpush1.msra.mxu0 0.0
  %3277 = vmatprep.subr.mxu0 0.0
  %3278 = vmatpush1.msra.mxu0 0.0
  %3279 = vmatprep.subr.mxu0 0.0
  %3280 = vmatpush1.msra.mxu0 0.0
  %3281 = vmatprep.subr.mxu0 0.0
  %3282 = vmatpush1.msra.mxu0 0.0
  %3283 = vmatprep.subr.mxu0 0.0
  %3284 = vmatpush1.msra.mxu0 0.0
  %3285 = vmatprep.subr.mxu0 0.0
  %3286 = vmatpush1.msra.mxu0 0.0
  %3287 = vmatprep.subr.mxu0 0.0
  %3288 = vmatpush1.msra.mxu0 0.0
  %3289 = vmatprep.subr.mxu0 0.0
  %3290 = vmatpush1.msra.mxu0 0.0
  %3291 = vmatprep.subr.mxu0 0.0
  %3292 = vmatpush1.msra.mxu0 0.0
  %3293 = vmatprep.subr.mxu0 0.0
  %3294 = vmatpush1.msra.mxu0 0.0
  %3295 = vmatprep.subr.mxu0 0.0
  %3296 = vmatpush1.msra.mxu0 0.0
  %3297 = vmatprep.subr.mxu0 0.0
  %3298 = vmatpush1.msra.mxu0 0.0
  %3299 = vmatprep.subr.mxu0 0.0
  %3300 = vmatpush1.msra.mxu0 0.0
  %3301 = vmatprep.subr.mxu0 0.0
  %3302 = vmatpush1.msra.mxu0 0.0
  %3303 = vmatprep.subr.mxu0 0.0
  %3304 = vmatpush1.msra.mxu0 0.0
  %3305 = vmatprep.subr.mxu0 0.0
  %3306 = vmatpush1.msra.mxu0 0.0
  %3307 = vmatprep.mubr.f32.mxu0 0.0
  %3308 = vmatmul.mubr.f32.gmra.mrb[0].mxu0 %v2766
  %v3309 = vpop.f32.mrb[0].mxu0
  %v3310 = vadd.f32 %v3240, %v3309
  %v3311 = vpop.f32.mrb[0].mxu0
  %3312 = vdwg.mxu0
  %v3313 = vtanh.pop %v3310
  %s3314 = scalar_lea.vmem %s0, 32
  %v3315 = vld [vmem:[%s3314] sm:$0xff]
  %3316 = vmatprep.subr.mxu0 0.0
  %3317 = vmatpush1.msra.mxu0 %v86
  %3318 = vmatprep.subr.mxu0 0.0
  %3319 = vmatpush1.msra.mxu0 %v87
  %3320 = vmatprep.subr.mxu0 0.0
  %3321 = vmatpush1.msra.mxu0 %v88
  %3322 = vmatprep.subr.mxu0 0.0
  %3323 = vmatpush1.msra.mxu0 %v89
  %3324 = vmatprep.subr.mxu0 0.0
  %3325 = vmatpush1.msra.mxu0 %v90
  %3326 = vmatprep.subr.mxu0 0.0
  %3327 = vmatpush1.msra.mxu0 %v91
  %3328 = vmatprep.subr.mxu0 0.0
  %3329 = vmatpush1.msra.mxu0 %v92
  %3330 = vmatprep.subr.mxu0 0.0
  %3331 = vmatpush1.msra.mxu0 %v93
  %3332 = vmatprep.subr.mxu0 0.0
  %3333 = vmatpush1.msra.mxu0 0.0
  %3334 = vmatprep.subr.mxu0 0.0
  %3335 = vmatpush1.msra.mxu0 0.0
  %3336 = vmatprep.subr.mxu0 0.0
  %3337 = vmatpush1.msra.mxu0 0.0
  %3338 = vmatprep.subr.mxu0 0.0
  %3339 = vmatpush1.msra.mxu0 0.0
  %3340 = vmatprep.subr.mxu0 0.0
  %3341 = vmatpush1.msra.mxu0 0.0
  %3342 = vmatprep.subr.mxu0 0.0
  %3343 = vmatpush1.msra.mxu0 0.0
  %3344 = vmatprep.subr.mxu0 0.0
  %3345 = vmatpush1.msra.mxu0 0.0
  %3346 = vmatprep.subr.mxu0 0.0
  %3347 = vmatpush1.msra.mxu0 0.0
  %3348 = vmatprep.subr.mxu0 0.0
  %3349 = vmatpush1.msra.mxu0 0.0
  %3350 = vmatprep.subr.mxu0 0.0
  %3351 = vmatpush1.msra.mxu0 0.0
  %3352 = vmatprep.subr.mxu0 0.0
  %3353 = vmatpush1.msra.mxu0 0.0
  %3354 = vmatprep.subr.mxu0 0.0
  %3355 = vmatpush1.msra.mxu0 0.0
  %3356 = vmatprep.subr.mxu0 0.0
  %3357 = vmatpush1.msra.mxu0 0.0
  %3358 = vmatprep.subr.mxu0 0.0
  %3359 = vmatpush1.msra.mxu0 0.0
  %3360 = vmatprep.subr.mxu0 0.0
  %3361 = vmatpush1.msra.mxu0 0.0
  %3362 = vmatprep.subr.mxu0 0.0
  %3363 = vmatpush1.msra.mxu0 0.0
  %3364 = vmatprep.subr.mxu0 0.0
  %3365 = vmatpush1.msra.mxu0 0.0
  %3366 = vmatprep.subr.mxu0 0.0
  %3367 = vmatpush1.msra.mxu0 0.0
  %3368 = vmatprep.subr.mxu0 0.0
  %3369 = vmatpush1.msra.mxu0 0.0
  %3370 = vmatprep.subr.mxu0 0.0
  %3371 = vmatpush1.msra.mxu0 0.0
  %3372 = vmatprep.subr.mxu0 0.0
  %3373 = vmatpush1.msra.mxu0 0.0
  %3374 = vmatprep.subr.mxu0 0.0
  %3375 = vmatpush1.msra.mxu0 0.0
  %3376 = vmatprep.subr.mxu0 0.0
  %3377 = vmatpush1.msra.mxu0 0.0
  %3378 = vmatprep.subr.mxu0 0.0
  %3379 = vmatpush1.msra.mxu0 0.0
  %3380 = vmatprep.mubr.f32.mxu0 0.0
  %3381 = vmatmul.mubr.f32.gmra.mrb[0].mxu0 %v3171
  %v3382 = vpop.f32.mrb[0].mxu0
  %v3383 = vadd.f32 0.0, %v3382
  %v3384 = vpop.f32.mrb[0].mxu0
  %3385 = vdwg.mxu0
  %v3387 = vsel %vm168, %v3315, 0
  %3389 = vmatprep.subr.mxu0 0.0
  %3390 = vmatpush1.msra.mxu0 %v82
  %3391 = vmatprep.subr.mxu0 0.0
  %3392 = vmatpush1.msra.mxu0 %v83
  %3393 = vmatprep.subr.mxu0 0.0
  %3394 = vmatpush1.msra.mxu0 %v84
  %3395 = vmatprep.subr.mxu0 0.0
  %3396 = vmatpush1.msra.mxu0 %v85
  %3397 = vmatprep.subr.mxu0 0.0
  %3398 = vmatpush1.msra.mxu0 0.0
  %3399 = vmatprep.subr.mxu0 0.0
  %3400 = vmatpush1.msra.mxu0 0.0
  %3401 = vmatprep.subr.mxu0 0.0
  %3402 = vmatpush1.msra.mxu0 0.0
  %3403 = vmatprep.subr.mxu0 0.0
  %3404 = vmatpush1.msra.mxu0 0.0
  %3405 = vmatprep.subr.mxu0 0.0
  %3406 = vmatpush1.msra.mxu0 0.0
  %3407 = vmatprep.subr.mxu0 0.0
  %3408 = vmatpush1.msra.mxu0 0.0
  %3409 = vmatprep.subr.mxu0 0.0
  %3410 = vmatpush1.msra.mxu0 0.0
  %3411 = vmatprep.subr.mxu0 0.0
  %3412 = vmatpush1.msra.mxu0 0.0
  %3413 = vmatprep.subr.mxu0 0.0
  %3414 = vmatpush1.msra.mxu0 0.0
  %3415 = vmatprep.subr.mxu0 0.0
  %3416 = vmatpush1.msra.mxu0 0.0
  %3417 = vmatprep.subr.mxu0 0.0
  %3418 = vmatpush1.msra.mxu0 0.0
  %3419 = vmatprep.subr.mxu0 0.0
  %3420 = vmatpush1.msra.mxu0 0.0
  %3421 = vmatprep.subr.mxu0 0.0
  %3422 = vmatpush1.msra.mxu0 0.0
  %3423 = vmatprep.subr.mxu0 0.0
  %3424 = vmatpush1.msra.mxu0 0.0
  %3425 = vmatprep.subr.mxu0 0.0
  %3426 = vmatpush1.msra.mxu0 0.0
  %3427 = vmatprep.subr.mxu0 0.0
  %3428 = vmatpush1.msra.mxu0 0.0
  %3429 = vmatprep.subr.mxu0 0.0
  %3430 = vmatpush1.msra.mxu0 0.0
  %3431 = vmatprep.subr.mxu0 0.0
  %3432 = vmatpush1.msra.mxu0 0.0
  %3433 = vmatprep.subr.mxu0 0.0
  %3434 = vmatpush1.msra.mxu0 0.0
  %3435 = vmatprep.subr.mxu0 0.0
  %3436 = vmatpush1.msra.mxu0 0.0
  %3437 = vmatprep.subr.mxu0 0.0
  %3438 = vmatpush1.msra.mxu0 0.0
  %3439 = vmatprep.subr.mxu0 0.0
  %3440 = vmatpush1.msra.mxu0 0.0
  %3441 = vmatprep.subr.mxu0 0.0
  %3442 = vmatpush1.msra.mxu0 0.0
  %3443 = vmatprep.subr.mxu0 0.0
  %3444 = vmatpush1.msra.mxu0 0.0
  %3445 = vmatprep.subr.mxu0 0.0
  %3446 = vmatpush1.msra.mxu0 0.0
  %3447 = vmatprep.subr.mxu0 0.0
  %3448 = vmatpush1.msra.mxu0 0.0
  %3449 = vmatprep.subr.mxu0 0.0
  %3450 = vmatpush1.msra.mxu0 0.0
  %3451 = vmatprep.subr.mxu0 0.0
  %3452 = vmatpush1.msra.mxu0 0.0
  %3453 = vmatprep.mubr.f32.mxu0 0.0
  %3454 = vmatmul.mubr.f32.gmra.mrb[0].mxu0 %v3387
  %v3455 = vpop.f32.mrb[0].mxu0
  %v3456 = vadd.f32 %v3383, %v3455
  %v3457 = vpop.f32.mrb[0].mxu0
  %3458 = vdwg.mxu0
  %3459 = vmatprep.subr.mxu0 0.0
  %3460 = vmatpush1.msra.mxu0 %v242
  %3461 = vmatprep.subr.mxu0 0.0
  %3462 = vmatpush1.msra.mxu0 %v243
  %3463 = vmatprep.subr.mxu0 0.0
  %3464 = vmatpush1.msra.mxu0 %v244
  %3465 = vmatprep.subr.mxu0 0.0
  %3466 = vmatpush1.msra.mxu0 %v245
  %3467 = vmatprep.subr.mxu0 0.0
  %3468 = vmatpush1.msra.mxu0 0.0
  %3469 = vmatprep.subr.mxu0 0.0
  %3470 = vmatpush1.msra.mxu0 0.0
  %3471 = vmatprep.subr.mxu0 0.0
  %3472 = vmatpush1.msra.mxu0 0.0
  %3473 = vmatprep.subr.mxu0 0.0
  %3474 = vmatpush1.msra.mxu0 0.0
  %3475 = vmatprep.subr.mxu0 0.0
  %3476 = vmatpush1.msra.mxu0 0.0
  %3477 = vmatprep.subr.mxu0 0.0
  %3478 = vmatpush1.msra.mxu0 0.0
  %3479 = vmatprep.subr.mxu0 0.0
  %3480 = vmatpush1.msra.mxu0 0.0
  %3481 = vmatprep.subr.mxu0 0.0
  %3482 = vmatpush1.msra.mxu0 0.0
  %3483 = vmatprep.subr.mxu0 0.0
  %3484 = vmatpush1.msra.mxu0 0.0
  %3485 = vmatprep.subr.mxu0 0.0
  %3486 = vmatpush1.msra.mxu0 0.0
  %3487 = vmatprep.subr.mxu0 0.0
  %3488 = vmatpush1.msra.mxu0 0.0
  %3489 = vmatprep.subr.mxu0 0.0
  %3490 = vmatpush1.msra.mxu0 0.0
  %3491 = vmatprep.subr.mxu0 0.0
  %3492 = vmatpush1.msra.mxu0 0.0
  %3493 = vmatprep.subr.mxu0 0.0
  %3494 = vmatpush1.msra.mxu0 0.0
  %3495 = vmatprep.subr.mxu0 0.0
  %3496 = vmatpush1.msra.mxu0 0.0
  %3497 = vmatprep.subr.mxu0 0.0
  %3498 = vmatpush1.msra.mxu0 0.0
  %3499 = vmatprep.subr.mxu0 0.0
  %3500 = vmatpush1.msra.mxu0 0.0
  %3501 = vmatprep.subr.mxu0 0.0
  %3502 = vmatpush1.msra.mxu0 0.0
  %3503 = vmatprep.subr.mxu0 0.0
  %3504 = vmatpush1.msra.mxu0 0.0
  %3505 = vmatprep.subr.mxu0 0.0
  %3506 = vmatpush1.msra.mxu0 0.0
  %3507 = vmatprep.subr.mxu0 0.0
  %3508 = vmatpush1.msra.mxu0 0.0
  %3509 = vmatprep.subr.mxu0 0.0
  %3510 = vmatpush1.msra.mxu0 0.0
  %3511 = vmatprep.subr.mxu0 0.0
  %3512 = vmatpush1.msra.mxu0 0.0
  %3513 = vmatprep.subr.mxu0 0.0
  %3514 = vmatpush1.msra.mxu0 0.0
  %3515 = vmatprep.subr.mxu0 0.0
  %3516 = vmatpush1.msra.mxu0 0.0
  %3517 = vmatprep.subr.mxu0 0.0
  %3518 = vmatpush1.msra.mxu0 0.0
  %3519 = vmatprep.subr.mxu0 0.0
  %3520 = vmatpush1.msra.mxu0 0.0
  %3521 = vmatprep.subr.mxu0 0.0
  %3522 = vmatpush1.msra.mxu0 0.0
  %3523 = vmatprep.mubr.f32.mxu0 0.0
  %3524 = vmatmul.mubr.f32.gmra.mrb[0].mxu0 %v2766
  %v3525 = vpop.f32.mrb[0].mxu0
  %v3526 = vadd.f32 0.0, %v3525
  %v3527 = vpop.f32.mrb[0].mxu0
  %3528 = vdwg.mxu0
  %v3529 = vadd.f32 %v3456, %v3526
  %v3530 = vadd.f32 %v3529, %v324
  %v3531 = vxor.u32 %v3530, 2147483648
  %v3532 = vmul.f32 %v3531, 1.442695
  %v3533 = vpow.pop %v3532
  %v3534 = vadd.f32 %v3533, 1.0
  %v3535 = vrcp.pop %v3534
  %v3536 = vmul.f32 1.0, %v3535
  %v3537 = vtanh.pop %v3530
  %v3538 = vmul.f32 %v3536, %v2756
  %3540 = vrot.lane.b32.xlu0 %v3537, 64
  %v3541 = vpop.permute.xlu0 %3540
  %v3543 = vmul.f32 %v3536, %v3541
  %3545 = vrot.lane.b32.xlu0 %v3543, 32
  %v3546 = vpop.permute.xlu0 %3545
  %v3548 = vadd.f32 %v3538, %v3546
  %v3549 = vtanh.pop %v3548
  %3551 = vrot.lane.b32.xlu0 %v3549, 64
  %v3552 = vpop.permute.xlu0 %3551
  %v3554 = vmul.f32 %v3536, %v3552
  %3556 = vrot.lane.b32.xlu0 %v3554, 32
  %v3557 = vpop.permute.xlu0 %3556
  %v3558 = vsel %vm168, %v3557, 0
  %3560 = vmatprep.subr.mxu0 0.0
  %3561 = vmatpush1.msra.mxu0 %v355
  %3562 = vmatprep.subr.mxu0 0.0
  %3563 = vmatpush1.msra.mxu0 %v356
  %3564 = vmatprep.subr.mxu0 0.0
  %3565 = vmatpush1.msra.mxu0 %v357
  %3566 = vmatprep.subr.mxu0 0.0
  %3567 = vmatpush1.msra.mxu0 %v358
  %3568 = vmatprep.subr.mxu0 0.0
  %3569 = vmatpush1.msra.mxu0 0.0
  %3570 = vmatprep.subr.mxu0 0.0
  %3571 = vmatpush1.msra.mxu0 0.0
  %3572 = vmatprep.subr.mxu0 0.0
  %3573 = vmatpush1.msra.mxu0 0.0
  %3574 = vmatprep.subr.mxu0 0.0
  %3575 = vmatpush1.msra.mxu0 0.0
  %3576 = vmatprep.subr.mxu0 0.0
  %3577 = vmatpush1.msra.mxu0 0.0
  %3578 = vmatprep.subr.mxu0 0.0
  %3579 = vmatpush1.msra.mxu0 0.0
  %3580 = vmatprep.subr.mxu0 0.0
  %3581 = vmatpush1.msra.mxu0 0.0
  %3582 = vmatprep.subr.mxu0 0.0
  %3583 = vmatpush1.msra.mxu0 0.0
  %3584 = vmatprep.subr.mxu0 0.0
  %3585 = vmatpush1.msra.mxu0 0.0
  %3586 = vmatprep.subr.mxu0 0.0
  %3587 = vmatpush1.msra.mxu0 0.0
  %3588 = vmatprep.subr.mxu0 0.0
  %3589 = vmatpush1.msra.mxu0 0.0
  %3590 = vmatprep.subr.mxu0 0.0
  %3591 = vmatpush1.msra.mxu0 0.0
  %3592 = vmatprep.subr.mxu0 0.0
  %3593 = vmatpush1.msra.mxu0 0.0
  %3594 = vmatprep.subr.mxu0 0.0
  %3595 = vmatpush1.msra.mxu0 0.0
  %3596 = vmatprep.subr.mxu0 0.0
  %3597 = vmatpush1.msra.mxu0 0.0
  %3598 = vmatprep.subr.mxu0 0.0
  %3599 = vmatpush1.msra.mxu0 0.0
  %3600 = vmatprep.subr.mxu0 0.0
  %3601 = vmatpush1.msra.mxu0 0.0
  %3602 = vmatprep.subr.mxu0 0.0
  %3603 = vmatpush1.msra.mxu0 0.0
  %3604 = vmatprep.subr.mxu0 0.0
  %3605 = vmatpush1.msra.mxu0 0.0
  %3606 = vmatprep.subr.mxu0 0.0
  %3607 = vmatpush1.msra.mxu0 0.0
  %3608 = vmatprep.subr.mxu0 0.0
  %3609 = vmatpush1.msra.mxu0 0.0
  %3610 = vmatprep.subr.mxu0 0.0
  %3611 = vmatpush1.msra.mxu0 0.0
  %3612 = vmatprep.subr.mxu0 0.0
  %3613 = vmatpush1.msra.mxu0 0.0
  %3614 = vmatprep.subr.mxu0 0.0
  %3615 = vmatpush1.msra.mxu0 0.0
  %3616 = vmatprep.subr.mxu0 0.0
  %3617 = vmatpush1.msra.mxu0 0.0
  %3618 = vmatprep.subr.mxu0 0.0
  %3619 = vmatpush1.msra.mxu0 0.0
  %3620 = vmatprep.subr.mxu0 0.0
  %3621 = vmatpush1.msra.mxu0 0.0
  %3622 = vmatprep.subr.mxu0 0.0
  %3623 = vmatpush1.msra.mxu0 0.0
  %3624 = vmatprep.mubr.f32.mxu0 0.0
  %3625 = vmatmul.mubr.f32.gmra.mrb[0].mxu0 %v3558
  %v3626 = vpop.f32.mrb[0].mxu0
  %v3627 = vadd.f32 0.0, %v3626
  %v3628 = vpop.f32.mrb[0].mxu0
  %3629 = vdwg.mxu0
  %v3631 = vcombine.high %v3627, %v3627
  %v3633 = vunpack.c.l.s4 1966171168
  %v3634 = vunpack.c.0.s8 %v3633
  %v3635 = vlaneseq
  %v3636 = vshrl.u32 %v3635, 7
  %v3637 = vsub.s32 %v3634, %v3636
  %v3638 = vrot.slane %v3627, %v3637
  %v3640 = vunpack.c.l.s4 1966171168
  %v3641 = vunpack.c.0.s8 %v3640
  %v3642 = vlaneseq
  %v3643 = vshrl.u32 %v3642, 7
  %v3644 = vsub.s32 %v3641, %v3643
  %v3645 = vrot.slane %v3631, %v3644
  %v3646 = vcombine.high %v3638, %v3638
  %v3647 = vcombine.high %v3645, %v3645
  %v3649 = vunpack.c.l.s4 1966171168
  %v3650 = vunpack.c.0.s8 %v3649
  %v3651 = vlaneseq
  %v3652 = vshrl.u32 %v3651, 7
  %v3653 = vsub.s32 %v3650, %v3652
  %v3654 = vrot.slane %v3638, %v3653
  %v3656 = vunpack.c.l.s4 1966171168
  %v3657 = vunpack.c.0.s8 %v3656
  %v3658 = vlaneseq
  %v3659 = vshrl.u32 %v3658, 7
  %v3660 = vsub.s32 %v3657, %v3659
  %v3661 = vrot.slane %v3645, %v3660
  %v3663 = vunpack.c.l.s4 1966171168
  %v3664 = vunpack.c.0.s8 %v3663
  %v3665 = vlaneseq
  %v3666 = vshrl.u32 %v3665, 7
  %v3667 = vsub.s32 %v3664, %v3666
  %v3668 = vrot.slane %v3646, %v3667
  %v3670 = vunpack.c.l.s4 1966171168
  %v3671 = vunpack.c.0.s8 %v3670
  %v3672 = vlaneseq
  %v3673 = vshrl.u32 %v3672, 7
  %v3674 = vsub.s32 %v3671, %v3673
  %v3675 = vrot.slane %v3647, %v3674
  %v3676 = vcombine.high %v3654, %v3654
  %v3677 = vcombine.high %v3661, %v3661
  %v3678 = vcombine.high %v3668, %v3668
  %v3679 = vcombine.high %v3675, %v3675
  %v3680 = vlaneseq
  %v3681 = vshrl.u32 %v3680, 7
  %v3682 = vsub.s32 0, %v3681
  %v3683 = vrot.slane %v3654, %v3682
  %v3684 = vlaneseq
  %v3685 = vshrl.u32 %v3684, 7
  %v3686 = vsub.s32 0, %v3685
  %v3687 = vrot.slane %v3668, %v3686
  %v3688 = vlaneseq
  %v3689 = vshrl.u32 %v3688, 7
  %v3690 = vsub.s32 0, %v3689
  %v3691 = vrot.slane %v3676, %v3690
  %v3692 = vlaneseq
  %v3693 = vshrl.u32 %v3692, 7
  %v3694 = vsub.s32 0, %v3693
  %v3695 = vrot.slane %v3678, %v3694
  %v3696 = vlaneseq
  %v3697 = vshrl.u32 %v3696, 7
  %v3698 = vsub.s32 0, %v3697
  %v3699 = vrot.slane %v3661, %v3698
  %v3700 = vlaneseq
  %v3701 = vshrl.u32 %v3700, 7
  %v3702 = vsub.s32 0, %v3701
  %v3703 = vrot.slane %v3675, %v3702
  %v3704 = vlaneseq
  %v3705 = vshrl.u32 %v3704, 7
  %v3706 = vsub.s32 0, %v3705
  %v3707 = vrot.slane %v3677, %v3706
  %v3708 = vlaneseq
  %v3709 = vshrl.u32 %v3708, 7
  %v3710 = vsub.s32 0, %v3709
  %v3711 = vrot.slane %v3679, %v3710
  %v3720 = vadd.f32 %v66, %v3683
  %v3721 = vadd.f32 %v67, %v3687
  %v3722 = vadd.f32 %v68, %v3691
  %v3723 = vadd.f32 %v69, %v3695
  %v3724 = vadd.f32 %v70, %v3699
  %v3725 = vadd.f32 %v71, %v3703
  %v3726 = vadd.f32 %v72, %v3707
  %v3727 = vadd.f32 %v73, %v3711
  %v3728 = vtanh.pop %v3720
  %v3729 = vtanh.pop %v3721
  %v3730 = vtanh.pop %v3722
  %v3731 = vtanh.pop %v3723
  %v3732 = vtanh.pop %v3724
  %v3733 = vtanh.pop %v3725
  %v3734 = vtanh.pop %v3726
  %v3735 = vtanh.pop %v3727
  %v3736 = vmul.f32 %v3728, %v544
  %v3737 = vmul.f32 %v3729, %v544
  %v3738 = vmul.f32 %v3730, %v544
  %v3739 = vmul.f32 %v3731, %v544
  %v3740 = vmul.f32 %v3732, %v544
  %v3741 = vmul.f32 %v3733, %v544
  %v3742 = vmul.f32 %v3734, %v544
  %v3743 = vmul.f32 %v3735, %v544
  %v3744 = vsel %vm168, %v3736, 0.0
  %3745 = vadd.xlane.f32.xlu0 %v3744
  %v3746 = vpop.xlane.xlu0 %3745
  %v3747 = vsel %vm168, %v3737, 0.0
  %3748 = vadd.xlane.f32.xlu0 %v3747
  %v3749 = vpop.xlane.xlu0 %3748
  %v3750 = vsel %vm168, %v3738, 0.0
  %3751 = vadd.xlane.f32.xlu0 %v3750
  %v3752 = vpop.xlane.xlu0 %3751
  %v3753 = vsel %vm168, %v3739, 0.0
  %3754 = vadd.xlane.f32.xlu0 %v3753
  %v3755 = vpop.xlane.xlu0 %3754
  %v3756 = vsel %vm168, %v3740, 0.0
  %3757 = vadd.xlane.f32.xlu0 %v3756
  %v3758 = vpop.xlane.xlu0 %3757
  %v3759 = vsel %vm168, %v3741, 0.0
  %3760 = vadd.xlane.f32.xlu0 %v3759
  %v3761 = vpop.xlane.xlu0 %3760
  %v3762 = vsel %vm168, %v3742, 0.0
  %3763 = vadd.xlane.f32.xlu0 %v3762
  %v3764 = vpop.xlane.xlu0 %3763
  %v3765 = vsel %vm168, %v3743, 0.0
  %3766 = vadd.xlane.f32.xlu0 %v3765
  %v3767 = vpop.xlane.xlu0 %3766
  %v3776 = vlaneseq
  %v3777 = vshrl.u32 %v3776, 7
  %v3778 = vsub.s32 %v587, %v3777
  %v3779 = vrot.slane %v3746, %v3778
  %v3780 = vlaneseq
  %v3781 = vshrl.u32 %v3780, 7
  %v3782 = vsub.s32 %v587, %v3781
  %v3783 = vrot.slane %v3749, %v3782
  %v3784 = vlaneseq
  %v3785 = vshrl.u32 %v3784, 7
  %v3786 = vsub.s32 %v587, %v3785
  %v3787 = vrot.slane %v3752, %v3786
  %v3788 = vlaneseq
  %v3789 = vshrl.u32 %v3788, 7
  %v3790 = vsub.s32 %v587, %v3789
  %v3791 = vrot.slane %v3755, %v3790
  %v3792 = vlaneseq
  %v3793 = vshrl.u32 %v3792, 7
  %v3794 = vsub.s32 %v587, %v3793
  %v3795 = vrot.slane %v3758, %v3794
  %v3796 = vlaneseq
  %v3797 = vshrl.u32 %v3796, 7
  %v3798 = vsub.s32 %v587, %v3797
  %v3799 = vrot.slane %v3761, %v3798
  %v3800 = vlaneseq
  %v3801 = vshrl.u32 %v3800, 7
  %v3802 = vsub.s32 %v587, %v3801
  %v3803 = vrot.slane %v3764, %v3802
  %v3804 = vlaneseq
  %v3805 = vshrl.u32 %v3804, 7
  %v3806 = vsub.s32 %v587, %v3805
  %v3807 = vrot.slane %v3767, %v3806
  %v3808 = vsel %vm620, %v3783, %v3779
  %v3809 = vsel %vm622, %v3787, %v3808
  %v3810 = vsel %vm624, %v3791, %v3809
  %v3811 = vsel %vm626, %v3795, %v3810
  %v3812 = vsel %vm628, %v3799, %v3811
  %v3813 = vsel %vm630, %v3803, %v3812
  %v3814 = vsel %vm632, %v3807, %v3813
  %v3816 = vsel %vm75, -1e+09, %v3814
  %v3817 = vsel %vm636, %v3816, -inf
  %3818 = vmax.xlane.f32.xlu0 %v3817
  %v3819 = vpop.xlane.xlu0 %3818
  %v3820 = vsub.f32 %v3816, %v3819
  %v3821 = vmul.f32 %v3820, 1.442695
  %v3822 = vpow.pop %v3821
  %v3823 = vsel %vm636, %v3822, 0.0
  %3824 = vadd.xlane.f32.xlu0 %v3823
  %v3825 = vpop.xlane.xlu0 %3824
  %v3826 = vrcp.pop %v3825
  %v3827 = vmul.f32 %v3822, %v3826
  %v3828 = vlaneseq
  %v3829 = vshrl.u32 %v3828, 7
  %v3830 = vsub.s32 0, %v3829
  %v3831 = vrot.slane %v3827, %v3830
  %3833 = vbcast.lane.b32.xlu0 %v3831, 256
  %v3834 = vpop.permute.xlu0 %3833
  %v3835 = vlaneseq
  %v3836 = vshrl.u32 %v3835, 7
  %v3837 = vsub.s32 1, %v3836
  %v3838 = vrot.slane %v3827, %v3837
  %3840 = vbcast.lane.b32.xlu0 %v3838, 256
  %v3841 = vpop.permute.xlu0 %3840
  %v3842 = vlaneseq
  %v3843 = vshrl.u32 %v3842, 7
  %v3844 = vsub.s32 2, %v3843
  %v3845 = vrot.slane %v3827, %v3844
  %3847 = vbcast.lane.b32.xlu0 %v3845, 256
  %v3848 = vpop.permute.xlu0 %3847
  %v3849 = vlaneseq
  %v3850 = vshrl.u32 %v3849, 7
  %v3851 = vsub.s32 3, %v3850
  %v3852 = vrot.slane %v3827, %v3851
  %3854 = vbcast.lane.b32.xlu0 %v3852, 256
  %v3855 = vpop.permute.xlu0 %3854
  %v3856 = vlaneseq
  %v3857 = vshrl.u32 %v3856, 7
  %v3858 = vsub.s32 4, %v3857
  %v3859 = vrot.slane %v3827, %v3858
  %3861 = vbcast.lane.b32.xlu0 %v3859, 256
  %v3862 = vpop.permute.xlu0 %3861
  %v3863 = vlaneseq
  %v3864 = vshrl.u32 %v3863, 7
  %v3865 = vsub.s32 5, %v3864
  %v3866 = vrot.slane %v3827, %v3865
  %3868 = vbcast.lane.b32.xlu0 %v3866, 256
  %v3869 = vpop.permute.xlu0 %3868
  %v3870 = vlaneseq
  %v3871 = vshrl.u32 %v3870, 7
  %v3872 = vsub.s32 6, %v3871
  %v3873 = vrot.slane %v3827, %v3872
  %3875 = vbcast.lane.b32.xlu0 %v3873, 256
  %v3876 = vpop.permute.xlu0 %3875
  %v3877 = vlaneseq
  %v3878 = vshrl.u32 %v3877, 7
  %v3879 = vsub.s32 7, %v3878
  %v3880 = vrot.slane %v3827, %v3879
  %3882 = vbcast.lane.b32.xlu0 %v3880, 256
  %v3883 = vpop.permute.xlu0 %3882
  %v3884 = vmul.f32 %v3834, %v58
  %v3885 = vmul.f32 %v3841, %v59
  %v3886 = vmul.f32 %v3848, %v60
  %v3887 = vmul.f32 %v3855, %v61
  %v3888 = vmul.f32 %v3862, %v62
  %v3889 = vmul.f32 %v3869, %v63
  %v3890 = vmul.f32 %v3876, %v64
  %v3891 = vmul.f32 %v3883, %v65
  %v3892 = vsel %vm94, %v3884, 0.0
  %v3893 = vrot.slane %v3892, 4
  %v3894 = vadd.f32 %v3892, %v3893
  %v3895 = vrot.slane %v3894, 2
  %v3896 = vadd.f32 %v3894, %v3895
  %v3897 = vrot.slane %v3896, 1
  %v3898 = vadd.f32 %v3896, %v3897
  %v3899 = vsel %vm94, %v3885, 0.0
  %v3900 = vrot.slane %v3899, 4
  %v3901 = vadd.f32 %v3899, %v3900
  %v3902 = vrot.slane %v3901, 2
  %v3903 = vadd.f32 %v3901, %v3902
  %v3904 = vrot.slane %v3903, 1
  %v3905 = vadd.f32 %v3903, %v3904
  %v3906 = vsel %vm94, %v3886, 0.0
  %v3907 = vrot.slane %v3906, 4
  %v3908 = vadd.f32 %v3906, %v3907
  %v3909 = vrot.slane %v3908, 2
  %v3910 = vadd.f32 %v3908, %v3909
  %v3911 = vrot.slane %v3910, 1
  %v3912 = vadd.f32 %v3910, %v3911
  %v3913 = vsel %vm94, %v3887, 0.0
  %v3914 = vrot.slane %v3913, 4
  %v3915 = vadd.f32 %v3913, %v3914
  %v3916 = vrot.slane %v3915, 2
  %v3917 = vadd.f32 %v3915, %v3916
  %v3918 = vrot.slane %v3917, 1
  %v3919 = vadd.f32 %v3917, %v3918
  %v3920 = vsel %vm94, %v3888, 0.0
  %v3921 = vrot.slane %v3920, 4
  %v3922 = vadd.f32 %v3920, %v3921
  %v3923 = vrot.slane %v3922, 2
  %v3924 = vadd.f32 %v3922, %v3923
  %v3925 = vrot.slane %v3924, 1
  %v3926 = vadd.f32 %v3924, %v3925
  %v3927 = vsel %vm94, %v3889, 0.0
  %v3928 = vrot.slane %v3927, 4
  %v3929 = vadd.f32 %v3927, %v3928
  %v3930 = vrot.slane %v3929, 2
  %v3931 = vadd.f32 %v3929, %v3930
  %v3932 = vrot.slane %v3931, 1
  %v3933 = vadd.f32 %v3931, %v3932
  %v3934 = vsel %vm94, %v3890, 0.0
  %v3935 = vrot.slane %v3934, 4
  %v3936 = vadd.f32 %v3934, %v3935
  %v3937 = vrot.slane %v3936, 2
  %v3938 = vadd.f32 %v3936, %v3937
  %v3939 = vrot.slane %v3938, 1
  %v3940 = vadd.f32 %v3938, %v3939
  %v3941 = vsel %vm94, %v3891, 0.0
  %v3942 = vrot.slane %v3941, 4
  %v3943 = vadd.f32 %v3941, %v3942
  %v3944 = vrot.slane %v3943, 2
  %v3945 = vadd.f32 %v3943, %v3944
  %v3946 = vrot.slane %v3945, 1
  %v3947 = vadd.f32 %v3945, %v3946
  %v3956 = vsel %vm620, %v3905, %v3898
  %v3957 = vsel %vm622, %v3912, %v3956
  %v3958 = vsel %vm624, %v3919, %v3957
  %v3959 = vsel %vm626, %v3926, %v3958
  %v3960 = vsel %vm628, %v3933, %v3959
  %v3961 = vsel %vm630, %v3940, %v3960
  %v3962 = vsel %vm632, %v3947, %v3961
  %v3963 = vsel %vm94, %v3962, 0
  %3965 = vmatprep.subr.mxu0 0.0
  %3966 = vmatpush1.msra.mxu0 %v772
  %3967 = vmatprep.subr.mxu0 0.0
  %3968 = vmatpush1.msra.mxu0 %v773
  %3969 = vmatprep.subr.mxu0 0.0
  %3970 = vmatpush1.msra.mxu0 %v774
  %3971 = vmatprep.subr.mxu0 0.0
  %3972 = vmatpush1.msra.mxu0 %v775
  %3973 = vmatprep.subr.mxu0 0.0
  %3974 = vmatpush1.msra.mxu0 %v776
  %3975 = vmatprep.subr.mxu0 0.0
  %3976 = vmatpush1.msra.mxu0 %v777
  %3977 = vmatprep.subr.mxu0 0.0
  %3978 = vmatpush1.msra.mxu0 %v778
  %3979 = vmatprep.subr.mxu0 0.0
  %3980 = vmatpush1.msra.mxu0 %v779
  %3981 = vmatprep.subr.mxu0 0.0
  %3982 = vmatpush1.msra.mxu0 0.0
  %3983 = vmatprep.subr.mxu0 0.0
  %3984 = vmatpush1.msra.mxu0 0.0
  %3985 = vmatprep.subr.mxu0 0.0
  %3986 = vmatpush1.msra.mxu0 0.0
  %3987 = vmatprep.subr.mxu0 0.0
  %3988 = vmatpush1.msra.mxu0 0.0
  %3989 = vmatprep.subr.mxu0 0.0
  %3990 = vmatpush1.msra.mxu0 0.0
  %3991 = vmatprep.subr.mxu0 0.0
  %3992 = vmatpush1.msra.mxu0 0.0
  %3993 = vmatprep.subr.mxu0 0.0
  %3994 = vmatpush1.msra.mxu0 0.0
  %3995 = vmatprep.subr.mxu0 0.0
  %3996 = vmatpush1.msra.mxu0 0.0
  %3997 = vmatprep.subr.mxu0 0.0
  %3998 = vmatpush1.msra.mxu0 0.0
  %3999 = vmatprep.subr.mxu0 0.0
  %4000 = vmatpush1.msra.mxu0 0.0
  %4001 = vmatprep.subr.mxu0 0.0
  %4002 = vmatpush1.msra.mxu0 0.0
  %4003 = vmatprep.subr.mxu0 0.0
  %4004 = vmatpush1.msra.mxu0 0.0
  %4005 = vmatprep.subr.mxu0 0.0
  %4006 = vmatpush1.msra.mxu0 0.0
  %4007 = vmatprep.subr.mxu0 0.0
  %4008 = vmatpush1.msra.mxu0 0.0
  %4009 = vmatprep.subr.mxu0 0.0
  %4010 = vmatpush1.msra.mxu0 0.0
  %4011 = vmatprep.subr.mxu0 0.0
  %4012 = vmatpush1.msra.mxu0 0.0
  %4013 = vmatprep.subr.mxu0 0.0
  %4014 = vmatpush1.msra.mxu0 0.0
  %4015 = vmatprep.subr.mxu0 0.0
  %4016 = vmatpush1.msra.mxu0 0.0
  %4017 = vmatprep.subr.mxu0 0.0
  %4018 = vmatpush1.msra.mxu0 0.0
  %4019 = vmatprep.subr.mxu0 0.0
  %4020 = vmatpush1.msra.mxu0 0.0
  %4021 = vmatprep.subr.mxu0 0.0
  %4022 = vmatpush1.msra.mxu0 0.0
  %4023 = vmatprep.subr.mxu0 0.0
  %4024 = vmatpush1.msra.mxu0 0.0
  %4025 = vmatprep.subr.mxu0 0.0
  %4026 = vmatpush1.msra.mxu0 0.0
  %4027 = vmatprep.subr.mxu0 0.0
  %4028 = vmatpush1.msra.mxu0 0.0
  %4029 = vmatprep.mubr.f32.mxu0 0.0
  %4030 = vmatmul.mubr.f32.gmra.mrb[0].mxu0 %v3963
  %v4031 = vpop.f32.mrb[0].mxu0
  %v4032 = vadd.f32 0.0, %v4031
  %v4033 = vpop.f32.mrb[0].mxu0
  %4034 = vdwg.mxu0
  %4035 = vmatprep.subr.mxu0 0.0
  %4036 = vmatpush1.msra.mxu0 %v768
  %4037 = vmatprep.subr.mxu0 0.0
  %4038 = vmatpush1.msra.mxu0 %v769
  %4039 = vmatprep.subr.mxu0 0.0
  %4040 = vmatpush1.msra.mxu0 %v770
  %4041 = vmatprep.subr.mxu0 0.0
  %4042 = vmatpush1.msra.mxu0 %v771
  %4043 = vmatprep.subr.mxu0 0.0
  %4044 = vmatpush1.msra.mxu0 0.0
  %4045 = vmatprep.subr.mxu0 0.0
  %4046 = vmatpush1.msra.mxu0 0.0
  %4047 = vmatprep.subr.mxu0 0.0
  %4048 = vmatpush1.msra.mxu0 0.0
  %4049 = vmatprep.subr.mxu0 0.0
  %4050 = vmatpush1.msra.mxu0 0.0
  %4051 = vmatprep.subr.mxu0 0.0
  %4052 = vmatpush1.msra.mxu0 0.0
  %4053 = vmatprep.subr.mxu0 0.0
  %4054 = vmatpush1.msra.mxu0 0.0
  %4055 = vmatprep.subr.mxu0 0.0
  %4056 = vmatpush1.msra.mxu0 0.0
  %4057 = vmatprep.subr.mxu0 0.0
  %4058 = vmatpush1.msra.mxu0 0.0
  %4059 = vmatprep.subr.mxu0 0.0
  %4060 = vmatpush1.msra.mxu0 0.0
  %4061 = vmatprep.subr.mxu0 0.0
  %4062 = vmatpush1.msra.mxu0 0.0
  %4063 = vmatprep.subr.mxu0 0.0
  %4064 = vmatpush1.msra.mxu0 0.0
  %4065 = vmatprep.subr.mxu0 0.0
  %4066 = vmatpush1.msra.mxu0 0.0
  %4067 = vmatprep.subr.mxu0 0.0
  %4068 = vmatpush1.msra.mxu0 0.0
  %4069 = vmatprep.subr.mxu0 0.0
  %4070 = vmatpush1.msra.mxu0 0.0
  %4071 = vmatprep.subr.mxu0 0.0
  %4072 = vmatpush1.msra.mxu0 0.0
  %4073 = vmatprep.subr.mxu0 0.0
  %4074 = vmatpush1.msra.mxu0 0.0
  %4075 = vmatprep.subr.mxu0 0.0
  %4076 = vmatpush1.msra.mxu0 0.0
  %4077 = vmatprep.subr.mxu0 0.0
  %4078 = vmatpush1.msra.mxu0 0.0
  %4079 = vmatprep.subr.mxu0 0.0
  %4080 = vmatpush1.msra.mxu0 0.0
  %4081 = vmatprep.subr.mxu0 0.0
  %4082 = vmatpush1.msra.mxu0 0.0
  %4083 = vmatprep.subr.mxu0 0.0
  %4084 = vmatpush1.msra.mxu0 0.0
  %4085 = vmatprep.subr.mxu0 0.0
  %4086 = vmatpush1.msra.mxu0 0.0
  %4087 = vmatprep.subr.mxu0 0.0
  %4088 = vmatpush1.msra.mxu0 0.0
  %4089 = vmatprep.subr.mxu0 0.0
  %4090 = vmatpush1.msra.mxu0 0.0
  %4091 = vmatprep.subr.mxu0 0.0
  %4092 = vmatpush1.msra.mxu0 0.0
  %4093 = vmatprep.subr.mxu0 0.0
  %4094 = vmatpush1.msra.mxu0 0.0
  %4095 = vmatprep.subr.mxu0 0.0
  %4096 = vmatpush1.msra.mxu0 0.0
  %4097 = vmatprep.subr.mxu0 0.0
  %4098 = vmatpush1.msra.mxu0 0.0
  %4099 = vmatprep.mubr.f32.mxu0 0.0
  %4100 = vmatmul.mubr.f32.gmra.mrb[0].mxu0 %v3558
  %v4101 = vpop.f32.mrb[0].mxu0
  %v4102 = vadd.f32 %v4032, %v4101
  %v4103 = vpop.f32.mrb[0].mxu0
  %4104 = vdwg.mxu0
  %v4105 = vtanh.pop %v4102
  %s4106 = scalar_lea.vmem %s0, 40
  %v4107 = vld [vmem:[%s4106] sm:$0xff]
  %4108 = vmatprep.subr.mxu0 0.0
  %4109 = vmatpush1.msra.mxu0 %v86
  %4110 = vmatprep.subr.mxu0 0.0
  %4111 = vmatpush1.msra.mxu0 %v87
  %4112 = vmatprep.subr.mxu0 0.0
  %4113 = vmatpush1.msra.mxu0 %v88
  %4114 = vmatprep.subr.mxu0 0.0
  %4115 = vmatpush1.msra.mxu0 %v89
  %4116 = vmatprep.subr.mxu0 0.0
  %4117 = vmatpush1.msra.mxu0 %v90
  %4118 = vmatprep.subr.mxu0 0.0
  %4119 = vmatpush1.msra.mxu0 %v91
  %4120 = vmatprep.subr.mxu0 0.0
  %4121 = vmatpush1.msra.mxu0 %v92
  %4122 = vmatprep.subr.mxu0 0.0
  %4123 = vmatpush1.msra.mxu0 %v93
  %4124 = vmatprep.subr.mxu0 0.0
  %4125 = vmatpush1.msra.mxu0 0.0
  %4126 = vmatprep.subr.mxu0 0.0
  %4127 = vmatpush1.msra.mxu0 0.0
  %4128 = vmatprep.subr.mxu0 0.0
  %4129 = vmatpush1.msra.mxu0 0.0
  %4130 = vmatprep.subr.mxu0 0.0
  %4131 = vmatpush1.msra.mxu0 0.0
  %4132 = vmatprep.subr.mxu0 0.0
  %4133 = vmatpush1.msra.mxu0 0.0
  %4134 = vmatprep.subr.mxu0 0.0
  %4135 = vmatpush1.msra.mxu0 0.0
  %4136 = vmatprep.subr.mxu0 0.0
  %4137 = vmatpush1.msra.mxu0 0.0
  %4138 = vmatprep.subr.mxu0 0.0
  %4139 = vmatpush1.msra.mxu0 0.0
  %4140 = vmatprep.subr.mxu0 0.0
  %4141 = vmatpush1.msra.mxu0 0.0
  %4142 = vmatprep.subr.mxu0 0.0
  %4143 = vmatpush1.msra.mxu0 0.0
  %4144 = vmatprep.subr.mxu0 0.0
  %4145 = vmatpush1.msra.mxu0 0.0
  %4146 = vmatprep.subr.mxu0 0.0
  %4147 = vmatpush1.msra.mxu0 0.0
  %4148 = vmatprep.subr.mxu0 0.0
  %4149 = vmatpush1.msra.mxu0 0.0
  %4150 = vmatprep.subr.mxu0 0.0
  %4151 = vmatpush1.msra.mxu0 0.0
  %4152 = vmatprep.subr.mxu0 0.0
  %4153 = vmatpush1.msra.mxu0 0.0
  %4154 = vmatprep.subr.mxu0 0.0
  %4155 = vmatpush1.msra.mxu0 0.0
  %4156 = vmatprep.subr.mxu0 0.0
  %4157 = vmatpush1.msra.mxu0 0.0
  %4158 = vmatprep.subr.mxu0 0.0
  %4159 = vmatpush1.msra.mxu0 0.0
  %4160 = vmatprep.subr.mxu0 0.0
  %4161 = vmatpush1.msra.mxu0 0.0
  %4162 = vmatprep.subr.mxu0 0.0
  %4163 = vmatpush1.msra.mxu0 0.0
  %4164 = vmatprep.subr.mxu0 0.0
  %4165 = vmatpush1.msra.mxu0 0.0
  %4166 = vmatprep.subr.mxu0 0.0
  %4167 = vmatpush1.msra.mxu0 0.0
  %4168 = vmatprep.subr.mxu0 0.0
  %4169 = vmatpush1.msra.mxu0 0.0
  %4170 = vmatprep.subr.mxu0 0.0
  %4171 = vmatpush1.msra.mxu0 0.0
  %4172 = vmatprep.mubr.f32.mxu0 0.0
  %4173 = vmatmul.mubr.f32.gmra.mrb[0].mxu0 %v3963
  %v4174 = vpop.f32.mrb[0].mxu0
  %v4175 = vadd.f32 0.0, %v4174
  %v4176 = vpop.f32.mrb[0].mxu0
  %4177 = vdwg.mxu0
  %v4179 = vsel %vm168, %v4107, 0
  %4181 = vmatprep.subr.mxu0 0.0
  %4182 = vmatpush1.msra.mxu0 %v82
  %4183 = vmatprep.subr.mxu0 0.0
  %4184 = vmatpush1.msra.mxu0 %v83
  %4185 = vmatprep.subr.mxu0 0.0
  %4186 = vmatpush1.msra.mxu0 %v84
  %4187 = vmatprep.subr.mxu0 0.0
  %4188 = vmatpush1.msra.mxu0 %v85
  %4189 = vmatprep.subr.mxu0 0.0
  %4190 = vmatpush1.msra.mxu0 0.0
  %4191 = vmatprep.subr.mxu0 0.0
  %4192 = vmatpush1.msra.mxu0 0.0
  %4193 = vmatprep.subr.mxu0 0.0
  %4194 = vmatpush1.msra.mxu0 0.0
  %4195 = vmatprep.subr.mxu0 0.0
  %4196 = vmatpush1.msra.mxu0 0.0
  %4197 = vmatprep.subr.mxu0 0.0
  %4198 = vmatpush1.msra.mxu0 0.0
  %4199 = vmatprep.subr.mxu0 0.0
  %4200 = vmatpush1.msra.mxu0 0.0
  %4201 = vmatprep.subr.mxu0 0.0
  %4202 = vmatpush1.msra.mxu0 0.0
  %4203 = vmatprep.subr.mxu0 0.0
  %4204 = vmatpush1.msra.mxu0 0.0
  %4205 = vmatprep.subr.mxu0 0.0
  %4206 = vmatpush1.msra.mxu0 0.0
  %4207 = vmatprep.subr.mxu0 0.0
  %4208 = vmatpush1.msra.mxu0 0.0
  %4209 = vmatprep.subr.mxu0 0.0
  %4210 = vmatpush1.msra.mxu0 0.0
  %4211 = vmatprep.subr.mxu0 0.0
  %4212 = vmatpush1.msra.mxu0 0.0
  %4213 = vmatprep.subr.mxu0 0.0
  %4214 = vmatpush1.msra.mxu0 0.0
  %4215 = vmatprep.subr.mxu0 0.0
  %4216 = vmatpush1.msra.mxu0 0.0
  %4217 = vmatprep.subr.mxu0 0.0
  %4218 = vmatpush1.msra.mxu0 0.0
  %4219 = vmatprep.subr.mxu0 0.0
  %4220 = vmatpush1.msra.mxu0 0.0
  %4221 = vmatprep.subr.mxu0 0.0
  %4222 = vmatpush1.msra.mxu0 0.0
  %4223 = vmatprep.subr.mxu0 0.0
  %4224 = vmatpush1.msra.mxu0 0.0
  %4225 = vmatprep.subr.mxu0 0.0
  %4226 = vmatpush1.msra.mxu0 0.0
  %4227 = vmatprep.subr.mxu0 0.0
  %4228 = vmatpush1.msra.mxu0 0.0
  %4229 = vmatprep.subr.mxu0 0.0
  %4230 = vmatpush1.msra.mxu0 0.0
  %4231 = vmatprep.subr.mxu0 0.0
  %4232 = vmatpush1.msra.mxu0 0.0
  %4233 = vmatprep.subr.mxu0 0.0
  %4234 = vmatpush1.msra.mxu0 0.0
  %4235 = vmatprep.subr.mxu0 0.0
  %4236 = vmatpush1.msra.mxu0 0.0
  %4237 = vmatprep.subr.mxu0 0.0
  %4238 = vmatpush1.msra.mxu0 0.0
  %4239 = vmatprep.subr.mxu0 0.0
  %4240 = vmatpush1.msra.mxu0 0.0
  %4241 = vmatprep.subr.mxu0 0.0
  %4242 = vmatpush1.msra.mxu0 0.0
  %4243 = vmatprep.subr.mxu0 0.0
  %4244 = vmatpush1.msra.mxu0 0.0
  %4245 = vmatprep.mubr.f32.mxu0 0.0
  %4246 = vmatmul.mubr.f32.gmra.mrb[0].mxu0 %v4179
  %v4247 = vpop.f32.mrb[0].mxu0
  %v4248 = vadd.f32 %v4175, %v4247
  %v4249 = vpop.f32.mrb[0].mxu0
  %4250 = vdwg.mxu0
  %4251 = vmatprep.subr.mxu0 0.0
  %4252 = vmatpush1.msra.mxu0 %v242
  %4253 = vmatprep.subr.mxu0 0.0
  %4254 = vmatpush1.msra.mxu0 %v243
  %4255 = vmatprep.subr.mxu0 0.0
  %4256 = vmatpush1.msra.mxu0 %v244
  %4257 = vmatprep.subr.mxu0 0.0
  %4258 = vmatpush1.msra.mxu0 %v245
  %4259 = vmatprep.subr.mxu0 0.0
  %4260 = vmatpush1.msra.mxu0 0.0
  %4261 = vmatprep.subr.mxu0 0.0
  %4262 = vmatpush1.msra.mxu0 0.0
  %4263 = vmatprep.subr.mxu0 0.0
  %4264 = vmatpush1.msra.mxu0 0.0
  %4265 = vmatprep.subr.mxu0 0.0
  %4266 = vmatpush1.msra.mxu0 0.0
  %4267 = vmatprep.subr.mxu0 0.0
  %4268 = vmatpush1.msra.mxu0 0.0
  %4269 = vmatprep.subr.mxu0 0.0
  %4270 = vmatpush1.msra.mxu0 0.0
  %4271 = vmatprep.subr.mxu0 0.0
  %4272 = vmatpush1.msra.mxu0 0.0
  %4273 = vmatprep.subr.mxu0 0.0
  %4274 = vmatpush1.msra.mxu0 0.0
  %4275 = vmatprep.subr.mxu0 0.0
  %4276 = vmatpush1.msra.mxu0 0.0
  %4277 = vmatprep.subr.mxu0 0.0
  %4278 = vmatpush1.msra.mxu0 0.0
  %4279 = vmatprep.subr.mxu0 0.0
  %4280 = vmatpush1.msra.mxu0 0.0
  %4281 = vmatprep.subr.mxu0 0.0
  %4282 = vmatpush1.msra.mxu0 0.0
  %4283 = vmatprep.subr.mxu0 0.0
  %4284 = vmatpush1.msra.mxu0 0.0
  %4285 = vmatprep.subr.mxu0 0.0
  %4286 = vmatpush1.msra.mxu0 0.0
  %4287 = vmatprep.subr.mxu0 0.0
  %4288 = vmatpush1.msra.mxu0 0.0
  %4289 = vmatprep.subr.mxu0 0.0
  %4290 = vmatpush1.msra.mxu0 0.0
  %4291 = vmatprep.subr.mxu0 0.0
  %4292 = vmatpush1.msra.mxu0 0.0
  %4293 = vmatprep.subr.mxu0 0.0
  %4294 = vmatpush1.msra.mxu0 0.0
  %4295 = vmatprep.subr.mxu0 0.0
  %4296 = vmatpush1.msra.mxu0 0.0
  %4297 = vmatprep.subr.mxu0 0.0
  %4298 = vmatpush1.msra.mxu0 0.0
  %4299 = vmatprep.subr.mxu0 0.0
  %4300 = vmatpush1.msra.mxu0 0.0
  %4301 = vmatprep.subr.mxu0 0.0
  %4302 = vmatpush1.msra.mxu0 0.0
  %4303 = vmatprep.subr.mxu0 0.0
  %4304 = vmatpush1.msra.mxu0 0.0
  %4305 = vmatprep.subr.mxu0 0.0
  %4306 = vmatpush1.msra.mxu0 0.0
  %4307 = vmatprep.subr.mxu0 0.0
  %4308 = vmatpush1.msra.mxu0 0.0
  %4309 = vmatprep.subr.mxu0 0.0
  %4310 = vmatpush1.msra.mxu0 0.0
  %4311 = vmatprep.subr.mxu0 0.0
  %4312 = vmatpush1.msra.mxu0 0.0
  %4313 = vmatprep.subr.mxu0 0.0
  %4314 = vmatpush1.msra.mxu0 0.0
  %4315 = vmatprep.mubr.f32.mxu0 0.0
  %4316 = vmatmul.mubr.f32.gmra.mrb[0].mxu0 %v3558
  %v4317 = vpop.f32.mrb[0].mxu0
  %v4318 = vadd.f32 0.0, %v4317
  %v4319 = vpop.f32.mrb[0].mxu0
  %4320 = vdwg.mxu0
  %v4321 = vadd.f32 %v4248, %v4318
  %v4322 = vadd.f32 %v4321, %v324
  %v4323 = vxor.u32 %v4322, 2147483648
  %v4324 = vmul.f32 %v4323, 1.442695
  %v4325 = vpow.pop %v4324
  %v4326 = vadd.f32 %v4325, 1.0
  %v4327 = vrcp.pop %v4326
  %v4328 = vmul.f32 1.0, %v4327
  %v4329 = vtanh.pop %v4322
  %v4330 = vmul.f32 %v4328, %v3548
  %4332 = vrot.lane.b32.xlu0 %v4329, 64
  %v4333 = vpop.permute.xlu0 %4332
  %v4335 = vmul.f32 %v4328, %v4333
  %4337 = vrot.lane.b32.xlu0 %v4335, 32
  %v4338 = vpop.permute.xlu0 %4337
  %v4340 = vadd.f32 %v4330, %v4338
  %v4341 = vtanh.pop %v4340
  %4343 = vrot.lane.b32.xlu0 %v4341, 64
  %v4344 = vpop.permute.xlu0 %4343
  %v4346 = vmul.f32 %v4328, %v4344
  %4348 = vrot.lane.b32.xlu0 %v4346, 32
  %v4349 = vpop.permute.xlu0 %4348
  %v4350 = vsel %vm168, %v4349, 0
  %4352 = vmatprep.subr.mxu0 0.0
  %4353 = vmatpush1.msra.mxu0 %v355
  %4354 = vmatprep.subr.mxu0 0.0
  %4355 = vmatpush1.msra.mxu0 %v356
  %4356 = vmatprep.subr.mxu0 0.0
  %4357 = vmatpush1.msra.mxu0 %v357
  %4358 = vmatprep.subr.mxu0 0.0
  %4359 = vmatpush1.msra.mxu0 %v358
  %4360 = vmatprep.subr.mxu0 0.0
  %4361 = vmatpush1.msra.mxu0 0.0
  %4362 = vmatprep.subr.mxu0 0.0
  %4363 = vmatpush1.msra.mxu0 0.0
  %4364 = vmatprep.subr.mxu0 0.0
  %4365 = vmatpush1.msra.mxu0 0.0
  %4366 = vmatprep.subr.mxu0 0.0
  %4367 = vmatpush1.msra.mxu0 0.0
  %4368 = vmatprep.subr.mxu0 0.0
  %4369 = vmatpush1.msra.mxu0 0.0
  %4370 = vmatprep.subr.mxu0 0.0
  %4371 = vmatpush1.msra.mxu0 0.0
  %4372 = vmatprep.subr.mxu0 0.0
  %4373 = vmatpush1.msra.mxu0 0.0
  %4374 = vmatprep.subr.mxu0 0.0
  %4375 = vmatpush1.msra.mxu0 0.0
  %4376 = vmatprep.subr.mxu0 0.0
  %4377 = vmatpush1.msra.mxu0 0.0
  %4378 = vmatprep.subr.mxu0 0.0
  %4379 = vmatpush1.msra.mxu0 0.0
  %4380 = vmatprep.subr.mxu0 0.0
  %4381 = vmatpush1.msra.mxu0 0.0
  %4382 = vmatprep.subr.mxu0 0.0
  %4383 = vmatpush1.msra.mxu0 0.0
  %4384 = vmatprep.subr.mxu0 0.0
  %4385 = vmatpush1.msra.mxu0 0.0
  %4386 = vmatprep.subr.mxu0 0.0
  %4387 = vmatpush1.msra.mxu0 0.0
  %4388 = vmatprep.subr.mxu0 0.0
  %4389 = vmatpush1.msra.mxu0 0.0
  %4390 = vmatprep.subr.mxu0 0.0
  %4391 = vmatpush1.msra.mxu0 0.0
  %4392 = vmatprep.subr.mxu0 0.0
  %4393 = vmatpush1.msra.mxu0 0.0
  %4394 = vmatprep.subr.mxu0 0.0
  %4395 = vmatpush1.msra.mxu0 0.0
  %4396 = vmatprep.subr.mxu0 0.0
  %4397 = vmatpush1.msra.mxu0 0.0
  %4398 = vmatprep.subr.mxu0 0.0
  %4399 = vmatpush1.msra.mxu0 0.0
  %4400 = vmatprep.subr.mxu0 0.0
  %4401 = vmatpush1.msra.mxu0 0.0
  %4402 = vmatprep.subr.mxu0 0.0
  %4403 = vmatpush1.msra.mxu0 0.0
  %4404 = vmatprep.subr.mxu0 0.0
  %4405 = vmatpush1.msra.mxu0 0.0
  %4406 = vmatprep.subr.mxu0 0.0
  %4407 = vmatpush1.msra.mxu0 0.0
  %4408 = vmatprep.subr.mxu0 0.0
  %4409 = vmatpush1.msra.mxu0 0.0
  %4410 = vmatprep.subr.mxu0 0.0
  %4411 = vmatpush1.msra.mxu0 0.0
  %4412 = vmatprep.subr.mxu0 0.0
  %4413 = vmatpush1.msra.mxu0 0.0
  %4414 = vmatprep.subr.mxu0 0.0
  %4415 = vmatpush1.msra.mxu0 0.0
  %4416 = vmatprep.mubr.f32.mxu0 0.0
  %4417 = vmatmul.mubr.f32.gmra.mrb[0].mxu0 %v4350
  %v4418 = vpop.f32.mrb[0].mxu0
  %v4419 = vadd.f32 0.0, %v4418
  %v4420 = vpop.f32.mrb[0].mxu0
  %4421 = vdwg.mxu0
  %v4423 = vcombine.high %v4419, %v4419
  %v4425 = vunpack.c.l.s4 1966171168
  %v4426 = vunpack.c.0.s8 %v4425
  %v4427 = vlaneseq
  %v4428 = vshrl.u32 %v4427, 7
  %v4429 = vsub.s32 %v4426, %v4428
  %v4430 = vrot.slane %v4419, %v4429
  %v4432 = vunpack.c.l.s4 1966171168
  %v4433 = vunpack.c.0.s8 %v4432
  %v4434 = vlaneseq
  %v4435 = vshrl.u32 %v4434, 7
  %v4436 = vsub.s32 %v4433, %v4435
  %v4437 = vrot.slane %v4423, %v4436
  %v4438 = vcombine.high %v4430, %v4430
  %v4439 = vcombine.high %v4437, %v4437
  %v4441 = vunpack.c.l.s4 1966171168
  %v4442 = vunpack.c.0.s8 %v4441
  %v4443 = vlaneseq
  %v4444 = vshrl.u32 %v4443, 7
  %v4445 = vsub.s32 %v4442, %v4444
  %v4446 = vrot.slane %v4430, %v4445
  %v4448 = vunpack.c.l.s4 1966171168
  %v4449 = vunpack.c.0.s8 %v4448
  %v4450 = vlaneseq
  %v4451 = vshrl.u32 %v4450, 7
  %v4452 = vsub.s32 %v4449, %v4451
  %v4453 = vrot.slane %v4437, %v4452
  %v4455 = vunpack.c.l.s4 1966171168
  %v4456 = vunpack.c.0.s8 %v4455
  %v4457 = vlaneseq
  %v4458 = vshrl.u32 %v4457, 7
  %v4459 = vsub.s32 %v4456, %v4458
  %v4460 = vrot.slane %v4438, %v4459
  %v4462 = vunpack.c.l.s4 1966171168
  %v4463 = vunpack.c.0.s8 %v4462
  %v4464 = vlaneseq
  %v4465 = vshrl.u32 %v4464, 7
  %v4466 = vsub.s32 %v4463, %v4465
  %v4467 = vrot.slane %v4439, %v4466
  %v4468 = vcombine.high %v4446, %v4446
  %v4469 = vcombine.high %v4453, %v4453
  %v4470 = vcombine.high %v4460, %v4460
  %v4471 = vcombine.high %v4467, %v4467
  %v4472 = vlaneseq
  %v4473 = vshrl.u32 %v4472, 7
  %v4474 = vsub.s32 0, %v4473
  %v4475 = vrot.slane %v4446, %v4474
  %v4476 = vlaneseq
  %v4477 = vshrl.u32 %v4476, 7
  %v4478 = vsub.s32 0, %v4477
  %v4479 = vrot.slane %v4460, %v4478
  %v4480 = vlaneseq
  %v4481 = vshrl.u32 %v4480, 7
  %v4482 = vsub.s32 0, %v4481
  %v4483 = vrot.slane %v4468, %v4482
  %v4484 = vlaneseq
  %v4485 = vshrl.u32 %v4484, 7
  %v4486 = vsub.s32 0, %v4485
  %v4487 = vrot.slane %v4470, %v4486
  %v4488 = vlaneseq
  %v4489 = vshrl.u32 %v4488, 7
  %v4490 = vsub.s32 0, %v4489
  %v4491 = vrot.slane %v4453, %v4490
  %v4492 = vlaneseq
  %v4493 = vshrl.u32 %v4492, 7
  %v4494 = vsub.s32 0, %v4493
  %v4495 = vrot.slane %v4467, %v4494
  %v4496 = vlaneseq
  %v4497 = vshrl.u32 %v4496, 7
  %v4498 = vsub.s32 0, %v4497
  %v4499 = vrot.slane %v4469, %v4498
  %v4500 = vlaneseq
  %v4501 = vshrl.u32 %v4500, 7
  %v4502 = vsub.s32 0, %v4501
  %v4503 = vrot.slane %v4471, %v4502
  %v4512 = vadd.f32 %v66, %v4475
  %v4513 = vadd.f32 %v67, %v4479
  %v4514 = vadd.f32 %v68, %v4483
  %v4515 = vadd.f32 %v69, %v4487
  %v4516 = vadd.f32 %v70, %v4491
  %v4517 = vadd.f32 %v71, %v4495
  %v4518 = vadd.f32 %v72, %v4499
  %v4519 = vadd.f32 %v73, %v4503
  %v4520 = vtanh.pop %v4512
  %v4521 = vtanh.pop %v4513
  %v4522 = vtanh.pop %v4514
  %v4523 = vtanh.pop %v4515
  %v4524 = vtanh.pop %v4516
  %v4525 = vtanh.pop %v4517
  %v4526 = vtanh.pop %v4518
  %v4527 = vtanh.pop %v4519
  %v4528 = vmul.f32 %v4520, %v544
  %v4529 = vmul.f32 %v4521, %v544
  %v4530 = vmul.f32 %v4522, %v544
  %v4531 = vmul.f32 %v4523, %v544
  %v4532 = vmul.f32 %v4524, %v544
  %v4533 = vmul.f32 %v4525, %v544
  %v4534 = vmul.f32 %v4526, %v544
  %v4535 = vmul.f32 %v4527, %v544
  %v4536 = vsel %vm168, %v4528, 0.0
  %4537 = vadd.xlane.f32.xlu0 %v4536
  %v4538 = vpop.xlane.xlu0 %4537
  %v4539 = vsel %vm168, %v4529, 0.0
  %4540 = vadd.xlane.f32.xlu0 %v4539
  %v4541 = vpop.xlane.xlu0 %4540
  %v4542 = vsel %vm168, %v4530, 0.0
  %4543 = vadd.xlane.f32.xlu0 %v4542
  %v4544 = vpop.xlane.xlu0 %4543
  %v4545 = vsel %vm168, %v4531, 0.0
  %4546 = vadd.xlane.f32.xlu0 %v4545
  %v4547 = vpop.xlane.xlu0 %4546
  %v4548 = vsel %vm168, %v4532, 0.0
  %4549 = vadd.xlane.f32.xlu0 %v4548
  %v4550 = vpop.xlane.xlu0 %4549
  %v4551 = vsel %vm168, %v4533, 0.0
  %4552 = vadd.xlane.f32.xlu0 %v4551
  %v4553 = vpop.xlane.xlu0 %4552
  %v4554 = vsel %vm168, %v4534, 0.0
  %4555 = vadd.xlane.f32.xlu0 %v4554
  %v4556 = vpop.xlane.xlu0 %4555
  %v4557 = vsel %vm168, %v4535, 0.0
  %4558 = vadd.xlane.f32.xlu0 %v4557
  %v4559 = vpop.xlane.xlu0 %4558
  %v4568 = vlaneseq
  %v4569 = vshrl.u32 %v4568, 7
  %v4570 = vsub.s32 %v587, %v4569
  %v4571 = vrot.slane %v4538, %v4570
  %v4572 = vlaneseq
  %v4573 = vshrl.u32 %v4572, 7
  %v4574 = vsub.s32 %v587, %v4573
  %v4575 = vrot.slane %v4541, %v4574
  %v4576 = vlaneseq
  %v4577 = vshrl.u32 %v4576, 7
  %v4578 = vsub.s32 %v587, %v4577
  %v4579 = vrot.slane %v4544, %v4578
  %v4580 = vlaneseq
  %v4581 = vshrl.u32 %v4580, 7
  %v4582 = vsub.s32 %v587, %v4581
  %v4583 = vrot.slane %v4547, %v4582
  %v4584 = vlaneseq
  %v4585 = vshrl.u32 %v4584, 7
  %v4586 = vsub.s32 %v587, %v4585
  %v4587 = vrot.slane %v4550, %v4586
  %v4588 = vlaneseq
  %v4589 = vshrl.u32 %v4588, 7
  %v4590 = vsub.s32 %v587, %v4589
  %v4591 = vrot.slane %v4553, %v4590
  %v4592 = vlaneseq
  %v4593 = vshrl.u32 %v4592, 7
  %v4594 = vsub.s32 %v587, %v4593
  %v4595 = vrot.slane %v4556, %v4594
  %v4596 = vlaneseq
  %v4597 = vshrl.u32 %v4596, 7
  %v4598 = vsub.s32 %v587, %v4597
  %v4599 = vrot.slane %v4559, %v4598
  %v4600 = vsel %vm620, %v4575, %v4571
  %v4601 = vsel %vm622, %v4579, %v4600
  %v4602 = vsel %vm624, %v4583, %v4601
  %v4603 = vsel %vm626, %v4587, %v4602
  %v4604 = vsel %vm628, %v4591, %v4603
  %v4605 = vsel %vm630, %v4595, %v4604
  %v4606 = vsel %vm632, %v4599, %v4605
  %v4608 = vsel %vm75, -1e+09, %v4606
  %v4609 = vsel %vm636, %v4608, -inf
  %4610 = vmax.xlane.f32.xlu0 %v4609
  %v4611 = vpop.xlane.xlu0 %4610
  %v4612 = vsub.f32 %v4608, %v4611
  %v4613 = vmul.f32 %v4612, 1.442695
  %v4614 = vpow.pop %v4613
  %v4615 = vsel %vm636, %v4614, 0.0
  %4616 = vadd.xlane.f32.xlu0 %v4615
  %v4617 = vpop.xlane.xlu0 %4616
  %v4618 = vrcp.pop %v4617
  %v4619 = vmul.f32 %v4614, %v4618
  %v4620 = vlaneseq
  %v4621 = vshrl.u32 %v4620, 7
  %v4622 = vsub.s32 0, %v4621
  %v4623 = vrot.slane %v4619, %v4622
  %4625 = vbcast.lane.b32.xlu0 %v4623, 256
  %v4626 = vpop.permute.xlu0 %4625
  %v4627 = vlaneseq
  %v4628 = vshrl.u32 %v4627, 7
  %v4629 = vsub.s32 1, %v4628
  %v4630 = vrot.slane %v4619, %v4629
  %4632 = vbcast.lane.b32.xlu0 %v4630, 256
  %v4633 = vpop.permute.xlu0 %4632
  %v4634 = vlaneseq
  %v4635 = vshrl.u32 %v4634, 7
  %v4636 = vsub.s32 2, %v4635
  %v4637 = vrot.slane %v4619, %v4636
  %4639 = vbcast.lane.b32.xlu0 %v4637, 256
  %v4640 = vpop.permute.xlu0 %4639
  %v4641 = vlaneseq
  %v4642 = vshrl.u32 %v4641, 7
  %v4643 = vsub.s32 3, %v4642
  %v4644 = vrot.slane %v4619, %v4643
  %4646 = vbcast.lane.b32.xlu0 %v4644, 256
  %v4647 = vpop.permute.xlu0 %4646
  %v4648 = vlaneseq
  %v4649 = vshrl.u32 %v4648, 7
  %v4650 = vsub.s32 4, %v4649
  %v4651 = vrot.slane %v4619, %v4650
  %4653 = vbcast.lane.b32.xlu0 %v4651, 256
  %v4654 = vpop.permute.xlu0 %4653
  %v4655 = vlaneseq
  %v4656 = vshrl.u32 %v4655, 7
  %v4657 = vsub.s32 5, %v4656
  %v4658 = vrot.slane %v4619, %v4657
  %4660 = vbcast.lane.b32.xlu0 %v4658, 256
  %v4661 = vpop.permute.xlu0 %4660
  %v4662 = vlaneseq
  %v4663 = vshrl.u32 %v4662, 7
  %v4664 = vsub.s32 6, %v4663
  %v4665 = vrot.slane %v4619, %v4664
  %4667 = vbcast.lane.b32.xlu0 %v4665, 256
  %v4668 = vpop.permute.xlu0 %4667
  %v4669 = vlaneseq
  %v4670 = vshrl.u32 %v4669, 7
  %v4671 = vsub.s32 7, %v4670
  %v4672 = vrot.slane %v4619, %v4671
  %4674 = vbcast.lane.b32.xlu0 %v4672, 256
  %v4675 = vpop.permute.xlu0 %4674
  %v4676 = vmul.f32 %v4626, %v58
  %v4677 = vmul.f32 %v4633, %v59
  %v4678 = vmul.f32 %v4640, %v60
  %v4679 = vmul.f32 %v4647, %v61
  %v4680 = vmul.f32 %v4654, %v62
  %v4681 = vmul.f32 %v4661, %v63
  %v4682 = vmul.f32 %v4668, %v64
  %v4683 = vmul.f32 %v4675, %v65
  %v4684 = vsel %vm94, %v4676, 0.0
  %v4685 = vrot.slane %v4684, 4
  %v4686 = vadd.f32 %v4684, %v4685
  %v4687 = vrot.slane %v4686, 2
  %v4688 = vadd.f32 %v4686, %v4687
  %v4689 = vrot.slane %v4688, 1
  %v4690 = vadd.f32 %v4688, %v4689
  %v4691 = vsel %vm94, %v4677, 0.0
  %v4692 = vrot.slane %v4691, 4
  %v4693 = vadd.f32 %v4691, %v4692
  %v4694 = vrot.slane %v4693, 2
  %v4695 = vadd.f32 %v4693, %v4694
  %v4696 = vrot.slane %v4695, 1
  %v4697 = vadd.f32 %v4695, %v4696
  %v4698 = vsel %vm94, %v4678, 0.0
  %v4699 = vrot.slane %v4698, 4
  %v4700 = vadd.f32 %v4698, %v4699
  %v4701 = vrot.slane %v4700, 2
  %v4702 = vadd.f32 %v4700, %v4701
  %v4703 = vrot.slane %v4702, 1
  %v4704 = vadd.f32 %v4702, %v4703
  %v4705 = vsel %vm94, %v4679, 0.0
  %v4706 = vrot.slane %v4705, 4
  %v4707 = vadd.f32 %v4705, %v4706
  %v4708 = vrot.slane %v4707, 2
  %v4709 = vadd.f32 %v4707, %v4708
  %v4710 = vrot.slane %v4709, 1
  %v4711 = vadd.f32 %v4709, %v4710
  %v4712 = vsel %vm94, %v4680, 0.0
  %v4713 = vrot.slane %v4712, 4
  %v4714 = vadd.f32 %v4712, %v4713
  %v4715 = vrot.slane %v4714, 2
  %v4716 = vadd.f32 %v4714, %v4715
  %v4717 = vrot.slane %v4716, 1
  %v4718 = vadd.f32 %v4716, %v4717
  %v4719 = vsel %vm94, %v4681, 0.0
  %v4720 = vrot.slane %v4719, 4
  %v4721 = vadd.f32 %v4719, %v4720
  %v4722 = vrot.slane %v4721, 2
  %v4723 = vadd.f32 %v4721, %v4722
  %v4724 = vrot.slane %v4723, 1
  %v4725 = vadd.f32 %v4723, %v4724
  %v4726 = vsel %vm94, %v4682, 0.0
  %v4727 = vrot.slane %v4726, 4
  %v4728 = vadd.f32 %v4726, %v4727
  %v4729 = vrot.slane %v4728, 2
  %v4730 = vadd.f32 %v4728, %v4729
  %v4731 = vrot.slane %v4730, 1
  %v4732 = vadd.f32 %v4730, %v4731
  %v4733 = vsel %vm94, %v4683, 0.0
  %v4734 = vrot.slane %v4733, 4
  %v4735 = vadd.f32 %v4733, %v4734
  %v4736 = vrot.slane %v4735, 2
  %v4737 = vadd.f32 %v4735, %v4736
  %v4738 = vrot.slane %v4737, 1
  %v4739 = vadd.f32 %v4737, %v4738
  %v4748 = vsel %vm620, %v4697, %v4690
  %v4749 = vsel %vm622, %v4704, %v4748
  %v4750 = vsel %vm624, %v4711, %v4749
  %v4751 = vsel %vm626, %v4718, %v4750
  %v4752 = vsel %vm628, %v4725, %v4751
  %v4753 = vsel %vm630, %v4732, %v4752
  %v4754 = vsel %vm632, %v4739, %v4753
  %v4755 = vsel %vm94, %v4754, 0
  %4757 = vmatprep.subr.mxu0 0.0
  %4758 = vmatpush1.msra.mxu0 %v772
  %4759 = vmatprep.subr.mxu0 0.0
  %4760 = vmatpush1.msra.mxu0 %v773
  %4761 = vmatprep.subr.mxu0 0.0
  %4762 = vmatpush1.msra.mxu0 %v774
  %4763 = vmatprep.subr.mxu0 0.0
  %4764 = vmatpush1.msra.mxu0 %v775
  %4765 = vmatprep.subr.mxu0 0.0
  %4766 = vmatpush1.msra.mxu0 %v776
  %4767 = vmatprep.subr.mxu0 0.0
  %4768 = vmatpush1.msra.mxu0 %v777
  %4769 = vmatprep.subr.mxu0 0.0
  %4770 = vmatpush1.msra.mxu0 %v778
  %4771 = vmatprep.subr.mxu0 0.0
  %4772 = vmatpush1.msra.mxu0 %v779
  %4773 = vmatprep.subr.mxu0 0.0
  %4774 = vmatpush1.msra.mxu0 0.0
  %4775 = vmatprep.subr.mxu0 0.0
  %4776 = vmatpush1.msra.mxu0 0.0
  %4777 = vmatprep.subr.mxu0 0.0
  %4778 = vmatpush1.msra.mxu0 0.0
  %4779 = vmatprep.subr.mxu0 0.0
  %4780 = vmatpush1.msra.mxu0 0.0
  %4781 = vmatprep.subr.mxu0 0.0
  %4782 = vmatpush1.msra.mxu0 0.0
  %4783 = vmatprep.subr.mxu0 0.0
  %4784 = vmatpush1.msra.mxu0 0.0
  %4785 = vmatprep.subr.mxu0 0.0
  %4786 = vmatpush1.msra.mxu0 0.0
  %4787 = vmatprep.subr.mxu0 0.0
  %4788 = vmatpush1.msra.mxu0 0.0
  %4789 = vmatprep.subr.mxu0 0.0
  %4790 = vmatpush1.msra.mxu0 0.0
  %4791 = vmatprep.subr.mxu0 0.0
  %4792 = vmatpush1.msra.mxu0 0.0
  %4793 = vmatprep.subr.mxu0 0.0
  %4794 = vmatpush1.msra.mxu0 0.0
  %4795 = vmatprep.subr.mxu0 0.0
  %4796 = vmatpush1.msra.mxu0 0.0
  %4797 = vmatprep.subr.mxu0 0.0
  %4798 = vmatpush1.msra.mxu0 0.0
  %4799 = vmatprep.subr.mxu0 0.0
  %4800 = vmatpush1.msra.mxu0 0.0
  %4801 = vmatprep.subr.mxu0 0.0
  %4802 = vmatpush1.msra.mxu0 0.0
  %4803 = vmatprep.subr.mxu0 0.0
  %4804 = vmatpush1.msra.mxu0 0.0
  %4805 = vmatprep.subr.mxu0 0.0
  %4806 = vmatpush1.msra.mxu0 0.0
  %4807 = vmatprep.subr.mxu0 0.0
  %4808 = vmatpush1.msra.mxu0 0.0
  %4809 = vmatprep.subr.mxu0 0.0
  %4810 = vmatpush1.msra.mxu0 0.0
  %4811 = vmatprep.subr.mxu0 0.0
  %4812 = vmatpush1.msra.mxu0 0.0
  %4813 = vmatprep.subr.mxu0 0.0
  %4814 = vmatpush1.msra.mxu0 0.0
  %4815 = vmatprep.subr.mxu0 0.0
  %4816 = vmatpush1.msra.mxu0 0.0
  %4817 = vmatprep.subr.mxu0 0.0
  %4818 = vmatpush1.msra.mxu0 0.0
  %4819 = vmatprep.subr.mxu0 0.0
  %4820 = vmatpush1.msra.mxu0 0.0
  %4821 = vmatprep.mubr.f32.mxu0 0.0
  %4822 = vmatmul.mubr.f32.gmra.mrb[0].mxu0 %v4755
  %v4823 = vpop.f32.mrb[0].mxu0
  %v4824 = vadd.f32 0.0, %v4823
  %v4825 = vpop.f32.mrb[0].mxu0
  %4826 = vdwg.mxu0
  %4827 = vmatprep.subr.mxu0 0.0
  %4828 = vmatpush1.msra.mxu0 %v768
  %4829 = vmatprep.subr.mxu0 0.0
  %4830 = vmatpush1.msra.mxu0 %v769
  %4831 = vmatprep.subr.mxu0 0.0
  %4832 = vmatpush1.msra.mxu0 %v770
  %4833 = vmatprep.subr.mxu0 0.0
  %4834 = vmatpush1.msra.mxu0 %v771
  %4835 = vmatprep.subr.mxu0 0.0
  %4836 = vmatpush1.msra.mxu0 0.0
  %4837 = vmatprep.subr.mxu0 0.0
  %4838 = vmatpush1.msra.mxu0 0.0
  %4839 = vmatprep.subr.mxu0 0.0
  %4840 = vmatpush1.msra.mxu0 0.0
  %4841 = vmatprep.subr.mxu0 0.0
  %4842 = vmatpush1.msra.mxu0 0.0
  %4843 = vmatprep.subr.mxu0 0.0
  %4844 = vmatpush1.msra.mxu0 0.0
  %4845 = vmatprep.subr.mxu0 0.0
  %4846 = vmatpush1.msra.mxu0 0.0
  %4847 = vmatprep.subr.mxu0 0.0
  %4848 = vmatpush1.msra.mxu0 0.0
  %4849 = vmatprep.subr.mxu0 0.0
  %4850 = vmatpush1.msra.mxu0 0.0
  %4851 = vmatprep.subr.mxu0 0.0
  %4852 = vmatpush1.msra.mxu0 0.0
  %4853 = vmatprep.subr.mxu0 0.0
  %4854 = vmatpush1.msra.mxu0 0.0
  %4855 = vmatprep.subr.mxu0 0.0
  %4856 = vmatpush1.msra.mxu0 0.0
  %4857 = vmatprep.subr.mxu0 0.0
  %4858 = vmatpush1.msra.mxu0 0.0
  %4859 = vmatprep.subr.mxu0 0.0
  %4860 = vmatpush1.msra.mxu0 0.0
  %4861 = vmatprep.subr.mxu0 0.0
  %4862 = vmatpush1.msra.mxu0 0.0
  %4863 = vmatprep.subr.mxu0 0.0
  %4864 = vmatpush1.msra.mxu0 0.0
  %4865 = vmatprep.subr.mxu0 0.0
  %4866 = vmatpush1.msra.mxu0 0.0
  %4867 = vmatprep.subr.mxu0 0.0
  %4868 = vmatpush1.msra.mxu0 0.0
  %4869 = vmatprep.subr.mxu0 0.0
  %4870 = vmatpush1.msra.mxu0 0.0
  %4871 = vmatprep.subr.mxu0 0.0
  %4872 = vmatpush1.msra.mxu0 0.0
  %4873 = vmatprep.subr.mxu0 0.0
  %4874 = vmatpush1.msra.mxu0 0.0
  %4875 = vmatprep.subr.mxu0 0.0
  %4876 = vmatpush1.msra.mxu0 0.0
  %4877 = vmatprep.subr.mxu0 0.0
  %4878 = vmatpush1.msra.mxu0 0.0
  %4879 = vmatprep.subr.mxu0 0.0
  %4880 = vmatpush1.msra.mxu0 0.0
  %4881 = vmatprep.subr.mxu0 0.0
  %4882 = vmatpush1.msra.mxu0 0.0
  %4883 = vmatprep.subr.mxu0 0.0
  %4884 = vmatpush1.msra.mxu0 0.0
  %4885 = vmatprep.subr.mxu0 0.0
  %4886 = vmatpush1.msra.mxu0 0.0
  %4887 = vmatprep.subr.mxu0 0.0
  %4888 = vmatpush1.msra.mxu0 0.0
  %4889 = vmatprep.subr.mxu0 0.0
  %4890 = vmatpush1.msra.mxu0 0.0
  %4891 = vmatprep.mubr.f32.mxu0 0.0
  %4892 = vmatmul.mubr.f32.gmra.mrb[0].mxu0 %v4350
  %v4893 = vpop.f32.mrb[0].mxu0
  %v4894 = vadd.f32 %v4824, %v4893
  %v4895 = vpop.f32.mrb[0].mxu0
  %4896 = vdwg.mxu0
  %v4897 = vtanh.pop %v4894
  %s4898 = scalar_lea.vmem %s0, 48
  %v4899 = vld [vmem:[%s4898] sm:$0xff]
  %4900 = vmatprep.subr.mxu0 0.0
  %4901 = vmatpush1.msra.mxu0 %v86
  %4902 = vmatprep.subr.mxu0 0.0
  %4903 = vmatpush1.msra.mxu0 %v87
  %4904 = vmatprep.subr.mxu0 0.0
  %4905 = vmatpush1.msra.mxu0 %v88
  %4906 = vmatprep.subr.mxu0 0.0
  %4907 = vmatpush1.msra.mxu0 %v89
  %4908 = vmatprep.subr.mxu0 0.0
  %4909 = vmatpush1.msra.mxu0 %v90
  %4910 = vmatprep.subr.mxu0 0.0
  %4911 = vmatpush1.msra.mxu0 %v91
  %4912 = vmatprep.subr.mxu0 0.0
  %4913 = vmatpush1.msra.mxu0 %v92
  %4914 = vmatprep.subr.mxu0 0.0
  %4915 = vmatpush1.msra.mxu0 %v93
  %4916 = vmatprep.subr.mxu0 0.0
  %4917 = vmatpush1.msra.mxu0 0.0
  %4918 = vmatprep.subr.mxu0 0.0
  %4919 = vmatpush1.msra.mxu0 0.0
  %4920 = vmatprep.subr.mxu0 0.0
  %4921 = vmatpush1.msra.mxu0 0.0
  %4922 = vmatprep.subr.mxu0 0.0
  %4923 = vmatpush1.msra.mxu0 0.0
  %4924 = vmatprep.subr.mxu0 0.0
  %4925 = vmatpush1.msra.mxu0 0.0
  %4926 = vmatprep.subr.mxu0 0.0
  %4927 = vmatpush1.msra.mxu0 0.0
  %4928 = vmatprep.subr.mxu0 0.0
  %4929 = vmatpush1.msra.mxu0 0.0
  %4930 = vmatprep.subr.mxu0 0.0
  %4931 = vmatpush1.msra.mxu0 0.0
  %4932 = vmatprep.subr.mxu0 0.0
  %4933 = vmatpush1.msra.mxu0 0.0
  %4934 = vmatprep.subr.mxu0 0.0
  %4935 = vmatpush1.msra.mxu0 0.0
  %4936 = vmatprep.subr.mxu0 0.0
  %4937 = vmatpush1.msra.mxu0 0.0
  %4938 = vmatprep.subr.mxu0 0.0
  %4939 = vmatpush1.msra.mxu0 0.0
  %4940 = vmatprep.subr.mxu0 0.0
  %4941 = vmatpush1.msra.mxu0 0.0
  %4942 = vmatprep.subr.mxu0 0.0
  %4943 = vmatpush1.msra.mxu0 0.0
  %4944 = vmatprep.subr.mxu0 0.0
  %4945 = vmatpush1.msra.mxu0 0.0
  %4946 = vmatprep.subr.mxu0 0.0
  %4947 = vmatpush1.msra.mxu0 0.0
  %4948 = vmatprep.subr.mxu0 0.0
  %4949 = vmatpush1.msra.mxu0 0.0
  %4950 = vmatprep.subr.mxu0 0.0
  %4951 = vmatpush1.msra.mxu0 0.0
  %4952 = vmatprep.subr.mxu0 0.0
  %4953 = vmatpush1.msra.mxu0 0.0
  %4954 = vmatprep.subr.mxu0 0.0
  %4955 = vmatpush1.msra.mxu0 0.0
  %4956 = vmatprep.subr.mxu0 0.0
  %4957 = vmatpush1.msra.mxu0 0.0
  %4958 = vmatprep.subr.mxu0 0.0
  %4959 = vmatpush1.msra.mxu0 0.0
  %4960 = vmatprep.subr.mxu0 0.0
  %4961 = vmatpush1.msra.mxu0 0.0
  %4962 = vmatprep.subr.mxu0 0.0
  %4963 = vmatpush1.msra.mxu0 0.0
  %4964 = vmatprep.mubr.f32.mxu0 0.0
  %4965 = vmatmul.mubr.f32.gmra.mrb[0].mxu0 %v4755
  %v4966 = vpop.f32.mrb[0].mxu0
  %v4967 = vadd.f32 0.0, %v4966
  %v4968 = vpop.f32.mrb[0].mxu0
  %4969 = vdwg.mxu0
  %v4971 = vsel %vm168, %v4899, 0
  %4973 = vmatprep.subr.mxu0 0.0
  %4974 = vmatpush1.msra.mxu0 %v82
  %4975 = vmatprep.subr.mxu0 0.0
  %4976 = vmatpush1.msra.mxu0 %v83
  %4977 = vmatprep.subr.mxu0 0.0
  %4978 = vmatpush1.msra.mxu0 %v84
  %4979 = vmatprep.subr.mxu0 0.0
  %4980 = vmatpush1.msra.mxu0 %v85
  %4981 = vmatprep.subr.mxu0 0.0
  %4982 = vmatpush1.msra.mxu0 0.0
  %4983 = vmatprep.subr.mxu0 0.0
  %4984 = vmatpush1.msra.mxu0 0.0
  %4985 = vmatprep.subr.mxu0 0.0
  %4986 = vmatpush1.msra.mxu0 0.0
  %4987 = vmatprep.subr.mxu0 0.0
  %4988 = vmatpush1.msra.mxu0 0.0
  %4989 = vmatprep.subr.mxu0 0.0
  %4990 = vmatpush1.msra.mxu0 0.0
  %4991 = vmatprep.subr.mxu0 0.0
  %4992 = vmatpush1.msra.mxu0 0.0
  %4993 = vmatprep.subr.mxu0 0.0
  %4994 = vmatpush1.msra.mxu0 0.0
  %4995 = vmatprep.subr.mxu0 0.0
  %4996 = vmatpush1.msra.mxu0 0.0
  %4997 = vmatprep.subr.mxu0 0.0
  %4998 = vmatpush1.msra.mxu0 0.0
  %4999 = vmatprep.subr.mxu0 0.0
  %5000 = vmatpush1.msra.mxu0 0.0
  %5001 = vmatprep.subr.mxu0 0.0
  %5002 = vmatpush1.msra.mxu0 0.0
  %5003 = vmatprep.subr.mxu0 0.0
  %5004 = vmatpush1.msra.mxu0 0.0
  %5005 = vmatprep.subr.mxu0 0.0
  %5006 = vmatpush1.msra.mxu0 0.0
  %5007 = vmatprep.subr.mxu0 0.0
  %5008 = vmatpush1.msra.mxu0 0.0
  %5009 = vmatprep.subr.mxu0 0.0
  %5010 = vmatpush1.msra.mxu0 0.0
  %5011 = vmatprep.subr.mxu0 0.0
  %5012 = vmatpush1.msra.mxu0 0.0
  %5013 = vmatprep.subr.mxu0 0.0
  %5014 = vmatpush1.msra.mxu0 0.0
  %5015 = vmatprep.subr.mxu0 0.0
  %5016 = vmatpush1.msra.mxu0 0.0
  %5017 = vmatprep.subr.mxu0 0.0
  %5018 = vmatpush1.msra.mxu0 0.0
  %5019 = vmatprep.subr.mxu0 0.0
  %5020 = vmatpush1.msra.mxu0 0.0
  %5021 = vmatprep.subr.mxu0 0.0
  %5022 = vmatpush1.msra.mxu0 0.0
  %5023 = vmatprep.subr.mxu0 0.0
  %5024 = vmatpush1.msra.mxu0 0.0
  %5025 = vmatprep.subr.mxu0 0.0
  %5026 = vmatpush1.msra.mxu0 0.0
  %5027 = vmatprep.subr.mxu0 0.0
  %5028 = vmatpush1.msra.mxu0 0.0
  %5029 = vmatprep.subr.mxu0 0.0
  %5030 = vmatpush1.msra.mxu0 0.0
  %5031 = vmatprep.subr.mxu0 0.0
  %5032 = vmatpush1.msra.mxu0 0.0
  %5033 = vmatprep.subr.mxu0 0.0
  %5034 = vmatpush1.msra.mxu0 0.0
  %5035 = vmatprep.subr.mxu0 0.0
  %5036 = vmatpush1.msra.mxu0 0.0
  %5037 = vmatprep.mubr.f32.mxu0 0.0
  %5038 = vmatmul.mubr.f32.gmra.mrb[0].mxu0 %v4971
  %v5039 = vpop.f32.mrb[0].mxu0
  %v5040 = vadd.f32 %v4967, %v5039
  %v5041 = vpop.f32.mrb[0].mxu0
  %5042 = vdwg.mxu0
  %5043 = vmatprep.subr.mxu0 0.0
  %5044 = vmatpush1.msra.mxu0 %v242
  %5045 = vmatprep.subr.mxu0 0.0
  %5046 = vmatpush1.msra.mxu0 %v243
  %5047 = vmatprep.subr.mxu0 0.0
  %5048 = vmatpush1.msra.mxu0 %v244
  %5049 = vmatprep.subr.mxu0 0.0
  %5050 = vmatpush1.msra.mxu0 %v245
  %5051 = vmatprep.subr.mxu0 0.0
  %5052 = vmatpush1.msra.mxu0 0.0
  %5053 = vmatprep.subr.mxu0 0.0
  %5054 = vmatpush1.msra.mxu0 0.0
  %5055 = vmatprep.subr.mxu0 0.0
  %5056 = vmatpush1.msra.mxu0 0.0
  %5057 = vmatprep.subr.mxu0 0.0
  %5058 = vmatpush1.msra.mxu0 0.0
  %5059 = vmatprep.subr.mxu0 0.0
  %5060 = vmatpush1.msra.mxu0 0.0
  %5061 = vmatprep.subr.mxu0 0.0
  %5062 = vmatpush1.msra.mxu0 0.0
  %5063 = vmatprep.subr.mxu0 0.0
  %5064 = vmatpush1.msra.mxu0 0.0
  %5065 = vmatprep.subr.mxu0 0.0
  %5066 = vmatpush1.msra.mxu0 0.0
  %5067 = vmatprep.subr.mxu0 0.0
  %5068 = vmatpush1.msra.mxu0 0.0
  %5069 = vmatprep.subr.mxu0 0.0
  %5070 = vmatpush1.msra.mxu0 0.0
  %5071 = vmatprep.subr.mxu0 0.0
  %5072 = vmatpush1.msra.mxu0 0.0
  %5073 = vmatprep.subr.mxu0 0.0
  %5074 = vmatpush1.msra.mxu0 0.0
  %5075 = vmatprep.subr.mxu0 0.0
  %5076 = vmatpush1.msra.mxu0 0.0
  %5077 = vmatprep.subr.mxu0 0.0
  %5078 = vmatpush1.msra.mxu0 0.0
  %5079 = vmatprep.subr.mxu0 0.0
  %5080 = vmatpush1.msra.mxu0 0.0
  %5081 = vmatprep.subr.mxu0 0.0
  %5082 = vmatpush1.msra.mxu0 0.0
  %5083 = vmatprep.subr.mxu0 0.0
  %5084 = vmatpush1.msra.mxu0 0.0
  %5085 = vmatprep.subr.mxu0 0.0
  %5086 = vmatpush1.msra.mxu0 0.0
  %5087 = vmatprep.subr.mxu0 0.0
  %5088 = vmatpush1.msra.mxu0 0.0
  %5089 = vmatprep.subr.mxu0 0.0
  %5090 = vmatpush1.msra.mxu0 0.0
  %5091 = vmatprep.subr.mxu0 0.0
  %5092 = vmatpush1.msra.mxu0 0.0
  %5093 = vmatprep.subr.mxu0 0.0
  %5094 = vmatpush1.msra.mxu0 0.0
  %5095 = vmatprep.subr.mxu0 0.0
  %5096 = vmatpush1.msra.mxu0 0.0
  %5097 = vmatprep.subr.mxu0 0.0
  %5098 = vmatpush1.msra.mxu0 0.0
  %5099 = vmatprep.subr.mxu0 0.0
  %5100 = vmatpush1.msra.mxu0 0.0
  %5101 = vmatprep.subr.mxu0 0.0
  %5102 = vmatpush1.msra.mxu0 0.0
  %5103 = vmatprep.subr.mxu0 0.0
  %5104 = vmatpush1.msra.mxu0 0.0
  %5105 = vmatprep.subr.mxu0 0.0
  %5106 = vmatpush1.msra.mxu0 0.0
  %5107 = vmatprep.mubr.f32.mxu0 0.0
  %5108 = vmatmul.mubr.f32.gmra.mrb[0].mxu0 %v4350
  %v5109 = vpop.f32.mrb[0].mxu0
  %v5110 = vadd.f32 0.0, %v5109
  %v5111 = vpop.f32.mrb[0].mxu0
  %5112 = vdwg.mxu0
  %v5113 = vadd.f32 %v5040, %v5110
  %v5114 = vadd.f32 %v5113, %v324
  %v5115 = vxor.u32 %v5114, 2147483648
  %v5116 = vmul.f32 %v5115, 1.442695
  %v5117 = vpow.pop %v5116
  %v5118 = vadd.f32 %v5117, 1.0
  %v5119 = vrcp.pop %v5118
  %v5120 = vmul.f32 1.0, %v5119
  %v5121 = vtanh.pop %v5114
  %v5122 = vmul.f32 %v5120, %v4340
  %5124 = vrot.lane.b32.xlu0 %v5121, 64
  %v5125 = vpop.permute.xlu0 %5124
  %v5127 = vmul.f32 %v5120, %v5125
  %5129 = vrot.lane.b32.xlu0 %v5127, 32
  %v5130 = vpop.permute.xlu0 %5129
  %v5132 = vadd.f32 %v5122, %v5130
  %v5133 = vtanh.pop %v5132
  %5135 = vrot.lane.b32.xlu0 %v5133, 64
  %v5136 = vpop.permute.xlu0 %5135
  %v5138 = vmul.f32 %v5120, %v5136
  %5140 = vrot.lane.b32.xlu0 %v5138, 32
  %v5141 = vpop.permute.xlu0 %5140
  %v5142 = vsel %vm168, %v5141, 0
  %5144 = vmatprep.subr.mxu0 0.0
  %5145 = vmatpush1.msra.mxu0 %v355
  %5146 = vmatprep.subr.mxu0 0.0
  %5147 = vmatpush1.msra.mxu0 %v356
  %5148 = vmatprep.subr.mxu0 0.0
  %5149 = vmatpush1.msra.mxu0 %v357
  %5150 = vmatprep.subr.mxu0 0.0
  %5151 = vmatpush1.msra.mxu0 %v358
  %5152 = vmatprep.subr.mxu0 0.0
  %5153 = vmatpush1.msra.mxu0 0.0
  %5154 = vmatprep.subr.mxu0 0.0
  %5155 = vmatpush1.msra.mxu0 0.0
  %5156 = vmatprep.subr.mxu0 0.0
  %5157 = vmatpush1.msra.mxu0 0.0
  %5158 = vmatprep.subr.mxu0 0.0
  %5159 = vmatpush1.msra.mxu0 0.0
  %5160 = vmatprep.subr.mxu0 0.0
  %5161 = vmatpush1.msra.mxu0 0.0
  %5162 = vmatprep.subr.mxu0 0.0
  %5163 = vmatpush1.msra.mxu0 0.0
  %5164 = vmatprep.subr.mxu0 0.0
  %5165 = vmatpush1.msra.mxu0 0.0
  %5166 = vmatprep.subr.mxu0 0.0
  %5167 = vmatpush1.msra.mxu0 0.0
  %5168 = vmatprep.subr.mxu0 0.0
  %5169 = vmatpush1.msra.mxu0 0.0
  %5170 = vmatprep.subr.mxu0 0.0
  %5171 = vmatpush1.msra.mxu0 0.0
  %5172 = vmatprep.subr.mxu0 0.0
  %5173 = vmatpush1.msra.mxu0 0.0
  %5174 = vmatprep.subr.mxu0 0.0
  %5175 = vmatpush1.msra.mxu0 0.0
  %5176 = vmatprep.subr.mxu0 0.0
  %5177 = vmatpush1.msra.mxu0 0.0
  %5178 = vmatprep.subr.mxu0 0.0
  %5179 = vmatpush1.msra.mxu0 0.0
  %5180 = vmatprep.subr.mxu0 0.0
  %5181 = vmatpush1.msra.mxu0 0.0
  %5182 = vmatprep.subr.mxu0 0.0
  %5183 = vmatpush1.msra.mxu0 0.0
  %5184 = vmatprep.subr.mxu0 0.0
  %5185 = vmatpush1.msra.mxu0 0.0
  %5186 = vmatprep.subr.mxu0 0.0
  %5187 = vmatpush1.msra.mxu0 0.0
  %5188 = vmatprep.subr.mxu0 0.0
  %5189 = vmatpush1.msra.mxu0 0.0
  %5190 = vmatprep.subr.mxu0 0.0
  %5191 = vmatpush1.msra.mxu0 0.0
  %5192 = vmatprep.subr.mxu0 0.0
  %5193 = vmatpush1.msra.mxu0 0.0
  %5194 = vmatprep.subr.mxu0 0.0
  %5195 = vmatpush1.msra.mxu0 0.0
  %5196 = vmatprep.subr.mxu0 0.0
  %5197 = vmatpush1.msra.mxu0 0.0
  %5198 = vmatprep.subr.mxu0 0.0
  %5199 = vmatpush1.msra.mxu0 0.0
  %5200 = vmatprep.subr.mxu0 0.0
  %5201 = vmatpush1.msra.mxu0 0.0
  %5202 = vmatprep.subr.mxu0 0.0
  %5203 = vmatpush1.msra.mxu0 0.0
  %5204 = vmatprep.subr.mxu0 0.0
  %5205 = vmatpush1.msra.mxu0 0.0
  %5206 = vmatprep.subr.mxu0 0.0
  %5207 = vmatpush1.msra.mxu0 0.0
  %5208 = vmatprep.mubr.f32.mxu0 0.0
  %5209 = vmatmul.mubr.f32.gmra.mrb[0].mxu0 %v5142
  %v5210 = vpop.f32.mrb[0].mxu0
  %v5211 = vadd.f32 0.0, %v5210
  %v5212 = vpop.f32.mrb[0].mxu0
  %5213 = vdwg.mxu0
  %v5215 = vcombine.high %v5211, %v5211
  %v5217 = vunpack.c.l.s4 1966171168
  %v5218 = vunpack.c.0.s8 %v5217
  %v5219 = vlaneseq
  %v5220 = vshrl.u32 %v5219, 7
  %v5221 = vsub.s32 %v5218, %v5220
  %v5222 = vrot.slane %v5211, %v5221
  %v5224 = vunpack.c.l.s4 1966171168
  %v5225 = vunpack.c.0.s8 %v5224
  %v5226 = vlaneseq
  %v5227 = vshrl.u32 %v5226, 7
  %v5228 = vsub.s32 %v5225, %v5227
  %v5229 = vrot.slane %v5215, %v5228
  %v5230 = vcombine.high %v5222, %v5222
  %v5231 = vcombine.high %v5229, %v5229
  %v5233 = vunpack.c.l.s4 1966171168
  %v5234 = vunpack.c.0.s8 %v5233
  %v5235 = vlaneseq
  %v5236 = vshrl.u32 %v5235, 7
  %v5237 = vsub.s32 %v5234, %v5236
  %v5238 = vrot.slane %v5222, %v5237
  %v5240 = vunpack.c.l.s4 1966171168
  %v5241 = vunpack.c.0.s8 %v5240
  %v5242 = vlaneseq
  %v5243 = vshrl.u32 %v5242, 7
  %v5244 = vsub.s32 %v5241, %v5243
  %v5245 = vrot.slane %v5229, %v5244
  %v5247 = vunpack.c.l.s4 1966171168
  %v5248 = vunpack.c.0.s8 %v5247
  %v5249 = vlaneseq
  %v5250 = vshrl.u32 %v5249, 7
  %v5251 = vsub.s32 %v5248, %v5250
  %v5252 = vrot.slane %v5230, %v5251
  %v5254 = vunpack.c.l.s4 1966171168
  %v5255 = vunpack.c.0.s8 %v5254
  %v5256 = vlaneseq
  %v5257 = vshrl.u32 %v5256, 7
  %v5258 = vsub.s32 %v5255, %v5257
  %v5259 = vrot.slane %v5231, %v5258
  %v5260 = vcombine.high %v5238, %v5238
  %v5261 = vcombine.high %v5245, %v5245
  %v5262 = vcombine.high %v5252, %v5252
  %v5263 = vcombine.high %v5259, %v5259
  %v5264 = vlaneseq
  %v5265 = vshrl.u32 %v5264, 7
  %v5266 = vsub.s32 0, %v5265
  %v5267 = vrot.slane %v5238, %v5266
  %v5268 = vlaneseq
  %v5269 = vshrl.u32 %v5268, 7
  %v5270 = vsub.s32 0, %v5269
  %v5271 = vrot.slane %v5252, %v5270
  %v5272 = vlaneseq
  %v5273 = vshrl.u32 %v5272, 7
  %v5274 = vsub.s32 0, %v5273
  %v5275 = vrot.slane %v5260, %v5274
  %v5276 = vlaneseq
  %v5277 = vshrl.u32 %v5276, 7
  %v5278 = vsub.s32 0, %v5277
  %v5279 = vrot.slane %v5262, %v5278
  %v5280 = vlaneseq
  %v5281 = vshrl.u32 %v5280, 7
  %v5282 = vsub.s32 0, %v5281
  %v5283 = vrot.slane %v5245, %v5282
  %v5284 = vlaneseq
  %v5285 = vshrl.u32 %v5284, 7
  %v5286 = vsub.s32 0, %v5285
  %v5287 = vrot.slane %v5259, %v5286
  %v5288 = vlaneseq
  %v5289 = vshrl.u32 %v5288, 7
  %v5290 = vsub.s32 0, %v5289
  %v5291 = vrot.slane %v5261, %v5290
  %v5292 = vlaneseq
  %v5293 = vshrl.u32 %v5292, 7
  %v5294 = vsub.s32 0, %v5293
  %v5295 = vrot.slane %v5263, %v5294
  %v5304 = vadd.f32 %v66, %v5267
  %v5305 = vadd.f32 %v67, %v5271
  %v5306 = vadd.f32 %v68, %v5275
  %v5307 = vadd.f32 %v69, %v5279
  %v5308 = vadd.f32 %v70, %v5283
  %v5309 = vadd.f32 %v71, %v5287
  %v5310 = vadd.f32 %v72, %v5291
  %v5311 = vadd.f32 %v73, %v5295
  %v5312 = vtanh.pop %v5304
  %v5313 = vtanh.pop %v5305
  %v5314 = vtanh.pop %v5306
  %v5315 = vtanh.pop %v5307
  %v5316 = vtanh.pop %v5308
  %v5317 = vtanh.pop %v5309
  %v5318 = vtanh.pop %v5310
  %v5319 = vtanh.pop %v5311
  %v5320 = vmul.f32 %v5312, %v544
  %v5321 = vmul.f32 %v5313, %v544
  %v5322 = vmul.f32 %v5314, %v544
  %v5323 = vmul.f32 %v5315, %v544
  %v5324 = vmul.f32 %v5316, %v544
  %v5325 = vmul.f32 %v5317, %v544
  %v5326 = vmul.f32 %v5318, %v544
  %v5327 = vmul.f32 %v5319, %v544
  %v5328 = vsel %vm168, %v5320, 0.0
  %5329 = vadd.xlane.f32.xlu0 %v5328
  %v5330 = vpop.xlane.xlu0 %5329
  %v5331 = vsel %vm168, %v5321, 0.0
  %5332 = vadd.xlane.f32.xlu0 %v5331
  %v5333 = vpop.xlane.xlu0 %5332
  %v5334 = vsel %vm168, %v5322, 0.0
  %5335 = vadd.xlane.f32.xlu0 %v5334
  %v5336 = vpop.xlane.xlu0 %5335
  %v5337 = vsel %vm168, %v5323, 0.0
  %5338 = vadd.xlane.f32.xlu0 %v5337
  %v5339 = vpop.xlane.xlu0 %5338
  %v5340 = vsel %vm168, %v5324, 0.0
  %5341 = vadd.xlane.f32.xlu0 %v5340
  %v5342 = vpop.xlane.xlu0 %5341
  %v5343 = vsel %vm168, %v5325, 0.0
  %5344 = vadd.xlane.f32.xlu0 %v5343
  %v5345 = vpop.xlane.xlu0 %5344
  %v5346 = vsel %vm168, %v5326, 0.0
  %5347 = vadd.xlane.f32.xlu0 %v5346
  %v5348 = vpop.xlane.xlu0 %5347
  %v5349 = vsel %vm168, %v5327, 0.0
  %5350 = vadd.xlane.f32.xlu0 %v5349
  %v5351 = vpop.xlane.xlu0 %5350
  %v5360 = vlaneseq
  %v5361 = vshrl.u32 %v5360, 7
  %v5362 = vsub.s32 %v587, %v5361
  %v5363 = vrot.slane %v5330, %v5362
  %v5364 = vlaneseq
  %v5365 = vshrl.u32 %v5364, 7
  %v5366 = vsub.s32 %v587, %v5365
  %v5367 = vrot.slane %v5333, %v5366
  %v5368 = vlaneseq
  %v5369 = vshrl.u32 %v5368, 7
  %v5370 = vsub.s32 %v587, %v5369
  %v5371 = vrot.slane %v5336, %v5370
  %v5372 = vlaneseq
  %v5373 = vshrl.u32 %v5372, 7
  %v5374 = vsub.s32 %v587, %v5373
  %v5375 = vrot.slane %v5339, %v5374
  %v5376 = vlaneseq
  %v5377 = vshrl.u32 %v5376, 7
  %v5378 = vsub.s32 %v587, %v5377
  %v5379 = vrot.slane %v5342, %v5378
  %v5380 = vlaneseq
  %v5381 = vshrl.u32 %v5380, 7
  %v5382 = vsub.s32 %v587, %v5381
  %v5383 = vrot.slane %v5345, %v5382
  %v5384 = vlaneseq
  %v5385 = vshrl.u32 %v5384, 7
  %v5386 = vsub.s32 %v587, %v5385
  %v5387 = vrot.slane %v5348, %v5386
  %v5388 = vlaneseq
  %v5389 = vshrl.u32 %v5388, 7
  %v5390 = vsub.s32 %v587, %v5389
  %v5391 = vrot.slane %v5351, %v5390
  %v5392 = vsel %vm620, %v5367, %v5363
  %v5393 = vsel %vm622, %v5371, %v5392
  %v5394 = vsel %vm624, %v5375, %v5393
  %v5395 = vsel %vm626, %v5379, %v5394
  %v5396 = vsel %vm628, %v5383, %v5395
  %v5397 = vsel %vm630, %v5387, %v5396
  %v5398 = vsel %vm632, %v5391, %v5397
  %v5400 = vsel %vm75, -1e+09, %v5398
  %v5401 = vsel %vm636, %v5400, -inf
  %5402 = vmax.xlane.f32.xlu0 %v5401
  %v5403 = vpop.xlane.xlu0 %5402
  %v5404 = vsub.f32 %v5400, %v5403
  %v5405 = vmul.f32 %v5404, 1.442695
  %v5406 = vpow.pop %v5405
  %v5407 = vsel %vm636, %v5406, 0.0
  %5408 = vadd.xlane.f32.xlu0 %v5407
  %v5409 = vpop.xlane.xlu0 %5408
  %v5410 = vrcp.pop %v5409
  %v5411 = vmul.f32 %v5406, %v5410
  %v5412 = vlaneseq
  %v5413 = vshrl.u32 %v5412, 7
  %v5414 = vsub.s32 0, %v5413
  %v5415 = vrot.slane %v5411, %v5414
  %5417 = vbcast.lane.b32.xlu0 %v5415, 256
  %v5418 = vpop.permute.xlu0 %5417
  %v5419 = vlaneseq
  %v5420 = vshrl.u32 %v5419, 7
  %v5421 = vsub.s32 1, %v5420
  %v5422 = vrot.slane %v5411, %v5421
  %5424 = vbcast.lane.b32.xlu0 %v5422, 256
  %v5425 = vpop.permute.xlu0 %5424
  %v5426 = vlaneseq
  %v5427 = vshrl.u32 %v5426, 7
  %v5428 = vsub.s32 2, %v5427
  %v5429 = vrot.slane %v5411, %v5428
  %5431 = vbcast.lane.b32.xlu0 %v5429, 256
  %v5432 = vpop.permute.xlu0 %5431
  %v5433 = vlaneseq
  %v5434 = vshrl.u32 %v5433, 7
  %v5435 = vsub.s32 3, %v5434
  %v5436 = vrot.slane %v5411, %v5435
  %5438 = vbcast.lane.b32.xlu0 %v5436, 256
  %v5439 = vpop.permute.xlu0 %5438
  %v5440 = vlaneseq
  %v5441 = vshrl.u32 %v5440, 7
  %v5442 = vsub.s32 4, %v5441
  %v5443 = vrot.slane %v5411, %v5442
  %5445 = vbcast.lane.b32.xlu0 %v5443, 256
  %v5446 = vpop.permute.xlu0 %5445
  %v5447 = vlaneseq
  %v5448 = vshrl.u32 %v5447, 7
  %v5449 = vsub.s32 5, %v5448
  %v5450 = vrot.slane %v5411, %v5449
  %5452 = vbcast.lane.b32.xlu0 %v5450, 256
  %v5453 = vpop.permute.xlu0 %5452
  %v5454 = vlaneseq
  %v5455 = vshrl.u32 %v5454, 7
  %v5456 = vsub.s32 6, %v5455
  %v5457 = vrot.slane %v5411, %v5456
  %5459 = vbcast.lane.b32.xlu0 %v5457, 256
  %v5460 = vpop.permute.xlu0 %5459
  %v5461 = vlaneseq
  %v5462 = vshrl.u32 %v5461, 7
  %v5463 = vsub.s32 7, %v5462
  %v5464 = vrot.slane %v5411, %v5463
  %5466 = vbcast.lane.b32.xlu0 %v5464, 256
  %v5467 = vpop.permute.xlu0 %5466
  %v5468 = vmul.f32 %v5418, %v58
  %v5469 = vmul.f32 %v5425, %v59
  %v5470 = vmul.f32 %v5432, %v60
  %v5471 = vmul.f32 %v5439, %v61
  %v5472 = vmul.f32 %v5446, %v62
  %v5473 = vmul.f32 %v5453, %v63
  %v5474 = vmul.f32 %v5460, %v64
  %v5475 = vmul.f32 %v5467, %v65
  %v5476 = vsel %vm94, %v5468, 0.0
  %v5477 = vrot.slane %v5476, 4
  %v5478 = vadd.f32 %v5476, %v5477
  %v5479 = vrot.slane %v5478, 2
  %v5480 = vadd.f32 %v5478, %v5479
  %v5481 = vrot.slane %v5480, 1
  %v5482 = vadd.f32 %v5480, %v5481
  %v5483 = vsel %vm94, %v5469, 0.0
  %v5484 = vrot.slane %v5483, 4
  %v5485 = vadd.f32 %v5483, %v5484
  %v5486 = vrot.slane %v5485, 2
  %v5487 = vadd.f32 %v5485, %v5486
  %v5488 = vrot.slane %v5487, 1
  %v5489 = vadd.f32 %v5487, %v5488
  %v5490 = vsel %vm94, %v5470, 0.0
  %v5491 = vrot.slane %v5490, 4
  %v5492 = vadd.f32 %v5490, %v5491
  %v5493 = vrot.slane %v5492, 2
  %v5494 = vadd.f32 %v5492, %v5493
  %v5495 = vrot.slane %v5494, 1
  %v5496 = vadd.f32 %v5494, %v5495
  %v5497 = vsel %vm94, %v5471, 0.0
  %v5498 = vrot.slane %v5497, 4
  %v5499 = vadd.f32 %v5497, %v5498
  %v5500 = vrot.slane %v5499, 2
  %v5501 = vadd.f32 %v5499, %v5500
  %v5502 = vrot.slane %v5501, 1
  %v5503 = vadd.f32 %v5501, %v5502
  %v5504 = vsel %vm94, %v5472, 0.0
  %v5505 = vrot.slane %v5504, 4
  %v5506 = vadd.f32 %v5504, %v5505
  %v5507 = vrot.slane %v5506, 2
  %v5508 = vadd.f32 %v5506, %v5507
  %v5509 = vrot.slane %v5508, 1
  %v5510 = vadd.f32 %v5508, %v5509
  %v5511 = vsel %vm94, %v5473, 0.0
  %v5512 = vrot.slane %v5511, 4
  %v5513 = vadd.f32 %v5511, %v5512
  %v5514 = vrot.slane %v5513, 2
  %v5515 = vadd.f32 %v5513, %v5514
  %v5516 = vrot.slane %v5515, 1
  %v5517 = vadd.f32 %v5515, %v5516
  %v5518 = vsel %vm94, %v5474, 0.0
  %v5519 = vrot.slane %v5518, 4
  %v5520 = vadd.f32 %v5518, %v5519
  %v5521 = vrot.slane %v5520, 2
  %v5522 = vadd.f32 %v5520, %v5521
  %v5523 = vrot.slane %v5522, 1
  %v5524 = vadd.f32 %v5522, %v5523
  %v5525 = vsel %vm94, %v5475, 0.0
  %v5526 = vrot.slane %v5525, 4
  %v5527 = vadd.f32 %v5525, %v5526
  %v5528 = vrot.slane %v5527, 2
  %v5529 = vadd.f32 %v5527, %v5528
  %v5530 = vrot.slane %v5529, 1
  %v5531 = vadd.f32 %v5529, %v5530
  %v5540 = vsel %vm620, %v5489, %v5482
  %v5541 = vsel %vm622, %v5496, %v5540
  %v5542 = vsel %vm624, %v5503, %v5541
  %v5543 = vsel %vm626, %v5510, %v5542
  %v5544 = vsel %vm628, %v5517, %v5543
  %v5545 = vsel %vm630, %v5524, %v5544
  %v5546 = vsel %vm632, %v5531, %v5545
  %v5547 = vsel %vm94, %v5546, 0
  %5549 = vmatprep.subr.mxu0 0.0
  %5550 = vmatpush1.msra.mxu0 %v772
  %5551 = vmatprep.subr.mxu0 0.0
  %5552 = vmatpush1.msra.mxu0 %v773
  %5553 = vmatprep.subr.mxu0 0.0
  %5554 = vmatpush1.msra.mxu0 %v774
  %5555 = vmatprep.subr.mxu0 0.0
  %5556 = vmatpush1.msra.mxu0 %v775
  %5557 = vmatprep.subr.mxu0 0.0
  %5558 = vmatpush1.msra.mxu0 %v776
  %5559 = vmatprep.subr.mxu0 0.0
  %5560 = vmatpush1.msra.mxu0 %v777
  %5561 = vmatprep.subr.mxu0 0.0
  %5562 = vmatpush1.msra.mxu0 %v778
  %5563 = vmatprep.subr.mxu0 0.0
  %5564 = vmatpush1.msra.mxu0 %v779
  %5565 = vmatprep.subr.mxu0 0.0
  %5566 = vmatpush1.msra.mxu0 0.0
  %5567 = vmatprep.subr.mxu0 0.0
  %5568 = vmatpush1.msra.mxu0 0.0
  %5569 = vmatprep.subr.mxu0 0.0
  %5570 = vmatpush1.msra.mxu0 0.0
  %5571 = vmatprep.subr.mxu0 0.0
  %5572 = vmatpush1.msra.mxu0 0.0
  %5573 = vmatprep.subr.mxu0 0.0
  %5574 = vmatpush1.msra.mxu0 0.0
  %5575 = vmatprep.subr.mxu0 0.0
  %5576 = vmatpush1.msra.mxu0 0.0
  %5577 = vmatprep.subr.mxu0 0.0
  %5578 = vmatpush1.msra.mxu0 0.0
  %5579 = vmatprep.subr.mxu0 0.0
  %5580 = vmatpush1.msra.mxu0 0.0
  %5581 = vmatprep.subr.mxu0 0.0
  %5582 = vmatpush1.msra.mxu0 0.0
  %5583 = vmatprep.subr.mxu0 0.0
  %5584 = vmatpush1.msra.mxu0 0.0
  %5585 = vmatprep.subr.mxu0 0.0
  %5586 = vmatpush1.msra.mxu0 0.0
  %5587 = vmatprep.subr.mxu0 0.0
  %5588 = vmatpush1.msra.mxu0 0.0
  %5589 = vmatprep.subr.mxu0 0.0
  %5590 = vmatpush1.msra.mxu0 0.0
  %5591 = vmatprep.subr.mxu0 0.0
  %5592 = vmatpush1.msra.mxu0 0.0
  %5593 = vmatprep.subr.mxu0 0.0
  %5594 = vmatpush1.msra.mxu0 0.0
  %5595 = vmatprep.subr.mxu0 0.0
  %5596 = vmatpush1.msra.mxu0 0.0
  %5597 = vmatprep.subr.mxu0 0.0
  %5598 = vmatpush1.msra.mxu0 0.0
  %5599 = vmatprep.subr.mxu0 0.0
  %5600 = vmatpush1.msra.mxu0 0.0
  %5601 = vmatprep.subr.mxu0 0.0
  %5602 = vmatpush1.msra.mxu0 0.0
  %5603 = vmatprep.subr.mxu0 0.0
  %5604 = vmatpush1.msra.mxu0 0.0
  %5605 = vmatprep.subr.mxu0 0.0
  %5606 = vmatpush1.msra.mxu0 0.0
  %5607 = vmatprep.subr.mxu0 0.0
  %5608 = vmatpush1.msra.mxu0 0.0
  %5609 = vmatprep.subr.mxu0 0.0
  %5610 = vmatpush1.msra.mxu0 0.0
  %5611 = vmatprep.subr.mxu0 0.0
  %5612 = vmatpush1.msra.mxu0 0.0
  %5613 = vmatprep.mubr.f32.mxu0 0.0
  %5614 = vmatmul.mubr.f32.gmra.mrb[0].mxu0 %v5547
  %v5615 = vpop.f32.mrb[0].mxu0
  %v5616 = vadd.f32 0.0, %v5615
  %v5617 = vpop.f32.mrb[0].mxu0
  %5618 = vdwg.mxu0
  %5619 = vmatprep.subr.mxu0 0.0
  %5620 = vmatpush1.msra.mxu0 %v768
  %5621 = vmatprep.subr.mxu0 0.0
  %5622 = vmatpush1.msra.mxu0 %v769
  %5623 = vmatprep.subr.mxu0 0.0
  %5624 = vmatpush1.msra.mxu0 %v770
  %5625 = vmatprep.subr.mxu0 0.0
  %5626 = vmatpush1.msra.mxu0 %v771
  %5627 = vmatprep.subr.mxu0 0.0
  %5628 = vmatpush1.msra.mxu0 0.0
  %5629 = vmatprep.subr.mxu0 0.0
  %5630 = vmatpush1.msra.mxu0 0.0
  %5631 = vmatprep.subr.mxu0 0.0
  %5632 = vmatpush1.msra.mxu0 0.0
  %5633 = vmatprep.subr.mxu0 0.0
  %5634 = vmatpush1.msra.mxu0 0.0
  %5635 = vmatprep.subr.mxu0 0.0
  %5636 = vmatpush1.msra.mxu0 0.0
  %5637 = vmatprep.subr.mxu0 0.0
  %5638 = vmatpush1.msra.mxu0 0.0
  %5639 = vmatprep.subr.mxu0 0.0
  %5640 = vmatpush1.msra.mxu0 0.0
  %5641 = vmatprep.subr.mxu0 0.0
  %5642 = vmatpush1.msra.mxu0 0.0
  %5643 = vmatprep.subr.mxu0 0.0
  %5644 = vmatpush1.msra.mxu0 0.0
  %5645 = vmatprep.subr.mxu0 0.0
  %5646 = vmatpush1.msra.mxu0 0.0
  %5647 = vmatprep.subr.mxu0 0.0
  %5648 = vmatpush1.msra.mxu0 0.0
  %5649 = vmatprep.subr.mxu0 0.0
  %5650 = vmatpush1.msra.mxu0 0.0
  %5651 = vmatprep.subr.mxu0 0.0
  %5652 = vmatpush1.msra.mxu0 0.0
  %5653 = vmatprep.subr.mxu0 0.0
  %5654 = vmatpush1.msra.mxu0 0.0
  %5655 = vmatprep.subr.mxu0 0.0
  %5656 = vmatpush1.msra.mxu0 0.0
  %5657 = vmatprep.subr.mxu0 0.0
  %5658 = vmatpush1.msra.mxu0 0.0
  %5659 = vmatprep.subr.mxu0 0.0
  %5660 = vmatpush1.msra.mxu0 0.0
  %5661 = vmatprep.subr.mxu0 0.0
  %5662 = vmatpush1.msra.mxu0 0.0
  %5663 = vmatprep.subr.mxu0 0.0
  %5664 = vmatpush1.msra.mxu0 0.0
  %5665 = vmatprep.subr.mxu0 0.0
  %5666 = vmatpush1.msra.mxu0 0.0
  %5667 = vmatprep.subr.mxu0 0.0
  %5668 = vmatpush1.msra.mxu0 0.0
  %5669 = vmatprep.subr.mxu0 0.0
  %5670 = vmatpush1.msra.mxu0 0.0
  %5671 = vmatprep.subr.mxu0 0.0
  %5672 = vmatpush1.msra.mxu0 0.0
  %5673 = vmatprep.subr.mxu0 0.0
  %5674 = vmatpush1.msra.mxu0 0.0
  %5675 = vmatprep.subr.mxu0 0.0
  %5676 = vmatpush1.msra.mxu0 0.0
  %5677 = vmatprep.subr.mxu0 0.0
  %5678 = vmatpush1.msra.mxu0 0.0
  %5679 = vmatprep.subr.mxu0 0.0
  %5680 = vmatpush1.msra.mxu0 0.0
  %5681 = vmatprep.subr.mxu0 0.0
  %5682 = vmatpush1.msra.mxu0 0.0
  %5683 = vmatprep.mubr.f32.mxu0 0.0
  %5684 = vmatmul.mubr.f32.gmra.mrb[0].mxu0 %v5142
  %v5685 = vpop.f32.mrb[0].mxu0
  %v5686 = vadd.f32 %v5616, %v5685
  %v5687 = vpop.f32.mrb[0].mxu0
  %5688 = vdwg.mxu0
  %v5689 = vtanh.pop %v5686
  %s5690 = scalar_lea.vmem %s0, 56
  %v5691 = vld [vmem:[%s5690] sm:$0xff]
  %5692 = vmatprep.subr.mxu0 0.0
  %5693 = vmatpush1.msra.mxu0 %v86
  %5694 = vmatprep.subr.mxu0 0.0
  %5695 = vmatpush1.msra.mxu0 %v87
  %5696 = vmatprep.subr.mxu0 0.0
  %5697 = vmatpush1.msra.mxu0 %v88
  %5698 = vmatprep.subr.mxu0 0.0
  %5699 = vmatpush1.msra.mxu0 %v89
  %5700 = vmatprep.subr.mxu0 0.0
  %5701 = vmatpush1.msra.mxu0 %v90
  %5702 = vmatprep.subr.mxu0 0.0
  %5703 = vmatpush1.msra.mxu0 %v91
  %5704 = vmatprep.subr.mxu0 0.0
  %5705 = vmatpush1.msra.mxu0 %v92
  %5706 = vmatprep.subr.mxu0 0.0
  %5707 = vmatpush1.msra.mxu0 %v93
  %5708 = vmatprep.subr.mxu0 0.0
  %5709 = vmatpush1.msra.mxu0 0.0
  %5710 = vmatprep.subr.mxu0 0.0
  %5711 = vmatpush1.msra.mxu0 0.0
  %5712 = vmatprep.subr.mxu0 0.0
  %5713 = vmatpush1.msra.mxu0 0.0
  %5714 = vmatprep.subr.mxu0 0.0
  %5715 = vmatpush1.msra.mxu0 0.0
  %5716 = vmatprep.subr.mxu0 0.0
  %5717 = vmatpush1.msra.mxu0 0.0
  %5718 = vmatprep.subr.mxu0 0.0
  %5719 = vmatpush1.msra.mxu0 0.0
  %5720 = vmatprep.subr.mxu0 0.0
  %5721 = vmatpush1.msra.mxu0 0.0
  %5722 = vmatprep.subr.mxu0 0.0
  %5723 = vmatpush1.msra.mxu0 0.0
  %5724 = vmatprep.subr.mxu0 0.0
  %5725 = vmatpush1.msra.mxu0 0.0
  %5726 = vmatprep.subr.mxu0 0.0
  %5727 = vmatpush1.msra.mxu0 0.0
  %5728 = vmatprep.subr.mxu0 0.0
  %5729 = vmatpush1.msra.mxu0 0.0
  %5730 = vmatprep.subr.mxu0 0.0
  %5731 = vmatpush1.msra.mxu0 0.0
  %5732 = vmatprep.subr.mxu0 0.0
  %5733 = vmatpush1.msra.mxu0 0.0
  %5734 = vmatprep.subr.mxu0 0.0
  %5735 = vmatpush1.msra.mxu0 0.0
  %5736 = vmatprep.subr.mxu0 0.0
  %5737 = vmatpush1.msra.mxu0 0.0
  %5738 = vmatprep.subr.mxu0 0.0
  %5739 = vmatpush1.msra.mxu0 0.0
  %5740 = vmatprep.subr.mxu0 0.0
  %5741 = vmatpush1.msra.mxu0 0.0
  %5742 = vmatprep.subr.mxu0 0.0
  %5743 = vmatpush1.msra.mxu0 0.0
  %5744 = vmatprep.subr.mxu0 0.0
  %5745 = vmatpush1.msra.mxu0 0.0
  %5746 = vmatprep.subr.mxu0 0.0
  %5747 = vmatpush1.msra.mxu0 0.0
  %5748 = vmatprep.subr.mxu0 0.0
  %5749 = vmatpush1.msra.mxu0 0.0
  %5750 = vmatprep.subr.mxu0 0.0
  %5751 = vmatpush1.msra.mxu0 0.0
  %5752 = vmatprep.subr.mxu0 0.0
  %5753 = vmatpush1.msra.mxu0 0.0
  %5754 = vmatprep.subr.mxu0 0.0
  %5755 = vmatpush1.msra.mxu0 0.0
  %5756 = vmatprep.mubr.f32.mxu0 0.0
  %5757 = vmatmul.mubr.f32.gmra.mrb[0].mxu0 %v5547
  %v5758 = vpop.f32.mrb[0].mxu0
  %v5759 = vadd.f32 0.0, %v5758
  %v5760 = vpop.f32.mrb[0].mxu0
  %5761 = vdwg.mxu0
  %v5763 = vsel %vm168, %v5691, 0
  %5765 = vmatprep.subr.mxu0 0.0
  %5766 = vmatpush1.msra.mxu0 %v82
  %5767 = vmatprep.subr.mxu0 0.0
  %5768 = vmatpush1.msra.mxu0 %v83
  %5769 = vmatprep.subr.mxu0 0.0
  %5770 = vmatpush1.msra.mxu0 %v84
  %5771 = vmatprep.subr.mxu0 0.0
  %5772 = vmatpush1.msra.mxu0 %v85
  %5773 = vmatprep.subr.mxu0 0.0
  %5774 = vmatpush1.msra.mxu0 0.0
  %5775 = vmatprep.subr.mxu0 0.0
  %5776 = vmatpush1.msra.mxu0 0.0
  %5777 = vmatprep.subr.mxu0 0.0
  %5778 = vmatpush1.msra.mxu0 0.0
  %5779 = vmatprep.subr.mxu0 0.0
  %5780 = vmatpush1.msra.mxu0 0.0
  %5781 = vmatprep.subr.mxu0 0.0
  %5782 = vmatpush1.msra.mxu0 0.0
  %5783 = vmatprep.subr.mxu0 0.0
  %5784 = vmatpush1.msra.mxu0 0.0
  %5785 = vmatprep.subr.mxu0 0.0
  %5786 = vmatpush1.msra.mxu0 0.0
  %5787 = vmatprep.subr.mxu0 0.0
  %5788 = vmatpush1.msra.mxu0 0.0
  %5789 = vmatprep.subr.mxu0 0.0
  %5790 = vmatpush1.msra.mxu0 0.0
  %5791 = vmatprep.subr.mxu0 0.0
  %5792 = vmatpush1.msra.mxu0 0.0
  %5793 = vmatprep.subr.mxu0 0.0
  %5794 = vmatpush1.msra.mxu0 0.0
  %5795 = vmatprep.subr.mxu0 0.0
  %5796 = vmatpush1.msra.mxu0 0.0
  %5797 = vmatprep.subr.mxu0 0.0
  %5798 = vmatpush1.msra.mxu0 0.0
  %5799 = vmatprep.subr.mxu0 0.0
  %5800 = vmatpush1.msra.mxu0 0.0
  %5801 = vmatprep.subr.mxu0 0.0
  %5802 = vmatpush1.msra.mxu0 0.0
  %5803 = vmatprep.subr.mxu0 0.0
  %5804 = vmatpush1.msra.mxu0 0.0
  %5805 = vmatprep.subr.mxu0 0.0
  %5806 = vmatpush1.msra.mxu0 0.0
  %5807 = vmatprep.subr.mxu0 0.0
  %5808 = vmatpush1.msra.mxu0 0.0
  %5809 = vmatprep.subr.mxu0 0.0
  %5810 = vmatpush1.msra.mxu0 0.0
  %5811 = vmatprep.subr.mxu0 0.0
  %5812 = vmatpush1.msra.mxu0 0.0
  %5813 = vmatprep.subr.mxu0 0.0
  %5814 = vmatpush1.msra.mxu0 0.0
  %5815 = vmatprep.subr.mxu0 0.0
  %5816 = vmatpush1.msra.mxu0 0.0
  %5817 = vmatprep.subr.mxu0 0.0
  %5818 = vmatpush1.msra.mxu0 0.0
  %5819 = vmatprep.subr.mxu0 0.0
  %5820 = vmatpush1.msra.mxu0 0.0
  %5821 = vmatprep.subr.mxu0 0.0
  %5822 = vmatpush1.msra.mxu0 0.0
  %5823 = vmatprep.subr.mxu0 0.0
  %5824 = vmatpush1.msra.mxu0 0.0
  %5825 = vmatprep.subr.mxu0 0.0
  %5826 = vmatpush1.msra.mxu0 0.0
  %5827 = vmatprep.subr.mxu0 0.0
  %5828 = vmatpush1.msra.mxu0 0.0
  %5829 = vmatprep.mubr.f32.mxu0 0.0
  %5830 = vmatmul.mubr.f32.gmra.mrb[0].mxu0 %v5763
  %v5831 = vpop.f32.mrb[0].mxu0
  %v5832 = vadd.f32 %v5759, %v5831
  %v5833 = vpop.f32.mrb[0].mxu0
  %5834 = vdwg.mxu0
  %5835 = vmatprep.subr.mxu0 0.0
  %5836 = vmatpush1.msra.mxu0 %v242
  %5837 = vmatprep.subr.mxu0 0.0
  %5838 = vmatpush1.msra.mxu0 %v243
  %5839 = vmatprep.subr.mxu0 0.0
  %5840 = vmatpush1.msra.mxu0 %v244
  %5841 = vmatprep.subr.mxu0 0.0
  %5842 = vmatpush1.msra.mxu0 %v245
  %5843 = vmatprep.subr.mxu0 0.0
  %5844 = vmatpush1.msra.mxu0 0.0
  %5845 = vmatprep.subr.mxu0 0.0
  %5846 = vmatpush1.msra.mxu0 0.0
  %5847 = vmatprep.subr.mxu0 0.0
  %5848 = vmatpush1.msra.mxu0 0.0
  %5849 = vmatprep.subr.mxu0 0.0
  %5850 = vmatpush1.msra.mxu0 0.0
  %5851 = vmatprep.subr.mxu0 0.0
  %5852 = vmatpush1.msra.mxu0 0.0
  %5853 = vmatprep.subr.mxu0 0.0
  %5854 = vmatpush1.msra.mxu0 0.0
  %5855 = vmatprep.subr.mxu0 0.0
  %5856 = vmatpush1.msra.mxu0 0.0
  %5857 = vmatprep.subr.mxu0 0.0
  %5858 = vmatpush1.msra.mxu0 0.0
  %5859 = vmatprep.subr.mxu0 0.0
  %5860 = vmatpush1.msra.mxu0 0.0
  %5861 = vmatprep.subr.mxu0 0.0
  %5862 = vmatpush1.msra.mxu0 0.0
  %5863 = vmatprep.subr.mxu0 0.0
  %5864 = vmatpush1.msra.mxu0 0.0
  %5865 = vmatprep.subr.mxu0 0.0
  %5866 = vmatpush1.msra.mxu0 0.0
  %5867 = vmatprep.subr.mxu0 0.0
  %5868 = vmatpush1.msra.mxu0 0.0
  %5869 = vmatprep.subr.mxu0 0.0
  %5870 = vmatpush1.msra.mxu0 0.0
  %5871 = vmatprep.subr.mxu0 0.0
  %5872 = vmatpush1.msra.mxu0 0.0
  %5873 = vmatprep.subr.mxu0 0.0
  %5874 = vmatpush1.msra.mxu0 0.0
  %5875 = vmatprep.subr.mxu0 0.0
  %5876 = vmatpush1.msra.mxu0 0.0
  %5877 = vmatprep.subr.mxu0 0.0
  %5878 = vmatpush1.msra.mxu0 0.0
  %5879 = vmatprep.subr.mxu0 0.0
  %5880 = vmatpush1.msra.mxu0 0.0
  %5881 = vmatprep.subr.mxu0 0.0
  %5882 = vmatpush1.msra.mxu0 0.0
  %5883 = vmatprep.subr.mxu0 0.0
  %5884 = vmatpush1.msra.mxu0 0.0
  %5885 = vmatprep.subr.mxu0 0.0
  %5886 = vmatpush1.msra.mxu0 0.0
  %5887 = vmatprep.subr.mxu0 0.0
  %5888 = vmatpush1.msra.mxu0 0.0
  %5889 = vmatprep.subr.mxu0 0.0
  %5890 = vmatpush1.msra.mxu0 0.0
  %5891 = vmatprep.subr.mxu0 0.0
  %5892 = vmatpush1.msra.mxu0 0.0
  %5893 = vmatprep.subr.mxu0 0.0
  %5894 = vmatpush1.msra.mxu0 0.0
  %5895 = vmatprep.subr.mxu0 0.0
  %5896 = vmatpush1.msra.mxu0 0.0
  %5897 = vmatprep.subr.mxu0 0.0
  %5898 = vmatpush1.msra.mxu0 0.0
  %5899 = vmatprep.mubr.f32.mxu0 0.0
  %5900 = vmatmul.mubr.f32.gmra.mrb[0].mxu0 %v5142
  %v5901 = vpop.f32.mrb[0].mxu0
  %v5902 = vadd.f32 0.0, %v5901
  %v5903 = vpop.f32.mrb[0].mxu0
  %5904 = vdwg.mxu0
  %v5905 = vadd.f32 %v5832, %v5902
  %v5906 = vadd.f32 %v5905, %v324
  %v5907 = vxor.u32 %v5906, 2147483648
  %v5908 = vmul.f32 %v5907, 1.442695
  %v5909 = vpow.pop %v5908
  %v5910 = vadd.f32 %v5909, 1.0
  %v5911 = vrcp.pop %v5910
  %v5912 = vmul.f32 1.0, %v5911
  %v5913 = vtanh.pop %v5906
  %v5914 = vmul.f32 %v5912, %v5132
  %5916 = vrot.lane.b32.xlu0 %v5913, 64
  %v5917 = vpop.permute.xlu0 %5916
  %v5919 = vmul.f32 %v5912, %v5917
  %5921 = vrot.lane.b32.xlu0 %v5919, 32
  %v5922 = vpop.permute.xlu0 %5921
  %v5924 = vadd.f32 %v5914, %v5922
  %v5925 = vtanh.pop %v5924
  %5927 = vrot.lane.b32.xlu0 %v5925, 64
  %v5928 = vpop.permute.xlu0 %5927
  %v5930 = vmul.f32 %v5912, %v5928
  %5932 = vrot.lane.b32.xlu0 %v5930, 32
  %v5933 = vpop.permute.xlu0 %5932
  %v5934 = vsel %vm168, %v5933, 0
  %5936 = vmatprep.subr.mxu0 0.0
  %5937 = vmatpush1.msra.mxu0 %v355
  %5938 = vmatprep.subr.mxu0 0.0
  %5939 = vmatpush1.msra.mxu0 %v356
  %5940 = vmatprep.subr.mxu0 0.0
  %5941 = vmatpush1.msra.mxu0 %v357
  %5942 = vmatprep.subr.mxu0 0.0
  %5943 = vmatpush1.msra.mxu0 %v358
  %5944 = vmatprep.subr.mxu0 0.0
  %5945 = vmatpush1.msra.mxu0 0.0
  %5946 = vmatprep.subr.mxu0 0.0
  %5947 = vmatpush1.msra.mxu0 0.0
  %5948 = vmatprep.subr.mxu0 0.0
  %5949 = vmatpush1.msra.mxu0 0.0
  %5950 = vmatprep.subr.mxu0 0.0
  %5951 = vmatpush1.msra.mxu0 0.0
  %5952 = vmatprep.subr.mxu0 0.0
  %5953 = vmatpush1.msra.mxu0 0.0
  %5954 = vmatprep.subr.mxu0 0.0
  %5955 = vmatpush1.msra.mxu0 0.0
  %5956 = vmatprep.subr.mxu0 0.0
  %5957 = vmatpush1.msra.mxu0 0.0
  %5958 = vmatprep.subr.mxu0 0.0
  %5959 = vmatpush1.msra.mxu0 0.0
  %5960 = vmatprep.subr.mxu0 0.0
  %5961 = vmatpush1.msra.mxu0 0.0
  %5962 = vmatprep.subr.mxu0 0.0
  %5963 = vmatpush1.msra.mxu0 0.0
  %5964 = vmatprep.subr.mxu0 0.0
  %5965 = vmatpush1.msra.mxu0 0.0
  %5966 = vmatprep.subr.mxu0 0.0
  %5967 = vmatpush1.msra.mxu0 0.0
  %5968 = vmatprep.subr.mxu0 0.0
  %5969 = vmatpush1.msra.mxu0 0.0
  %5970 = vmatprep.subr.mxu0 0.0
  %5971 = vmatpush1.msra.mxu0 0.0
  %5972 = vmatprep.subr.mxu0 0.0
  %5973 = vmatpush1.msra.mxu0 0.0
  %5974 = vmatprep.subr.mxu0 0.0
  %5975 = vmatpush1.msra.mxu0 0.0
  %5976 = vmatprep.subr.mxu0 0.0
  %5977 = vmatpush1.msra.mxu0 0.0
  %5978 = vmatprep.subr.mxu0 0.0
  %5979 = vmatpush1.msra.mxu0 0.0
  %5980 = vmatprep.subr.mxu0 0.0
  %5981 = vmatpush1.msra.mxu0 0.0
  %5982 = vmatprep.subr.mxu0 0.0
  %5983 = vmatpush1.msra.mxu0 0.0
  %5984 = vmatprep.subr.mxu0 0.0
  %5985 = vmatpush1.msra.mxu0 0.0
  %5986 = vmatprep.subr.mxu0 0.0
  %5987 = vmatpush1.msra.mxu0 0.0
  %5988 = vmatprep.subr.mxu0 0.0
  %5989 = vmatpush1.msra.mxu0 0.0
  %5990 = vmatprep.subr.mxu0 0.0
  %5991 = vmatpush1.msra.mxu0 0.0
  %5992 = vmatprep.subr.mxu0 0.0
  %5993 = vmatpush1.msra.mxu0 0.0
  %5994 = vmatprep.subr.mxu0 0.0
  %5995 = vmatpush1.msra.mxu0 0.0
  %5996 = vmatprep.subr.mxu0 0.0
  %5997 = vmatpush1.msra.mxu0 0.0
  %5998 = vmatprep.subr.mxu0 0.0
  %5999 = vmatpush1.msra.mxu0 0.0
  %6000 = vmatprep.mubr.f32.mxu0 0.0
  %6001 = vmatmul.mubr.f32.gmra.mrb[0].mxu0 %v5934
  %v6002 = vpop.f32.mrb[0].mxu0
  %v6003 = vadd.f32 0.0, %v6002
  %v6004 = vpop.f32.mrb[0].mxu0
  %6005 = vdwg.mxu0
  %v6007 = vcombine.high %v6003, %v6003
  %v6009 = vunpack.c.l.s4 1966171168
  %v6010 = vunpack.c.0.s8 %v6009
  %v6011 = vlaneseq
  %v6012 = vshrl.u32 %v6011, 7
  %v6013 = vsub.s32 %v6010, %v6012
  %v6014 = vrot.slane %v6003, %v6013
  %v6016 = vunpack.c.l.s4 1966171168
  %v6017 = vunpack.c.0.s8 %v6016
  %v6018 = vlaneseq
  %v6019 = vshrl.u32 %v6018, 7
  %v6020 = vsub.s32 %v6017, %v6019
  %v6021 = vrot.slane %v6007, %v6020
  %v6022 = vcombine.high %v6014, %v6014
  %v6023 = vcombine.high %v6021, %v6021
  %v6025 = vunpack.c.l.s4 1966171168
  %v6026 = vunpack.c.0.s8 %v6025
  %v6027 = vlaneseq
  %v6028 = vshrl.u32 %v6027, 7
  %v6029 = vsub.s32 %v6026, %v6028
  %v6030 = vrot.slane %v6014, %v6029
  %v6032 = vunpack.c.l.s4 1966171168
  %v6033 = vunpack.c.0.s8 %v6032
  %v6034 = vlaneseq
  %v6035 = vshrl.u32 %v6034, 7
  %v6036 = vsub.s32 %v6033, %v6035
  %v6037 = vrot.slane %v6021, %v6036
  %v6039 = vunpack.c.l.s4 1966171168
  %v6040 = vunpack.c.0.s8 %v6039
  %v6041 = vlaneseq
  %v6042 = vshrl.u32 %v6041, 7
  %v6043 = vsub.s32 %v6040, %v6042
  %v6044 = vrot.slane %v6022, %v6043
  %v6046 = vunpack.c.l.s4 1966171168
  %v6047 = vunpack.c.0.s8 %v6046
  %v6048 = vlaneseq
  %v6049 = vshrl.u32 %v6048, 7
  %v6050 = vsub.s32 %v6047, %v6049
  %v6051 = vrot.slane %v6023, %v6050
  %v6052 = vcombine.high %v6030, %v6030
  %v6053 = vcombine.high %v6037, %v6037
  %v6054 = vcombine.high %v6044, %v6044
  %v6055 = vcombine.high %v6051, %v6051
  %v6056 = vlaneseq
  %v6057 = vshrl.u32 %v6056, 7
  %v6058 = vsub.s32 0, %v6057
  %v6059 = vrot.slane %v6030, %v6058
  %v6060 = vlaneseq
  %v6061 = vshrl.u32 %v6060, 7
  %v6062 = vsub.s32 0, %v6061
  %v6063 = vrot.slane %v6044, %v6062
  %v6064 = vlaneseq
  %v6065 = vshrl.u32 %v6064, 7
  %v6066 = vsub.s32 0, %v6065
  %v6067 = vrot.slane %v6052, %v6066
  %v6068 = vlaneseq
  %v6069 = vshrl.u32 %v6068, 7
  %v6070 = vsub.s32 0, %v6069
  %v6071 = vrot.slane %v6054, %v6070
  %v6072 = vlaneseq
  %v6073 = vshrl.u32 %v6072, 7
  %v6074 = vsub.s32 0, %v6073
  %v6075 = vrot.slane %v6037, %v6074
  %v6076 = vlaneseq
  %v6077 = vshrl.u32 %v6076, 7
  %v6078 = vsub.s32 0, %v6077
  %v6079 = vrot.slane %v6051, %v6078
  %v6080 = vlaneseq
  %v6081 = vshrl.u32 %v6080, 7
  %v6082 = vsub.s32 0, %v6081
  %v6083 = vrot.slane %v6053, %v6082
  %v6084 = vlaneseq
  %v6085 = vshrl.u32 %v6084, 7
  %v6086 = vsub.s32 0, %v6085
  %v6087 = vrot.slane %v6055, %v6086
  %v6096 = vadd.f32 %v66, %v6059
  %v6097 = vadd.f32 %v67, %v6063
  %v6098 = vadd.f32 %v68, %v6067
  %v6099 = vadd.f32 %v69, %v6071
  %v6100 = vadd.f32 %v70, %v6075
  %v6101 = vadd.f32 %v71, %v6079
  %v6102 = vadd.f32 %v72, %v6083
  %v6103 = vadd.f32 %v73, %v6087
  %v6104 = vtanh.pop %v6096
  %v6105 = vtanh.pop %v6097
  %v6106 = vtanh.pop %v6098
  %v6107 = vtanh.pop %v6099
  %v6108 = vtanh.pop %v6100
  %v6109 = vtanh.pop %v6101
  %v6110 = vtanh.pop %v6102
  %v6111 = vtanh.pop %v6103
  %v6112 = vmul.f32 %v6104, %v544
  %v6113 = vmul.f32 %v6105, %v544
  %v6114 = vmul.f32 %v6106, %v544
  %v6115 = vmul.f32 %v6107, %v544
  %v6116 = vmul.f32 %v6108, %v544
  %v6117 = vmul.f32 %v6109, %v544
  %v6118 = vmul.f32 %v6110, %v544
  %v6119 = vmul.f32 %v6111, %v544
  %v6120 = vsel %vm168, %v6112, 0.0
  %6121 = vadd.xlane.f32.xlu0 %v6120
  %v6122 = vpop.xlane.xlu0 %6121
  %v6123 = vsel %vm168, %v6113, 0.0
  %6124 = vadd.xlane.f32.xlu0 %v6123
  %v6125 = vpop.xlane.xlu0 %6124
  %v6126 = vsel %vm168, %v6114, 0.0
  %6127 = vadd.xlane.f32.xlu0 %v6126
  %v6128 = vpop.xlane.xlu0 %6127
  %v6129 = vsel %vm168, %v6115, 0.0
  %6130 = vadd.xlane.f32.xlu0 %v6129
  %v6131 = vpop.xlane.xlu0 %6130
  %v6132 = vsel %vm168, %v6116, 0.0
  %6133 = vadd.xlane.f32.xlu0 %v6132
  %v6134 = vpop.xlane.xlu0 %6133
  %v6135 = vsel %vm168, %v6117, 0.0
  %6136 = vadd.xlane.f32.xlu0 %v6135
  %v6137 = vpop.xlane.xlu0 %6136
  %v6138 = vsel %vm168, %v6118, 0.0
  %6139 = vadd.xlane.f32.xlu0 %v6138
  %v6140 = vpop.xlane.xlu0 %6139
  %v6141 = vsel %vm168, %v6119, 0.0
  %6142 = vadd.xlane.f32.xlu0 %v6141
  %v6143 = vpop.xlane.xlu0 %6142
  %v6152 = vlaneseq
  %v6153 = vshrl.u32 %v6152, 7
  %v6154 = vsub.s32 %v587, %v6153
  %v6155 = vrot.slane %v6122, %v6154
  %v6156 = vlaneseq
  %v6157 = vshrl.u32 %v6156, 7
  %v6158 = vsub.s32 %v587, %v6157
  %v6159 = vrot.slane %v6125, %v6158
  %v6160 = vlaneseq
  %v6161 = vshrl.u32 %v6160, 7
  %v6162 = vsub.s32 %v587, %v6161
  %v6163 = vrot.slane %v6128, %v6162
  %v6164 = vlaneseq
  %v6165 = vshrl.u32 %v6164, 7
  %v6166 = vsub.s32 %v587, %v6165
  %v6167 = vrot.slane %v6131, %v6166
  %v6168 = vlaneseq
  %v6169 = vshrl.u32 %v6168, 7
  %v6170 = vsub.s32 %v587, %v6169
  %v6171 = vrot.slane %v6134, %v6170
  %v6172 = vlaneseq
  %v6173 = vshrl.u32 %v6172, 7
  %v6174 = vsub.s32 %v587, %v6173
  %v6175 = vrot.slane %v6137, %v6174
  %v6176 = vlaneseq
  %v6177 = vshrl.u32 %v6176, 7
  %v6178 = vsub.s32 %v587, %v6177
  %v6179 = vrot.slane %v6140, %v6178
  %v6180 = vlaneseq
  %v6181 = vshrl.u32 %v6180, 7
  %v6182 = vsub.s32 %v587, %v6181
  %v6183 = vrot.slane %v6143, %v6182
  %v6184 = vsel %vm620, %v6159, %v6155
  %v6185 = vsel %vm622, %v6163, %v6184
  %v6186 = vsel %vm624, %v6167, %v6185
  %v6187 = vsel %vm626, %v6171, %v6186
  %v6188 = vsel %vm628, %v6175, %v6187
  %v6189 = vsel %vm630, %v6179, %v6188
  %v6190 = vsel %vm632, %v6183, %v6189
  %v6192 = vsel %vm75, -1e+09, %v6190
  %v6193 = vsel %vm636, %v6192, -inf
  %6194 = vmax.xlane.f32.xlu0 %v6193
  %v6195 = vpop.xlane.xlu0 %6194
  %v6196 = vsub.f32 %v6192, %v6195
  %v6197 = vmul.f32 %v6196, 1.442695
  %v6198 = vpow.pop %v6197
  %v6199 = vsel %vm636, %v6198, 0.0
  %6200 = vadd.xlane.f32.xlu0 %v6199
  %v6201 = vpop.xlane.xlu0 %6200
  %v6202 = vrcp.pop %v6201
  %v6203 = vmul.f32 %v6198, %v6202
  %v6204 = vlaneseq
  %v6205 = vshrl.u32 %v6204, 7
  %v6206 = vsub.s32 0, %v6205
  %v6207 = vrot.slane %v6203, %v6206
  %6209 = vbcast.lane.b32.xlu0 %v6207, 256
  %v6210 = vpop.permute.xlu0 %6209
  %v6211 = vlaneseq
  %v6212 = vshrl.u32 %v6211, 7
  %v6213 = vsub.s32 1, %v6212
  %v6214 = vrot.slane %v6203, %v6213
  %6216 = vbcast.lane.b32.xlu0 %v6214, 256
  %v6217 = vpop.permute.xlu0 %6216
  %v6218 = vlaneseq
  %v6219 = vshrl.u32 %v6218, 7
  %v6220 = vsub.s32 2, %v6219
  %v6221 = vrot.slane %v6203, %v6220
  %6223 = vbcast.lane.b32.xlu0 %v6221, 256
  %v6224 = vpop.permute.xlu0 %6223
  %v6225 = vlaneseq
  %v6226 = vshrl.u32 %v6225, 7
  %v6227 = vsub.s32 3, %v6226
  %v6228 = vrot.slane %v6203, %v6227
  %6230 = vbcast.lane.b32.xlu0 %v6228, 256
  %v6231 = vpop.permute.xlu0 %6230
  %v6232 = vlaneseq
  %v6233 = vshrl.u32 %v6232, 7
  %v6234 = vsub.s32 4, %v6233
  %v6235 = vrot.slane %v6203, %v6234
  %6237 = vbcast.lane.b32.xlu0 %v6235, 256
  %v6238 = vpop.permute.xlu0 %6237
  %v6239 = vlaneseq
  %v6240 = vshrl.u32 %v6239, 7
  %v6241 = vsub.s32 5, %v6240
  %v6242 = vrot.slane %v6203, %v6241
  %6244 = vbcast.lane.b32.xlu0 %v6242, 256
  %v6245 = vpop.permute.xlu0 %6244
  %v6246 = vlaneseq
  %v6247 = vshrl.u32 %v6246, 7
  %v6248 = vsub.s32 6, %v6247
  %v6249 = vrot.slane %v6203, %v6248
  %6251 = vbcast.lane.b32.xlu0 %v6249, 256
  %v6252 = vpop.permute.xlu0 %6251
  %v6253 = vlaneseq
  %v6254 = vshrl.u32 %v6253, 7
  %v6255 = vsub.s32 7, %v6254
  %v6256 = vrot.slane %v6203, %v6255
  %6258 = vbcast.lane.b32.xlu0 %v6256, 256
  %v6259 = vpop.permute.xlu0 %6258
  %v6260 = vmul.f32 %v6210, %v58
  %v6261 = vmul.f32 %v6217, %v59
  %v6262 = vmul.f32 %v6224, %v60
  %v6263 = vmul.f32 %v6231, %v61
  %v6264 = vmul.f32 %v6238, %v62
  %v6265 = vmul.f32 %v6245, %v63
  %v6266 = vmul.f32 %v6252, %v64
  %v6267 = vmul.f32 %v6259, %v65
  %v6268 = vsel %vm94, %v6260, 0.0
  %v6269 = vrot.slane %v6268, 4
  %v6270 = vadd.f32 %v6268, %v6269
  %v6271 = vrot.slane %v6270, 2
  %v6272 = vadd.f32 %v6270, %v6271
  %v6273 = vrot.slane %v6272, 1
  %v6274 = vadd.f32 %v6272, %v6273
  %v6275 = vsel %vm94, %v6261, 0.0
  %v6276 = vrot.slane %v6275, 4
  %v6277 = vadd.f32 %v6275, %v6276
  %v6278 = vrot.slane %v6277, 2
  %v6279 = vadd.f32 %v6277, %v6278
  %v6280 = vrot.slane %v6279, 1
  %v6281 = vadd.f32 %v6279, %v6280
  %v6282 = vsel %vm94, %v6262, 0.0
  %v6283 = vrot.slane %v6282, 4
  %v6284 = vadd.f32 %v6282, %v6283
  %v6285 = vrot.slane %v6284, 2
  %v6286 = vadd.f32 %v6284, %v6285
  %v6287 = vrot.slane %v6286, 1
  %v6288 = vadd.f32 %v6286, %v6287
  %v6289 = vsel %vm94, %v6263, 0.0
  %v6290 = vrot.slane %v6289, 4
  %v6291 = vadd.f32 %v6289, %v6290
  %v6292 = vrot.slane %v6291, 2
  %v6293 = vadd.f32 %v6291, %v6292
  %v6294 = vrot.slane %v6293, 1
  %v6295 = vadd.f32 %v6293, %v6294
  %v6296 = vsel %vm94, %v6264, 0.0
  %v6297 = vrot.slane %v6296, 4
  %v6298 = vadd.f32 %v6296, %v6297
  %v6299 = vrot.slane %v6298, 2
  %v6300 = vadd.f32 %v6298, %v6299
  %v6301 = vrot.slane %v6300, 1
  %v6302 = vadd.f32 %v6300, %v6301
  %v6303 = vsel %vm94, %v6265, 0.0
  %v6304 = vrot.slane %v6303, 4
  %v6305 = vadd.f32 %v6303, %v6304
  %v6306 = vrot.slane %v6305, 2
  %v6307 = vadd.f32 %v6305, %v6306
  %v6308 = vrot.slane %v6307, 1
  %v6309 = vadd.f32 %v6307, %v6308
  %v6310 = vsel %vm94, %v6266, 0.0
  %v6311 = vrot.slane %v6310, 4
  %v6312 = vadd.f32 %v6310, %v6311
  %v6313 = vrot.slane %v6312, 2
  %v6314 = vadd.f32 %v6312, %v6313
  %v6315 = vrot.slane %v6314, 1
  %v6316 = vadd.f32 %v6314, %v6315
  %v6317 = vsel %vm94, %v6267, 0.0
  %v6318 = vrot.slane %v6317, 4
  %v6319 = vadd.f32 %v6317, %v6318
  %v6320 = vrot.slane %v6319, 2
  %v6321 = vadd.f32 %v6319, %v6320
  %v6322 = vrot.slane %v6321, 1
  %v6323 = vadd.f32 %v6321, %v6322
  %v6332 = vsel %vm620, %v6281, %v6274
  %v6333 = vsel %vm622, %v6288, %v6332
  %v6334 = vsel %vm624, %v6295, %v6333
  %v6335 = vsel %vm626, %v6302, %v6334
  %v6336 = vsel %vm628, %v6309, %v6335
  %v6337 = vsel %vm630, %v6316, %v6336
  %v6338 = vsel %vm632, %v6323, %v6337
  %v6339 = vsel %vm94, %v6338, 0
  %6341 = vmatprep.subr.mxu0 0.0
  %6342 = vmatpush1.msra.mxu0 %v772
  %6343 = vmatprep.subr.mxu0 0.0
  %6344 = vmatpush1.msra.mxu0 %v773
  %6345 = vmatprep.subr.mxu0 0.0
  %6346 = vmatpush1.msra.mxu0 %v774
  %6347 = vmatprep.subr.mxu0 0.0
  %6348 = vmatpush1.msra.mxu0 %v775
  %6349 = vmatprep.subr.mxu0 0.0
  %6350 = vmatpush1.msra.mxu0 %v776
  %6351 = vmatprep.subr.mxu0 0.0
  %6352 = vmatpush1.msra.mxu0 %v777
  %6353 = vmatprep.subr.mxu0 0.0
  %6354 = vmatpush1.msra.mxu0 %v778
  %6355 = vmatprep.subr.mxu0 0.0
  %6356 = vmatpush1.msra.mxu0 %v779
  %6357 = vmatprep.subr.mxu0 0.0
  %6358 = vmatpush1.msra.mxu0 0.0
  %6359 = vmatprep.subr.mxu0 0.0
  %6360 = vmatpush1.msra.mxu0 0.0
  %6361 = vmatprep.subr.mxu0 0.0
  %6362 = vmatpush1.msra.mxu0 0.0
  %6363 = vmatprep.subr.mxu0 0.0
  %6364 = vmatpush1.msra.mxu0 0.0
  %6365 = vmatprep.subr.mxu0 0.0
  %6366 = vmatpush1.msra.mxu0 0.0
  %6367 = vmatprep.subr.mxu0 0.0
  %6368 = vmatpush1.msra.mxu0 0.0
  %6369 = vmatprep.subr.mxu0 0.0
  %6370 = vmatpush1.msra.mxu0 0.0
  %6371 = vmatprep.subr.mxu0 0.0
  %6372 = vmatpush1.msra.mxu0 0.0
  %6373 = vmatprep.subr.mxu0 0.0
  %6374 = vmatpush1.msra.mxu0 0.0
  %6375 = vmatprep.subr.mxu0 0.0
  %6376 = vmatpush1.msra.mxu0 0.0
  %6377 = vmatprep.subr.mxu0 0.0
  %6378 = vmatpush1.msra.mxu0 0.0
  %6379 = vmatprep.subr.mxu0 0.0
  %6380 = vmatpush1.msra.mxu0 0.0
  %6381 = vmatprep.subr.mxu0 0.0
  %6382 = vmatpush1.msra.mxu0 0.0
  %6383 = vmatprep.subr.mxu0 0.0
  %6384 = vmatpush1.msra.mxu0 0.0
  %6385 = vmatprep.subr.mxu0 0.0
  %6386 = vmatpush1.msra.mxu0 0.0
  %6387 = vmatprep.subr.mxu0 0.0
  %6388 = vmatpush1.msra.mxu0 0.0
  %6389 = vmatprep.subr.mxu0 0.0
  %6390 = vmatpush1.msra.mxu0 0.0
  %6391 = vmatprep.subr.mxu0 0.0
  %6392 = vmatpush1.msra.mxu0 0.0
  %6393 = vmatprep.subr.mxu0 0.0
  %6394 = vmatpush1.msra.mxu0 0.0
  %6395 = vmatprep.subr.mxu0 0.0
  %6396 = vmatpush1.msra.mxu0 0.0
  %6397 = vmatprep.subr.mxu0 0.0
  %6398 = vmatpush1.msra.mxu0 0.0
  %6399 = vmatprep.subr.mxu0 0.0
  %6400 = vmatpush1.msra.mxu0 0.0
  %6401 = vmatprep.subr.mxu0 0.0
  %6402 = vmatpush1.msra.mxu0 0.0
  %6403 = vmatprep.subr.mxu0 0.0
  %6404 = vmatpush1.msra.mxu0 0.0
  %6405 = vmatprep.mubr.f32.mxu0 0.0
  %6406 = vmatmul.mubr.f32.gmra.mrb[0].mxu0 %v6339
  %v6407 = vpop.f32.mrb[0].mxu0
  %v6408 = vadd.f32 0.0, %v6407
  %v6409 = vpop.f32.mrb[0].mxu0
  %6410 = vdwg.mxu0
  %6411 = vmatprep.subr.mxu0 0.0
  %6412 = vmatpush1.msra.mxu0 %v768
  %6413 = vmatprep.subr.mxu0 0.0
  %6414 = vmatpush1.msra.mxu0 %v769
  %6415 = vmatprep.subr.mxu0 0.0
  %6416 = vmatpush1.msra.mxu0 %v770
  %6417 = vmatprep.subr.mxu0 0.0
  %6418 = vmatpush1.msra.mxu0 %v771
  %6419 = vmatprep.subr.mxu0 0.0
  %6420 = vmatpush1.msra.mxu0 0.0
  %6421 = vmatprep.subr.mxu0 0.0
  %6422 = vmatpush1.msra.mxu0 0.0
  %6423 = vmatprep.subr.mxu0 0.0
  %6424 = vmatpush1.msra.mxu0 0.0
  %6425 = vmatprep.subr.mxu0 0.0
  %6426 = vmatpush1.msra.mxu0 0.0
  %6427 = vmatprep.subr.mxu0 0.0
  %6428 = vmatpush1.msra.mxu0 0.0
  %6429 = vmatprep.subr.mxu0 0.0
  %6430 = vmatpush1.msra.mxu0 0.0
  %6431 = vmatprep.subr.mxu0 0.0
  %6432 = vmatpush1.msra.mxu0 0.0
  %6433 = vmatprep.subr.mxu0 0.0
  %6434 = vmatpush1.msra.mxu0 0.0
  %6435 = vmatprep.subr.mxu0 0.0
  %6436 = vmatpush1.msra.mxu0 0.0
  %6437 = vmatprep.subr.mxu0 0.0
  %6438 = vmatpush1.msra.mxu0 0.0
  %6439 = vmatprep.subr.mxu0 0.0
  %6440 = vmatpush1.msra.mxu0 0.0
  %6441 = vmatprep.subr.mxu0 0.0
  %6442 = vmatpush1.msra.mxu0 0.0
  %6443 = vmatprep.subr.mxu0 0.0
  %6444 = vmatpush1.msra.mxu0 0.0
  %6445 = vmatprep.subr.mxu0 0.0
  %6446 = vmatpush1.msra.mxu0 0.0
  %6447 = vmatprep.subr.mxu0 0.0
  %6448 = vmatpush1.msra.mxu0 0.0
  %6449 = vmatprep.subr.mxu0 0.0
  %6450 = vmatpush1.msra.mxu0 0.0
  %6451 = vmatprep.subr.mxu0 0.0
  %6452 = vmatpush1.msra.mxu0 0.0
  %6453 = vmatprep.subr.mxu0 0.0
  %6454 = vmatpush1.msra.mxu0 0.0
  %6455 = vmatprep.subr.mxu0 0.0
  %6456 = vmatpush1.msra.mxu0 0.0
  %6457 = vmatprep.subr.mxu0 0.0
  %6458 = vmatpush1.msra.mxu0 0.0
  %6459 = vmatprep.subr.mxu0 0.0
  %6460 = vmatpush1.msra.mxu0 0.0
  %6461 = vmatprep.subr.mxu0 0.0
  %6462 = vmatpush1.msra.mxu0 0.0
  %6463 = vmatprep.subr.mxu0 0.0
  %6464 = vmatpush1.msra.mxu0 0.0
  %6465 = vmatprep.subr.mxu0 0.0
  %6466 = vmatpush1.msra.mxu0 0.0
  %6467 = vmatprep.subr.mxu0 0.0
  %6468 = vmatpush1.msra.mxu0 0.0
  %6469 = vmatprep.subr.mxu0 0.0
  %6470 = vmatpush1.msra.mxu0 0.0
  %6471 = vmatprep.subr.mxu0 0.0
  %6472 = vmatpush1.msra.mxu0 0.0
  %6473 = vmatprep.subr.mxu0 0.0
  %6474 = vmatpush1.msra.mxu0 0.0
  %6475 = vmatprep.mubr.f32.mxu0 0.0
  %6476 = vmatmul.mubr.f32.gmra.mrb[0].mxu0 %v5934
  %v6477 = vpop.f32.mrb[0].mxu0
  %v6478 = vadd.f32 %v6408, %v6477
  %v6479 = vpop.f32.mrb[0].mxu0
  %6480 = vdwg.mxu0
  %v6481 = vtanh.pop %v6478
  %6483 = vrot.lane.b32.xlu0 %v1729, 32
  %v6484 = vpop.permute.xlu0 %6483
  %6487 = vrot.lane.b32.xlu0 %v2521, 64
  %v6488 = vpop.permute.xlu0 %6487
  %6491 = vrot.lane.b32.xlu0 %v3313, 96
  %v6492 = vpop.permute.xlu0 %6491
  %6495 = vrot.lane.b32.xlu0 %v4897, 32
  %v6496 = vpop.permute.xlu0 %6495
  %6499 = vrot.lane.b32.xlu0 %v5689, 64
  %v6500 = vpop.permute.xlu0 %6499
  %6503 = vrot.lane.b32.xlu0 %v6481, 96
  %v6504 = vpop.permute.xlu0 %6503
  %v6506 = vsel %vm168, %v937, %v6484
  %v6507 = vsel %vm94, %v6506, %v6488
  %vm6508 = vcmask 785408
  %v6509 = vsel %vm6508, %v6507, %v6492
  %v6510 = vsel %vm168, %v4105, %v6496
  %v6511 = vsel %vm94, %v6510, %v6500
  %v6512 = vsel %vm6508, %v6511, %v6504
  %6513 = vst [vmem:[%s14] sm:$0xff] %v6509
  %6514 = vst [vmem:[%s14 + $0x8] sm:$0xff] %v6512
  %6516 = vst.msk [vmem:[#allocation2] sm:$0xff] %vm168, %v5933
  %6518 = vrot.lane.b32.xlu0 %v5924, 96
  %v6519 = vpop.permute.xlu0 %6518
  %6521 = vst.msk [vmem:[#allocation3] sm:$0xff] %vm168, %v6519
  %6523 = vst.msk [vmem:[#allocation4] sm:$0xff] %vm94, %v6338
  // Predicated region
  $region62: #{decoder_forward.2} parent=0 // pred_check
    _
  $region63: #{decoder_forward.2} parent=0 // pred_check_branch
    %6525 = sbr.rel (0) target = $region65
  $region64: #{decoder_forward.2} parent=0 // pred_region
    _
  $region65: #{decoder_forward.2} parent=0 // pred_fallthru
    _
  // Predicated region
  $region66: #{decoder_forward.2} parent=0 // pred_check
    _
  $region67: #{decoder_forward.2} parent=0 // pred_check_branch
    %6527 = sbr.rel (0) target = $region69
  $region68: #{decoder_forward.2} parent=0 // pred_region
    _
  $region69: #{decoder_forward.2} parent=0 // pred_fallthru
    _

</llo_original>
